<compile_context>
chip_gen: v7x
topology: tpu7x:2x2x1
jax: 0.10.0
libtpu: 0.0.40
codegen_flags: <defaults>
</compile_context>

<pallas_src>
import jax
import jax.numpy as jnp
from jax.experimental import pallas as pl
from jax.experimental.pallas import tpu as pltpu


# ----------------------------- constants / helpers ---------------------------

TOTAL_FEATS = 10194          # 1 rate + 25 genre + 2186 director + 7978 actor + 4 user idx
LKP_BLOCK = 128              # each single-index table zero-padded to 128 rows
GENRE_PAD = 128              # 25   -> 128
DIRECTOR_PAD = 2304          # 2186 -> 2304
ACTOR_PAD = 8064             # 7978 -> 8064
SUM_LANE = 127               # the ones (row-sum) column of every fused multi-hot weight
ALIGN = 32                   # int8 inputs: keep batch tiles 32-row aligned


def _round_up(n, m):
    return ((n + m - 1) // m) * m


def _pad_cols(a, target):
    return jnp.pad(a, ((0, 0), (0, target - a.shape[1])))


def _vmem_capacity_bytes():
    """Best-effort hardware query; conservative (v7x-sized) fallback."""
    try:
        info = pltpu.get_tpu_info()
        for name in ("vmem_capacity_bytes", "vmem_bytes", "vmem_size_bytes"):
            v = getattr(info, name, None)
            if v:
                return int(v)
    except Exception:
        pass
    return 64 << 20


def _select_tiling(B):
    """(batch tile, vmem_limit_bytes) tuned per TPU generation."""
    if _vmem_capacity_bytes() >= (100 << 20):
        # v5e / v6e: 128 MiB VMEM, single TensorCore -> big mem-bound tiles.
        tb = min(512, _round_up(B, ALIGN))
        vmem_limit = 64 << 20
    else:
        # v7x: 64 MiB VMEM, 2 TensorCores -> aim for >=2 grid steps on big B.
        tb = min(256, _round_up(pl.cdiv(B, 2), ALIGN))
        vmem_limit = 32 << 20
    return tb, vmem_limit


# ----------------------------- the Pallas kernel ------------------------------

def upe_kernel(idx_ref, genre_ref, director_ref, actor_ref,
               lkp_fw_ref, genre_fw_ref, director_fw_ref, actor_fw_ref,
               w2_ref, w3_ref, bias_ref, out_ref):
    tb = idx_ref.shape[0]

    # ---- 5 single-index embeddings; fc1 row-blocks are pre-fused into the
    #      stacked bf16 table, one-hot built per 128-row block in bf16. ----
    # (Out-of-range indices silently contribute a wrong/zero row, like v1/v2;
    #  real MeLU data is always in range.)
    idx = idx_ref[...]                                             # (tb, 8) int32, cols 0..4 used
    pos = jax.lax.broadcasted_iota(jnp.int32, (tb, LKP_BLOCK), 1)
    h = jnp.zeros((tb, 128), jnp.float32)
    for j in range(5):
        oh = (pos == idx[:, j:j + 1]).astype(jnp.bfloat16)         # exact one-hot, bf16
        h = h + jnp.dot(oh, lkp_fw_ref[j * LKP_BLOCK:(j + 1) * LKP_BLOCK, :],
                        preferred_element_type=jnp.float32)

    # ---- 3 multi-hot embeddings: int8 inputs cast to bf16 right before the
    #      dot; fused weight is [W @ fc1_block | 0 ... | ones@lane127], so one
    #      bf16 matmul gives both the fc1 contribution and the row sum. ----
    def multi_hot(x_ref, w_ref):
        x = x_ref[...].astype(jnp.bfloat16)                        # int8 (0/1) -> bf16, exact
        e = jnp.dot(x, w_ref[...], preferred_element_type=jnp.float32)   # (tb, 128)
        s = e[:, SUM_LANE:SUM_LANE + 1]                            # row sum via ones column
        # Guard: an all-zero group gives e == 0, so e * (1/eps) stays 0 (torch
        # would produce inf/nan here).
        r = pl.reciprocal(jnp.maximum(s, 1e-20), approx=True)      # EUP slot, ~free
        return e * r                                               # junk lanes killed by zero w2 rows

    h = h + multi_hot(genre_ref, genre_fw_ref)
    h = h + multi_hot(director_ref, director_fw_ref)
    h = h + multi_hot(actor_ref, actor_fw_ref)

    h = jnp.maximum(h + bias_ref[0:1, :], 0.0)                     # fc1 bias + relu (128 lanes)
    h = jnp.dot(h, w2_ref[...], preferred_element_type=jnp.float32)
    h = jnp.maximum(h + bias_ref[1:2, :], 0.0)                     # fc2 bias + relu (128 lanes)

    # linear_out: w3 padded to (128, 8); column 0 carries the prediction.
    out_ref[...] = (jnp.dot(h, w3_ref[...], preferred_element_type=jnp.float32)
                    + bias_ref[2:3, 0:8])


# ----------------------------- parameter preparation --------------------------

def init_raw_params(key, config):
    """Torch-layout-equivalent f32 parameters (weights stored (in, out))."""
    D = config["embedding_dim"]
    H1 = config["first_fc_hidden_dim"]
    H2 = config["second_fc_hidden_dim"]
    ks = jax.random.split(key, 11)

    def emb(k, n):
        return jax.random.normal(k, (n, D), jnp.float32) * 0.1

    def lin_w(k, fin, fout):
        bound = fin ** -0.5
        return jax.random.uniform(k, (fin, fout), jnp.float32, -bound, bound)

    def lin(k, fin, fout):
        bound = fin ** -0.5
        kw, kb = jax.random.split(k)
        w = jax.random.uniform(kw, (fin, fout), jnp.float32, -bound, bound)
        b = jax.random.uniform(kb, (fout,), jnp.float32, -bound, bound)
        return w, b

    w1, b1 = lin(ks[8], 8 * D, H1)
    w2, b2 = lin(ks[9], H1, H2)
    w3, b3 = lin(ks[10], H2, 1)
    return {
        "rate_tbl": emb(ks[0], config["num_rate"]),
        "genre_w": lin_w(ks[1], 25, D),
        "director_w": lin_w(ks[2], 2186, D),
        "actor_w": lin_w(ks[3], 7978, D),
        "gender_tbl": emb(ks[4], config["num_gender"]),
        "age_tbl": emb(ks[5], config["num_age"]),
        "occ_tbl": emb(ks[6], config["num_occupation"]),
        "area_tbl": emb(ks[7], config["num_zipcode"]),
        "w1": w1, "b1": b1, "w2": w2, "b2": b2, "w3": w3, "b3": b3,
    }


def prepare_kernel_params(raw, config):
    """Fuse fc1 into the embedding weights, add ones column at lane 127,
    pad every weight to 128 lanes, cast the big tables to bf16."""
    D = config["embedding_dim"]
    H1 = config["first_fc_hidden_dim"]
    H2 = config["second_fc_hidden_dim"]
    assert H1 <= SUM_LANE and H2 <= 128
    w1 = raw["w1"]                                   # (8*D, H1)

    def w1_block(slot):
        return w1[slot * D:(slot + 1) * D, :]

    def fused_lookup(tbl, slot):
        assert tbl.shape[0] <= LKP_BLOCK
        f = tbl @ w1_block(slot)                                     # (n, H1)
        return jnp.pad(f, ((0, LKP_BLOCK - tbl.shape[0]), (0, 128 - H1)))  # (128, 128)

    # concat order in torch: rate, genre, director, actor, gender, age, occ, area
    lookup_fw = jnp.concatenate([
        fused_lookup(raw["rate_tbl"], 0),
        fused_lookup(raw["gender_tbl"], 4),
        fused_lookup(raw["age_tbl"], 5),
        fused_lookup(raw["occ_tbl"], 6),
        fused_lookup(raw["area_tbl"], 7),
    ], axis=0).astype(jnp.bfloat16)                                  # (640, 128) bf16

    def fused_multihot(w, slot, pad_rows):
        f = w @ w1_block(slot)                                       # (n, H1) f32
        f = jnp.pad(f, ((0, 0), (0, 128 - H1)))                      # (n, 128) lane-dense
        f = f.at[:, SUM_LANE].set(1.0)                               # ones column (row-sum)
        f = jnp.pad(f, ((0, pad_rows - w.shape[0]), (0, 0)))         # (pad_rows, 128)
        return f.astype(jnp.bfloat16)                                # halves weight DMA

    bias = jnp.zeros((8, 128), jnp.float32)
    bias = bias.at[0, :H1].set(raw["b1"])
    bias = bias.at[1, :H2].set(raw["b2"])
    bias = bias.at[2, 0].set(raw["b3"][0])

    w2_pad = jnp.zeros((128, 128), jnp.float32).at[:H1, :H2].set(raw["w2"])
    w3_pad = jnp.zeros((128, 8), jnp.float32).at[:H2, 0].set(raw["w3"][:, 0])

    return {
        "lookup_fw": lookup_fw,
        "genre_fw": fused_multihot(raw["genre_w"], 1, GENRE_PAD),
        "director_fw": fused_multihot(raw["director_w"], 2, DIRECTOR_PAD),
        "actor_fw": fused_multihot(raw["actor_w"], 3, ACTOR_PAD),
        "w2_pad": w2_pad,
        "w3_pad": w3_pad,
        "bias": bias,
    }


# ----------------------------- wrapper ----------------------------------------

def estimator_forward(kparams, x):
    """user_preference_estimator.forward on a (B, 10194) int feature matrix."""
    assert x.shape[1] == TOTAL_FEATS
    B = x.shape[0]
    xi = x.astype(jnp.int32)

    # Column slicing + packing (plain-JAX glue, mirrors the torch forward).
    idx = jnp.concatenate([
        xi[:, 0:1],                                  # rate       -> block 0
        xi[:, 10190:10191],                          # gender     -> block 1
        xi[:, 10191:10192],                          # age        -> block 2
        xi[:, 10192:10193],                          # occupation -> block 3
        xi[:, 10193:10194],                          # area       -> block 4
        jnp.zeros((B, 3), jnp.int32),                # unused lanes
    ], axis=1)                                       # (B, 8) int32
    # Multi-hot features are exact 0/1 -> ship as int8, cast in-kernel.
    genre = _pad_cols(xi[:, 1:26], GENRE_PAD).astype(jnp.int8)
    director = _pad_cols(xi[:, 26:2212], DIRECTOR_PAD).astype(jnp.int8)
    actor = _pad_cols(xi[:, 2212:10190], ACTOR_PAD).astype(jnp.int8)

    TB, vmem_limit = _select_tiling(B)
    B_pad = _round_up(B, TB)

    def pad_b(a):
        return a if a.shape[0] == B_pad else jnp.pad(a, ((0, B_pad - a.shape[0]), (0, 0)))

    idx, genre, director, actor = map(pad_b, (idx, genre, director, actor))

    def bspec(cols):
        return pl.BlockSpec((TB, cols), lambda i: (i, 0))

    def wspec(a):   # weights: full-array block, resident across the batch grid
        return pl.BlockSpec(a.shape, lambda i: (0, 0))

    weights = [kparams["lookup_fw"], kparams["genre_fw"], kparams["director_fw"],
               kparams["actor_fw"], kparams["w2_pad"], kparams["w3_pad"], kparams["bias"]]

    out = pl.pallas_call(
        upe_kernel,
        out_shape=jax.ShapeDtypeStruct((B_pad, 8), jnp.float32),
        grid_spec=pltpu.PrefetchScalarGridSpec(
            num_scalar_prefetch=0,
            grid=(B_pad // TB,),
            in_specs=[bspec(idx.shape[1]), bspec(GENRE_PAD),
                      bspec(DIRECTOR_PAD), bspec(ACTOR_PAD)]
                     + [wspec(w) for w in weights],
            out_specs=pl.BlockSpec((TB, 8), lambda i: (i, 0)),
        ),
        compiler_params=pltpu.CompilerParams(
            dimension_semantics=("parallel",),
            vmem_limit_bytes=vmem_limit),
    )(idx, genre, director, actor, *weights)

    return out[:B, 0:1]


def melu_forward(kparams, support_set_x, support_set_y, query_set_x, num_local_update):
    """MeLU.forward -> local_model(query_set_x, local_update=True)."""
    # TODO(synk): the MAML inner loop (num_local_update Adam steps of MSE on the
    # support set via autograd) is training dynamics with no clean Pallas
    # equivalent; only the num_local_update == 0 forward path is kernelized.
    del support_set_x, support_set_y, num_local_update
    return estimator_forward(kparams, query_set_x)


# ----------------------------- pure-JAX reference ------------------------------

def reference_forward(raw, x):
    x = x.astype(jnp.int32)
    genre = x[:, 1:26].astype(jnp.float32)
    director = x[:, 26:2212].astype(jnp.float32)
    actor = x[:, 2212:10190].astype(jnp.float32)
    rate_e = raw["rate_tbl"][x[:, 0]]
    genre_e = genre @ raw["genre_w"] / genre.sum(1, keepdims=True)
    director_e = director @ raw["director_w"] / director.sum(1, keepdims=True)
    actor_e = actor @ raw["actor_w"] / actor.sum(1, keepdims=True)
    gender_e = raw["gender_tbl"][x[:, 10190]]
    age_e = raw["age_tbl"][x[:, 10191]]
    occ_e = raw["occ_tbl"][x[:, 10192]]
    area_e = raw["area_tbl"][x[:, 10193]]
    feats = jnp.concatenate([rate_e, genre_e, director_e, actor_e,
                             gender_e, age_e, occ_e, area_e], axis=1)
    h = jax.nn.relu(feats @ raw["w1"] + raw["b1"])
    h = jax.nn.relu(h @ raw["w2"] + raw["b2"])
    return h @ raw["w3"] + raw["b3"]


# ----------------------------- deterministic inputs ----------------------------

def make_inputs(key, B, config):
    ks = jax.random.split(key, 8)

    def multihot(k, n, p):
        m = jax.random.bernoulli(k, p, (B, n)).astype(jnp.int32)
        return m.at[:, 0].set(1)          # guarantee nonzero row sums

    rate = jax.random.randint(ks[0], (B, 1), 0, config["num_rate"], jnp.int32)
    genre = multihot(ks[1], 25, 0.2)
    director = multihot(ks[2], 2186, 0.002)
    actor = multihot(ks[3], 7978, 0.001)
    gender = jax.random.randint(ks[4], (B, 1), 0, config["num_gender"], jnp.int32)
    age = jax.random.randint(ks[5], (B, 1), 0, config["num_age"], jnp.int32)
    occ = jax.random.randint(ks[6], (B, 1), 0, config["num_occupation"], jnp.int32)
    area = jax.random.randint(ks[7], (B, 1), 0, config["num_zipcode"], jnp.int32)
    x = jnp.concatenate([rate, genre, director, actor, gender, age, occ, area], axis=1)
    assert x.shape == (B, TOTAL_FEATS)
    return x


# ----------------------------- main --------------------------------------------

if __name__ == "__main__":
    config = {
        "embedding_dim": 32,
        "first_fc_hidden_dim": 64,
        "second_fc_hidden_dim": 64,
        "num_rate": 6,
        "num_gender": 2,
        "num_age": 7,
        "num_occupation": 21,
        "num_zipcode": 100,
        "use_cuda": False,
        "lr": 5e-5,
        "local_lr": 5e-6,
    }

    k_params, k_sup, k_qry, k_y = jax.random.split(jax.random.PRNGKey(0), 4)
    raw_params = init_raw_params(k_params, config)
    kparams = prepare_kernel_params(raw_params, config)

    B = 8
    support_set_x = make_inputs(k_sup, B, config)
    support_set_y = jax.random.uniform(k_y, (B,), jnp.float32, 1.0, 5.0)
    query_set_x = make_inputs(k_qry, B, config)

    pred = melu_forward(kparams, support_set_x, support_set_y, query_set_x,
                        num_local_update=0)
    pred = jax.block_until_ready(pred)

    ref = reference_forward(raw_params, query_set_x)
    assert pred.shape == (B, 1) and pred.dtype == jnp.float32
    assert bool(jnp.all(jnp.isfinite(pred)))
    assert bool(jnp.allclose(pred, ref, rtol=3e-2, atol=1e-2)), (
        f"max abs diff {float(jnp.max(jnp.abs(pred - ref)))}")
    print("KERNEL_OK")
</pallas_src>

<mosaic_0001>
module attributes {stable_mosaic.version = 11 : i64} {
  func.func @upe_kernel(%arg0: i32, %arg1: memref<32x8xi32, #tpu.memory_space<vmem>>, %arg2: memref<32x128xi8, #tpu.memory_space<vmem>>, %arg3: memref<32x2304xi8, #tpu.memory_space<vmem>>, %arg4: memref<32x8064xi8, #tpu.memory_space<vmem>>, %arg5: memref<640x128xbf16, #tpu.memory_space<vmem>>, %arg6: memref<128x128xbf16, #tpu.memory_space<vmem>>, %arg7: memref<2304x128xbf16, #tpu.memory_space<vmem>>, %arg8: memref<8064x128xbf16, #tpu.memory_space<vmem>>, %arg9: memref<128x128xf32, #tpu.memory_space<vmem>>, %arg10: memref<128x8xf32, #tpu.memory_space<vmem>>, %arg11: memref<8x128xf32, #tpu.memory_space<vmem>>, %arg12: memref<32x8xf32, #tpu.memory_space<vmem>>) attributes {dimension_semantics = [#tpu.dimension_semantics<parallel>], iteration_bounds = array<i64: 1>, scalar_prefetch = 0 : i64, scratch_operands = 0 : i64, tpu.core_type = #tpu.core_type<tc>, window_params = [{transform_indices = @transform_0, window_bounds = array<i64: 32, 8>}, {transform_indices = @transform_1, window_bounds = array<i64: 32, 128>}, {transform_indices = @transform_2, window_bounds = array<i64: 32, 2304>}, {transform_indices = @transform_3, window_bounds = array<i64: 32, 8064>}, {pipeline_mode = #tpu.pipeline_mode<synchronous>, transform_indices = @transform_4, window_bounds = array<i64: 640, 128>}, {pipeline_mode = #tpu.pipeline_mode<synchronous>, transform_indices = @transform_5, window_bounds = array<i64: 128, 128>}, {pipeline_mode = #tpu.pipeline_mode<synchronous>, transform_indices = @transform_6, window_bounds = array<i64: 2304, 128>}, {pipeline_mode = #tpu.pipeline_mode<synchronous>, transform_indices = @transform_7, window_bounds = array<i64: 8064, 128>}, {pipeline_mode = #tpu.pipeline_mode<synchronous>, transform_indices = @transform_8, window_bounds = array<i64: 128, 128>}, {pipeline_mode = #tpu.pipeline_mode<synchronous>, transform_indices = @transform_9, window_bounds = array<i64: 128, 8>}, {pipeline_mode = #tpu.pipeline_mode<synchronous>, transform_indices = @transform_10, window_bounds = array<i64: 8, 128>}, {transform_indices = @transform_11, window_bounds = array<i64: 32, 8>}]} {
    %c0 = arith.constant 0 : index
    %c0_0 = arith.constant 0 : index
    %0 = vector.load %arg1[%c0, %c0_0] : memref<32x8xi32, #tpu.memory_space<vmem>>, vector<32x8xi32>
    %1 = tpu.iota {dimensions = array<i32: 1>} : vector<32x128xi32>
    %cst = arith.constant 0.000000e+00 : f32
    %2 = vector.broadcast %cst : f32 to vector<32x128xf32>
    %3 = vector.extract_strided_slice %0 {offsets = [0, 0], sizes = [32, 1], strides = [1, 1]} : vector<32x8xi32> to vector<32x1xi32>
    %4 = vector.broadcast %3 : vector<32x1xi32> to vector<32x128xi32>
    %5 = arith.cmpi eq, %1, %4 : vector<32x128xi32>
    %6 = arith.extui %5 : vector<32x128xi1> to vector<32x128xi32>
    %7 = arith.sitofp %6 : vector<32x128xi32> to vector<32x128xf32>
    %8 = arith.truncf %7 : vector<32x128xf32> to vector<32x128xbf16>
    %c0_1 = arith.constant 0 : index
    %c0_2 = arith.constant 0 : index
    %9 = vector.load %arg5[%c0_1, %c0_2] : memref<640x128xbf16, #tpu.memory_space<vmem>>, vector<128x128xbf16>
    %cst_3 = arith.constant dense<0.000000e+00> : vector<32x128xf32>
    %10 = tpu.matmul %8, %9, %cst_3 {dimension_numbers = #tpu.dot_dimension_numbers<[1], [0], [0], [1], [0, 0, 1, 1], [], []>} : vector<32x128xbf16>, vector<128x128xbf16>, vector<32x128xf32> -> vector<32x128xf32>
    %11 = arith.addf %2, %10 : vector<32x128xf32>
    %12 = vector.extract_strided_slice %0 {offsets = [0, 1], sizes = [32, 1], strides = [1, 1]} : vector<32x8xi32> to vector<32x1xi32>
    %13 = vector.broadcast %12 : vector<32x1xi32> to vector<32x128xi32>
    %14 = arith.cmpi eq, %1, %13 : vector<32x128xi32>
    %15 = arith.extui %14 : vector<32x128xi1> to vector<32x128xi32>
    %16 = arith.sitofp %15 : vector<32x128xi32> to vector<32x128xf32>
    %17 = arith.truncf %16 : vector<32x128xf32> to vector<32x128xbf16>
    %c128 = arith.constant 128 : index
    %c0_4 = arith.constant 0 : index
    %18 = vector.load %arg5[%c128, %c0_4] : memref<640x128xbf16, #tpu.memory_space<vmem>>, vector<128x128xbf16>
    %cst_5 = arith.constant dense<0.000000e+00> : vector<32x128xf32>
    %19 = tpu.matmul %17, %18, %cst_5 {dimension_numbers = #tpu.dot_dimension_numbers<[1], [0], [0], [1], [0, 0, 1, 1], [], []>} : vector<32x128xbf16>, vector<128x128xbf16>, vector<32x128xf32> -> vector<32x128xf32>
    %20 = arith.addf %11, %19 : vector<32x128xf32>
    %21 = vector.extract_strided_slice %0 {offsets = [0, 2], sizes = [32, 1], strides = [1, 1]} : vector<32x8xi32> to vector<32x1xi32>
    %22 = vector.broadcast %21 : vector<32x1xi32> to vector<32x128xi32>
    %23 = arith.cmpi eq, %1, %22 : vector<32x128xi32>
    %24 = arith.extui %23 : vector<32x128xi1> to vector<32x128xi32>
    %25 = arith.sitofp %24 : vector<32x128xi32> to vector<32x128xf32>
    %26 = arith.truncf %25 : vector<32x128xf32> to vector<32x128xbf16>
    %c256 = arith.constant 256 : index
    %c0_6 = arith.constant 0 : index
    %27 = vector.load %arg5[%c256, %c0_6] : memref<640x128xbf16, #tpu.memory_space<vmem>>, vector<128x128xbf16>
    %cst_7 = arith.constant dense<0.000000e+00> : vector<32x128xf32>
    %28 = tpu.matmul %26, %27, %cst_7 {dimension_numbers = #tpu.dot_dimension_numbers<[1], [0], [0], [1], [0, 0, 1, 1], [], []>} : vector<32x128xbf16>, vector<128x128xbf16>, vector<32x128xf32> -> vector<32x128xf32>
    %29 = arith.addf %20, %28 : vector<32x128xf32>
    %30 = vector.extract_strided_slice %0 {offsets = [0, 3], sizes = [32, 1], strides = [1, 1]} : vector<32x8xi32> to vector<32x1xi32>
    %31 = vector.broadcast %30 : vector<32x1xi32> to vector<32x128xi32>
    %32 = arith.cmpi eq, %1, %31 : vector<32x128xi32>
    %33 = arith.extui %32 : vector<32x128xi1> to vector<32x128xi32>
    %34 = arith.sitofp %33 : vector<32x128xi32> to vector<32x128xf32>
    %35 = arith.truncf %34 : vector<32x128xf32> to vector<32x128xbf16>
    %c384 = arith.constant 384 : index
    %c0_8 = arith.constant 0 : index
    %36 = vector.load %arg5[%c384, %c0_8] : memref<640x128xbf16, #tpu.memory_space<vmem>>, vector<128x128xbf16>
    %cst_9 = arith.constant dense<0.000000e+00> : vector<32x128xf32>
    %37 = tpu.matmul %35, %36, %cst_9 {dimension_numbers = #tpu.dot_dimension_numbers<[1], [0], [0], [1], [0, 0, 1, 1], [], []>} : vector<32x128xbf16>, vector<128x128xbf16>, vector<32x128xf32> -> vector<32x128xf32>
    %38 = arith.addf %29, %37 : vector<32x128xf32>
    %39 = vector.extract_strided_slice %0 {offsets = [0, 4], sizes = [32, 1], strides = [1, 1]} : vector<32x8xi32> to vector<32x1xi32>
    %40 = vector.broadcast %39 : vector<32x1xi32> to vector<32x128xi32>
    %41 = arith.cmpi eq, %1, %40 : vector<32x128xi32>
    %42 = arith.extui %41 : vector<32x128xi1> to vector<32x128xi32>
    %43 = arith.sitofp %42 : vector<32x128xi32> to vector<32x128xf32>
    %44 = arith.truncf %43 : vector<32x128xf32> to vector<32x128xbf16>
    %c512 = arith.constant 512 : index
    %c0_10 = arith.constant 0 : index
    %45 = vector.load %arg5[%c512, %c0_10] : memref<640x128xbf16, #tpu.memory_space<vmem>>, vector<128x128xbf16>
    %cst_11 = arith.constant dense<0.000000e+00> : vector<32x128xf32>
    %46 = tpu.matmul %44, %45, %cst_11 {dimension_numbers = #tpu.dot_dimension_numbers<[1], [0], [0], [1], [0, 0, 1, 1], [], []>} : vector<32x128xbf16>, vector<128x128xbf16>, vector<32x128xf32> -> vector<32x128xf32>
    %47 = arith.addf %38, %46 : vector<32x128xf32>
    %c0_12 = arith.constant 0 : index
    %c0_13 = arith.constant 0 : index
    %48 = vector.load %arg2[%c0_12, %c0_13] : memref<32x128xi8, #tpu.memory_space<vmem>>, vector<32x128xi8>
    %49 = arith.sitofp %48 : vector<32x128xi8> to vector<32x128xbf16>
    %c0_14 = arith.constant 0 : index
    %c0_15 = arith.constant 0 : index
    %50 = vector.load %arg6[%c0_14, %c0_15] : memref<128x128xbf16, #tpu.memory_space<vmem>>, vector<128x128xbf16>
    %cst_16 = arith.constant dense<0.000000e+00> : vector<32x128xf32>
    %51 = tpu.matmul %49, %50, %cst_16 {dimension_numbers = #tpu.dot_dimension_numbers<[1], [0], [0], [1], [0, 0, 1, 1], [], []>} : vector<32x128xbf16>, vector<128x128xbf16>, vector<32x128xf32> -> vector<32x128xf32>
    %52 = vector.extract_strided_slice %51 {offsets = [0, 127], sizes = [32, 1], strides = [1, 1]} : vector<32x128xf32> to vector<32x1xf32>
    %cst_17 = arith.constant 9.99999968E-21 : f32
    %53 = vector.broadcast %cst_17 : f32 to vector<32x1xf32>
    %54 = arith.maximumf %52, %53 : vector<32x1xf32>
    %55 = tpu.reciprocal %54 {approx = true} : vector<32x1xf32> -> vector<32x1xf32>
    %56 = vector.broadcast %55 : vector<32x1xf32> to vector<32x128xf32>
    %57 = arith.mulf %51, %56 : vector<32x128xf32>
    %58 = arith.addf %47, %57 : vector<32x128xf32>
    %c0_18 = arith.constant 0 : index
    %c0_19 = arith.constant 0 : index
    %59 = vector.load %arg3[%c0_18, %c0_19] : memref<32x2304xi8, #tpu.memory_space<vmem>>, vector<32x2304xi8>
    %60 = arith.sitofp %59 : vector<32x2304xi8> to vector<32x2304xbf16>
    %c0_20 = arith.constant 0 : index
    %c0_21 = arith.constant 0 : index
    %61 = vector.load %arg7[%c0_20, %c0_21] : memref<2304x128xbf16, #tpu.memory_space<vmem>>, vector<2304x128xbf16>
    %cst_22 = arith.constant dense<0.000000e+00> : vector<32x128xf32>
    %62 = tpu.matmul %60, %61, %cst_22 {dimension_numbers = #tpu.dot_dimension_numbers<[1], [0], [0], [1], [0, 0, 1, 1], [], []>} : vector<32x2304xbf16>, vector<2304x128xbf16>, vector<32x128xf32> -> vector<32x128xf32>
    %63 = vector.extract_strided_slice %62 {offsets = [0, 127], sizes = [32, 1], strides = [1, 1]} : vector<32x128xf32> to vector<32x1xf32>
    %cst_23 = arith.constant 9.99999968E-21 : f32
    %64 = vector.broadcast %cst_23 : f32 to vector<32x1xf32>
    %65 = arith.maximumf %63, %64 : vector<32x1xf32>
    %66 = tpu.reciprocal %65 {approx = true} : vector<32x1xf32> -> vector<32x1xf32>
    %67 = vector.broadcast %66 : vector<32x1xf32> to vector<32x128xf32>
    %68 = arith.mulf %62, %67 : vector<32x128xf32>
    %69 = arith.addf %58, %68 : vector<32x128xf32>
    %c0_24 = arith.constant 0 : index
    %c0_25 = arith.constant 0 : index
    %70 = vector.load %arg4[%c0_24, %c0_25] : memref<32x8064xi8, #tpu.memory_space<vmem>>, vector<32x8064xi8>
    %71 = arith.sitofp %70 : vector<32x8064xi8> to vector<32x8064xbf16>
    %c0_26 = arith.constant 0 : index
    %c0_27 = arith.constant 0 : index
    %72 = vector.load %arg8[%c0_26, %c0_27] : memref<8064x128xbf16, #tpu.memory_space<vmem>>, vector<8064x128xbf16>
    %cst_28 = arith.constant dense<0.000000e+00> : vector<32x128xf32>
    %73 = tpu.matmul %71, %72, %cst_28 {dimension_numbers = #tpu.dot_dimension_numbers<[1], [0], [0], [1], [0, 0, 1, 1], [], []>} : vector<32x8064xbf16>, vector<8064x128xbf16>, vector<32x128xf32> -> vector<32x128xf32>
    %74 = vector.extract_strided_slice %73 {offsets = [0, 127], sizes = [32, 1], strides = [1, 1]} : vector<32x128xf32> to vector<32x1xf32>
    %cst_29 = arith.constant 9.99999968E-21 : f32
    %75 = vector.broadcast %cst_29 : f32 to vector<32x1xf32>
    %76 = arith.maximumf %74, %75 : vector<32x1xf32>
    %77 = tpu.reciprocal %76 {approx = true} : vector<32x1xf32> -> vector<32x1xf32>
    %78 = vector.broadcast %77 : vector<32x1xf32> to vector<32x128xf32>
    %79 = arith.mulf %73, %78 : vector<32x128xf32>
    %80 = arith.addf %69, %79 : vector<32x128xf32>
    %c0_30 = arith.constant 0 : index
    %c0_31 = arith.constant 0 : index
    %81 = vector.load %arg11[%c0_30, %c0_31] : memref<8x128xf32, #tpu.memory_space<vmem>>, vector<1x128xf32>
    %82 = vector.broadcast %81 : vector<1x128xf32> to vector<32x128xf32>
    %83 = arith.addf %80, %82 : vector<32x128xf32>
    %cst_32 = arith.constant 0.000000e+00 : f32
    %84 = vector.broadcast %cst_32 : f32 to vector<32x128xf32>
    %85 = arith.maximumf %83, %84 : vector<32x128xf32>
    %c0_33 = arith.constant 0 : index
    %c0_34 = arith.constant 0 : index
    %86 = vector.load %arg9[%c0_33, %c0_34] : memref<128x128xf32, #tpu.memory_space<vmem>>, vector<128x128xf32>
    %cst_35 = arith.constant dense<0.000000e+00> : vector<32x128xf32>
    %87 = tpu.matmul %85, %86, %cst_35 {dimension_numbers = #tpu.dot_dimension_numbers<[1], [0], [0], [1], [0, 0, 1, 1], [], []>} : vector<32x128xf32>, vector<128x128xf32>, vector<32x128xf32> -> vector<32x128xf32>
    %c1 = arith.constant 1 : index
    %c0_36 = arith.constant 0 : index
    %88 = vector.load %arg11[%c1, %c0_36] : memref<8x128xf32, #tpu.memory_space<vmem>>, vector<1x128xf32>
    %89 = vector.broadcast %88 : vector<1x128xf32> to vector<32x128xf32>
    %90 = arith.addf %87, %89 : vector<32x128xf32>
    %cst_37 = arith.constant 0.000000e+00 : f32
    %91 = vector.broadcast %cst_37 : f32 to vector<32x128xf32>
    %92 = arith.maximumf %90, %91 : vector<32x128xf32>
    %c0_38 = arith.constant 0 : index
    %c0_39 = arith.constant 0 : index
    %93 = vector.load %arg10[%c0_38, %c0_39] : memref<128x8xf32, #tpu.memory_space<vmem>>, vector<128x8xf32>
    %cst_40 = arith.constant dense<0.000000e+00> : vector<32x8xf32>
    %94 = tpu.matmul %92, %93, %cst_40 {dimension_numbers = #tpu.dot_dimension_numbers<[1], [0], [0], [1], [0, 0, 1, 1], [], []>} : vector<32x128xf32>, vector<128x8xf32>, vector<32x8xf32> -> vector<32x8xf32>
    %c2 = arith.constant 2 : index
    %c0_41 = arith.constant 0 : index
    %95 = vector.load %arg11[%c2, %c0_41] : memref<8x128xf32, #tpu.memory_space<vmem>>, vector<1x8xf32>
    %96 = vector.broadcast %95 : vector<1x8xf32> to vector<32x8xf32>
    %97 = arith.addf %94, %96 : vector<32x8xf32>
    %c0_42 = arith.constant 0 : index
    %c0_43 = arith.constant 0 : index
    %98 = vector.load %arg12[%c0_42, %c0_43] : memref<32x8xf32, #tpu.memory_space<vmem>>, vector<32x8xf32>
    tpu.vector_store %arg12[%c0_42, %c0_43], %97 {strides = array<i32>} : memref<32x8xf32, #tpu.memory_space<vmem>>, vector<32x8xf32>,
    return
  }
  func.func @transform_0(%arg0: i32) -> (i32, i32) {
    %c0_i32 = arith.constant 0 : i32
    %c0_i32_0 = arith.constant 0 : i32
    return %arg0, %c0_i32 : i32, i32
  }
  func.func @transform_1(%arg0: i32) -> (i32, i32) {
    %c0_i32 = arith.constant 0 : i32
    %c0_i32_0 = arith.constant 0 : i32
    return %arg0, %c0_i32 : i32, i32
  }
  func.func @transform_2(%arg0: i32) -> (i32, i32) {
    %c0_i32 = arith.constant 0 : i32
    %c0_i32_0 = arith.constant 0 : i32
    return %arg0, %c0_i32 : i32, i32
  }
  func.func @transform_3(%arg0: i32) -> (i32, i32) {
    %c0_i32 = arith.constant 0 : i32
    %c0_i32_0 = arith.constant 0 : i32
    return %arg0, %c0_i32 : i32, i32
  }
  func.func @transform_4(%arg0: i32) -> (i32, i32) {
    %c0_i32 = arith.constant 0 : i32
    %c0_i32_0 = arith.constant 0 : i32
    %c0_i32_1 = arith.constant 0 : i32
    return %c0_i32, %c0_i32_0 : i32, i32
  }
  func.func @transform_5(%arg0: i32) -> (i32, i32) {
    %c0_i32 = arith.constant 0 : i32
    %c0_i32_0 = arith.constant 0 : i32
    %c0_i32_1 = arith.constant 0 : i32
    return %c0_i32, %c0_i32_0 : i32, i32
  }
  func.func @transform_6(%arg0: i32) -> (i32, i32) {
    %c0_i32 = arith.constant 0 : i32
    %c0_i32_0 = arith.constant 0 : i32
    %c0_i32_1 = arith.constant 0 : i32
    return %c0_i32, %c0_i32_0 : i32, i32
  }
  func.func @transform_7(%arg0: i32) -> (i32, i32) {
    %c0_i32 = arith.constant 0 : i32
    %c0_i32_0 = arith.constant 0 : i32
    %c0_i32_1 = arith.constant 0 : i32
    return %c0_i32, %c0_i32_0 : i32, i32
  }
  func.func @transform_8(%arg0: i32) -> (i32, i32) {
    %c0_i32 = arith.constant 0 : i32
    %c0_i32_0 = arith.constant 0 : i32
    %c0_i32_1 = arith.constant 0 : i32
    return %c0_i32, %c0_i32_0 : i32, i32
  }
  func.func @transform_9(%arg0: i32) -> (i32, i32) {
    %c0_i32 = arith.constant 0 : i32
    %c0_i32_0 = arith.constant 0 : i32
    %c0_i32_1 = arith.constant 0 : i32
    return %c0_i32, %c0_i32_0 : i32, i32
  }
  func.func @transform_10(%arg0: i32) -> (i32, i32) {
    %c0_i32 = arith.constant 0 : i32
    %c0_i32_0 = arith.constant 0 : i32
    %c0_i32_1 = arith.constant 0 : i32
    return %c0_i32, %c0_i32_0 : i32, i32
  }
  func.func @transform_11(%arg0: i32) -> (i32, i32) {
    %c0_i32 = arith.constant 0 : i32
    %c0_i32_0 = arith.constant 0 : i32
    return %arg0, %c0_i32 : i32, i32
  }
}

</mosaic_0001>

<llo_original>
// kernel: tpu_custom_call.1
$region0: #{tpu_custom_call.1}
  #allocation0 [shape = 'u32[]', space=smem, size = 0x4, offset = 0x4, fixed_abs, tag = 'smem constant byte address 0x4 - core index']
  #allocation1 [shape = 'u32[144,128]{1,0:T(1,128)}', space=vmem, size = 0x12000, scoped, tag = 'internal scratch']
  %s0 = inlined_call_operand.vmem [shape: s32[32,8], index: 0, kind: input, shape index: {}]
  %s1 = inlined_call_operand.hbm [shape: s8[32,128], index: 1, kind: input, shape index: {}]
  %s2 = inlined_call_operand.hbm [shape: s8[32,2304], index: 2, kind: input, shape index: {}]
  %s3 = inlined_call_operand.hbm [shape: s8[32,8064], index: 3, kind: input, shape index: {}]
  %s4 = inlined_call_operand.hbm [shape: bf16[640,128], index: 4, kind: input, shape index: {}]
  %s5 = inlined_call_operand.hbm [shape: bf16[128,128], index: 5, kind: input, shape index: {}]
  %s6 = inlined_call_operand.hbm [shape: bf16[2304,128], index: 6, kind: input, shape index: {}]
  %s7 = inlined_call_operand.hbm [shape: bf16[8064,128], index: 7, kind: input, shape index: {}]
  %s8 = inlined_call_operand.hbm [shape: f32[128,128], index: 8, kind: input, shape index: {}]
  %s9 = inlined_call_operand.vmem [shape: f32[128,8], index: 9, kind: input, shape index: {}]
  %s10 = inlined_call_operand.hbm [shape: f32[8,128], index: 10, kind: input, shape index: {}]
  %s11 = inlined_call_operand.vmem [shape: f32[32,8], index: 11, kind: output, shape index: {}]
  %s12 = sld [smem:[#allocation0]]
  $region90: #{tpu_custom_call.1} parent=0
    _
  %s14 = ssub.s32 1, %s12
  %s15 = scalar_select 0, %s14, %s12
  $region1: #{tpu_custom_call.1} parent=0
    #allocation2 [shape = 'u8[4096]{0}', space=vmem, size = 0x1000, scoped, tag = 'input window, operand 1, single buffered']
    #allocation3 [shape = 's32[1]{0}', space=sflag, size = 0x4, scoped, tag = 'scoped memory for tpu_custom_call.1']
    #allocation4 [shape = 'u8[73728]{0}', space=vmem, size = 0x12000, scoped, tag = 'input window, operand 2, single buffered']
    #allocation5 [shape = 's32[1]{0}', space=sflag, size = 0x4, scoped, tag = 'scoped memory for tpu_custom_call.1']
    #allocation6 [shape = 'u8[258048]{0}', space=vmem, size = 0x3f000, scoped, tag = 'input window, operand 3, single buffered']
    #allocation7 [shape = 'u8[163840]{0}', space=vmem, size = 0x28000, scoped, tag = 'input window, operand 4, single buffered']
    #allocation8 [shape = 's32[1]{0}', space=sflag, size = 0x4, scoped, tag = 'scoped memory for tpu_custom_call.1']
    #allocation9 [shape = 'u8[32768]{0}', space=vmem, size = 0x8000, scoped, tag = 'input window, operand 5, single buffered']
    #allocation10 [shape = 'u8[589824]{0}', space=vmem, size = 0x90000, scoped, tag = 'input window, operand 6, single buffered']
    #allocation11 [shape = 's32[1]{0}', space=sflag, size = 0x4, scoped, tag = 'scoped memory for tpu_custom_call.1']
    #allocation12 [shape = 'u8[2064384]{0}', space=vmem, size = 0x1f8000, scoped, tag = 'input window, operand 7, single buffered']
    #allocation13 [shape = 'u8[65536]{0}', space=vmem, size = 0x10000, scoped, tag = 'input window, operand 8, single buffered']
    #allocation14 [shape = 's32[1]{0}', space=sflag, size = 0x4, scoped, tag = 'scoped memory for tpu_custom_call.1']
    #allocation15 [shape = 'u8[4096]{0}', space=vmem, size = 0x1000, scoped, tag = 'input window, operand 10, single buffered']
    %16 = vsyncpa [#allocation3], 0
    %17 = vsyncpa [#allocation5], 0
    %18 = vsyncpa [#allocation8], 0
    %19 = vsyncpa [#allocation11], 0
    %20 = vsyncpa [#allocation14], 0
    // Predicated region
    $region2: #{tpu_custom_call.1} parent=1 // pred_check
      _
    $region3: #{tpu_custom_call.1} parent=1 // pred_check_branch
      %22 = sbr.rel (0) target = $region5
    $region4: #{tpu_custom_call.1} parent=1 // pred_region
      _
    $region5: #{tpu_custom_call.1} parent=1 // pred_fallthru
      _
    // Predicated region
    $region6: #{tpu_custom_call.1} parent=1 // pred_check
      _
    $region7: #{tpu_custom_call.1} parent=1 // pred_check_branch
      %24 = sbr.rel (0) target = $region9
    $region8: #{tpu_custom_call.1} parent=1 // pred_region
      %s26 = ssub.s32 128, 128
      %27 = vsyncadd [#allocation3], %s26
      %s29 = sshll.u32 [#allocation2], 4
      %s30 = int_to_ptr.vmem [resolvable:$true] %s29
      %32 = dma.hbm_to_vmem [thread:$0]  %s1, 128, %s30, [#allocation3]
    $region9: #{tpu_custom_call.1} parent=1 // pred_fallthru
      _
    // Predicated region
    $region10: #{tpu_custom_call.1} parent=1 // pred_check
      _
    $region11: #{tpu_custom_call.1} parent=1 // pred_check_branch
      %34 = sbr.rel (0) target = $region13
    $region12: #{tpu_custom_call.1} parent=1 // pred_region
      %s36 = ssub.s32 2304, 2304
      %37 = vsyncadd [#allocation5], %s36
      %s39 = sshll.u32 [#allocation4], 4
      %s40 = int_to_ptr.vmem [resolvable:$true] %s39
      %42 = dma.hbm_to_vmem [thread:$0]  %s2, 2304, %s40, [#allocation5]
    $region13: #{tpu_custom_call.1} parent=1 // pred_fallthru
      _
    // Predicated region
    $region14: #{tpu_custom_call.1} parent=1 // pred_check
      _
    $region15: #{tpu_custom_call.1} parent=1 // pred_check_branch
      %44 = sbr.rel (0) target = $region17
    $region16: #{tpu_custom_call.1} parent=1 // pred_region
      %s46 = ssub.s32 8064, 8064
      %47 = vsyncadd [#allocation5], %s46
      %s49 = sshll.u32 [#allocation6], 4
      %s50 = int_to_ptr.vmem [resolvable:$true] %s49
      %52 = dma.hbm_to_vmem [thread:$0]  %s3, 8064, %s50, [#allocation5]
    $region17: #{tpu_custom_call.1} parent=1 // pred_fallthru
      _
    // Predicated region
    $region18: #{tpu_custom_call.1} parent=1 // pred_check
      _
    $region19: #{tpu_custom_call.1} parent=1 // pred_check_branch
      %54 = sbr.rel (0) target = $region21
    $region20: #{tpu_custom_call.1} parent=1 // pred_region
      %s56 = ssub.s32 5120, 5120
      %57 = vsyncadd [#allocation8], %s56
      %s58 = sshll.u32 [#allocation7], 4
      %s59 = int_to_ptr.vmem [resolvable:$true] %s58
      %64 = dma.hbm_to_vmem [thread:$0]  %s4, 5120, %s59, [#allocation8], 64, 64, 4
    $region21: #{tpu_custom_call.1} parent=1 // pred_fallthru
      _
    // Predicated region
    $region22: #{tpu_custom_call.1} parent=1 // pred_check
      _
    $region23: #{tpu_custom_call.1} parent=1 // pred_check_branch
      %66 = sbr.rel (0) target = $region25
    $region24: #{tpu_custom_call.1} parent=1 // pred_region
      %s68 = ssub.s32 1024, 1024
      %69 = vsyncadd [#allocation8], %s68
      %s70 = sshll.u32 [#allocation9], 4
      %s71 = int_to_ptr.vmem [resolvable:$true] %s70
      %76 = dma.hbm_to_vmem [thread:$0]  %s5, 1024, %s71, [#allocation8], 64, 64, 4
    $region25: #{tpu_custom_call.1} parent=1 // pred_fallthru
      _
    // Predicated region
    $region26: #{tpu_custom_call.1} parent=1 // pred_check
      _
    $region27: #{tpu_custom_call.1} parent=1 // pred_check_branch
      %78 = sbr.rel (0) target = $region29
    $region28: #{tpu_custom_call.1} parent=1 // pred_region
      %s80 = ssub.s32 18432, 18432
      %81 = vsyncadd [#allocation11], %s80
      %s82 = sshll.u32 [#allocation10], 4
      %s83 = int_to_ptr.vmem [resolvable:$true] %s82
      %88 = dma.hbm_to_vmem [thread:$0]  %s6, 18432, %s83, [#allocation11], 64, 64, 4
    $region29: #{tpu_custom_call.1} parent=1 // pred_fallthru
      _
    // Predicated region
    $region30: #{tpu_custom_call.1} parent=1 // pred_check
      _
    $region31: #{tpu_custom_call.1} parent=1 // pred_check_branch
      %90 = sbr.rel (0) target = $region33
    $region32: #{tpu_custom_call.1} parent=1 // pred_region
      %s92 = ssub.s32 64512, 64512
      %93 = vsyncadd [#allocation11], %s92
      %s94 = sshll.u32 [#allocation12], 4
      %s95 = int_to_ptr.vmem [resolvable:$true] %s94
      %100 = dma.hbm_to_vmem [thread:$0]  %s7, 64512, %s95, [#allocation11], 64, 64, 4
    $region33: #{tpu_custom_call.1} parent=1 // pred_fallthru
      _
    // Predicated region
    $region34: #{tpu_custom_call.1} parent=1 // pred_check
      _
    $region35: #{tpu_custom_call.1} parent=1 // pred_check_branch
      %102 = sbr.rel (0) target = $region37
    $region36: #{tpu_custom_call.1} parent=1 // pred_region
      %s104 = ssub.s32 2048, 2048
      %105 = vsyncadd [#allocation14], %s104
      %s106 = sshll.u32 [#allocation13], 4
      %s107 = int_to_ptr.vmem [resolvable:$true] %s106
      %112 = dma.hbm_to_vmem [thread:$0]  %s8, 2048, %s107, [#allocation14], 128, 128, 8
    $region37: #{tpu_custom_call.1} parent=1 // pred_fallthru
      _
    // Predicated region
    $region38: #{tpu_custom_call.1} parent=1 // pred_check
      _
    $region39: #{tpu_custom_call.1} parent=1 // pred_check_branch
      %114 = sbr.rel (0) target = $region41
    $region40: #{tpu_custom_call.1} parent=1 // pred_region
      _
    $region41: #{tpu_custom_call.1} parent=1 // pred_fallthru
      _
    // Predicated region
    $region42: #{tpu_custom_call.1} parent=1 // pred_check
      _
    $region43: #{tpu_custom_call.1} parent=1 // pred_check_branch
      %116 = sbr.rel (0) target = $region45
    $region44: #{tpu_custom_call.1} parent=1 // pred_region
      %s118 = ssub.s32 128, 128
      %119 = vsyncadd [#allocation14], %s118
      %s121 = sshll.u32 [#allocation15], 4
      %s122 = int_to_ptr.vmem [resolvable:$true] %s121
      %124 = dma.hbm_to_vmem [thread:$0]  %s10, 128, %s122, [#allocation14]
    $region45: #{tpu_custom_call.1} parent=1 // pred_fallthru
      _
    // Predicated region
    $region46: #{tpu_custom_call.1} parent=1 // pred_check
      _
    $region47: #{tpu_custom_call.1} parent=1 // pred_check_branch
      %126 = sbr.rel (0) target = $region49
    $region48: #{tpu_custom_call.1} parent=1 // pred_region
      %127 = dma.done [#allocation3], 128
    $region49: #{tpu_custom_call.1} parent=1 // pred_fallthru
      _
    // Predicated region
    $region50: #{tpu_custom_call.1} parent=1 // pred_check
      _
    $region51: #{tpu_custom_call.1} parent=1 // pred_check_branch
      %129 = sbr.rel (0) target = $region53
    $region52: #{tpu_custom_call.1} parent=1 // pred_region
      %130 = dma.done [#allocation5], 2304
    $region53: #{tpu_custom_call.1} parent=1 // pred_fallthru
      _
    // Predicated region
    $region54: #{tpu_custom_call.1} parent=1 // pred_check
      _
    $region55: #{tpu_custom_call.1} parent=1 // pred_check_branch
      %132 = sbr.rel (0) target = $region57
    $region56: #{tpu_custom_call.1} parent=1 // pred_region
      %133 = dma.done [#allocation5], 8064
    $region57: #{tpu_custom_call.1} parent=1 // pred_fallthru
      _
    // Predicated region
    $region58: #{tpu_custom_call.1} parent=1 // pred_check
      _
    $region59: #{tpu_custom_call.1} parent=1 // pred_check_branch
      %135 = sbr.rel (0) target = $region61
    $region60: #{tpu_custom_call.1} parent=1 // pred_region
      %136 = dma.done [#allocation8], 5120
    $region61: #{tpu_custom_call.1} parent=1 // pred_fallthru
      _
    // Predicated region
    $region62: #{tpu_custom_call.1} parent=1 // pred_check
      _
    $region63: #{tpu_custom_call.1} parent=1 // pred_check_branch
      %138 = sbr.rel (0) target = $region65
    $region64: #{tpu_custom_call.1} parent=1 // pred_region
      %139 = dma.done [#allocation8], 1024
    $region65: #{tpu_custom_call.1} parent=1 // pred_fallthru
      _
    // Predicated region
    $region66: #{tpu_custom_call.1} parent=1 // pred_check
      _
    $region67: #{tpu_custom_call.1} parent=1 // pred_check_branch
      %141 = sbr.rel (0) target = $region69
    $region68: #{tpu_custom_call.1} parent=1 // pred_region
      %142 = dma.done [#allocation11], 18432
    $region69: #{tpu_custom_call.1} parent=1 // pred_fallthru
      _
    // Predicated region
    $region70: #{tpu_custom_call.1} parent=1 // pred_check
      _
    $region71: #{tpu_custom_call.1} parent=1 // pred_check_branch
      %144 = sbr.rel (0) target = $region73
    $region72: #{tpu_custom_call.1} parent=1 // pred_region
      %145 = dma.done [#allocation11], 64512
    $region73: #{tpu_custom_call.1} parent=1 // pred_fallthru
      _
    // Predicated region
    $region74: #{tpu_custom_call.1} parent=1 // pred_check
      _
    $region75: #{tpu_custom_call.1} parent=1 // pred_check_branch
      %147 = sbr.rel (0) target = $region77
    $region76: #{tpu_custom_call.1} parent=1 // pred_region
      %148 = dma.done [#allocation14], 2048
    $region77: #{tpu_custom_call.1} parent=1 // pred_fallthru
      _
    // Predicated region
    $region78: #{tpu_custom_call.1} parent=1 // pred_check
      _
    $region79: #{tpu_custom_call.1} parent=1 // pred_check_branch
      %150 = sbr.rel (0) target = $region81
    $region80: #{tpu_custom_call.1} parent=1 // pred_region
      %151 = dma.done [#allocation14], 128
    $region81: #{tpu_custom_call.1} parent=1 // pred_fallthru
      _
    %v153 = vld [vmem:[%s0] sm:$0xff]
    %v154 = vld [vmem:[%s0 + $0x8] sm:$0xff]
    %v155 = vld [vmem:[%s0 + $0x10] sm:$0xff]
    %v156 = vld [vmem:[%s0 + $0x18] sm:$0xff]
    %v157 = vlaneseq
    %v158 = vand.u32 %v157, 127
    %159 = vset.pattern.permute.xlu0 0
    %160 = vperm.xlu0 %159, %v153
    %v161 = vpop.permute.xlu0 %160
    %162 = vset.pattern.permute.xlu0 0
    %163 = vperm.xlu0 %162, %v154
    %v164 = vpop.permute.xlu0 %163
    %165 = vset.pattern.permute.xlu0 0
    %166 = vperm.xlu0 %165, %v155
    %v167 = vpop.permute.xlu0 %166
    %168 = vset.pattern.permute.xlu0 0
    %169 = vperm.xlu0 %168, %v156
    %v170 = vpop.permute.xlu0 %169
    %vm171 = vcmp.eq.s32.totalorder %v158, %v161
    %vm172 = vcmp.eq.s32.totalorder %v158, %v164
    %vm173 = vcmp.eq.s32.totalorder %v158, %v167
    %vm174 = vcmp.eq.s32.totalorder %v158, %v170
    %v175 = vsel %vm171, 1, 0
    %v176 = vsel %vm172, 1, 0
    %v177 = vsel %vm173, 1, 0
    %v178 = vsel %vm174, 1, 0
    %v179 = vcvt.s32.f32 %v175
    %v180 = vcvt.s32.f32 %v176
    %v181 = vcvt.s32.f32 %v177
    %v182 = vcvt.s32.f32 %v178
    %v183 = vpack.c.bf16 %v180, %v179
    %v184 = vpack.c.bf16 %v182, %v181
    %v185 = vld [vmem:[#allocation7] sm:$0xf]
    %v186 = vld [vmem:[#allocation7 + $0x4] sm:$0xf]
    %v187 = vld [vmem:[#allocation7 + $0x8] sm:$0xf]
    %v188 = vld [vmem:[#allocation7 + $0xc] sm:$0xf]
    %v189 = vld [vmem:[#allocation7 + $0x10] sm:$0xf]
    %v190 = vld [vmem:[#allocation7 + $0x14] sm:$0xf]
    %v191 = vld [vmem:[#allocation7 + $0x18] sm:$0xf]
    %v192 = vld [vmem:[#allocation7 + $0x1c] sm:$0xf]
    %v193 = vld [vmem:[#allocation7 + $0x20] sm:$0xf]
    %v194 = vld [vmem:[#allocation7 + $0x24] sm:$0xf]
    %v195 = vld [vmem:[#allocation7 + $0x28] sm:$0xf]
    %v196 = vld [vmem:[#allocation7 + $0x2c] sm:$0xf]
    %v197 = vld [vmem:[#allocation7 + $0x30] sm:$0xf]
    %v198 = vld [vmem:[#allocation7 + $0x34] sm:$0xf]
    %v199 = vld [vmem:[#allocation7 + $0x38] sm:$0xf]
    %v200 = vld [vmem:[#allocation7 + $0x3c] sm:$0xf]
    %201 = vset.pattern.permute.xlu0 1
    %202 = vperm.xlu0 %201, %v153
    %v203 = vpop.permute.xlu0 %202
    %204 = vset.pattern.permute.xlu0 1
    %205 = vperm.xlu0 %204, %v154
    %v206 = vpop.permute.xlu0 %205
    %207 = vset.pattern.permute.xlu0 1
    %208 = vperm.xlu0 %207, %v155
    %v209 = vpop.permute.xlu0 %208
    %210 = vset.pattern.permute.xlu0 1
    %211 = vperm.xlu0 %210, %v156
    %v212 = vpop.permute.xlu0 %211
    %vm213 = vcmp.eq.s32.totalorder %v158, %v203
    %vm214 = vcmp.eq.s32.totalorder %v158, %v206
    %vm215 = vcmp.eq.s32.totalorder %v158, %v209
    %vm216 = vcmp.eq.s32.totalorder %v158, %v212
    %v217 = vsel %vm213, 1, 0
    %v218 = vsel %vm214, 1, 0
    %v219 = vsel %vm215, 1, 0
    %v220 = vsel %vm216, 1, 0
    %v221 = vcvt.s32.f32 %v217
    %v222 = vcvt.s32.f32 %v218
    %v223 = vcvt.s32.f32 %v219
    %v224 = vcvt.s32.f32 %v220
    %v225 = vpack.c.bf16 %v222, %v221
    %v226 = vpack.c.bf16 %v224, %v223
    %v227 = vld [vmem:[#allocation7 + $0x40] sm:$0xf]
    %v228 = vld [vmem:[#allocation7 + $0x44] sm:$0xf]
    %v229 = vld [vmem:[#allocation7 + $0x48] sm:$0xf]
    %v230 = vld [vmem:[#allocation7 + $0x4c] sm:$0xf]
    %v231 = vld [vmem:[#allocation7 + $0x50] sm:$0xf]
    %v232 = vld [vmem:[#allocation7 + $0x54] sm:$0xf]
    %v233 = vld [vmem:[#allocation7 + $0x58] sm:$0xf]
    %v234 = vld [vmem:[#allocation7 + $0x5c] sm:$0xf]
    %v235 = vld [vmem:[#allocation7 + $0x60] sm:$0xf]
    %v236 = vld [vmem:[#allocation7 + $0x64] sm:$0xf]
    %v237 = vld [vmem:[#allocation7 + $0x68] sm:$0xf]
    %v238 = vld [vmem:[#allocation7 + $0x6c] sm:$0xf]
    %v239 = vld [vmem:[#allocation7 + $0x70] sm:$0xf]
    %v240 = vld [vmem:[#allocation7 + $0x74] sm:$0xf]
    %v241 = vld [vmem:[#allocation7 + $0x78] sm:$0xf]
    %v242 = vld [vmem:[#allocation7 + $0x7c] sm:$0xf]
    %v259 = vunpack.c.l.b16 %v227
    %v260 = vunpack.c.l.b16 %v228
    %v261 = vunpack.c.l.b16 %v229
    %v262 = vunpack.c.l.b16 %v230
    %v263 = vunpack.c.l.b16 %v231
    %v264 = vunpack.c.l.b16 %v232
    %v265 = vunpack.c.l.b16 %v233
    %v266 = vunpack.c.l.b16 %v234
    %v267 = vunpack.c.l.b16 %v235
    %v268 = vunpack.c.l.b16 %v236
    %v269 = vunpack.c.l.b16 %v237
    %v270 = vunpack.c.l.b16 %v238
    %v271 = vunpack.c.l.b16 %v239
    %v272 = vunpack.c.l.b16 %v240
    %v273 = vunpack.c.l.b16 %v241
    %v274 = vunpack.c.l.b16 %v242
    %v275 = vpack.c.b16 %v260, %v259
    %v276 = vpack.c.b16 %v262, %v261
    %v277 = vpack.c.b16 %v264, %v263
    %v278 = vpack.c.b16 %v266, %v265
    %v279 = vpack.c.b16 %v268, %v267
    %v280 = vpack.c.b16 %v270, %v269
    %v281 = vpack.c.b16 %v272, %v271
    %v282 = vpack.c.b16 %v274, %v273
    %291 = vmatprep.subr.bf16.mxu0 0
    %292 = vmatpush1.bf16.msra.mxu0 %v275
    %293 = vmatprep.subr.bf16.mxu0 0
    %294 = vmatpush1.bf16.msra.mxu0 %v276
    %295 = vmatprep.subr.bf16.mxu0 0
    %296 = vmatpush1.bf16.msra.mxu0 %v277
    %297 = vmatprep.subr.bf16.mxu0 0
    %298 = vmatpush1.bf16.msra.mxu0 %v278
    %299 = vmatprep.subr.bf16.mxu0 0
    %300 = vmatpush1.bf16.msra.mxu0 %v279
    %301 = vmatprep.subr.bf16.mxu0 0
    %302 = vmatpush1.bf16.msra.mxu0 %v280
    %303 = vmatprep.subr.bf16.mxu0 0
    %304 = vmatpush1.bf16.msra.mxu0 %v281
    %305 = vmatprep.subr.bf16.mxu0 0
    %306 = vmatpush1.bf16.msra.mxu0 %v282
    %307 = vmatprep.subr.bf16.mxu0 0
    %308 = vmatpush1.bf16.msra.mxu0 0
    %309 = vmatprep.subr.bf16.mxu0 0
    %310 = vmatpush1.bf16.msra.mxu0 0
    %311 = vmatprep.subr.bf16.mxu0 0
    %312 = vmatpush1.bf16.msra.mxu0 0
    %313 = vmatprep.subr.bf16.mxu0 0
    %314 = vmatpush1.bf16.msra.mxu0 0
    %315 = vmatprep.subr.bf16.mxu0 0
    %316 = vmatpush1.bf16.msra.mxu0 0
    %317 = vmatprep.subr.bf16.mxu0 0
    %318 = vmatpush1.bf16.msra.mxu0 0
    %319 = vmatprep.subr.bf16.mxu0 0
    %320 = vmatpush1.bf16.msra.mxu0 0
    %321 = vmatprep.subr.bf16.mxu0 0
    %322 = vmatpush1.bf16.msra.mxu0 0
    %323 = vmatprep.mubr.bf16.mxu0 0
    %324 = vmatmul.mubr.bf16.gmra.mrb[0].mxu0 %v225
    %v325 = vpop.f32.mrb[0].mxu0
    %v326 = vadd.f32 0.0, %v325
    %v327 = vpop.f32.mrb[0].mxu0
    %v328 = vpop.f32.mrb[0].mxu0
    %v329 = vadd.f32 0.0, %v328
    %v330 = vpop.f32.mrb[0].mxu0
    %331 = vmatprep.mubr.bf16.mxu0 0
    %332 = vmatmul.mubr.bf16.gmra.mrb[0].mxu0 %v226
    %v333 = vpop.f32.mrb[0].mxu0
    %v334 = vadd.f32 0.0, %v333
    %v335 = vpop.f32.mrb[0].mxu0
    %v336 = vpop.f32.mrb[0].mxu0
    %v337 = vadd.f32 0.0, %v336
    %v338 = vpop.f32.mrb[0].mxu0
    %339 = vdwg.mxu0
    %v356 = vunpack.c.l.b16 %v185
    %v357 = vunpack.c.l.b16 %v186
    %v358 = vunpack.c.l.b16 %v187
    %v359 = vunpack.c.l.b16 %v188
    %v360 = vunpack.c.l.b16 %v189
    %v361 = vunpack.c.l.b16 %v190
    %v362 = vunpack.c.l.b16 %v191
    %v363 = vunpack.c.l.b16 %v192
    %v364 = vunpack.c.l.b16 %v193
    %v365 = vunpack.c.l.b16 %v194
    %v366 = vunpack.c.l.b16 %v195
    %v367 = vunpack.c.l.b16 %v196
    %v368 = vunpack.c.l.b16 %v197
    %v369 = vunpack.c.l.b16 %v198
    %v370 = vunpack.c.l.b16 %v199
    %v371 = vunpack.c.l.b16 %v200
    %v372 = vpack.c.b16 %v357, %v356
    %v373 = vpack.c.b16 %v359, %v358
    %v374 = vpack.c.b16 %v361, %v360
    %v375 = vpack.c.b16 %v363, %v362
    %v376 = vpack.c.b16 %v365, %v364
    %v377 = vpack.c.b16 %v367, %v366
    %v378 = vpack.c.b16 %v369, %v368
    %v379 = vpack.c.b16 %v371, %v370
    %388 = vmatprep.subr.bf16.mxu0 0
    %389 = vmatpush1.bf16.msra.mxu0 %v372
    %390 = vmatprep.subr.bf16.mxu0 0
    %391 = vmatpush1.bf16.msra.mxu0 %v373
    %392 = vmatprep.subr.bf16.mxu0 0
    %393 = vmatpush1.bf16.msra.mxu0 %v374
    %394 = vmatprep.subr.bf16.mxu0 0
    %395 = vmatpush1.bf16.msra.mxu0 %v375
    %396 = vmatprep.subr.bf16.mxu0 0
    %397 = vmatpush1.bf16.msra.mxu0 %v376
    %398 = vmatprep.subr.bf16.mxu0 0
    %399 = vmatpush1.bf16.msra.mxu0 %v377
    %400 = vmatprep.subr.bf16.mxu0 0
    %401 = vmatpush1.bf16.msra.mxu0 %v378
    %402 = vmatprep.subr.bf16.mxu0 0
    %403 = vmatpush1.bf16.msra.mxu0 %v379
    %404 = vmatprep.subr.bf16.mxu0 0
    %405 = vmatpush1.bf16.msra.mxu0 0
    %406 = vmatprep.subr.bf16.mxu0 0
    %407 = vmatpush1.bf16.msra.mxu0 0
    %408 = vmatprep.subr.bf16.mxu0 0
    %409 = vmatpush1.bf16.msra.mxu0 0
    %410 = vmatprep.subr.bf16.mxu0 0
    %411 = vmatpush1.bf16.msra.mxu0 0
    %412 = vmatprep.subr.bf16.mxu0 0
    %413 = vmatpush1.bf16.msra.mxu0 0
    %414 = vmatprep.subr.bf16.mxu0 0
    %415 = vmatpush1.bf16.msra.mxu0 0
    %416 = vmatprep.subr.bf16.mxu0 0
    %417 = vmatpush1.bf16.msra.mxu0 0
    %418 = vmatprep.subr.bf16.mxu0 0
    %419 = vmatpush1.bf16.msra.mxu0 0
    %420 = vmatprep.mubr.bf16.mxu0 0
    %421 = vmatmul.mubr.bf16.gmra.mrb[0].mxu0 %v183
    %v422 = vpop.f32.mrb[0].mxu0
    %v423 = vadd.f32 %v326, %v422
    %v424 = vpop.f32.mrb[0].mxu0
    %v425 = vpop.f32.mrb[0].mxu0
    %v426 = vadd.f32 %v329, %v425
    %v427 = vpop.f32.mrb[0].mxu0
    %428 = vmatprep.mubr.bf16.mxu0 0
    %429 = vmatmul.mubr.bf16.gmra.mrb[0].mxu0 %v184
    %v430 = vpop.f32.mrb[0].mxu0
    %v431 = vadd.f32 %v334, %v430
    %v432 = vpop.f32.mrb[0].mxu0
    %v433 = vpop.f32.mrb[0].mxu0
    %v434 = vadd.f32 %v337, %v433
    %v435 = vpop.f32.mrb[0].mxu0
    %436 = vdwg.mxu0
    %437 = vset.pattern.permute.xlu0 2
    %438 = vperm.xlu0 %437, %v153
    %v439 = vpop.permute.xlu0 %438
    %440 = vset.pattern.permute.xlu0 2
    %441 = vperm.xlu0 %440, %v154
    %v442 = vpop.permute.xlu0 %441
    %443 = vset.pattern.permute.xlu0 2
    %444 = vperm.xlu0 %443, %v155
    %v445 = vpop.permute.xlu0 %444
    %446 = vset.pattern.permute.xlu0 2
    %447 = vperm.xlu0 %446, %v156
    %v448 = vpop.permute.xlu0 %447
    %vm449 = vcmp.eq.s32.totalorder %v158, %v439
    %vm450 = vcmp.eq.s32.totalorder %v158, %v442
    %vm451 = vcmp.eq.s32.totalorder %v158, %v445
    %vm452 = vcmp.eq.s32.totalorder %v158, %v448
    %v453 = vsel %vm449, 1, 0
    %v454 = vsel %vm450, 1, 0
    %v455 = vsel %vm451, 1, 0
    %v456 = vsel %vm452, 1, 0
    %v457 = vcvt.s32.f32 %v453
    %v458 = vcvt.s32.f32 %v454
    %v459 = vcvt.s32.f32 %v455
    %v460 = vcvt.s32.f32 %v456
    %v461 = vpack.c.bf16 %v458, %v457
    %v462 = vpack.c.bf16 %v460, %v459
    %v463 = vld [vmem:[#allocation7 + $0x80] sm:$0xf]
    %v464 = vld [vmem:[#allocation7 + $0x84] sm:$0xf]
    %v465 = vld [vmem:[#allocation7 + $0x88] sm:$0xf]
    %v466 = vld [vmem:[#allocation7 + $0x8c] sm:$0xf]
    %v467 = vld [vmem:[#allocation7 + $0x90] sm:$0xf]
    %v468 = vld [vmem:[#allocation7 + $0x94] sm:$0xf]
    %v469 = vld [vmem:[#allocation7 + $0x98] sm:$0xf]
    %v470 = vld [vmem:[#allocation7 + $0x9c] sm:$0xf]
    %v471 = vld [vmem:[#allocation7 + $0xa0] sm:$0xf]
    %v472 = vld [vmem:[#allocation7 + $0xa4] sm:$0xf]
    %v473 = vld [vmem:[#allocation7 + $0xa8] sm:$0xf]
    %v474 = vld [vmem:[#allocation7 + $0xac] sm:$0xf]
    %v475 = vld [vmem:[#allocation7 + $0xb0] sm:$0xf]
    %v476 = vld [vmem:[#allocation7 + $0xb4] sm:$0xf]
    %v477 = vld [vmem:[#allocation7 + $0xb8] sm:$0xf]
    %v478 = vld [vmem:[#allocation7 + $0xbc] sm:$0xf]
    %v495 = vunpack.c.l.b16 %v463
    %v496 = vunpack.c.l.b16 %v464
    %v497 = vunpack.c.l.b16 %v465
    %v498 = vunpack.c.l.b16 %v466
    %v499 = vunpack.c.l.b16 %v467
    %v500 = vunpack.c.l.b16 %v468
    %v501 = vunpack.c.l.b16 %v469
    %v502 = vunpack.c.l.b16 %v470
    %v503 = vunpack.c.l.b16 %v471
    %v504 = vunpack.c.l.b16 %v472
    %v505 = vunpack.c.l.b16 %v473
    %v506 = vunpack.c.l.b16 %v474
    %v507 = vunpack.c.l.b16 %v475
    %v508 = vunpack.c.l.b16 %v476
    %v509 = vunpack.c.l.b16 %v477
    %v510 = vunpack.c.l.b16 %v478
    %v511 = vpack.c.b16 %v496, %v495
    %v512 = vpack.c.b16 %v498, %v497
    %v513 = vpack.c.b16 %v500, %v499
    %v514 = vpack.c.b16 %v502, %v501
    %v515 = vpack.c.b16 %v504, %v503
    %v516 = vpack.c.b16 %v506, %v505
    %v517 = vpack.c.b16 %v508, %v507
    %v518 = vpack.c.b16 %v510, %v509
    %527 = vmatprep.subr.bf16.mxu0 0
    %528 = vmatpush1.bf16.msra.mxu0 %v511
    %529 = vmatprep.subr.bf16.mxu0 0
    %530 = vmatpush1.bf16.msra.mxu0 %v512
    %531 = vmatprep.subr.bf16.mxu0 0
    %532 = vmatpush1.bf16.msra.mxu0 %v513
    %533 = vmatprep.subr.bf16.mxu0 0
    %534 = vmatpush1.bf16.msra.mxu0 %v514
    %535 = vmatprep.subr.bf16.mxu0 0
    %536 = vmatpush1.bf16.msra.mxu0 %v515
    %537 = vmatprep.subr.bf16.mxu0 0
    %538 = vmatpush1.bf16.msra.mxu0 %v516
    %539 = vmatprep.subr.bf16.mxu0 0
    %540 = vmatpush1.bf16.msra.mxu0 %v517
    %541 = vmatprep.subr.bf16.mxu0 0
    %542 = vmatpush1.bf16.msra.mxu0 %v518
    %543 = vmatprep.subr.bf16.mxu0 0
    %544 = vmatpush1.bf16.msra.mxu0 0
    %545 = vmatprep.subr.bf16.mxu0 0
    %546 = vmatpush1.bf16.msra.mxu0 0
    %547 = vmatprep.subr.bf16.mxu0 0
    %548 = vmatpush1.bf16.msra.mxu0 0
    %549 = vmatprep.subr.bf16.mxu0 0
    %550 = vmatpush1.bf16.msra.mxu0 0
    %551 = vmatprep.subr.bf16.mxu0 0
    %552 = vmatpush1.bf16.msra.mxu0 0
    %553 = vmatprep.subr.bf16.mxu0 0
    %554 = vmatpush1.bf16.msra.mxu0 0
    %555 = vmatprep.subr.bf16.mxu0 0
    %556 = vmatpush1.bf16.msra.mxu0 0
    %557 = vmatprep.subr.bf16.mxu0 0
    %558 = vmatpush1.bf16.msra.mxu0 0
    %559 = vmatprep.mubr.bf16.mxu0 0
    %560 = vmatmul.mubr.bf16.gmra.mrb[0].mxu0 %v461
    %v561 = vpop.f32.mrb[0].mxu0
    %v562 = vadd.f32 0.0, %v561
    %v563 = vpop.f32.mrb[0].mxu0
    %v564 = vpop.f32.mrb[0].mxu0
    %v565 = vadd.f32 0.0, %v564
    %v566 = vpop.f32.mrb[0].mxu0
    %567 = vmatprep.mubr.bf16.mxu0 0
    %568 = vmatmul.mubr.bf16.gmra.mrb[0].mxu0 %v462
    %v569 = vpop.f32.mrb[0].mxu0
    %v570 = vadd.f32 0.0, %v569
    %v571 = vpop.f32.mrb[0].mxu0
    %v572 = vpop.f32.mrb[0].mxu0
    %v573 = vadd.f32 0.0, %v572
    %v574 = vpop.f32.mrb[0].mxu0
    %575 = vdwg.mxu0
    %v576 = vadd.f32 %v423, %v562
    %v577 = vadd.f32 %v426, %v565
    %v578 = vadd.f32 %v431, %v570
    %v579 = vadd.f32 %v434, %v573
    %580 = vset.pattern.permute.xlu0 3
    %581 = vperm.xlu0 %580, %v153
    %v582 = vpop.permute.xlu0 %581
    %583 = vset.pattern.permute.xlu0 3
    %584 = vperm.xlu0 %583, %v154
    %v585 = vpop.permute.xlu0 %584
    %586 = vset.pattern.permute.xlu0 3
    %587 = vperm.xlu0 %586, %v155
    %v588 = vpop.permute.xlu0 %587
    %589 = vset.pattern.permute.xlu0 3
    %590 = vperm.xlu0 %589, %v156
    %v591 = vpop.permute.xlu0 %590
    %vm592 = vcmp.eq.s32.totalorder %v158, %v582
    %vm593 = vcmp.eq.s32.totalorder %v158, %v585
    %vm594 = vcmp.eq.s32.totalorder %v158, %v588
    %vm595 = vcmp.eq.s32.totalorder %v158, %v591
    %v596 = vsel %vm592, 1, 0
    %v597 = vsel %vm593, 1, 0
    %v598 = vsel %vm594, 1, 0
    %v599 = vsel %vm595, 1, 0
    %v600 = vcvt.s32.f32 %v596
    %v601 = vcvt.s32.f32 %v597
    %v602 = vcvt.s32.f32 %v598
    %v603 = vcvt.s32.f32 %v599
    %v604 = vpack.c.bf16 %v601, %v600
    %v605 = vpack.c.bf16 %v603, %v602
    %v606 = vld [vmem:[#allocation7 + $0xc0] sm:$0xf]
    %v607 = vld [vmem:[#allocation7 + $0xc4] sm:$0xf]
    %v608 = vld [vmem:[#allocation7 + $0xc8] sm:$0xf]
    %v609 = vld [vmem:[#allocation7 + $0xcc] sm:$0xf]
    %v610 = vld [vmem:[#allocation7 + $0xd0] sm:$0xf]
    %v611 = vld [vmem:[#allocation7 + $0xd4] sm:$0xf]
    %v612 = vld [vmem:[#allocation7 + $0xd8] sm:$0xf]
    %v613 = vld [vmem:[#allocation7 + $0xdc] sm:$0xf]
    %v614 = vld [vmem:[#allocation7 + $0xe0] sm:$0xf]
    %v615 = vld [vmem:[#allocation7 + $0xe4] sm:$0xf]
    %v616 = vld [vmem:[#allocation7 + $0xe8] sm:$0xf]
    %v617 = vld [vmem:[#allocation7 + $0xec] sm:$0xf]
    %v618 = vld [vmem:[#allocation7 + $0xf0] sm:$0xf]
    %v619 = vld [vmem:[#allocation7 + $0xf4] sm:$0xf]
    %v620 = vld [vmem:[#allocation7 + $0xf8] sm:$0xf]
    %v621 = vld [vmem:[#allocation7 + $0xfc] sm:$0xf]
    %v638 = vunpack.c.l.b16 %v606
    %v639 = vunpack.c.l.b16 %v607
    %v640 = vunpack.c.l.b16 %v608
    %v641 = vunpack.c.l.b16 %v609
    %v642 = vunpack.c.l.b16 %v610
    %v643 = vunpack.c.l.b16 %v611
    %v644 = vunpack.c.l.b16 %v612
    %v645 = vunpack.c.l.b16 %v613
    %v646 = vunpack.c.l.b16 %v614
    %v647 = vunpack.c.l.b16 %v615
    %v648 = vunpack.c.l.b16 %v616
    %v649 = vunpack.c.l.b16 %v617
    %v650 = vunpack.c.l.b16 %v618
    %v651 = vunpack.c.l.b16 %v619
    %v652 = vunpack.c.l.b16 %v620
    %v653 = vunpack.c.l.b16 %v621
    %v654 = vpack.c.b16 %v639, %v638
    %v655 = vpack.c.b16 %v641, %v640
    %v656 = vpack.c.b16 %v643, %v642
    %v657 = vpack.c.b16 %v645, %v644
    %v658 = vpack.c.b16 %v647, %v646
    %v659 = vpack.c.b16 %v649, %v648
    %v660 = vpack.c.b16 %v651, %v650
    %v661 = vpack.c.b16 %v653, %v652
    %670 = vmatprep.subr.bf16.mxu0 0
    %671 = vmatpush1.bf16.msra.mxu0 %v654
    %672 = vmatprep.subr.bf16.mxu0 0
    %673 = vmatpush1.bf16.msra.mxu0 %v655
    %674 = vmatprep.subr.bf16.mxu0 0
    %675 = vmatpush1.bf16.msra.mxu0 %v656
    %676 = vmatprep.subr.bf16.mxu0 0
    %677 = vmatpush1.bf16.msra.mxu0 %v657
    %678 = vmatprep.subr.bf16.mxu0 0
    %679 = vmatpush1.bf16.msra.mxu0 %v658
    %680 = vmatprep.subr.bf16.mxu0 0
    %681 = vmatpush1.bf16.msra.mxu0 %v659
    %682 = vmatprep.subr.bf16.mxu0 0
    %683 = vmatpush1.bf16.msra.mxu0 %v660
    %684 = vmatprep.subr.bf16.mxu0 0
    %685 = vmatpush1.bf16.msra.mxu0 %v661
    %686 = vmatprep.subr.bf16.mxu0 0
    %687 = vmatpush1.bf16.msra.mxu0 0
    %688 = vmatprep.subr.bf16.mxu0 0
    %689 = vmatpush1.bf16.msra.mxu0 0
    %690 = vmatprep.subr.bf16.mxu0 0
    %691 = vmatpush1.bf16.msra.mxu0 0
    %692 = vmatprep.subr.bf16.mxu0 0
    %693 = vmatpush1.bf16.msra.mxu0 0
    %694 = vmatprep.subr.bf16.mxu0 0
    %695 = vmatpush1.bf16.msra.mxu0 0
    %696 = vmatprep.subr.bf16.mxu0 0
    %697 = vmatpush1.bf16.msra.mxu0 0
    %698 = vmatprep.subr.bf16.mxu0 0
    %699 = vmatpush1.bf16.msra.mxu0 0
    %700 = vmatprep.subr.bf16.mxu0 0
    %701 = vmatpush1.bf16.msra.mxu0 0
    %702 = vmatprep.mubr.bf16.mxu0 0
    %703 = vmatmul.mubr.bf16.gmra.mrb[0].mxu0 %v604
    %v704 = vpop.f32.mrb[0].mxu0
    %v705 = vadd.f32 0.0, %v704
    %v706 = vpop.f32.mrb[0].mxu0
    %v707 = vpop.f32.mrb[0].mxu0
    %v708 = vadd.f32 0.0, %v707
    %v709 = vpop.f32.mrb[0].mxu0
    %710 = vmatprep.mubr.bf16.mxu0 0
    %711 = vmatmul.mubr.bf16.gmra.mrb[0].mxu0 %v605
    %v712 = vpop.f32.mrb[0].mxu0
    %v713 = vadd.f32 0.0, %v712
    %v714 = vpop.f32.mrb[0].mxu0
    %v715 = vpop.f32.mrb[0].mxu0
    %v716 = vadd.f32 0.0, %v715
    %v717 = vpop.f32.mrb[0].mxu0
    %718 = vdwg.mxu0
    %v719 = vadd.f32 %v576, %v705
    %v720 = vadd.f32 %v577, %v708
    %v721 = vadd.f32 %v578, %v713
    %v722 = vadd.f32 %v579, %v716
    %723 = vset.pattern.permute.xlu0 4
    %724 = vperm.xlu0 %723, %v153
    %v725 = vpop.permute.xlu0 %724
    %726 = vset.pattern.permute.xlu0 4
    %727 = vperm.xlu0 %726, %v154
    %v728 = vpop.permute.xlu0 %727
    %729 = vset.pattern.permute.xlu0 4
    %730 = vperm.xlu0 %729, %v155
    %v731 = vpop.permute.xlu0 %730
    %732 = vset.pattern.permute.xlu0 4
    %733 = vperm.xlu0 %732, %v156
    %v734 = vpop.permute.xlu0 %733
    %vm735 = vcmp.eq.s32.totalorder %v158, %v725
    %vm736 = vcmp.eq.s32.totalorder %v158, %v728
    %vm737 = vcmp.eq.s32.totalorder %v158, %v731
    %vm738 = vcmp.eq.s32.totalorder %v158, %v734
    %v739 = vsel %vm735, 1, 0
    %v740 = vsel %vm736, 1, 0
    %v741 = vsel %vm737, 1, 0
    %v742 = vsel %vm738, 1, 0
    %v743 = vcvt.s32.f32 %v739
    %v744 = vcvt.s32.f32 %v740
    %v745 = vcvt.s32.f32 %v741
    %v746 = vcvt.s32.f32 %v742
    %v747 = vpack.c.bf16 %v744, %v743
    %v748 = vpack.c.bf16 %v746, %v745
    %v749 = vld [vmem:[#allocation7 + $0x100] sm:$0xf]
    %v750 = vld [vmem:[#allocation7 + $0x104] sm:$0xf]
    %v751 = vld [vmem:[#allocation7 + $0x108] sm:$0xf]
    %v752 = vld [vmem:[#allocation7 + $0x10c] sm:$0xf]
    %v753 = vld [vmem:[#allocation7 + $0x110] sm:$0xf]
    %v754 = vld [vmem:[#allocation7 + $0x114] sm:$0xf]
    %v755 = vld [vmem:[#allocation7 + $0x118] sm:$0xf]
    %v756 = vld [vmem:[#allocation7 + $0x11c] sm:$0xf]
    %v757 = vld [vmem:[#allocation7 + $0x120] sm:$0xf]
    %v758 = vld [vmem:[#allocation7 + $0x124] sm:$0xf]
    %v759 = vld [vmem:[#allocation7 + $0x128] sm:$0xf]
    %v760 = vld [vmem:[#allocation7 + $0x12c] sm:$0xf]
    %v761 = vld [vmem:[#allocation7 + $0x130] sm:$0xf]
    %v762 = vld [vmem:[#allocation7 + $0x134] sm:$0xf]
    %v763 = vld [vmem:[#allocation7 + $0x138] sm:$0xf]
    %v764 = vld [vmem:[#allocation7 + $0x13c] sm:$0xf]
    %v781 = vunpack.c.l.b16 %v749
    %v782 = vunpack.c.l.b16 %v750
    %v783 = vunpack.c.l.b16 %v751
    %v784 = vunpack.c.l.b16 %v752
    %v785 = vunpack.c.l.b16 %v753
    %v786 = vunpack.c.l.b16 %v754
    %v787 = vunpack.c.l.b16 %v755
    %v788 = vunpack.c.l.b16 %v756
    %v789 = vunpack.c.l.b16 %v757
    %v790 = vunpack.c.l.b16 %v758
    %v791 = vunpack.c.l.b16 %v759
    %v792 = vunpack.c.l.b16 %v760
    %v793 = vunpack.c.l.b16 %v761
    %v794 = vunpack.c.l.b16 %v762
    %v795 = vunpack.c.l.b16 %v763
    %v796 = vunpack.c.l.b16 %v764
    %v797 = vpack.c.b16 %v782, %v781
    %v798 = vpack.c.b16 %v784, %v783
    %v799 = vpack.c.b16 %v786, %v785
    %v800 = vpack.c.b16 %v788, %v787
    %v801 = vpack.c.b16 %v790, %v789
    %v802 = vpack.c.b16 %v792, %v791
    %v803 = vpack.c.b16 %v794, %v793
    %v804 = vpack.c.b16 %v796, %v795
    %813 = vmatprep.subr.bf16.mxu0 0
    %814 = vmatpush1.bf16.msra.mxu0 %v797
    %815 = vmatprep.subr.bf16.mxu0 0
    %816 = vmatpush1.bf16.msra.mxu0 %v798
    %817 = vmatprep.subr.bf16.mxu0 0
    %818 = vmatpush1.bf16.msra.mxu0 %v799
    %819 = vmatprep.subr.bf16.mxu0 0
    %820 = vmatpush1.bf16.msra.mxu0 %v800
    %821 = vmatprep.subr.bf16.mxu0 0
    %822 = vmatpush1.bf16.msra.mxu0 %v801
    %823 = vmatprep.subr.bf16.mxu0 0
    %824 = vmatpush1.bf16.msra.mxu0 %v802
    %825 = vmatprep.subr.bf16.mxu0 0
    %826 = vmatpush1.bf16.msra.mxu0 %v803
    %827 = vmatprep.subr.bf16.mxu0 0
    %828 = vmatpush1.bf16.msra.mxu0 %v804
    %829 = vmatprep.subr.bf16.mxu0 0
    %830 = vmatpush1.bf16.msra.mxu0 0
    %831 = vmatprep.subr.bf16.mxu0 0
    %832 = vmatpush1.bf16.msra.mxu0 0
    %833 = vmatprep.subr.bf16.mxu0 0
    %834 = vmatpush1.bf16.msra.mxu0 0
    %835 = vmatprep.subr.bf16.mxu0 0
    %836 = vmatpush1.bf16.msra.mxu0 0
    %837 = vmatprep.subr.bf16.mxu0 0
    %838 = vmatpush1.bf16.msra.mxu0 0
    %839 = vmatprep.subr.bf16.mxu0 0
    %840 = vmatpush1.bf16.msra.mxu0 0
    %841 = vmatprep.subr.bf16.mxu0 0
    %842 = vmatpush1.bf16.msra.mxu0 0
    %843 = vmatprep.subr.bf16.mxu0 0
    %844 = vmatpush1.bf16.msra.mxu0 0
    %845 = vmatprep.mubr.bf16.mxu0 0
    %846 = vmatmul.mubr.bf16.gmra.mrb[0].mxu0 %v747
    %v847 = vpop.f32.mrb[0].mxu0
    %v848 = vadd.f32 0.0, %v847
    %v849 = vpop.f32.mrb[0].mxu0
    %v850 = vpop.f32.mrb[0].mxu0
    %v851 = vadd.f32 0.0, %v850
    %v852 = vpop.f32.mrb[0].mxu0
    %853 = vmatprep.mubr.bf16.mxu0 0
    %854 = vmatmul.mubr.bf16.gmra.mrb[0].mxu0 %v748
    %v855 = vpop.f32.mrb[0].mxu0
    %v856 = vadd.f32 0.0, %v855
    %v857 = vpop.f32.mrb[0].mxu0
    %v858 = vpop.f32.mrb[0].mxu0
    %v859 = vadd.f32 0.0, %v858
    %v860 = vpop.f32.mrb[0].mxu0
    %861 = vdwg.mxu0
    %v862 = vadd.f32 %v719, %v848
    %v863 = vadd.f32 %v720, %v851
    %v864 = vadd.f32 %v721, %v856
    %v865 = vadd.f32 %v722, %v859
    %v866 = vld [vmem:[#allocation2] sm:$0xff]
    %v867 = vunpack.c.l.s8.bf16 %v866
    %v868 = vunpack.c.h.s8.bf16 %v866
    %v869 = vld [vmem:[#allocation9] sm:$0xf]
    %v870 = vld [vmem:[#allocation9 + $0x4] sm:$0xf]
    %v871 = vld [vmem:[#allocation9 + $0x8] sm:$0xf]
    %v872 = vld [vmem:[#allocation9 + $0xc] sm:$0xf]
    %v873 = vld [vmem:[#allocation9 + $0x10] sm:$0xf]
    %v874 = vld [vmem:[#allocation9 + $0x14] sm:$0xf]
    %v875 = vld [vmem:[#allocation9 + $0x18] sm:$0xf]
    %v876 = vld [vmem:[#allocation9 + $0x1c] sm:$0xf]
    %v877 = vld [vmem:[#allocation9 + $0x20] sm:$0xf]
    %v878 = vld [vmem:[#allocation9 + $0x24] sm:$0xf]
    %v879 = vld [vmem:[#allocation9 + $0x28] sm:$0xf]
    %v880 = vld [vmem:[#allocation9 + $0x2c] sm:$0xf]
    %v881 = vld [vmem:[#allocation9 + $0x30] sm:$0xf]
    %v882 = vld [vmem:[#allocation9 + $0x34] sm:$0xf]
    %v883 = vld [vmem:[#allocation9 + $0x38] sm:$0xf]
    %v884 = vld [vmem:[#allocation9 + $0x3c] sm:$0xf]
    %v901 = vunpack.c.l.b16 %v869
    %v902 = vunpack.c.l.b16 %v870
    %v903 = vunpack.c.l.b16 %v871
    %v904 = vunpack.c.l.b16 %v872
    %v905 = vunpack.c.l.b16 %v873
    %v906 = vunpack.c.l.b16 %v874
    %v907 = vunpack.c.l.b16 %v875
    %v908 = vunpack.c.l.b16 %v876
    %v909 = vunpack.c.l.b16 %v877
    %v910 = vunpack.c.l.b16 %v878
    %v911 = vunpack.c.l.b16 %v879
    %v912 = vunpack.c.l.b16 %v880
    %v913 = vunpack.c.l.b16 %v881
    %v914 = vunpack.c.l.b16 %v882
    %v915 = vunpack.c.l.b16 %v883
    %v916 = vunpack.c.l.b16 %v884
    %v917 = vpack.c.b16 %v902, %v901
    %v918 = vpack.c.b16 %v904, %v903
    %v919 = vpack.c.b16 %v906, %v905
    %v920 = vpack.c.b16 %v908, %v907
    %v921 = vpack.c.b16 %v910, %v909
    %v922 = vpack.c.b16 %v912, %v911
    %v923 = vpack.c.b16 %v914, %v913
    %v924 = vpack.c.b16 %v916, %v915
    %933 = vmatprep.subr.bf16.mxu0 0
    %934 = vmatpush1.bf16.msra.mxu0 %v917
    %935 = vmatprep.subr.bf16.mxu0 0
    %936 = vmatpush1.bf16.msra.mxu0 %v918
    %937 = vmatprep.subr.bf16.mxu0 0
    %938 = vmatpush1.bf16.msra.mxu0 %v919
    %939 = vmatprep.subr.bf16.mxu0 0
    %940 = vmatpush1.bf16.msra.mxu0 %v920
    %941 = vmatprep.subr.bf16.mxu0 0
    %942 = vmatpush1.bf16.msra.mxu0 %v921
    %943 = vmatprep.subr.bf16.mxu0 0
    %944 = vmatpush1.bf16.msra.mxu0 %v922
    %945 = vmatprep.subr.bf16.mxu0 0
    %946 = vmatpush1.bf16.msra.mxu0 %v923
    %947 = vmatprep.subr.bf16.mxu0 0
    %948 = vmatpush1.bf16.msra.mxu0 %v924
    %949 = vmatprep.subr.bf16.mxu0 0
    %950 = vmatpush1.bf16.msra.mxu0 0
    %951 = vmatprep.subr.bf16.mxu0 0
    %952 = vmatpush1.bf16.msra.mxu0 0
    %953 = vmatprep.subr.bf16.mxu0 0
    %954 = vmatpush1.bf16.msra.mxu0 0
    %955 = vmatprep.subr.bf16.mxu0 0
    %956 = vmatpush1.bf16.msra.mxu0 0
    %957 = vmatprep.subr.bf16.mxu0 0
    %958 = vmatpush1.bf16.msra.mxu0 0
    %959 = vmatprep.subr.bf16.mxu0 0
    %960 = vmatpush1.bf16.msra.mxu0 0
    %961 = vmatprep.subr.bf16.mxu0 0
    %962 = vmatpush1.bf16.msra.mxu0 0
    %963 = vmatprep.subr.bf16.mxu0 0
    %964 = vmatpush1.bf16.msra.mxu0 0
    %965 = vmatprep.mubr.bf16.mxu0 0
    %966 = vmatmul.mubr.bf16.gmra.mrb[0].mxu0 %v867
    %v967 = vpop.f32.mrb[0].mxu0
    %v968 = vadd.f32 0.0, %v967
    %v969 = vpop.f32.mrb[0].mxu0
    %v970 = vpop.f32.mrb[0].mxu0
    %v971 = vadd.f32 0.0, %v970
    %v972 = vpop.f32.mrb[0].mxu0
    %973 = vmatprep.mubr.bf16.mxu0 0
    %974 = vmatmul.mubr.bf16.gmra.mrb[0].mxu0 %v868
    %v975 = vpop.f32.mrb[0].mxu0
    %v976 = vadd.f32 0.0, %v975
    %v977 = vpop.f32.mrb[0].mxu0
    %v978 = vpop.f32.mrb[0].mxu0
    %v979 = vadd.f32 0.0, %v978
    %v980 = vpop.f32.mrb[0].mxu0
    %981 = vdwg.mxu0
    %v982 = vmax.f32 %v968, 1e-20
    %v983 = vmax.f32 %v971, 1e-20
    %v984 = vmax.f32 %v976, 1e-20
    %v985 = vmax.f32 %v979, 1e-20
    %v986 = vrcp.pop %v982
    %v987 = vrcp.pop %v983
    %v988 = vrcp.pop %v984
    %v989 = vrcp.pop %v985
    %991 = vset.pattern.permute.xlu0 127
    %992 = vperm.xlu0 %991, %v986
    %v993 = vpop.permute.xlu0 %992
    %996 = vset.pattern.permute.xlu0 127
    %997 = vperm.xlu0 %996, %v987
    %v998 = vpop.permute.xlu0 %997
    %1001 = vset.pattern.permute.xlu0 127
    %1002 = vperm.xlu0 %1001, %v988
    %v1003 = vpop.permute.xlu0 %1002
    %1006 = vset.pattern.permute.xlu0 127
    %1007 = vperm.xlu0 %1006, %v989
    %v1008 = vpop.permute.xlu0 %1007
    %v1010 = vmul.f32 %v968, %v993
    %v1011 = vmul.f32 %v971, %v998
    %v1012 = vmul.f32 %v976, %v1003
    %v1013 = vmul.f32 %v979, %v1008
    %v1014 = vadd.f32 %v862, %v1010
    %v1015 = vadd.f32 %v863, %v1011
    %v1016 = vadd.f32 %v864, %v1012
    %v1017 = vadd.f32 %v865, %v1013
    %v1018 = vld [vmem:[#allocation4] sm:$0xff]
    %v1019 = vld [vmem:[#allocation4 + $0x8] sm:$0xff]
    %v1020 = vld [vmem:[#allocation4 + $0x10] sm:$0xff]
    %v1021 = vld [vmem:[#allocation4 + $0x18] sm:$0xff]
    %v1022 = vld [vmem:[#allocation4 + $0x20] sm:$0xff]
    %v1023 = vld [vmem:[#allocation4 + $0x28] sm:$0xff]
    %v1024 = vld [vmem:[#allocation4 + $0x30] sm:$0xff]
    %v1025 = vld [vmem:[#allocation4 + $0x38] sm:$0xff]
    %v1026 = vld [vmem:[#allocation4 + $0x40] sm:$0xff]
    %v1027 = vld [vmem:[#allocation4 + $0x48] sm:$0xff]
    %v1028 = vld [vmem:[#allocation4 + $0x50] sm:$0xff]
    %v1029 = vld [vmem:[#allocation4 + $0x58] sm:$0xff]
    %v1030 = vld [vmem:[#allocation4 + $0x60] sm:$0xff]
    %v1031 = vld [vmem:[#allocation4 + $0x68] sm:$0xff]
    %v1032 = vld [vmem:[#allocation4 + $0x70] sm:$0xff]
    %v1033 = vld [vmem:[#allocation4 + $0x78] sm:$0xff]
    %v1034 = vld [vmem:[#allocation4 + $0x80] sm:$0xff]
    %v1035 = vld [vmem:[#allocation4 + $0x88] sm:$0xff]
    %v1036 = vunpack.c.l.s8.bf16 %v1018
    %v1037 = vunpack.c.l.s8.bf16 %v1019
    %v1038 = vunpack.c.l.s8.bf16 %v1020
    %v1039 = vunpack.c.l.s8.bf16 %v1021
    %v1040 = vunpack.c.l.s8.bf16 %v1022
    %v1041 = vunpack.c.l.s8.bf16 %v1023
    %v1042 = vunpack.c.l.s8.bf16 %v1024
    %v1043 = vunpack.c.l.s8.bf16 %v1025
    %v1044 = vunpack.c.l.s8.bf16 %v1026
    %v1045 = vunpack.c.l.s8.bf16 %v1027
    %v1046 = vunpack.c.l.s8.bf16 %v1028
    %v1047 = vunpack.c.l.s8.bf16 %v1029
    %v1048 = vunpack.c.l.s8.bf16 %v1030
    %v1049 = vunpack.c.l.s8.bf16 %v1031
    %v1050 = vunpack.c.l.s8.bf16 %v1032
    %v1051 = vunpack.c.l.s8.bf16 %v1033
    %v1052 = vunpack.c.l.s8.bf16 %v1034
    %v1053 = vunpack.c.l.s8.bf16 %v1035
    %v1054 = vunpack.c.h.s8.bf16 %v1018
    %v1055 = vunpack.c.h.s8.bf16 %v1019
    %v1056 = vunpack.c.h.s8.bf16 %v1020
    %v1057 = vunpack.c.h.s8.bf16 %v1021
    %v1058 = vunpack.c.h.s8.bf16 %v1022
    %v1059 = vunpack.c.h.s8.bf16 %v1023
    %v1060 = vunpack.c.h.s8.bf16 %v1024
    %v1061 = vunpack.c.h.s8.bf16 %v1025
    %v1062 = vunpack.c.h.s8.bf16 %v1026
    %v1063 = vunpack.c.h.s8.bf16 %v1027
    %v1064 = vunpack.c.h.s8.bf16 %v1028
    %v1065 = vunpack.c.h.s8.bf16 %v1029
    %v1066 = vunpack.c.h.s8.bf16 %v1030
    %v1067 = vunpack.c.h.s8.bf16 %v1031
    %v1068 = vunpack.c.h.s8.bf16 %v1032
    %v1069 = vunpack.c.h.s8.bf16 %v1033
    %v1070 = vunpack.c.h.s8.bf16 %v1034
    %v1071 = vunpack.c.h.s8.bf16 %v1035
    %v1072 = vld [vmem:[#allocation10] sm:$0xf]
    %v1073 = vld [vmem:[#allocation10 + $0x4] sm:$0xf]
    %v1074 = vld [vmem:[#allocation10 + $0x8] sm:$0xf]
    %v1075 = vld [vmem:[#allocation10 + $0xc] sm:$0xf]
    %v1076 = vld [vmem:[#allocation10 + $0x10] sm:$0xf]
    %v1077 = vld [vmem:[#allocation10 + $0x14] sm:$0xf]
    %v1078 = vld [vmem:[#allocation10 + $0x18] sm:$0xf]
    %v1079 = vld [vmem:[#allocation10 + $0x1c] sm:$0xf]
    %v1080 = vld [vmem:[#allocation10 + $0x20] sm:$0xf]
    %v1081 = vld [vmem:[#allocation10 + $0x24] sm:$0xf]
    %v1082 = vld [vmem:[#allocation10 + $0x28] sm:$0xf]
    %v1083 = vld [vmem:[#allocation10 + $0x2c] sm:$0xf]
    %v1084 = vld [vmem:[#allocation10 + $0x30] sm:$0xf]
    %v1085 = vld [vmem:[#allocation10 + $0x34] sm:$0xf]
    %v1086 = vld [vmem:[#allocation10 + $0x38] sm:$0xf]
    %v1087 = vld [vmem:[#allocation10 + $0x3c] sm:$0xf]
    %v1088 = vld [vmem:[#allocation10 + $0x40] sm:$0xf]
    %v1089 = vld [vmem:[#allocation10 + $0x44] sm:$0xf]
    %v1090 = vld [vmem:[#allocation10 + $0x48] sm:$0xf]
    %v1091 = vld [vmem:[#allocation10 + $0x4c] sm:$0xf]
    %v1092 = vld [vmem:[#allocation10 + $0x50] sm:$0xf]
    %v1093 = vld [vmem:[#allocation10 + $0x54] sm:$0xf]
    %v1094 = vld [vmem:[#allocation10 + $0x58] sm:$0xf]
    %v1095 = vld [vmem:[#allocation10 + $0x5c] sm:$0xf]
    %v1096 = vld [vmem:[#allocation10 + $0x60] sm:$0xf]
    %v1097 = vld [vmem:[#allocation10 + $0x64] sm:$0xf]
    %v1098 = vld [vmem:[#allocation10 + $0x68] sm:$0xf]
    %v1099 = vld [vmem:[#allocation10 + $0x6c] sm:$0xf]
    %v1100 = vld [vmem:[#allocation10 + $0x70] sm:$0xf]
    %v1101 = vld [vmem:[#allocation10 + $0x74] sm:$0xf]
    %v1102 = vld [vmem:[#allocation10 + $0x78] sm:$0xf]
    %v1103 = vld [vmem:[#allocation10 + $0x7c] sm:$0xf]
    %v1104 = vld [vmem:[#allocation10 + $0x80] sm:$0xf]
    %v1105 = vld [vmem:[#allocation10 + $0x84] sm:$0xf]
    %v1106 = vld [vmem:[#allocation10 + $0x88] sm:$0xf]
    %v1107 = vld [vmem:[#allocation10 + $0x8c] sm:$0xf]
    %v1108 = vld [vmem:[#allocation10 + $0x90] sm:$0xf]
    %v1109 = vld [vmem:[#allocation10 + $0x94] sm:$0xf]
    %v1110 = vld [vmem:[#allocation10 + $0x98] sm:$0xf]
    %v1111 = vld [vmem:[#allocation10 + $0x9c] sm:$0xf]
    %v1112 = vld [vmem:[#allocation10 + $0xa0] sm:$0xf]
    %v1113 = vld [vmem:[#allocation10 + $0xa4] sm:$0xf]
    %v1114 = vld [vmem:[#allocation10 + $0xa8] sm:$0xf]
    %v1115 = vld [vmem:[#allocation10 + $0xac] sm:$0xf]
    %v1116 = vld [vmem:[#allocation10 + $0xb0] sm:$0xf]
    %v1117 = vld [vmem:[#allocation10 + $0xb4] sm:$0xf]
    %v1118 = vld [vmem:[#allocation10 + $0xb8] sm:$0xf]
    %v1119 = vld [vmem:[#allocation10 + $0xbc] sm:$0xf]
    %v1120 = vld [vmem:[#allocation10 + $0xc0] sm:$0xf]
    %v1121 = vld [vmem:[#allocation10 + $0xc4] sm:$0xf]
    %v1122 = vld [vmem:[#allocation10 + $0xc8] sm:$0xf]
    %v1123 = vld [vmem:[#allocation10 + $0xcc] sm:$0xf]
    %v1124 = vld [vmem:[#allocation10 + $0xd0] sm:$0xf]
    %v1125 = vld [vmem:[#allocation10 + $0xd4] sm:$0xf]
    %v1126 = vld [vmem:[#allocation10 + $0xd8] sm:$0xf]
    %v1127 = vld [vmem:[#allocation10 + $0xdc] sm:$0xf]
    %v1128 = vld [vmem:[#allocation10 + $0xe0] sm:$0xf]
    %v1129 = vld [vmem:[#allocation10 + $0xe4] sm:$0xf]
    %v1130 = vld [vmem:[#allocation10 + $0xe8] sm:$0xf]
    %v1131 = vld [vmem:[#allocation10 + $0xec] sm:$0xf]
    %v1132 = vld [vmem:[#allocation10 + $0xf0] sm:$0xf]
    %v1133 = vld [vmem:[#allocation10 + $0xf4] sm:$0xf]
    %v1134 = vld [vmem:[#allocation10 + $0xf8] sm:$0xf]
    %v1135 = vld [vmem:[#allocation10 + $0xfc] sm:$0xf]
    %v1136 = vld [vmem:[#allocation10 + $0x100] sm:$0xf]
    %v1137 = vld [vmem:[#allocation10 + $0x104] sm:$0xf]
    %v1138 = vld [vmem:[#allocation10 + $0x108] sm:$0xf]
    %v1139 = vld [vmem:[#allocation10 + $0x10c] sm:$0xf]
    %v1140 = vld [vmem:[#allocation10 + $0x110] sm:$0xf]
    %v1141 = vld [vmem:[#allocation10 + $0x114] sm:$0xf]
    %v1142 = vld [vmem:[#allocation10 + $0x118] sm:$0xf]
    %v1143 = vld [vmem:[#allocation10 + $0x11c] sm:$0xf]
    %v1144 = vld [vmem:[#allocation10 + $0x120] sm:$0xf]
    %v1145 = vld [vmem:[#allocation10 + $0x124] sm:$0xf]
    %v1146 = vld [vmem:[#allocation10 + $0x128] sm:$0xf]
    %v1147 = vld [vmem:[#allocation10 + $0x12c] sm:$0xf]
    %v1148 = vld [vmem:[#allocation10 + $0x130] sm:$0xf]
    %v1149 = vld [vmem:[#allocation10 + $0x134] sm:$0xf]
    %v1150 = vld [vmem:[#allocation10 + $0x138] sm:$0xf]
    %v1151 = vld [vmem:[#allocation10 + $0x13c] sm:$0xf]
    %v1152 = vld [vmem:[#allocation10 + $0x140] sm:$0xf]
    %v1153 = vld [vmem:[#allocation10 + $0x144] sm:$0xf]
    %v1154 = vld [vmem:[#allocation10 + $0x148] sm:$0xf]
    %v1155 = vld [vmem:[#allocation10 + $0x14c] sm:$0xf]
    %v1156 = vld [vmem:[#allocation10 + $0x150] sm:$0xf]
    %v1157 = vld [vmem:[#allocation10 + $0x154] sm:$0xf]
    %v1158 = vld [vmem:[#allocation10 + $0x158] sm:$0xf]
    %v1159 = vld [vmem:[#allocation10 + $0x15c] sm:$0xf]
    %v1160 = vld [vmem:[#allocation10 + $0x160] sm:$0xf]
    %v1161 = vld [vmem:[#allocation10 + $0x164] sm:$0xf]
    %v1162 = vld [vmem:[#allocation10 + $0x168] sm:$0xf]
    %v1163 = vld [vmem:[#allocation10 + $0x16c] sm:$0xf]
    %v1164 = vld [vmem:[#allocation10 + $0x170] sm:$0xf]
    %v1165 = vld [vmem:[#allocation10 + $0x174] sm:$0xf]
    %v1166 = vld [vmem:[#allocation10 + $0x178] sm:$0xf]
    %v1167 = vld [vmem:[#allocation10 + $0x17c] sm:$0xf]
    %v1168 = vld [vmem:[#allocation10 + $0x180] sm:$0xf]
    %v1169 = vld [vmem:[#allocation10 + $0x184] sm:$0xf]
    %v1170 = vld [vmem:[#allocation10 + $0x188] sm:$0xf]
    %v1171 = vld [vmem:[#allocation10 + $0x18c] sm:$0xf]
    %v1172 = vld [vmem:[#allocation10 + $0x190] sm:$0xf]
    %v1173 = vld [vmem:[#allocation10 + $0x194] sm:$0xf]
    %v1174 = vld [vmem:[#allocation10 + $0x198] sm:$0xf]
    %v1175 = vld [vmem:[#allocation10 + $0x19c] sm:$0xf]
    %v1176 = vld [vmem:[#allocation10 + $0x1a0] sm:$0xf]
    %v1177 = vld [vmem:[#allocation10 + $0x1a4] sm:$0xf]
    %v1178 = vld [vmem:[#allocation10 + $0x1a8] sm:$0xf]
    %v1179 = vld [vmem:[#allocation10 + $0x1ac] sm:$0xf]
    %v1180 = vld [vmem:[#allocation10 + $0x1b0] sm:$0xf]
    %v1181 = vld [vmem:[#allocation10 + $0x1b4] sm:$0xf]
    %v1182 = vld [vmem:[#allocation10 + $0x1b8] sm:$0xf]
    %v1183 = vld [vmem:[#allocation10 + $0x1bc] sm:$0xf]
    %v1184 = vld [vmem:[#allocation10 + $0x1c0] sm:$0xf]
    %v1185 = vld [vmem:[#allocation10 + $0x1c4] sm:$0xf]
    %v1186 = vld [vmem:[#allocation10 + $0x1c8] sm:$0xf]
    %v1187 = vld [vmem:[#allocation10 + $0x1cc] sm:$0xf]
    %v1188 = vld [vmem:[#allocation10 + $0x1d0] sm:$0xf]
    %v1189 = vld [vmem:[#allocation10 + $0x1d4] sm:$0xf]
    %v1190 = vld [vmem:[#allocation10 + $0x1d8] sm:$0xf]
    %v1191 = vld [vmem:[#allocation10 + $0x1dc] sm:$0xf]
    %v1192 = vld [vmem:[#allocation10 + $0x1e0] sm:$0xf]
    %v1193 = vld [vmem:[#allocation10 + $0x1e4] sm:$0xf]
    %v1194 = vld [vmem:[#allocation10 + $0x1e8] sm:$0xf]
    %v1195 = vld [vmem:[#allocation10 + $0x1ec] sm:$0xf]
    %v1196 = vld [vmem:[#allocation10 + $0x1f0] sm:$0xf]
    %v1197 = vld [vmem:[#allocation10 + $0x1f4] sm:$0xf]
    %v1198 = vld [vmem:[#allocation10 + $0x1f8] sm:$0xf]
    %v1199 = vld [vmem:[#allocation10 + $0x1fc] sm:$0xf]
    %v1200 = vld [vmem:[#allocation10 + $0x200] sm:$0xf]
    %v1201 = vld [vmem:[#allocation10 + $0x204] sm:$0xf]
    %v1202 = vld [vmem:[#allocation10 + $0x208] sm:$0xf]
    %v1203 = vld [vmem:[#allocation10 + $0x20c] sm:$0xf]
    %v1204 = vld [vmem:[#allocation10 + $0x210] sm:$0xf]
    %v1205 = vld [vmem:[#allocation10 + $0x214] sm:$0xf]
    %v1206 = vld [vmem:[#allocation10 + $0x218] sm:$0xf]
    %v1207 = vld [vmem:[#allocation10 + $0x21c] sm:$0xf]
    %v1208 = vld [vmem:[#allocation10 + $0x220] sm:$0xf]
    %v1209 = vld [vmem:[#allocation10 + $0x224] sm:$0xf]
    %v1210 = vld [vmem:[#allocation10 + $0x228] sm:$0xf]
    %v1211 = vld [vmem:[#allocation10 + $0x22c] sm:$0xf]
    %v1212 = vld [vmem:[#allocation10 + $0x230] sm:$0xf]
    %v1213 = vld [vmem:[#allocation10 + $0x234] sm:$0xf]
    %v1214 = vld [vmem:[#allocation10 + $0x238] sm:$0xf]
    %v1215 = vld [vmem:[#allocation10 + $0x23c] sm:$0xf]
    %v1216 = vld [vmem:[#allocation10 + $0x240] sm:$0xf]
    %v1217 = vld [vmem:[#allocation10 + $0x244] sm:$0xf]
    %v1218 = vld [vmem:[#allocation10 + $0x248] sm:$0xf]
    %v1219 = vld [vmem:[#allocation10 + $0x24c] sm:$0xf]
    %v1220 = vld [vmem:[#allocation10 + $0x250] sm:$0xf]
    %v1221 = vld [vmem:[#allocation10 + $0x254] sm:$0xf]
    %v1222 = vld [vmem:[#allocation10 + $0x258] sm:$0xf]
    %v1223 = vld [vmem:[#allocation10 + $0x25c] sm:$0xf]
    %v1224 = vld [vmem:[#allocation10 + $0x260] sm:$0xf]
    %v1225 = vld [vmem:[#allocation10 + $0x264] sm:$0xf]
    %v1226 = vld [vmem:[#allocation10 + $0x268] sm:$0xf]
    %v1227 = vld [vmem:[#allocation10 + $0x26c] sm:$0xf]
    %v1228 = vld [vmem:[#allocation10 + $0x270] sm:$0xf]
    %v1229 = vld [vmem:[#allocation10 + $0x274] sm:$0xf]
    %v1230 = vld [vmem:[#allocation10 + $0x278] sm:$0xf]
    %v1231 = vld [vmem:[#allocation10 + $0x27c] sm:$0xf]
    %v1232 = vld [vmem:[#allocation10 + $0x280] sm:$0xf]
    %v1233 = vld [vmem:[#allocation10 + $0x284] sm:$0xf]
    %v1234 = vld [vmem:[#allocation10 + $0x288] sm:$0xf]
    %v1235 = vld [vmem:[#allocation10 + $0x28c] sm:$0xf]
    %v1236 = vld [vmem:[#allocation10 + $0x290] sm:$0xf]
    %v1237 = vld [vmem:[#allocation10 + $0x294] sm:$0xf]
    %v1238 = vld [vmem:[#allocation10 + $0x298] sm:$0xf]
    %v1239 = vld [vmem:[#allocation10 + $0x29c] sm:$0xf]
    %v1240 = vld [vmem:[#allocation10 + $0x2a0] sm:$0xf]
    %v1241 = vld [vmem:[#allocation10 + $0x2a4] sm:$0xf]
    %v1242 = vld [vmem:[#allocation10 + $0x2a8] sm:$0xf]
    %v1243 = vld [vmem:[#allocation10 + $0x2ac] sm:$0xf]
    %v1244 = vld [vmem:[#allocation10 + $0x2b0] sm:$0xf]
    %v1245 = vld [vmem:[#allocation10 + $0x2b4] sm:$0xf]
    %v1246 = vld [vmem:[#allocation10 + $0x2b8] sm:$0xf]
    %v1247 = vld [vmem:[#allocation10 + $0x2bc] sm:$0xf]
    %v1248 = vld [vmem:[#allocation10 + $0x2c0] sm:$0xf]
    %v1249 = vld [vmem:[#allocation10 + $0x2c4] sm:$0xf]
    %v1250 = vld [vmem:[#allocation10 + $0x2c8] sm:$0xf]
    %v1251 = vld [vmem:[#allocation10 + $0x2cc] sm:$0xf]
    %v1252 = vld [vmem:[#allocation10 + $0x2d0] sm:$0xf]
    %v1253 = vld [vmem:[#allocation10 + $0x2d4] sm:$0xf]
    %v1254 = vld [vmem:[#allocation10 + $0x2d8] sm:$0xf]
    %v1255 = vld [vmem:[#allocation10 + $0x2dc] sm:$0xf]
    %v1256 = vld [vmem:[#allocation10 + $0x2e0] sm:$0xf]
    %v1257 = vld [vmem:[#allocation10 + $0x2e4] sm:$0xf]
    %v1258 = vld [vmem:[#allocation10 + $0x2e8] sm:$0xf]
    %v1259 = vld [vmem:[#allocation10 + $0x2ec] sm:$0xf]
    %v1260 = vld [vmem:[#allocation10 + $0x2f0] sm:$0xf]
    %v1261 = vld [vmem:[#allocation10 + $0x2f4] sm:$0xf]
    %v1262 = vld [vmem:[#allocation10 + $0x2f8] sm:$0xf]
    %v1263 = vld [vmem:[#allocation10 + $0x2fc] sm:$0xf]
    %v1264 = vld [vmem:[#allocation10 + $0x300] sm:$0xf]
    %v1265 = vld [vmem:[#allocation10 + $0x304] sm:$0xf]
    %v1266 = vld [vmem:[#allocation10 + $0x308] sm:$0xf]
    %v1267 = vld [vmem:[#allocation10 + $0x30c] sm:$0xf]
    %v1268 = vld [vmem:[#allocation10 + $0x310] sm:$0xf]
    %v1269 = vld [vmem:[#allocation10 + $0x314] sm:$0xf]
    %v1270 = vld [vmem:[#allocation10 + $0x318] sm:$0xf]
    %v1271 = vld [vmem:[#allocation10 + $0x31c] sm:$0xf]
    %v1272 = vld [vmem:[#allocation10 + $0x320] sm:$0xf]
    %v1273 = vld [vmem:[#allocation10 + $0x324] sm:$0xf]
    %v1274 = vld [vmem:[#allocation10 + $0x328] sm:$0xf]
    %v1275 = vld [vmem:[#allocation10 + $0x32c] sm:$0xf]
    %v1276 = vld [vmem:[#allocation10 + $0x330] sm:$0xf]
    %v1277 = vld [vmem:[#allocation10 + $0x334] sm:$0xf]
    %v1278 = vld [vmem:[#allocation10 + $0x338] sm:$0xf]
    %v1279 = vld [vmem:[#allocation10 + $0x33c] sm:$0xf]
    %v1280 = vld [vmem:[#allocation10 + $0x340] sm:$0xf]
    %v1281 = vld [vmem:[#allocation10 + $0x344] sm:$0xf]
    %v1282 = vld [vmem:[#allocation10 + $0x348] sm:$0xf]
    %v1283 = vld [vmem:[#allocation10 + $0x34c] sm:$0xf]
    %v1284 = vld [vmem:[#allocation10 + $0x350] sm:$0xf]
    %v1285 = vld [vmem:[#allocation10 + $0x354] sm:$0xf]
    %v1286 = vld [vmem:[#allocation10 + $0x358] sm:$0xf]
    %v1287 = vld [vmem:[#allocation10 + $0x35c] sm:$0xf]
    %v1288 = vld [vmem:[#allocation10 + $0x360] sm:$0xf]
    %v1289 = vld [vmem:[#allocation10 + $0x364] sm:$0xf]
    %v1290 = vld [vmem:[#allocation10 + $0x368] sm:$0xf]
    %v1291 = vld [vmem:[#allocation10 + $0x36c] sm:$0xf]
    %v1292 = vld [vmem:[#allocation10 + $0x370] sm:$0xf]
    %v1293 = vld [vmem:[#allocation10 + $0x374] sm:$0xf]
    %v1294 = vld [vmem:[#allocation10 + $0x378] sm:$0xf]
    %v1295 = vld [vmem:[#allocation10 + $0x37c] sm:$0xf]
    %v1296 = vld [vmem:[#allocation10 + $0x380] sm:$0xf]
    %v1297 = vld [vmem:[#allocation10 + $0x384] sm:$0xf]
    %v1298 = vld [vmem:[#allocation10 + $0x388] sm:$0xf]
    %v1299 = vld [vmem:[#allocation10 + $0x38c] sm:$0xf]
    %v1300 = vld [vmem:[#allocation10 + $0x390] sm:$0xf]
    %v1301 = vld [vmem:[#allocation10 + $0x394] sm:$0xf]
    %v1302 = vld [vmem:[#allocation10 + $0x398] sm:$0xf]
    %v1303 = vld [vmem:[#allocation10 + $0x39c] sm:$0xf]
    %v1304 = vld [vmem:[#allocation10 + $0x3a0] sm:$0xf]
    %v1305 = vld [vmem:[#allocation10 + $0x3a4] sm:$0xf]
    %v1306 = vld [vmem:[#allocation10 + $0x3a8] sm:$0xf]
    %v1307 = vld [vmem:[#allocation10 + $0x3ac] sm:$0xf]
    %v1308 = vld [vmem:[#allocation10 + $0x3b0] sm:$0xf]
    %v1309 = vld [vmem:[#allocation10 + $0x3b4] sm:$0xf]
    %v1310 = vld [vmem:[#allocation10 + $0x3b8] sm:$0xf]
    %v1311 = vld [vmem:[#allocation10 + $0x3bc] sm:$0xf]
    %v1312 = vld [vmem:[#allocation10 + $0x3c0] sm:$0xf]
    %v1313 = vld [vmem:[#allocation10 + $0x3c4] sm:$0xf]
    %v1314 = vld [vmem:[#allocation10 + $0x3c8] sm:$0xf]
    %v1315 = vld [vmem:[#allocation10 + $0x3cc] sm:$0xf]
    %v1316 = vld [vmem:[#allocation10 + $0x3d0] sm:$0xf]
    %v1317 = vld [vmem:[#allocation10 + $0x3d4] sm:$0xf]
    %v1318 = vld [vmem:[#allocation10 + $0x3d8] sm:$0xf]
    %v1319 = vld [vmem:[#allocation10 + $0x3dc] sm:$0xf]
    %v1320 = vld [vmem:[#allocation10 + $0x3e0] sm:$0xf]
    %v1321 = vld [vmem:[#allocation10 + $0x3e4] sm:$0xf]
    %v1322 = vld [vmem:[#allocation10 + $0x3e8] sm:$0xf]
    %v1323 = vld [vmem:[#allocation10 + $0x3ec] sm:$0xf]
    %v1324 = vld [vmem:[#allocation10 + $0x3f0] sm:$0xf]
    %v1325 = vld [vmem:[#allocation10 + $0x3f4] sm:$0xf]
    %v1326 = vld [vmem:[#allocation10 + $0x3f8] sm:$0xf]
    %v1327 = vld [vmem:[#allocation10 + $0x3fc] sm:$0xf]
    %v1328 = vld [vmem:[#allocation10 + $0x400] sm:$0xf]
    %v1329 = vld [vmem:[#allocation10 + $0x404] sm:$0xf]
    %v1330 = vld [vmem:[#allocation10 + $0x408] sm:$0xf]
    %v1331 = vld [vmem:[#allocation10 + $0x40c] sm:$0xf]
    %v1332 = vld [vmem:[#allocation10 + $0x410] sm:$0xf]
    %v1333 = vld [vmem:[#allocation10 + $0x414] sm:$0xf]
    %v1334 = vld [vmem:[#allocation10 + $0x418] sm:$0xf]
    %v1335 = vld [vmem:[#allocation10 + $0x41c] sm:$0xf]
    %v1336 = vld [vmem:[#allocation10 + $0x420] sm:$0xf]
    %v1337 = vld [vmem:[#allocation10 + $0x424] sm:$0xf]
    %v1338 = vld [vmem:[#allocation10 + $0x428] sm:$0xf]
    %v1339 = vld [vmem:[#allocation10 + $0x42c] sm:$0xf]
    %v1340 = vld [vmem:[#allocation10 + $0x430] sm:$0xf]
    %v1341 = vld [vmem:[#allocation10 + $0x434] sm:$0xf]
    %v1342 = vld [vmem:[#allocation10 + $0x438] sm:$0xf]
    %v1343 = vld [vmem:[#allocation10 + $0x43c] sm:$0xf]
    %v1344 = vld [vmem:[#allocation10 + $0x440] sm:$0xf]
    %v1345 = vld [vmem:[#allocation10 + $0x444] sm:$0xf]
    %v1346 = vld [vmem:[#allocation10 + $0x448] sm:$0xf]
    %v1347 = vld [vmem:[#allocation10 + $0x44c] sm:$0xf]
    %v1348 = vld [vmem:[#allocation10 + $0x450] sm:$0xf]
    %v1349 = vld [vmem:[#allocation10 + $0x454] sm:$0xf]
    %v1350 = vld [vmem:[#allocation10 + $0x458] sm:$0xf]
    %v1351 = vld [vmem:[#allocation10 + $0x45c] sm:$0xf]
    %v1352 = vld [vmem:[#allocation10 + $0x460] sm:$0xf]
    %v1353 = vld [vmem:[#allocation10 + $0x464] sm:$0xf]
    %v1354 = vld [vmem:[#allocation10 + $0x468] sm:$0xf]
    %v1355 = vld [vmem:[#allocation10 + $0x46c] sm:$0xf]
    %v1356 = vld [vmem:[#allocation10 + $0x470] sm:$0xf]
    %v1357 = vld [vmem:[#allocation10 + $0x474] sm:$0xf]
    %v1358 = vld [vmem:[#allocation10 + $0x478] sm:$0xf]
    %v1359 = vld [vmem:[#allocation10 + $0x47c] sm:$0xf]
    %v1648 = vunpack.c.l.b16 %v1072
    %v1649 = vunpack.c.l.b16 %v1073
    %v1650 = vunpack.c.l.b16 %v1074
    %v1651 = vunpack.c.l.b16 %v1075
    %v1652 = vunpack.c.l.b16 %v1076
    %v1653 = vunpack.c.l.b16 %v1077
    %v1654 = vunpack.c.l.b16 %v1078
    %v1655 = vunpack.c.l.b16 %v1079
    %v1656 = vunpack.c.l.b16 %v1080
    %v1657 = vunpack.c.l.b16 %v1081
    %v1658 = vunpack.c.l.b16 %v1082
    %v1659 = vunpack.c.l.b16 %v1083
    %v1660 = vunpack.c.l.b16 %v1084
    %v1661 = vunpack.c.l.b16 %v1085
    %v1662 = vunpack.c.l.b16 %v1086
    %v1663 = vunpack.c.l.b16 %v1087
    %v1664 = vunpack.c.l.b16 %v1088
    %v1665 = vunpack.c.l.b16 %v1089
    %v1666 = vunpack.c.l.b16 %v1090
    %v1667 = vunpack.c.l.b16 %v1091
    %v1668 = vunpack.c.l.b16 %v1092
    %v1669 = vunpack.c.l.b16 %v1093
    %v1670 = vunpack.c.l.b16 %v1094
    %v1671 = vunpack.c.l.b16 %v1095
    %v1672 = vunpack.c.l.b16 %v1096
    %v1673 = vunpack.c.l.b16 %v1097
    %v1674 = vunpack.c.l.b16 %v1098
    %v1675 = vunpack.c.l.b16 %v1099
    %v1676 = vunpack.c.l.b16 %v1100
    %v1677 = vunpack.c.l.b16 %v1101
    %v1678 = vunpack.c.l.b16 %v1102
    %v1679 = vunpack.c.l.b16 %v1103
    %v1680 = vunpack.c.l.b16 %v1104
    %v1681 = vunpack.c.l.b16 %v1105
    %v1682 = vunpack.c.l.b16 %v1106
    %v1683 = vunpack.c.l.b16 %v1107
    %v1684 = vunpack.c.l.b16 %v1108
    %v1685 = vunpack.c.l.b16 %v1109
    %v1686 = vunpack.c.l.b16 %v1110
    %v1687 = vunpack.c.l.b16 %v1111
    %v1688 = vunpack.c.l.b16 %v1112
    %v1689 = vunpack.c.l.b16 %v1113
    %v1690 = vunpack.c.l.b16 %v1114
    %v1691 = vunpack.c.l.b16 %v1115
    %v1692 = vunpack.c.l.b16 %v1116
    %v1693 = vunpack.c.l.b16 %v1117
    %v1694 = vunpack.c.l.b16 %v1118
    %v1695 = vunpack.c.l.b16 %v1119
    %v1696 = vunpack.c.l.b16 %v1120
    %v1697 = vunpack.c.l.b16 %v1121
    %v1698 = vunpack.c.l.b16 %v1122
    %v1699 = vunpack.c.l.b16 %v1123
    %v1700 = vunpack.c.l.b16 %v1124
    %v1701 = vunpack.c.l.b16 %v1125
    %v1702 = vunpack.c.l.b16 %v1126
    %v1703 = vunpack.c.l.b16 %v1127
    %v1704 = vunpack.c.l.b16 %v1128
    %v1705 = vunpack.c.l.b16 %v1129
    %v1706 = vunpack.c.l.b16 %v1130
    %v1707 = vunpack.c.l.b16 %v1131
    %v1708 = vunpack.c.l.b16 %v1132
    %v1709 = vunpack.c.l.b16 %v1133
    %v1710 = vunpack.c.l.b16 %v1134
    %v1711 = vunpack.c.l.b16 %v1135
    %v1712 = vunpack.c.l.b16 %v1136
    %v1713 = vunpack.c.l.b16 %v1137
    %v1714 = vunpack.c.l.b16 %v1138
    %v1715 = vunpack.c.l.b16 %v1139
    %v1716 = vunpack.c.l.b16 %v1140
    %v1717 = vunpack.c.l.b16 %v1141
    %v1718 = vunpack.c.l.b16 %v1142
    %v1719 = vunpack.c.l.b16 %v1143
    %v1720 = vunpack.c.l.b16 %v1144
    %v1721 = vunpack.c.l.b16 %v1145
    %v1722 = vunpack.c.l.b16 %v1146
    %v1723 = vunpack.c.l.b16 %v1147
    %v1724 = vunpack.c.l.b16 %v1148
    %v1725 = vunpack.c.l.b16 %v1149
    %v1726 = vunpack.c.l.b16 %v1150
    %v1727 = vunpack.c.l.b16 %v1151
    %v1728 = vunpack.c.l.b16 %v1152
    %v1729 = vunpack.c.l.b16 %v1153
    %v1730 = vunpack.c.l.b16 %v1154
    %v1731 = vunpack.c.l.b16 %v1155
    %v1732 = vunpack.c.l.b16 %v1156
    %v1733 = vunpack.c.l.b16 %v1157
    %v1734 = vunpack.c.l.b16 %v1158
    %v1735 = vunpack.c.l.b16 %v1159
    %v1736 = vunpack.c.l.b16 %v1160
    %v1737 = vunpack.c.l.b16 %v1161
    %v1738 = vunpack.c.l.b16 %v1162
    %v1739 = vunpack.c.l.b16 %v1163
    %v1740 = vunpack.c.l.b16 %v1164
    %v1741 = vunpack.c.l.b16 %v1165
    %v1742 = vunpack.c.l.b16 %v1166
    %v1743 = vunpack.c.l.b16 %v1167
    %v1744 = vunpack.c.l.b16 %v1168
    %v1745 = vunpack.c.l.b16 %v1169
    %v1746 = vunpack.c.l.b16 %v1170
    %v1747 = vunpack.c.l.b16 %v1171
    %v1748 = vunpack.c.l.b16 %v1172
    %v1749 = vunpack.c.l.b16 %v1173
    %v1750 = vunpack.c.l.b16 %v1174
    %v1751 = vunpack.c.l.b16 %v1175
    %v1752 = vunpack.c.l.b16 %v1176
    %v1753 = vunpack.c.l.b16 %v1177
    %v1754 = vunpack.c.l.b16 %v1178
    %v1755 = vunpack.c.l.b16 %v1179
    %v1756 = vunpack.c.l.b16 %v1180
    %v1757 = vunpack.c.l.b16 %v1181
    %v1758 = vunpack.c.l.b16 %v1182
    %v1759 = vunpack.c.l.b16 %v1183
    %v1760 = vunpack.c.l.b16 %v1184
    %v1761 = vunpack.c.l.b16 %v1185
    %v1762 = vunpack.c.l.b16 %v1186
    %v1763 = vunpack.c.l.b16 %v1187
    %v1764 = vunpack.c.l.b16 %v1188
    %v1765 = vunpack.c.l.b16 %v1189
    %v1766 = vunpack.c.l.b16 %v1190
    %v1767 = vunpack.c.l.b16 %v1191
    %v1768 = vunpack.c.l.b16 %v1192
    %v1769 = vunpack.c.l.b16 %v1193
    %v1770 = vunpack.c.l.b16 %v1194
    %v1771 = vunpack.c.l.b16 %v1195
    %v1772 = vunpack.c.l.b16 %v1196
    %v1773 = vunpack.c.l.b16 %v1197
    %v1774 = vunpack.c.l.b16 %v1198
    %v1775 = vunpack.c.l.b16 %v1199
    %v1776 = vunpack.c.l.b16 %v1200
    %v1777 = vunpack.c.l.b16 %v1201
    %v1778 = vunpack.c.l.b16 %v1202
    %v1779 = vunpack.c.l.b16 %v1203
    %v1780 = vunpack.c.l.b16 %v1204
    %v1781 = vunpack.c.l.b16 %v1205
    %v1782 = vunpack.c.l.b16 %v1206
    %v1783 = vunpack.c.l.b16 %v1207
    %v1784 = vunpack.c.l.b16 %v1208
    %v1785 = vunpack.c.l.b16 %v1209
    %v1786 = vunpack.c.l.b16 %v1210
    %v1787 = vunpack.c.l.b16 %v1211
    %v1788 = vunpack.c.l.b16 %v1212
    %v1789 = vunpack.c.l.b16 %v1213
    %v1790 = vunpack.c.l.b16 %v1214
    %v1791 = vunpack.c.l.b16 %v1215
    %v1792 = vunpack.c.l.b16 %v1216
    %v1793 = vunpack.c.l.b16 %v1217
    %v1794 = vunpack.c.l.b16 %v1218
    %v1795 = vunpack.c.l.b16 %v1219
    %v1796 = vunpack.c.l.b16 %v1220
    %v1797 = vunpack.c.l.b16 %v1221
    %v1798 = vunpack.c.l.b16 %v1222
    %v1799 = vunpack.c.l.b16 %v1223
    %v1800 = vunpack.c.l.b16 %v1224
    %v1801 = vunpack.c.l.b16 %v1225
    %v1802 = vunpack.c.l.b16 %v1226
    %v1803 = vunpack.c.l.b16 %v1227
    %v1804 = vunpack.c.l.b16 %v1228
    %v1805 = vunpack.c.l.b16 %v1229
    %v1806 = vunpack.c.l.b16 %v1230
    %v1807 = vunpack.c.l.b16 %v1231
    %v1808 = vunpack.c.l.b16 %v1232
    %v1809 = vunpack.c.l.b16 %v1233
    %v1810 = vunpack.c.l.b16 %v1234
    %v1811 = vunpack.c.l.b16 %v1235
    %v1812 = vunpack.c.l.b16 %v1236
    %v1813 = vunpack.c.l.b16 %v1237
    %v1814 = vunpack.c.l.b16 %v1238
    %v1815 = vunpack.c.l.b16 %v1239
    %v1816 = vunpack.c.l.b16 %v1240
    %v1817 = vunpack.c.l.b16 %v1241
    %v1818 = vunpack.c.l.b16 %v1242
    %v1819 = vunpack.c.l.b16 %v1243
    %v1820 = vunpack.c.l.b16 %v1244
    %v1821 = vunpack.c.l.b16 %v1245
    %v1822 = vunpack.c.l.b16 %v1246
    %v1823 = vunpack.c.l.b16 %v1247
    %v1824 = vunpack.c.l.b16 %v1248
    %v1825 = vunpack.c.l.b16 %v1249
    %v1826 = vunpack.c.l.b16 %v1250
    %v1827 = vunpack.c.l.b16 %v1251
    %v1828 = vunpack.c.l.b16 %v1252
    %v1829 = vunpack.c.l.b16 %v1253
    %v1830 = vunpack.c.l.b16 %v1254
    %v1831 = vunpack.c.l.b16 %v1255
    %v1832 = vunpack.c.l.b16 %v1256
    %v1833 = vunpack.c.l.b16 %v1257
    %v1834 = vunpack.c.l.b16 %v1258
    %v1835 = vunpack.c.l.b16 %v1259
    %v1836 = vunpack.c.l.b16 %v1260
    %v1837 = vunpack.c.l.b16 %v1261
    %v1838 = vunpack.c.l.b16 %v1262
    %v1839 = vunpack.c.l.b16 %v1263
    %v1840 = vunpack.c.l.b16 %v1264
    %v1841 = vunpack.c.l.b16 %v1265
    %v1842 = vunpack.c.l.b16 %v1266
    %v1843 = vunpack.c.l.b16 %v1267
    %v1844 = vunpack.c.l.b16 %v1268
    %v1845 = vunpack.c.l.b16 %v1269
    %v1846 = vunpack.c.l.b16 %v1270
    %v1847 = vunpack.c.l.b16 %v1271
    %v1848 = vunpack.c.l.b16 %v1272
    %v1849 = vunpack.c.l.b16 %v1273
    %v1850 = vunpack.c.l.b16 %v1274
    %v1851 = vunpack.c.l.b16 %v1275
    %v1852 = vunpack.c.l.b16 %v1276
    %v1853 = vunpack.c.l.b16 %v1277
    %v1854 = vunpack.c.l.b16 %v1278
    %v1855 = vunpack.c.l.b16 %v1279
    %v1856 = vunpack.c.l.b16 %v1280
    %v1857 = vunpack.c.l.b16 %v1281
    %v1858 = vunpack.c.l.b16 %v1282
    %v1859 = vunpack.c.l.b16 %v1283
    %v1860 = vunpack.c.l.b16 %v1284
    %v1861 = vunpack.c.l.b16 %v1285
    %v1862 = vunpack.c.l.b16 %v1286
    %v1863 = vunpack.c.l.b16 %v1287
    %v1864 = vunpack.c.l.b16 %v1288
    %v1865 = vunpack.c.l.b16 %v1289
    %v1866 = vunpack.c.l.b16 %v1290
    %v1867 = vunpack.c.l.b16 %v1291
    %v1868 = vunpack.c.l.b16 %v1292
    %v1869 = vunpack.c.l.b16 %v1293
    %v1870 = vunpack.c.l.b16 %v1294
    %v1871 = vunpack.c.l.b16 %v1295
    %v1872 = vunpack.c.l.b16 %v1296
    %v1873 = vunpack.c.l.b16 %v1297
    %v1874 = vunpack.c.l.b16 %v1298
    %v1875 = vunpack.c.l.b16 %v1299
    %v1876 = vunpack.c.l.b16 %v1300
    %v1877 = vunpack.c.l.b16 %v1301
    %v1878 = vunpack.c.l.b16 %v1302
    %v1879 = vunpack.c.l.b16 %v1303
    %v1880 = vunpack.c.l.b16 %v1304
    %v1881 = vunpack.c.l.b16 %v1305
    %v1882 = vunpack.c.l.b16 %v1306
    %v1883 = vunpack.c.l.b16 %v1307
    %v1884 = vunpack.c.l.b16 %v1308
    %v1885 = vunpack.c.l.b16 %v1309
    %v1886 = vunpack.c.l.b16 %v1310
    %v1887 = vunpack.c.l.b16 %v1311
    %v1888 = vunpack.c.l.b16 %v1312
    %v1889 = vunpack.c.l.b16 %v1313
    %v1890 = vunpack.c.l.b16 %v1314
    %v1891 = vunpack.c.l.b16 %v1315
    %v1892 = vunpack.c.l.b16 %v1316
    %v1893 = vunpack.c.l.b16 %v1317
    %v1894 = vunpack.c.l.b16 %v1318
    %v1895 = vunpack.c.l.b16 %v1319
    %v1896 = vunpack.c.l.b16 %v1320
    %v1897 = vunpack.c.l.b16 %v1321
    %v1898 = vunpack.c.l.b16 %v1322
    %v1899 = vunpack.c.l.b16 %v1323
    %v1900 = vunpack.c.l.b16 %v1324
    %v1901 = vunpack.c.l.b16 %v1325
    %v1902 = vunpack.c.l.b16 %v1326
    %v1903 = vunpack.c.l.b16 %v1327
    %v1904 = vunpack.c.l.b16 %v1328
    %v1905 = vunpack.c.l.b16 %v1329
    %v1906 = vunpack.c.l.b16 %v1330
    %v1907 = vunpack.c.l.b16 %v1331
    %v1908 = vunpack.c.l.b16 %v1332
    %v1909 = vunpack.c.l.b16 %v1333
    %v1910 = vunpack.c.l.b16 %v1334
    %v1911 = vunpack.c.l.b16 %v1335
    %v1912 = vunpack.c.l.b16 %v1336
    %v1913 = vunpack.c.l.b16 %v1337
    %v1914 = vunpack.c.l.b16 %v1338
    %v1915 = vunpack.c.l.b16 %v1339
    %v1916 = vunpack.c.l.b16 %v1340
    %v1917 = vunpack.c.l.b16 %v1341
    %v1918 = vunpack.c.l.b16 %v1342
    %v1919 = vunpack.c.l.b16 %v1343
    %v1920 = vunpack.c.l.b16 %v1344
    %v1921 = vunpack.c.l.b16 %v1345
    %v1922 = vunpack.c.l.b16 %v1346
    %v1923 = vunpack.c.l.b16 %v1347
    %v1924 = vunpack.c.l.b16 %v1348
    %v1925 = vunpack.c.l.b16 %v1349
    %v1926 = vunpack.c.l.b16 %v1350
    %v1927 = vunpack.c.l.b16 %v1351
    %v1928 = vunpack.c.l.b16 %v1352
    %v1929 = vunpack.c.l.b16 %v1353
    %v1930 = vunpack.c.l.b16 %v1354
    %v1931 = vunpack.c.l.b16 %v1355
    %v1932 = vunpack.c.l.b16 %v1356
    %v1933 = vunpack.c.l.b16 %v1357
    %v1934 = vunpack.c.l.b16 %v1358
    %v1935 = vunpack.c.l.b16 %v1359
    %v1936 = vpack.c.b16 %v1649, %v1648
    %v1937 = vpack.c.b16 %v1651, %v1650
    %v1938 = vpack.c.b16 %v1653, %v1652
    %v1939 = vpack.c.b16 %v1655, %v1654
    %v1940 = vpack.c.b16 %v1657, %v1656
    %v1941 = vpack.c.b16 %v1659, %v1658
    %v1942 = vpack.c.b16 %v1661, %v1660
    %v1943 = vpack.c.b16 %v1663, %v1662
    %v1944 = vpack.c.b16 %v1665, %v1664
    %v1945 = vpack.c.b16 %v1667, %v1666
    %v1946 = vpack.c.b16 %v1669, %v1668
    %v1947 = vpack.c.b16 %v1671, %v1670
    %v1948 = vpack.c.b16 %v1673, %v1672
    %v1949 = vpack.c.b16 %v1675, %v1674
    %v1950 = vpack.c.b16 %v1677, %v1676
    %v1951 = vpack.c.b16 %v1679, %v1678
    %v1952 = vpack.c.b16 %v1681, %v1680
    %v1953 = vpack.c.b16 %v1683, %v1682
    %v1954 = vpack.c.b16 %v1685, %v1684
    %v1955 = vpack.c.b16 %v1687, %v1686
    %v1956 = vpack.c.b16 %v1689, %v1688
    %v1957 = vpack.c.b16 %v1691, %v1690
    %v1958 = vpack.c.b16 %v1693, %v1692
    %v1959 = vpack.c.b16 %v1695, %v1694
    %v1960 = vpack.c.b16 %v1697, %v1696
    %v1961 = vpack.c.b16 %v1699, %v1698
    %v1962 = vpack.c.b16 %v1701, %v1700
    %v1963 = vpack.c.b16 %v1703, %v1702
    %v1964 = vpack.c.b16 %v1705, %v1704
    %v1965 = vpack.c.b16 %v1707, %v1706
    %v1966 = vpack.c.b16 %v1709, %v1708
    %v1967 = vpack.c.b16 %v1711, %v1710
    %v1968 = vpack.c.b16 %v1713, %v1712
    %v1969 = vpack.c.b16 %v1715, %v1714
    %v1970 = vpack.c.b16 %v1717, %v1716
    %v1971 = vpack.c.b16 %v1719, %v1718
    %v1972 = vpack.c.b16 %v1721, %v1720
    %v1973 = vpack.c.b16 %v1723, %v1722
    %v1974 = vpack.c.b16 %v1725, %v1724
    %v1975 = vpack.c.b16 %v1727, %v1726
    %v1976 = vpack.c.b16 %v1729, %v1728
    %v1977 = vpack.c.b16 %v1731, %v1730
    %v1978 = vpack.c.b16 %v1733, %v1732
    %v1979 = vpack.c.b16 %v1735, %v1734
    %v1980 = vpack.c.b16 %v1737, %v1736
    %v1981 = vpack.c.b16 %v1739, %v1738
    %v1982 = vpack.c.b16 %v1741, %v1740
    %v1983 = vpack.c.b16 %v1743, %v1742
    %v1984 = vpack.c.b16 %v1745, %v1744
    %v1985 = vpack.c.b16 %v1747, %v1746
    %v1986 = vpack.c.b16 %v1749, %v1748
    %v1987 = vpack.c.b16 %v1751, %v1750
    %v1988 = vpack.c.b16 %v1753, %v1752
    %v1989 = vpack.c.b16 %v1755, %v1754
    %v1990 = vpack.c.b16 %v1757, %v1756
    %v1991 = vpack.c.b16 %v1759, %v1758
    %v1992 = vpack.c.b16 %v1761, %v1760
    %v1993 = vpack.c.b16 %v1763, %v1762
    %v1994 = vpack.c.b16 %v1765, %v1764
    %v1995 = vpack.c.b16 %v1767, %v1766
    %v1996 = vpack.c.b16 %v1769, %v1768
    %v1997 = vpack.c.b16 %v1771, %v1770
    %v1998 = vpack.c.b16 %v1773, %v1772
    %v1999 = vpack.c.b16 %v1775, %v1774
    %v2000 = vpack.c.b16 %v1777, %v1776
    %v2001 = vpack.c.b16 %v1779, %v1778
    %v2002 = vpack.c.b16 %v1781, %v1780
    %v2003 = vpack.c.b16 %v1783, %v1782
    %v2004 = vpack.c.b16 %v1785, %v1784
    %v2005 = vpack.c.b16 %v1787, %v1786
    %v2006 = vpack.c.b16 %v1789, %v1788
    %v2007 = vpack.c.b16 %v1791, %v1790
    %v2008 = vpack.c.b16 %v1793, %v1792
    %v2009 = vpack.c.b16 %v1795, %v1794
    %v2010 = vpack.c.b16 %v1797, %v1796
    %v2011 = vpack.c.b16 %v1799, %v1798
    %v2012 = vpack.c.b16 %v1801, %v1800
    %v2013 = vpack.c.b16 %v1803, %v1802
    %v2014 = vpack.c.b16 %v1805, %v1804
    %v2015 = vpack.c.b16 %v1807, %v1806
    %v2016 = vpack.c.b16 %v1809, %v1808
    %v2017 = vpack.c.b16 %v1811, %v1810
    %v2018 = vpack.c.b16 %v1813, %v1812
    %v2019 = vpack.c.b16 %v1815, %v1814
    %v2020 = vpack.c.b16 %v1817, %v1816
    %v2021 = vpack.c.b16 %v1819, %v1818
    %v2022 = vpack.c.b16 %v1821, %v1820
    %v2023 = vpack.c.b16 %v1823, %v1822
    %v2024 = vpack.c.b16 %v1825, %v1824
    %v2025 = vpack.c.b16 %v1827, %v1826
    %v2026 = vpack.c.b16 %v1829, %v1828
    %v2027 = vpack.c.b16 %v1831, %v1830
    %v2028 = vpack.c.b16 %v1833, %v1832
    %v2029 = vpack.c.b16 %v1835, %v1834
    %v2030 = vpack.c.b16 %v1837, %v1836
    %v2031 = vpack.c.b16 %v1839, %v1838
    %v2032 = vpack.c.b16 %v1841, %v1840
    %v2033 = vpack.c.b16 %v1843, %v1842
    %v2034 = vpack.c.b16 %v1845, %v1844
    %v2035 = vpack.c.b16 %v1847, %v1846
    %v2036 = vpack.c.b16 %v1849, %v1848
    %v2037 = vpack.c.b16 %v1851, %v1850
    %v2038 = vpack.c.b16 %v1853, %v1852
    %v2039 = vpack.c.b16 %v1855, %v1854
    %v2040 = vpack.c.b16 %v1857, %v1856
    %v2041 = vpack.c.b16 %v1859, %v1858
    %v2042 = vpack.c.b16 %v1861, %v1860
    %v2043 = vpack.c.b16 %v1863, %v1862
    %v2044 = vpack.c.b16 %v1865, %v1864
    %v2045 = vpack.c.b16 %v1867, %v1866
    %v2046 = vpack.c.b16 %v1869, %v1868
    %v2047 = vpack.c.b16 %v1871, %v1870
    %v2048 = vpack.c.b16 %v1873, %v1872
    %v2049 = vpack.c.b16 %v1875, %v1874
    %v2050 = vpack.c.b16 %v1877, %v1876
    %v2051 = vpack.c.b16 %v1879, %v1878
    %v2052 = vpack.c.b16 %v1881, %v1880
    %v2053 = vpack.c.b16 %v1883, %v1882
    %v2054 = vpack.c.b16 %v1885, %v1884
    %v2055 = vpack.c.b16 %v1887, %v1886
    %v2056 = vpack.c.b16 %v1889, %v1888
    %v2057 = vpack.c.b16 %v1891, %v1890
    %v2058 = vpack.c.b16 %v1893, %v1892
    %v2059 = vpack.c.b16 %v1895, %v1894
    %v2060 = vpack.c.b16 %v1897, %v1896
    %v2061 = vpack.c.b16 %v1899, %v1898
    %v2062 = vpack.c.b16 %v1901, %v1900
    %v2063 = vpack.c.b16 %v1903, %v1902
    %v2064 = vpack.c.b16 %v1905, %v1904
    %v2065 = vpack.c.b16 %v1907, %v1906
    %v2066 = vpack.c.b16 %v1909, %v1908
    %v2067 = vpack.c.b16 %v1911, %v1910
    %v2068 = vpack.c.b16 %v1913, %v1912
    %v2069 = vpack.c.b16 %v1915, %v1914
    %v2070 = vpack.c.b16 %v1917, %v1916
    %v2071 = vpack.c.b16 %v1919, %v1918
    %v2072 = vpack.c.b16 %v1921, %v1920
    %v2073 = vpack.c.b16 %v1923, %v1922
    %v2074 = vpack.c.b16 %v1925, %v1924
    %v2075 = vpack.c.b16 %v1927, %v1926
    %v2076 = vpack.c.b16 %v1929, %v1928
    %v2077 = vpack.c.b16 %v1931, %v1930
    %v2078 = vpack.c.b16 %v1933, %v1932
    %v2079 = vpack.c.b16 %v1935, %v1934
    %2224 = vmatprep.subr.bf16.mxu0 0
    %2225 = vmatpush1.bf16.msra.mxu0 %v1936
    %2226 = vmatprep.subr.bf16.mxu0 0
    %2227 = vmatpush1.bf16.msra.mxu0 %v1937
    %2228 = vmatprep.subr.bf16.mxu0 0
    %2229 = vmatpush1.bf16.msra.mxu0 %v1938
    %2230 = vmatprep.subr.bf16.mxu0 0
    %2231 = vmatpush1.bf16.msra.mxu0 %v1939
    %2232 = vmatprep.subr.bf16.mxu0 0
    %2233 = vmatpush1.bf16.msra.mxu0 %v1940
    %2234 = vmatprep.subr.bf16.mxu0 0
    %2235 = vmatpush1.bf16.msra.mxu0 %v1941
    %2236 = vmatprep.subr.bf16.mxu0 0
    %2237 = vmatpush1.bf16.msra.mxu0 %v1942
    %2238 = vmatprep.subr.bf16.mxu0 0
    %2239 = vmatpush1.bf16.msra.mxu0 %v1943
    %2240 = vmatprep.subr.bf16.mxu0 0
    %2241 = vmatpush1.bf16.msra.mxu0 %v1944
    %2242 = vmatprep.subr.bf16.mxu0 0
    %2243 = vmatpush1.bf16.msra.mxu0 %v1945
    %2244 = vmatprep.subr.bf16.mxu0 0
    %2245 = vmatpush1.bf16.msra.mxu0 %v1946
    %2246 = vmatprep.subr.bf16.mxu0 0
    %2247 = vmatpush1.bf16.msra.mxu0 %v1947
    %2248 = vmatprep.subr.bf16.mxu0 0
    %2249 = vmatpush1.bf16.msra.mxu0 %v1948
    %2250 = vmatprep.subr.bf16.mxu0 0
    %2251 = vmatpush1.bf16.msra.mxu0 %v1949
    %2252 = vmatprep.subr.bf16.mxu0 0
    %2253 = vmatpush1.bf16.msra.mxu0 %v1950
    %2254 = vmatprep.subr.bf16.mxu0 0
    %2255 = vmatpush1.bf16.msra.mxu0 %v1951
    %2256 = vmatprep.mubr.bf16.mxu0 %v1037
    %2257 = vmatmul.mubr.bf16.gmra.mrb[0].mxu0 %v1036
    %v2258 = vpop.f32.mrb[0].mxu0
    %v2259 = vadd.f32 0.0, %v2258
    %v2260 = vpop.f32.mrb[0].mxu0
    %v2261 = vpop.f32.mrb[0].mxu0
    %v2262 = vadd.f32 0.0, %v2261
    %v2263 = vpop.f32.mrb[0].mxu0
    %2264 = vmatprep.mubr.bf16.mxu0 %v1055
    %2265 = vmatmul.mubr.bf16.gmra.mrb[0].mxu0 %v1054
    %v2266 = vpop.f32.mrb[0].mxu0
    %v2267 = vadd.f32 0.0, %v2266
    %v2268 = vpop.f32.mrb[0].mxu0
    %v2269 = vpop.f32.mrb[0].mxu0
    %v2270 = vadd.f32 0.0, %v2269
    %v2271 = vpop.f32.mrb[0].mxu0
    %2272 = vdwg.mxu0
    %2273 = vmatprep.subr.bf16.mxu0 0
    %2274 = vmatpush1.bf16.msra.mxu0 %v1952
    %2275 = vmatprep.subr.bf16.mxu0 0
    %2276 = vmatpush1.bf16.msra.mxu0 %v1953
    %2277 = vmatprep.subr.bf16.mxu0 0
    %2278 = vmatpush1.bf16.msra.mxu0 %v1954
    %2279 = vmatprep.subr.bf16.mxu0 0
    %2280 = vmatpush1.bf16.msra.mxu0 %v1955
    %2281 = vmatprep.subr.bf16.mxu0 0
    %2282 = vmatpush1.bf16.msra.mxu0 %v1956
    %2283 = vmatprep.subr.bf16.mxu0 0
    %2284 = vmatpush1.bf16.msra.mxu0 %v1957
    %2285 = vmatprep.subr.bf16.mxu0 0
    %2286 = vmatpush1.bf16.msra.mxu0 %v1958
    %2287 = vmatprep.subr.bf16.mxu0 0
    %2288 = vmatpush1.bf16.msra.mxu0 %v1959
    %2289 = vmatprep.subr.bf16.mxu0 0
    %2290 = vmatpush1.bf16.msra.mxu0 %v1960
    %2291 = vmatprep.subr.bf16.mxu0 0
    %2292 = vmatpush1.bf16.msra.mxu0 %v1961
    %2293 = vmatprep.subr.bf16.mxu0 0
    %2294 = vmatpush1.bf16.msra.mxu0 %v1962
    %2295 = vmatprep.subr.bf16.mxu0 0
    %2296 = vmatpush1.bf16.msra.mxu0 %v1963
    %2297 = vmatprep.subr.bf16.mxu0 0
    %2298 = vmatpush1.bf16.msra.mxu0 %v1964
    %2299 = vmatprep.subr.bf16.mxu0 0
    %2300 = vmatpush1.bf16.msra.mxu0 %v1965
    %2301 = vmatprep.subr.bf16.mxu0 0
    %2302 = vmatpush1.bf16.msra.mxu0 %v1966
    %2303 = vmatprep.subr.bf16.mxu0 0
    %2304 = vmatpush1.bf16.msra.mxu0 %v1967
    %2305 = vmatprep.mubr.bf16.mxu0 %v1039
    %2306 = vmatmul.mubr.bf16.gmra.mrb[0].mxu0 %v1038
    %v2307 = vpop.f32.mrb[0].mxu0
    %v2308 = vadd.f32 %v2259, %v2307
    %v2309 = vpop.f32.mrb[0].mxu0
    %v2310 = vpop.f32.mrb[0].mxu0
    %v2311 = vadd.f32 %v2262, %v2310
    %v2312 = vpop.f32.mrb[0].mxu0
    %2313 = vmatprep.mubr.bf16.mxu0 %v1057
    %2314 = vmatmul.mubr.bf16.gmra.mrb[0].mxu0 %v1056
    %v2315 = vpop.f32.mrb[0].mxu0
    %v2316 = vadd.f32 %v2267, %v2315
    %v2317 = vpop.f32.mrb[0].mxu0
    %v2318 = vpop.f32.mrb[0].mxu0
    %v2319 = vadd.f32 %v2270, %v2318
    %v2320 = vpop.f32.mrb[0].mxu0
    %2321 = vdwg.mxu0
    %2322 = vmatprep.subr.bf16.mxu0 0
    %2323 = vmatpush1.bf16.msra.mxu0 %v1968
    %2324 = vmatprep.subr.bf16.mxu0 0
    %2325 = vmatpush1.bf16.msra.mxu0 %v1969
    %2326 = vmatprep.subr.bf16.mxu0 0
    %2327 = vmatpush1.bf16.msra.mxu0 %v1970
    %2328 = vmatprep.subr.bf16.mxu0 0
    %2329 = vmatpush1.bf16.msra.mxu0 %v1971
    %2330 = vmatprep.subr.bf16.mxu0 0
    %2331 = vmatpush1.bf16.msra.mxu0 %v1972
    %2332 = vmatprep.subr.bf16.mxu0 0
    %2333 = vmatpush1.bf16.msra.mxu0 %v1973
    %2334 = vmatprep.subr.bf16.mxu0 0
    %2335 = vmatpush1.bf16.msra.mxu0 %v1974
    %2336 = vmatprep.subr.bf16.mxu0 0
    %2337 = vmatpush1.bf16.msra.mxu0 %v1975
    %2338 = vmatprep.subr.bf16.mxu0 0
    %2339 = vmatpush1.bf16.msra.mxu0 %v1976
    %2340 = vmatprep.subr.bf16.mxu0 0
    %2341 = vmatpush1.bf16.msra.mxu0 %v1977
    %2342 = vmatprep.subr.bf16.mxu0 0
    %2343 = vmatpush1.bf16.msra.mxu0 %v1978
    %2344 = vmatprep.subr.bf16.mxu0 0
    %2345 = vmatpush1.bf16.msra.mxu0 %v1979
    %2346 = vmatprep.subr.bf16.mxu0 0
    %2347 = vmatpush1.bf16.msra.mxu0 %v1980
    %2348 = vmatprep.subr.bf16.mxu0 0
    %2349 = vmatpush1.bf16.msra.mxu0 %v1981
    %2350 = vmatprep.subr.bf16.mxu0 0
    %2351 = vmatpush1.bf16.msra.mxu0 %v1982
    %2352 = vmatprep.subr.bf16.mxu0 0
    %2353 = vmatpush1.bf16.msra.mxu0 %v1983
    %2354 = vmatprep.mubr.bf16.mxu0 %v1041
    %2355 = vmatmul.mubr.bf16.gmra.mrb[0].mxu0 %v1040
    %v2356 = vpop.f32.mrb[0].mxu0
    %v2357 = vadd.f32 %v2308, %v2356
    %v2358 = vpop.f32.mrb[0].mxu0
    %v2359 = vpop.f32.mrb[0].mxu0
    %v2360 = vadd.f32 %v2311, %v2359
    %v2361 = vpop.f32.mrb[0].mxu0
    %2362 = vmatprep.mubr.bf16.mxu0 %v1059
    %2363 = vmatmul.mubr.bf16.gmra.mrb[0].mxu0 %v1058
    %v2364 = vpop.f32.mrb[0].mxu0
    %v2365 = vadd.f32 %v2316, %v2364
    %v2366 = vpop.f32.mrb[0].mxu0
    %v2367 = vpop.f32.mrb[0].mxu0
    %v2368 = vadd.f32 %v2319, %v2367
    %v2369 = vpop.f32.mrb[0].mxu0
    %2370 = vdwg.mxu0
    %2371 = vmatprep.subr.bf16.mxu0 0
    %2372 = vmatpush1.bf16.msra.mxu0 %v1984
    %2373 = vmatprep.subr.bf16.mxu0 0
    %2374 = vmatpush1.bf16.msra.mxu0 %v1985
    %2375 = vmatprep.subr.bf16.mxu0 0
    %2376 = vmatpush1.bf16.msra.mxu0 %v1986
    %2377 = vmatprep.subr.bf16.mxu0 0
    %2378 = vmatpush1.bf16.msra.mxu0 %v1987
    %2379 = vmatprep.subr.bf16.mxu0 0
    %2380 = vmatpush1.bf16.msra.mxu0 %v1988
    %2381 = vmatprep.subr.bf16.mxu0 0
    %2382 = vmatpush1.bf16.msra.mxu0 %v1989
    %2383 = vmatprep.subr.bf16.mxu0 0
    %2384 = vmatpush1.bf16.msra.mxu0 %v1990
    %2385 = vmatprep.subr.bf16.mxu0 0
    %2386 = vmatpush1.bf16.msra.mxu0 %v1991
    %2387 = vmatprep.subr.bf16.mxu0 0
    %2388 = vmatpush1.bf16.msra.mxu0 %v1992
    %2389 = vmatprep.subr.bf16.mxu0 0
    %2390 = vmatpush1.bf16.msra.mxu0 %v1993
    %2391 = vmatprep.subr.bf16.mxu0 0
    %2392 = vmatpush1.bf16.msra.mxu0 %v1994
    %2393 = vmatprep.subr.bf16.mxu0 0
    %2394 = vmatpush1.bf16.msra.mxu0 %v1995
    %2395 = vmatprep.subr.bf16.mxu0 0
    %2396 = vmatpush1.bf16.msra.mxu0 %v1996
    %2397 = vmatprep.subr.bf16.mxu0 0
    %2398 = vmatpush1.bf16.msra.mxu0 %v1997
    %2399 = vmatprep.subr.bf16.mxu0 0
    %2400 = vmatpush1.bf16.msra.mxu0 %v1998
    %2401 = vmatprep.subr.bf16.mxu0 0
    %2402 = vmatpush1.bf16.msra.mxu0 %v1999
    %2403 = vmatprep.mubr.bf16.mxu0 %v1043
    %2404 = vmatmul.mubr.bf16.gmra.mrb[0].mxu0 %v1042
    %v2405 = vpop.f32.mrb[0].mxu0
    %v2406 = vadd.f32 %v2357, %v2405
    %v2407 = vpop.f32.mrb[0].mxu0
    %v2408 = vpop.f32.mrb[0].mxu0
    %v2409 = vadd.f32 %v2360, %v2408
    %v2410 = vpop.f32.mrb[0].mxu0
    %2411 = vmatprep.mubr.bf16.mxu0 %v1061
    %2412 = vmatmul.mubr.bf16.gmra.mrb[0].mxu0 %v1060
    %v2413 = vpop.f32.mrb[0].mxu0
    %v2414 = vadd.f32 %v2365, %v2413
    %v2415 = vpop.f32.mrb[0].mxu0
    %v2416 = vpop.f32.mrb[0].mxu0
    %v2417 = vadd.f32 %v2368, %v2416
    %v2418 = vpop.f32.mrb[0].mxu0
    %2419 = vdwg.mxu0
    %2420 = vmatprep.subr.bf16.mxu0 0
    %2421 = vmatpush1.bf16.msra.mxu0 %v2000
    %2422 = vmatprep.subr.bf16.mxu0 0
    %2423 = vmatpush1.bf16.msra.mxu0 %v2001
    %2424 = vmatprep.subr.bf16.mxu0 0
    %2425 = vmatpush1.bf16.msra.mxu0 %v2002
    %2426 = vmatprep.subr.bf16.mxu0 0
    %2427 = vmatpush1.bf16.msra.mxu0 %v2003
    %2428 = vmatprep.subr.bf16.mxu0 0
    %2429 = vmatpush1.bf16.msra.mxu0 %v2004
    %2430 = vmatprep.subr.bf16.mxu0 0
    %2431 = vmatpush1.bf16.msra.mxu0 %v2005
    %2432 = vmatprep.subr.bf16.mxu0 0
    %2433 = vmatpush1.bf16.msra.mxu0 %v2006
    %2434 = vmatprep.subr.bf16.mxu0 0
    %2435 = vmatpush1.bf16.msra.mxu0 %v2007
    %2436 = vmatprep.subr.bf16.mxu0 0
    %2437 = vmatpush1.bf16.msra.mxu0 %v2008
    %2438 = vmatprep.subr.bf16.mxu0 0
    %2439 = vmatpush1.bf16.msra.mxu0 %v2009
    %2440 = vmatprep.subr.bf16.mxu0 0
    %2441 = vmatpush1.bf16.msra.mxu0 %v2010
    %2442 = vmatprep.subr.bf16.mxu0 0
    %2443 = vmatpush1.bf16.msra.mxu0 %v2011
    %2444 = vmatprep.subr.bf16.mxu0 0
    %2445 = vmatpush1.bf16.msra.mxu0 %v2012
    %2446 = vmatprep.subr.bf16.mxu0 0
    %2447 = vmatpush1.bf16.msra.mxu0 %v2013
    %2448 = vmatprep.subr.bf16.mxu0 0
    %2449 = vmatpush1.bf16.msra.mxu0 %v2014
    %2450 = vmatprep.subr.bf16.mxu0 0
    %2451 = vmatpush1.bf16.msra.mxu0 %v2015
    %2452 = vmatprep.mubr.bf16.mxu0 %v1045
    %2453 = vmatmul.mubr.bf16.gmra.mrb[0].mxu0 %v1044
    %v2454 = vpop.f32.mrb[0].mxu0
    %v2455 = vadd.f32 %v2406, %v2454
    %v2456 = vpop.f32.mrb[0].mxu0
    %v2457 = vpop.f32.mrb[0].mxu0
    %v2458 = vadd.f32 %v2409, %v2457
    %v2459 = vpop.f32.mrb[0].mxu0
    %2460 = vmatprep.mubr.bf16.mxu0 %v1063
    %2461 = vmatmul.mubr.bf16.gmra.mrb[0].mxu0 %v1062
    %v2462 = vpop.f32.mrb[0].mxu0
    %v2463 = vadd.f32 %v2414, %v2462
    %v2464 = vpop.f32.mrb[0].mxu0
    %v2465 = vpop.f32.mrb[0].mxu0
    %v2466 = vadd.f32 %v2417, %v2465
    %v2467 = vpop.f32.mrb[0].mxu0
    %2468 = vdwg.mxu0
    %2469 = vmatprep.subr.bf16.mxu0 0
    %2470 = vmatpush1.bf16.msra.mxu0 %v2016
    %2471 = vmatprep.subr.bf16.mxu0 0
    %2472 = vmatpush1.bf16.msra.mxu0 %v2017
    %2473 = vmatprep.subr.bf16.mxu0 0
    %2474 = vmatpush1.bf16.msra.mxu0 %v2018
    %2475 = vmatprep.subr.bf16.mxu0 0
    %2476 = vmatpush1.bf16.msra.mxu0 %v2019
    %2477 = vmatprep.subr.bf16.mxu0 0
    %2478 = vmatpush1.bf16.msra.mxu0 %v2020
    %2479 = vmatprep.subr.bf16.mxu0 0
    %2480 = vmatpush1.bf16.msra.mxu0 %v2021
    %2481 = vmatprep.subr.bf16.mxu0 0
    %2482 = vmatpush1.bf16.msra.mxu0 %v2022
    %2483 = vmatprep.subr.bf16.mxu0 0
    %2484 = vmatpush1.bf16.msra.mxu0 %v2023
    %2485 = vmatprep.subr.bf16.mxu0 0
    %2486 = vmatpush1.bf16.msra.mxu0 %v2024
    %2487 = vmatprep.subr.bf16.mxu0 0
    %2488 = vmatpush1.bf16.msra.mxu0 %v2025
    %2489 = vmatprep.subr.bf16.mxu0 0
    %2490 = vmatpush1.bf16.msra.mxu0 %v2026
    %2491 = vmatprep.subr.bf16.mxu0 0
    %2492 = vmatpush1.bf16.msra.mxu0 %v2027
    %2493 = vmatprep.subr.bf16.mxu0 0
    %2494 = vmatpush1.bf16.msra.mxu0 %v2028
    %2495 = vmatprep.subr.bf16.mxu0 0
    %2496 = vmatpush1.bf16.msra.mxu0 %v2029
    %2497 = vmatprep.subr.bf16.mxu0 0
    %2498 = vmatpush1.bf16.msra.mxu0 %v2030
    %2499 = vmatprep.subr.bf16.mxu0 0
    %2500 = vmatpush1.bf16.msra.mxu0 %v2031
    %2501 = vmatprep.mubr.bf16.mxu0 %v1047
    %2502 = vmatmul.mubr.bf16.gmra.mrb[0].mxu0 %v1046
    %v2503 = vpop.f32.mrb[0].mxu0
    %v2504 = vadd.f32 %v2455, %v2503
    %v2505 = vpop.f32.mrb[0].mxu0
    %v2506 = vpop.f32.mrb[0].mxu0
    %v2507 = vadd.f32 %v2458, %v2506
    %v2508 = vpop.f32.mrb[0].mxu0
    %2509 = vmatprep.mubr.bf16.mxu0 %v1065
    %2510 = vmatmul.mubr.bf16.gmra.mrb[0].mxu0 %v1064
    %v2511 = vpop.f32.mrb[0].mxu0
    %v2512 = vadd.f32 %v2463, %v2511
    %v2513 = vpop.f32.mrb[0].mxu0
    %v2514 = vpop.f32.mrb[0].mxu0
    %v2515 = vadd.f32 %v2466, %v2514
    %v2516 = vpop.f32.mrb[0].mxu0
    %2517 = vdwg.mxu0
    %2518 = vmatprep.subr.bf16.mxu0 0
    %2519 = vmatpush1.bf16.msra.mxu0 %v2032
    %2520 = vmatprep.subr.bf16.mxu0 0
    %2521 = vmatpush1.bf16.msra.mxu0 %v2033
    %2522 = vmatprep.subr.bf16.mxu0 0
    %2523 = vmatpush1.bf16.msra.mxu0 %v2034
    %2524 = vmatprep.subr.bf16.mxu0 0
    %2525 = vmatpush1.bf16.msra.mxu0 %v2035
    %2526 = vmatprep.subr.bf16.mxu0 0
    %2527 = vmatpush1.bf16.msra.mxu0 %v2036
    %2528 = vmatprep.subr.bf16.mxu0 0
    %2529 = vmatpush1.bf16.msra.mxu0 %v2037
    %2530 = vmatprep.subr.bf16.mxu0 0
    %2531 = vmatpush1.bf16.msra.mxu0 %v2038
    %2532 = vmatprep.subr.bf16.mxu0 0
    %2533 = vmatpush1.bf16.msra.mxu0 %v2039
    %2534 = vmatprep.subr.bf16.mxu0 0
    %2535 = vmatpush1.bf16.msra.mxu0 %v2040
    %2536 = vmatprep.subr.bf16.mxu0 0
    %2537 = vmatpush1.bf16.msra.mxu0 %v2041
    %2538 = vmatprep.subr.bf16.mxu0 0
    %2539 = vmatpush1.bf16.msra.mxu0 %v2042
    %2540 = vmatprep.subr.bf16.mxu0 0
    %2541 = vmatpush1.bf16.msra.mxu0 %v2043
    %2542 = vmatprep.subr.bf16.mxu0 0
    %2543 = vmatpush1.bf16.msra.mxu0 %v2044
    %2544 = vmatprep.subr.bf16.mxu0 0
    %2545 = vmatpush1.bf16.msra.mxu0 %v2045
    %2546 = vmatprep.subr.bf16.mxu0 0
    %2547 = vmatpush1.bf16.msra.mxu0 %v2046
    %2548 = vmatprep.subr.bf16.mxu0 0
    %2549 = vmatpush1.bf16.msra.mxu0 %v2047
    %2550 = vmatprep.mubr.bf16.mxu0 %v1049
    %2551 = vmatmul.mubr.bf16.gmra.mrb[0].mxu0 %v1048
    %v2552 = vpop.f32.mrb[0].mxu0
    %v2553 = vadd.f32 %v2504, %v2552
    %v2554 = vpop.f32.mrb[0].mxu0
    %v2555 = vpop.f32.mrb[0].mxu0
    %v2556 = vadd.f32 %v2507, %v2555
    %v2557 = vpop.f32.mrb[0].mxu0
    %2558 = vmatprep.mubr.bf16.mxu0 %v1067
    %2559 = vmatmul.mubr.bf16.gmra.mrb[0].mxu0 %v1066
    %v2560 = vpop.f32.mrb[0].mxu0
    %v2561 = vadd.f32 %v2512, %v2560
    %v2562 = vpop.f32.mrb[0].mxu0
    %v2563 = vpop.f32.mrb[0].mxu0
    %v2564 = vadd.f32 %v2515, %v2563
    %v2565 = vpop.f32.mrb[0].mxu0
    %2566 = vdwg.mxu0
    %2567 = vmatprep.subr.bf16.mxu0 0
    %2568 = vmatpush1.bf16.msra.mxu0 %v2048
    %2569 = vmatprep.subr.bf16.mxu0 0
    %2570 = vmatpush1.bf16.msra.mxu0 %v2049
    %2571 = vmatprep.subr.bf16.mxu0 0
    %2572 = vmatpush1.bf16.msra.mxu0 %v2050
    %2573 = vmatprep.subr.bf16.mxu0 0
    %2574 = vmatpush1.bf16.msra.mxu0 %v2051
    %2575 = vmatprep.subr.bf16.mxu0 0
    %2576 = vmatpush1.bf16.msra.mxu0 %v2052
    %2577 = vmatprep.subr.bf16.mxu0 0
    %2578 = vmatpush1.bf16.msra.mxu0 %v2053
    %2579 = vmatprep.subr.bf16.mxu0 0
    %2580 = vmatpush1.bf16.msra.mxu0 %v2054
    %2581 = vmatprep.subr.bf16.mxu0 0
    %2582 = vmatpush1.bf16.msra.mxu0 %v2055
    %2583 = vmatprep.subr.bf16.mxu0 0
    %2584 = vmatpush1.bf16.msra.mxu0 %v2056
    %2585 = vmatprep.subr.bf16.mxu0 0
    %2586 = vmatpush1.bf16.msra.mxu0 %v2057
    %2587 = vmatprep.subr.bf16.mxu0 0
    %2588 = vmatpush1.bf16.msra.mxu0 %v2058
    %2589 = vmatprep.subr.bf16.mxu0 0
    %2590 = vmatpush1.bf16.msra.mxu0 %v2059
    %2591 = vmatprep.subr.bf16.mxu0 0
    %2592 = vmatpush1.bf16.msra.mxu0 %v2060
    %2593 = vmatprep.subr.bf16.mxu0 0
    %2594 = vmatpush1.bf16.msra.mxu0 %v2061
    %2595 = vmatprep.subr.bf16.mxu0 0
    %2596 = vmatpush1.bf16.msra.mxu0 %v2062
    %2597 = vmatprep.subr.bf16.mxu0 0
    %2598 = vmatpush1.bf16.msra.mxu0 %v2063
    %2599 = vmatprep.mubr.bf16.mxu0 %v1051
    %2600 = vmatmul.mubr.bf16.gmra.mrb[0].mxu0 %v1050
    %v2601 = vpop.f32.mrb[0].mxu0
    %v2602 = vadd.f32 %v2553, %v2601
    %v2603 = vpop.f32.mrb[0].mxu0
    %v2604 = vpop.f32.mrb[0].mxu0
    %v2605 = vadd.f32 %v2556, %v2604
    %v2606 = vpop.f32.mrb[0].mxu0
    %2607 = vmatprep.mubr.bf16.mxu0 %v1069
    %2608 = vmatmul.mubr.bf16.gmra.mrb[0].mxu0 %v1068
    %v2609 = vpop.f32.mrb[0].mxu0
    %v2610 = vadd.f32 %v2561, %v2609
    %v2611 = vpop.f32.mrb[0].mxu0
    %v2612 = vpop.f32.mrb[0].mxu0
    %v2613 = vadd.f32 %v2564, %v2612
    %v2614 = vpop.f32.mrb[0].mxu0
    %2615 = vdwg.mxu0
    %2616 = vmatprep.subr.bf16.mxu0 0
    %2617 = vmatpush1.bf16.msra.mxu0 %v2064
    %2618 = vmatprep.subr.bf16.mxu0 0
    %2619 = vmatpush1.bf16.msra.mxu0 %v2065
    %2620 = vmatprep.subr.bf16.mxu0 0
    %2621 = vmatpush1.bf16.msra.mxu0 %v2066
    %2622 = vmatprep.subr.bf16.mxu0 0
    %2623 = vmatpush1.bf16.msra.mxu0 %v2067
    %2624 = vmatprep.subr.bf16.mxu0 0
    %2625 = vmatpush1.bf16.msra.mxu0 %v2068
    %2626 = vmatprep.subr.bf16.mxu0 0
    %2627 = vmatpush1.bf16.msra.mxu0 %v2069
    %2628 = vmatprep.subr.bf16.mxu0 0
    %2629 = vmatpush1.bf16.msra.mxu0 %v2070
    %2630 = vmatprep.subr.bf16.mxu0 0
    %2631 = vmatpush1.bf16.msra.mxu0 %v2071
    %2632 = vmatprep.subr.bf16.mxu0 0
    %2633 = vmatpush1.bf16.msra.mxu0 %v2072
    %2634 = vmatprep.subr.bf16.mxu0 0
    %2635 = vmatpush1.bf16.msra.mxu0 %v2073
    %2636 = vmatprep.subr.bf16.mxu0 0
    %2637 = vmatpush1.bf16.msra.mxu0 %v2074
    %2638 = vmatprep.subr.bf16.mxu0 0
    %2639 = vmatpush1.bf16.msra.mxu0 %v2075
    %2640 = vmatprep.subr.bf16.mxu0 0
    %2641 = vmatpush1.bf16.msra.mxu0 %v2076
    %2642 = vmatprep.subr.bf16.mxu0 0
    %2643 = vmatpush1.bf16.msra.mxu0 %v2077
    %2644 = vmatprep.subr.bf16.mxu0 0
    %2645 = vmatpush1.bf16.msra.mxu0 %v2078
    %2646 = vmatprep.subr.bf16.mxu0 0
    %2647 = vmatpush1.bf16.msra.mxu0 %v2079
    %2648 = vmatprep.mubr.bf16.mxu0 %v1053
    %2649 = vmatmul.mubr.bf16.gmra.mrb[0].mxu0 %v1052
    %v2650 = vpop.f32.mrb[0].mxu0
    %v2651 = vadd.f32 %v2602, %v2650
    %v2652 = vpop.f32.mrb[0].mxu0
    %v2653 = vpop.f32.mrb[0].mxu0
    %v2654 = vadd.f32 %v2605, %v2653
    %v2655 = vpop.f32.mrb[0].mxu0
    %2656 = vmatprep.mubr.bf16.mxu0 %v1071
    %2657 = vmatmul.mubr.bf16.gmra.mrb[0].mxu0 %v1070
    %v2658 = vpop.f32.mrb[0].mxu0
    %v2659 = vadd.f32 %v2610, %v2658
    %v2660 = vpop.f32.mrb[0].mxu0
    %v2661 = vpop.f32.mrb[0].mxu0
    %v2662 = vadd.f32 %v2613, %v2661
    %v2663 = vpop.f32.mrb[0].mxu0
    %2664 = vdwg.mxu0
    %v2665 = vmax.f32 %v2651, 1e-20
    %v2666 = vmax.f32 %v2654, 1e-20
    %v2667 = vmax.f32 %v2659, 1e-20
    %v2668 = vmax.f32 %v2662, 1e-20
    %v2669 = vrcp.pop %v2665
    %v2670 = vrcp.pop %v2666
    %v2671 = vrcp.pop %v2667
    %v2672 = vrcp.pop %v2668
    %2674 = vset.pattern.permute.xlu0 127
    %2675 = vperm.xlu0 %2674, %v2669
    %v2676 = vpop.permute.xlu0 %2675
    %2679 = vset.pattern.permute.xlu0 127
    %2680 = vperm.xlu0 %2679, %v2670
    %v2681 = vpop.permute.xlu0 %2680
    %2684 = vset.pattern.permute.xlu0 127
    %2685 = vperm.xlu0 %2684, %v2671
    %v2686 = vpop.permute.xlu0 %2685
    %2689 = vset.pattern.permute.xlu0 127
    %2690 = vperm.xlu0 %2689, %v2672
    %v2691 = vpop.permute.xlu0 %2690
    %v2693 = vmul.f32 %v2651, %v2676
    %v2694 = vmul.f32 %v2654, %v2681
    %v2695 = vmul.f32 %v2659, %v2686
    %v2696 = vmul.f32 %v2662, %v2691
    %v2697 = vadd.f32 %v1014, %v2693
    %v2698 = vadd.f32 %v1015, %v2694
    %v2699 = vadd.f32 %v1016, %v2695
    %v2700 = vadd.f32 %v1017, %v2696
    %v2701 = vld [vmem:[#allocation6] sm:$0xff]
    %v2702 = vld [vmem:[#allocation6 + $0x8] sm:$0xff]
    %v2703 = vld [vmem:[#allocation6 + $0x10] sm:$0xff]
    %v2704 = vld [vmem:[#allocation6 + $0x18] sm:$0xff]
    %v2705 = vld [vmem:[#allocation6 + $0x20] sm:$0xff]
    %v2706 = vld [vmem:[#allocation6 + $0x28] sm:$0xff]
    %v2707 = vld [vmem:[#allocation6 + $0x30] sm:$0xff]
    %v2708 = vld [vmem:[#allocation6 + $0x38] sm:$0xff]
    %v2709 = vld [vmem:[#allocation6 + $0x40] sm:$0xff]
    %v2710 = vld [vmem:[#allocation6 + $0x48] sm:$0xff]
    %v2711 = vld [vmem:[#allocation6 + $0x50] sm:$0xff]
    %v2712 = vld [vmem:[#allocation6 + $0x58] sm:$0xff]
    %v2713 = vld [vmem:[#allocation6 + $0x60] sm:$0xff]
    %v2714 = vld [vmem:[#allocation6 + $0x68] sm:$0xff]
    %v2715 = vld [vmem:[#allocation6 + $0x70] sm:$0xff]
    %v2716 = vld [vmem:[#allocation6 + $0x78] sm:$0xff]
    %v2717 = vld [vmem:[#allocation6 + $0x80] sm:$0xff]
    %v2718 = vld [vmem:[#allocation6 + $0x88] sm:$0xff]
    %v2719 = vld [vmem:[#allocation6 + $0x90] sm:$0xff]
    %v2720 = vld [vmem:[#allocation6 + $0x98] sm:$0xff]
    %v2721 = vld [vmem:[#allocation6 + $0xa0] sm:$0xff]
    %v2722 = vld [vmem:[#allocation6 + $0xa8] sm:$0xff]
    %v2723 = vld [vmem:[#allocation6 + $0xb0] sm:$0xff]
    %v2724 = vld [vmem:[#allocation6 + $0xb8] sm:$0xff]
    %v2725 = vld [vmem:[#allocation6 + $0xc0] sm:$0xff]
    %v2726 = vld [vmem:[#allocation6 + $0xc8] sm:$0xff]
    %v2727 = vld [vmem:[#allocation6 + $0xd0] sm:$0xff]
    %v2728 = vld [vmem:[#allocation6 + $0xd8] sm:$0xff]
    %v2729 = vld [vmem:[#allocation6 + $0xe0] sm:$0xff]
    %v2730 = vld [vmem:[#allocation6 + $0xe8] sm:$0xff]
    %v2731 = vld [vmem:[#allocation6 + $0xf0] sm:$0xff]
    %v2732 = vld [vmem:[#allocation6 + $0xf8] sm:$0xff]
    %v2733 = vld [vmem:[#allocation6 + $0x100] sm:$0xff]
    %v2734 = vld [vmem:[#allocation6 + $0x108] sm:$0xff]
    %v2735 = vld [vmem:[#allocation6 + $0x110] sm:$0xff]
    %v2736 = vld [vmem:[#allocation6 + $0x118] sm:$0xff]
    %v2737 = vld [vmem:[#allocation6 + $0x120] sm:$0xff]
    %v2738 = vld [vmem:[#allocation6 + $0x128] sm:$0xff]
    %v2739 = vld [vmem:[#allocation6 + $0x130] sm:$0xff]
    %v2740 = vld [vmem:[#allocation6 + $0x138] sm:$0xff]
    %v2741 = vld [vmem:[#allocation6 + $0x140] sm:$0xff]
    %v2742 = vld [vmem:[#allocation6 + $0x148] sm:$0xff]
    %v2743 = vld [vmem:[#allocation6 + $0x150] sm:$0xff]
    %v2744 = vld [vmem:[#allocation6 + $0x158] sm:$0xff]
    %v2745 = vld [vmem:[#allocation6 + $0x160] sm:$0xff]
    %v2746 = vld [vmem:[#allocation6 + $0x168] sm:$0xff]
    %v2747 = vld [vmem:[#allocation6 + $0x170] sm:$0xff]
    %v2748 = vld [vmem:[#allocation6 + $0x178] sm:$0xff]
    %v2749 = vld [vmem:[#allocation6 + $0x180] sm:$0xff]
    %v2750 = vld [vmem:[#allocation6 + $0x188] sm:$0xff]
    %v2751 = vld [vmem:[#allocation6 + $0x190] sm:$0xff]
    %v2752 = vld [vmem:[#allocation6 + $0x198] sm:$0xff]
    %v2753 = vld [vmem:[#allocation6 + $0x1a0] sm:$0xff]
    %v2754 = vld [vmem:[#allocation6 + $0x1a8] sm:$0xff]
    %v2755 = vld [vmem:[#allocation6 + $0x1b0] sm:$0xff]
    %v2756 = vld [vmem:[#allocation6 + $0x1b8] sm:$0xff]
    %v2757 = vld [vmem:[#allocation6 + $0x1c0] sm:$0xff]
    %v2758 = vld [vmem:[#allocation6 + $0x1c8] sm:$0xff]
    %v2759 = vld [vmem:[#allocation6 + $0x1d0] sm:$0xff]
    %v2760 = vld [vmem:[#allocation6 + $0x1d8] sm:$0xff]
    %v2761 = vld [vmem:[#allocation6 + $0x1e0] sm:$0xff]
    %v2762 = vld [vmem:[#allocation6 + $0x1e8] sm:$0xff]
    %v2763 = vld [vmem:[#allocation6 + $0x1f0] sm:$0xff]
    %v2764 = vunpack.c.l.s8.bf16 %v2701
    %v2765 = vunpack.c.l.s8.bf16 %v2702
    %v2766 = vunpack.c.l.s8.bf16 %v2703
    %v2767 = vunpack.c.l.s8.bf16 %v2704
    %v2768 = vunpack.c.l.s8.bf16 %v2705
    %v2769 = vunpack.c.l.s8.bf16 %v2706
    %v2770 = vunpack.c.l.s8.bf16 %v2707
    %v2771 = vunpack.c.l.s8.bf16 %v2708
    %v2772 = vunpack.c.l.s8.bf16 %v2709
    %v2773 = vunpack.c.l.s8.bf16 %v2710
    %v2774 = vunpack.c.l.s8.bf16 %v2711
    %v2775 = vunpack.c.l.s8.bf16 %v2712
    %v2776 = vunpack.c.l.s8.bf16 %v2713
    %v2777 = vunpack.c.l.s8.bf16 %v2714
    %v2778 = vunpack.c.l.s8.bf16 %v2715
    %v2779 = vunpack.c.l.s8.bf16 %v2716
    %v2780 = vunpack.c.l.s8.bf16 %v2717
    %v2781 = vunpack.c.l.s8.bf16 %v2718
    %v2782 = vunpack.c.l.s8.bf16 %v2719
    %v2783 = vunpack.c.l.s8.bf16 %v2720
    %v2784 = vunpack.c.l.s8.bf16 %v2721
    %v2785 = vunpack.c.l.s8.bf16 %v2722
    %v2786 = vunpack.c.l.s8.bf16 %v2723
    %v2787 = vunpack.c.l.s8.bf16 %v2724
    %v2788 = vunpack.c.l.s8.bf16 %v2725
    %v2789 = vunpack.c.l.s8.bf16 %v2726
    %v2790 = vunpack.c.l.s8.bf16 %v2727
    %v2791 = vunpack.c.l.s8.bf16 %v2728
    %v2792 = vunpack.c.l.s8.bf16 %v2729
    %v2793 = vunpack.c.l.s8.bf16 %v2730
    %v2794 = vunpack.c.l.s8.bf16 %v2731
    %v2795 = vunpack.c.l.s8.bf16 %v2732
    %v2796 = vunpack.c.l.s8.bf16 %v2733
    %v2797 = vunpack.c.l.s8.bf16 %v2734
    %v2798 = vunpack.c.l.s8.bf16 %v2735
    %v2799 = vunpack.c.l.s8.bf16 %v2736
    %v2800 = vunpack.c.l.s8.bf16 %v2737
    %v2801 = vunpack.c.l.s8.bf16 %v2738
    %v2802 = vunpack.c.l.s8.bf16 %v2739
    %v2803 = vunpack.c.l.s8.bf16 %v2740
    %v2804 = vunpack.c.l.s8.bf16 %v2741
    %v2805 = vunpack.c.l.s8.bf16 %v2742
    %v2806 = vunpack.c.l.s8.bf16 %v2743
    %v2807 = vunpack.c.l.s8.bf16 %v2744
    %v2808 = vunpack.c.l.s8.bf16 %v2745
    %v2809 = vunpack.c.l.s8.bf16 %v2746
    %v2810 = vunpack.c.l.s8.bf16 %v2747
    %v2811 = vunpack.c.l.s8.bf16 %v2748
    %v2812 = vunpack.c.l.s8.bf16 %v2749
    %v2813 = vunpack.c.l.s8.bf16 %v2750
    %v2814 = vunpack.c.l.s8.bf16 %v2751
    %v2815 = vunpack.c.l.s8.bf16 %v2752
    %v2816 = vunpack.c.l.s8.bf16 %v2753
    %v2817 = vunpack.c.l.s8.bf16 %v2754
    %v2818 = vunpack.c.l.s8.bf16 %v2755
    %v2819 = vunpack.c.l.s8.bf16 %v2756
    %v2820 = vunpack.c.l.s8.bf16 %v2757
    %v2821 = vunpack.c.l.s8.bf16 %v2758
    %v2822 = vunpack.c.l.s8.bf16 %v2759
    %v2823 = vunpack.c.l.s8.bf16 %v2760
    %v2824 = vunpack.c.l.s8.bf16 %v2761
    %v2825 = vunpack.c.l.s8.bf16 %v2762
    %v2826 = vunpack.c.l.s8.bf16 %v2763
    %v2827 = vunpack.c.h.s8.bf16 %v2701
    %v2828 = vunpack.c.h.s8.bf16 %v2702
    %v2829 = vunpack.c.h.s8.bf16 %v2703
    %v2830 = vunpack.c.h.s8.bf16 %v2704
    %v2831 = vunpack.c.h.s8.bf16 %v2705
    %v2832 = vunpack.c.h.s8.bf16 %v2706
    %v2833 = vunpack.c.h.s8.bf16 %v2707
    %v2834 = vunpack.c.h.s8.bf16 %v2708
    %v2835 = vunpack.c.h.s8.bf16 %v2709
    %v2836 = vunpack.c.h.s8.bf16 %v2710
    %v2837 = vunpack.c.h.s8.bf16 %v2711
    %v2838 = vunpack.c.h.s8.bf16 %v2712
    %v2839 = vunpack.c.h.s8.bf16 %v2713
    %v2840 = vunpack.c.h.s8.bf16 %v2714
    %v2841 = vunpack.c.h.s8.bf16 %v2715
    %v2842 = vunpack.c.h.s8.bf16 %v2716
    %v2843 = vunpack.c.h.s8.bf16 %v2717
    %v2844 = vunpack.c.h.s8.bf16 %v2718
    %v2845 = vunpack.c.h.s8.bf16 %v2719
    %v2846 = vunpack.c.h.s8.bf16 %v2720
    %v2847 = vunpack.c.h.s8.bf16 %v2721
    %v2848 = vunpack.c.h.s8.bf16 %v2722
    %v2849 = vunpack.c.h.s8.bf16 %v2723
    %v2850 = vunpack.c.h.s8.bf16 %v2724
    %v2851 = vunpack.c.h.s8.bf16 %v2725
    %v2852 = vunpack.c.h.s8.bf16 %v2726
    %v2853 = vunpack.c.h.s8.bf16 %v2727
    %v2854 = vunpack.c.h.s8.bf16 %v2728
    %v2855 = vunpack.c.h.s8.bf16 %v2729
    %v2856 = vunpack.c.h.s8.bf16 %v2730
    %v2857 = vunpack.c.h.s8.bf16 %v2731
    %v2858 = vunpack.c.h.s8.bf16 %v2732
    %v2859 = vunpack.c.h.s8.bf16 %v2733
    %v2860 = vunpack.c.h.s8.bf16 %v2734
    %v2861 = vunpack.c.h.s8.bf16 %v2735
    %v2862 = vunpack.c.h.s8.bf16 %v2736
    %v2863 = vunpack.c.h.s8.bf16 %v2737
    %v2864 = vunpack.c.h.s8.bf16 %v2738
    %v2865 = vunpack.c.h.s8.bf16 %v2739
    %v2866 = vunpack.c.h.s8.bf16 %v2740
    %v2867 = vunpack.c.h.s8.bf16 %v2741
    %v2868 = vunpack.c.h.s8.bf16 %v2742
    %v2869 = vunpack.c.h.s8.bf16 %v2743
    %v2870 = vunpack.c.h.s8.bf16 %v2744
    %v2871 = vunpack.c.h.s8.bf16 %v2745
    %v2872 = vunpack.c.h.s8.bf16 %v2746
    %v2873 = vunpack.c.h.s8.bf16 %v2747
    %v2874 = vunpack.c.h.s8.bf16 %v2748
    %v2875 = vunpack.c.h.s8.bf16 %v2749
    %v2876 = vunpack.c.h.s8.bf16 %v2750
    %v2877 = vunpack.c.h.s8.bf16 %v2751
    %v2878 = vunpack.c.h.s8.bf16 %v2752
    %v2879 = vunpack.c.h.s8.bf16 %v2753
    %v2880 = vunpack.c.h.s8.bf16 %v2754
    %v2881 = vunpack.c.h.s8.bf16 %v2755
    %v2882 = vunpack.c.h.s8.bf16 %v2756
    %v2883 = vunpack.c.h.s8.bf16 %v2757
    %v2884 = vunpack.c.h.s8.bf16 %v2758
    %v2885 = vunpack.c.h.s8.bf16 %v2759
    %v2886 = vunpack.c.h.s8.bf16 %v2760
    %v2887 = vunpack.c.h.s8.bf16 %v2761
    %v2888 = vunpack.c.h.s8.bf16 %v2762
    %v2889 = vunpack.c.h.s8.bf16 %v2763
    %v2890 = vld [vmem:[#allocation12] sm:$0xf]
    %v2891 = vld [vmem:[#allocation12 + $0x4] sm:$0xf]
    %v2892 = vld [vmem:[#allocation12 + $0x8] sm:$0xf]
    %v2893 = vld [vmem:[#allocation12 + $0xc] sm:$0xf]
    %v2894 = vld [vmem:[#allocation12 + $0x10] sm:$0xf]
    %v2895 = vld [vmem:[#allocation12 + $0x14] sm:$0xf]
    %v2896 = vld [vmem:[#allocation12 + $0x18] sm:$0xf]
    %v2897 = vld [vmem:[#allocation12 + $0x1c] sm:$0xf]
    %v2898 = vld [vmem:[#allocation12 + $0x20] sm:$0xf]
    %v2899 = vld [vmem:[#allocation12 + $0x24] sm:$0xf]
    %v2900 = vld [vmem:[#allocation12 + $0x28] sm:$0xf]
    %v2901 = vld [vmem:[#allocation12 + $0x2c] sm:$0xf]
    %v2902 = vld [vmem:[#allocation12 + $0x30] sm:$0xf]
    %v2903 = vld [vmem:[#allocation12 + $0x34] sm:$0xf]
    %v2904 = vld [vmem:[#allocation12 + $0x38] sm:$0xf]
    %v2905 = vld [vmem:[#allocation12 + $0x3c] sm:$0xf]
    %v2906 = vld [vmem:[#allocation12 + $0x40] sm:$0xf]
    %v2907 = vld [vmem:[#allocation12 + $0x44] sm:$0xf]
    %v2908 = vld [vmem:[#allocation12 + $0x48] sm:$0xf]
    %v2909 = vld [vmem:[#allocation12 + $0x4c] sm:$0xf]
    %v2910 = vld [vmem:[#allocation12 + $0x50] sm:$0xf]
    %v2911 = vld [vmem:[#allocation12 + $0x54] sm:$0xf]
    %v2912 = vld [vmem:[#allocation12 + $0x58] sm:$0xf]
    %v2913 = vld [vmem:[#allocation12 + $0x5c] sm:$0xf]
    %v2914 = vld [vmem:[#allocation12 + $0x60] sm:$0xf]
    %v2915 = vld [vmem:[#allocation12 + $0x64] sm:$0xf]
    %v2916 = vld [vmem:[#allocation12 + $0x68] sm:$0xf]
    %v2917 = vld [vmem:[#allocation12 + $0x6c] sm:$0xf]
    %v2918 = vld [vmem:[#allocation12 + $0x70] sm:$0xf]
    %v2919 = vld [vmem:[#allocation12 + $0x74] sm:$0xf]
    %v2920 = vld [vmem:[#allocation12 + $0x78] sm:$0xf]
    %v2921 = vld [vmem:[#allocation12 + $0x7c] sm:$0xf]
    %v2922 = vld [vmem:[#allocation12 + $0x80] sm:$0xf]
    %v2923 = vld [vmem:[#allocation12 + $0x84] sm:$0xf]
    %v2924 = vld [vmem:[#allocation12 + $0x88] sm:$0xf]
    %v2925 = vld [vmem:[#allocation12 + $0x8c] sm:$0xf]
    %v2926 = vld [vmem:[#allocation12 + $0x90] sm:$0xf]
    %v2927 = vld [vmem:[#allocation12 + $0x94] sm:$0xf]
    %v2928 = vld [vmem:[#allocation12 + $0x98] sm:$0xf]
    %v2929 = vld [vmem:[#allocation12 + $0x9c] sm:$0xf]
    %v2930 = vld [vmem:[#allocation12 + $0xa0] sm:$0xf]
    %v2931 = vld [vmem:[#allocation12 + $0xa4] sm:$0xf]
    %v2932 = vld [vmem:[#allocation12 + $0xa8] sm:$0xf]
    %v2933 = vld [vmem:[#allocation12 + $0xac] sm:$0xf]
    %v2934 = vld [vmem:[#allocation12 + $0xb0] sm:$0xf]
    %v2935 = vld [vmem:[#allocation12 + $0xb4] sm:$0xf]
    %v2936 = vld [vmem:[#allocation12 + $0xb8] sm:$0xf]
    %v2937 = vld [vmem:[#allocation12 + $0xbc] sm:$0xf]
    %v2938 = vld [vmem:[#allocation12 + $0xc0] sm:$0xf]
    %v2939 = vld [vmem:[#allocation12 + $0xc4] sm:$0xf]
    %v2940 = vld [vmem:[#allocation12 + $0xc8] sm:$0xf]
    %v2941 = vld [vmem:[#allocation12 + $0xcc] sm:$0xf]
    %v2942 = vld [vmem:[#allocation12 + $0xd0] sm:$0xf]
    %v2943 = vld [vmem:[#allocation12 + $0xd4] sm:$0xf]
    %v2944 = vld [vmem:[#allocation12 + $0xd8] sm:$0xf]
    %v2945 = vld [vmem:[#allocation12 + $0xdc] sm:$0xf]
    %v2946 = vld [vmem:[#allocation12 + $0xe0] sm:$0xf]
    %v2947 = vld [vmem:[#allocation12 + $0xe4] sm:$0xf]
    %v2948 = vld [vmem:[#allocation12 + $0xe8] sm:$0xf]
    %v2949 = vld [vmem:[#allocation12 + $0xec] sm:$0xf]
    %v2950 = vld [vmem:[#allocation12 + $0xf0] sm:$0xf]
    %v2951 = vld [vmem:[#allocation12 + $0xf4] sm:$0xf]
    %v2952 = vld [vmem:[#allocation12 + $0xf8] sm:$0xf]
    %v2953 = vld [vmem:[#allocation12 + $0xfc] sm:$0xf]
    %v2954 = vld [vmem:[#allocation12 + $0x100] sm:$0xf]
    %v2955 = vld [vmem:[#allocation12 + $0x104] sm:$0xf]
    %v2956 = vld [vmem:[#allocation12 + $0x108] sm:$0xf]
    %v2957 = vld [vmem:[#allocation12 + $0x10c] sm:$0xf]
    %v2958 = vld [vmem:[#allocation12 + $0x110] sm:$0xf]
    %v2959 = vld [vmem:[#allocation12 + $0x114] sm:$0xf]
    %v2960 = vld [vmem:[#allocation12 + $0x118] sm:$0xf]
    %v2961 = vld [vmem:[#allocation12 + $0x11c] sm:$0xf]
    %v2962 = vld [vmem:[#allocation12 + $0x120] sm:$0xf]
    %v2963 = vld [vmem:[#allocation12 + $0x124] sm:$0xf]
    %v2964 = vld [vmem:[#allocation12 + $0x128] sm:$0xf]
    %v2965 = vld [vmem:[#allocation12 + $0x12c] sm:$0xf]
    %v2966 = vld [vmem:[#allocation12 + $0x130] sm:$0xf]
    %v2967 = vld [vmem:[#allocation12 + $0x134] sm:$0xf]
    %v2968 = vld [vmem:[#allocation12 + $0x138] sm:$0xf]
    %v2969 = vld [vmem:[#allocation12 + $0x13c] sm:$0xf]
    %v2970 = vld [vmem:[#allocation12 + $0x140] sm:$0xf]
    %v2971 = vld [vmem:[#allocation12 + $0x144] sm:$0xf]
    %v2972 = vld [vmem:[#allocation12 + $0x148] sm:$0xf]
    %v2973 = vld [vmem:[#allocation12 + $0x14c] sm:$0xf]
    %v2974 = vld [vmem:[#allocation12 + $0x150] sm:$0xf]
    %v2975 = vld [vmem:[#allocation12 + $0x154] sm:$0xf]
    %v2976 = vld [vmem:[#allocation12 + $0x158] sm:$0xf]
    %v2977 = vld [vmem:[#allocation12 + $0x15c] sm:$0xf]
    %v2978 = vld [vmem:[#allocation12 + $0x160] sm:$0xf]
    %v2979 = vld [vmem:[#allocation12 + $0x164] sm:$0xf]
    %v2980 = vld [vmem:[#allocation12 + $0x168] sm:$0xf]
    %v2981 = vld [vmem:[#allocation12 + $0x16c] sm:$0xf]
    %v2982 = vld [vmem:[#allocation12 + $0x170] sm:$0xf]
    %v2983 = vld [vmem:[#allocation12 + $0x174] sm:$0xf]
    %v2984 = vld [vmem:[#allocation12 + $0x178] sm:$0xf]
    %v2985 = vld [vmem:[#allocation12 + $0x17c] sm:$0xf]
    %v2986 = vld [vmem:[#allocation12 + $0x180] sm:$0xf]
    %v2987 = vld [vmem:[#allocation12 + $0x184] sm:$0xf]
    %v2988 = vld [vmem:[#allocation12 + $0x188] sm:$0xf]
    %v2989 = vld [vmem:[#allocation12 + $0x18c] sm:$0xf]
    %v2990 = vld [vmem:[#allocation12 + $0x190] sm:$0xf]
    %v2991 = vld [vmem:[#allocation12 + $0x194] sm:$0xf]
    %v2992 = vld [vmem:[#allocation12 + $0x198] sm:$0xf]
    %v2993 = vld [vmem:[#allocation12 + $0x19c] sm:$0xf]
    %v2994 = vld [vmem:[#allocation12 + $0x1a0] sm:$0xf]
    %v2995 = vld [vmem:[#allocation12 + $0x1a4] sm:$0xf]
    %v2996 = vld [vmem:[#allocation12 + $0x1a8] sm:$0xf]
    %v2997 = vld [vmem:[#allocation12 + $0x1ac] sm:$0xf]
    %v2998 = vld [vmem:[#allocation12 + $0x1b0] sm:$0xf]
    %v2999 = vld [vmem:[#allocation12 + $0x1b4] sm:$0xf]
    %v3000 = vld [vmem:[#allocation12 + $0x1b8] sm:$0xf]
    %v3001 = vld [vmem:[#allocation12 + $0x1bc] sm:$0xf]
    %v3002 = vld [vmem:[#allocation12 + $0x1c0] sm:$0xf]
    %v3003 = vld [vmem:[#allocation12 + $0x1c4] sm:$0xf]
    %v3004 = vld [vmem:[#allocation12 + $0x1c8] sm:$0xf]
    %v3005 = vld [vmem:[#allocation12 + $0x1cc] sm:$0xf]
    %v3006 = vld [vmem:[#allocation12 + $0x1d0] sm:$0xf]
    %v3007 = vld [vmem:[#allocation12 + $0x1d4] sm:$0xf]
    %v3008 = vld [vmem:[#allocation12 + $0x1d8] sm:$0xf]
    %v3009 = vld [vmem:[#allocation12 + $0x1dc] sm:$0xf]
    %v3010 = vld [vmem:[#allocation12 + $0x1e0] sm:$0xf]
    %v3011 = vld [vmem:[#allocation12 + $0x1e4] sm:$0xf]
    %v3012 = vld [vmem:[#allocation12 + $0x1e8] sm:$0xf]
    %v3013 = vld [vmem:[#allocation12 + $0x1ec] sm:$0xf]
    %v3014 = vld [vmem:[#allocation12 + $0x1f0] sm:$0xf]
    %v3015 = vld [vmem:[#allocation12 + $0x1f4] sm:$0xf]
    %v3016 = vld [vmem:[#allocation12 + $0x1f8] sm:$0xf]
    %v3017 = vld [vmem:[#allocation12 + $0x1fc] sm:$0xf]
    %v3018 = vld [vmem:[#allocation12 + $0x200] sm:$0xf]
    %v3019 = vld [vmem:[#allocation12 + $0x204] sm:$0xf]
    %v3020 = vld [vmem:[#allocation12 + $0x208] sm:$0xf]
    %v3021 = vld [vmem:[#allocation12 + $0x20c] sm:$0xf]
    %v3022 = vld [vmem:[#allocation12 + $0x210] sm:$0xf]
    %v3023 = vld [vmem:[#allocation12 + $0x214] sm:$0xf]
    %v3024 = vld [vmem:[#allocation12 + $0x218] sm:$0xf]
    %v3025 = vld [vmem:[#allocation12 + $0x21c] sm:$0xf]
    %v3026 = vld [vmem:[#allocation12 + $0x220] sm:$0xf]
    %v3027 = vld [vmem:[#allocation12 + $0x224] sm:$0xf]
    %v3028 = vld [vmem:[#allocation12 + $0x228] sm:$0xf]
    %v3029 = vld [vmem:[#allocation12 + $0x22c] sm:$0xf]
    %v3030 = vld [vmem:[#allocation12 + $0x230] sm:$0xf]
    %v3031 = vld [vmem:[#allocation12 + $0x234] sm:$0xf]
    %v3032 = vld [vmem:[#allocation12 + $0x238] sm:$0xf]
    %v3033 = vld [vmem:[#allocation12 + $0x23c] sm:$0xf]
    %v3034 = vld [vmem:[#allocation12 + $0x240] sm:$0xf]
    %v3035 = vld [vmem:[#allocation12 + $0x244] sm:$0xf]
    %v3036 = vld [vmem:[#allocation12 + $0x248] sm:$0xf]
    %v3037 = vld [vmem:[#allocation12 + $0x24c] sm:$0xf]
    %v3038 = vld [vmem:[#allocation12 + $0x250] sm:$0xf]
    %v3039 = vld [vmem:[#allocation12 + $0x254] sm:$0xf]
    %v3040 = vld [vmem:[#allocation12 + $0x258] sm:$0xf]
    %v3041 = vld [vmem:[#allocation12 + $0x25c] sm:$0xf]
    %v3042 = vld [vmem:[#allocation12 + $0x260] sm:$0xf]
    %v3043 = vld [vmem:[#allocation12 + $0x264] sm:$0xf]
    %v3044 = vld [vmem:[#allocation12 + $0x268] sm:$0xf]
    %v3045 = vld [vmem:[#allocation12 + $0x26c] sm:$0xf]
    %v3046 = vld [vmem:[#allocation12 + $0x270] sm:$0xf]
    %v3047 = vld [vmem:[#allocation12 + $0x274] sm:$0xf]
    %v3048 = vld [vmem:[#allocation12 + $0x278] sm:$0xf]
    %v3049 = vld [vmem:[#allocation12 + $0x27c] sm:$0xf]
    %v3050 = vld [vmem:[#allocation12 + $0x280] sm:$0xf]
    %v3051 = vld [vmem:[#allocation12 + $0x284] sm:$0xf]
    %v3052 = vld [vmem:[#allocation12 + $0x288] sm:$0xf]
    %v3053 = vld [vmem:[#allocation12 + $0x28c] sm:$0xf]
    %v3054 = vld [vmem:[#allocation12 + $0x290] sm:$0xf]
    %v3055 = vld [vmem:[#allocation12 + $0x294] sm:$0xf]
    %v3056 = vld [vmem:[#allocation12 + $0x298] sm:$0xf]
    %v3057 = vld [vmem:[#allocation12 + $0x29c] sm:$0xf]
    %v3058 = vld [vmem:[#allocation12 + $0x2a0] sm:$0xf]
    %v3059 = vld [vmem:[#allocation12 + $0x2a4] sm:$0xf]
    %v3060 = vld [vmem:[#allocation12 + $0x2a8] sm:$0xf]
    %v3061 = vld [vmem:[#allocation12 + $0x2ac] sm:$0xf]
    %v3062 = vld [vmem:[#allocation12 + $0x2b0] sm:$0xf]
    %v3063 = vld [vmem:[#allocation12 + $0x2b4] sm:$0xf]
    %v3064 = vld [vmem:[#allocation12 + $0x2b8] sm:$0xf]
    %v3065 = vld [vmem:[#allocation12 + $0x2bc] sm:$0xf]
    %v3066 = vld [vmem:[#allocation12 + $0x2c0] sm:$0xf]
    %v3067 = vld [vmem:[#allocation12 + $0x2c4] sm:$0xf]
    %v3068 = vld [vmem:[#allocation12 + $0x2c8] sm:$0xf]
    %v3069 = vld [vmem:[#allocation12 + $0x2cc] sm:$0xf]
    %v3070 = vld [vmem:[#allocation12 + $0x2d0] sm:$0xf]
    %v3071 = vld [vmem:[#allocation12 + $0x2d4] sm:$0xf]
    %v3072 = vld [vmem:[#allocation12 + $0x2d8] sm:$0xf]
    %v3073 = vld [vmem:[#allocation12 + $0x2dc] sm:$0xf]
    %v3074 = vld [vmem:[#allocation12 + $0x2e0] sm:$0xf]
    %v3075 = vld [vmem:[#allocation12 + $0x2e4] sm:$0xf]
    %v3076 = vld [vmem:[#allocation12 + $0x2e8] sm:$0xf]
    %v3077 = vld [vmem:[#allocation12 + $0x2ec] sm:$0xf]
    %v3078 = vld [vmem:[#allocation12 + $0x2f0] sm:$0xf]
    %v3079 = vld [vmem:[#allocation12 + $0x2f4] sm:$0xf]
    %v3080 = vld [vmem:[#allocation12 + $0x2f8] sm:$0xf]
    %v3081 = vld [vmem:[#allocation12 + $0x2fc] sm:$0xf]
    %v3082 = vld [vmem:[#allocation12 + $0x300] sm:$0xf]
    %v3083 = vld [vmem:[#allocation12 + $0x304] sm:$0xf]
    %v3084 = vld [vmem:[#allocation12 + $0x308] sm:$0xf]
    %v3085 = vld [vmem:[#allocation12 + $0x30c] sm:$0xf]
    %v3086 = vld [vmem:[#allocation12 + $0x310] sm:$0xf]
    %v3087 = vld [vmem:[#allocation12 + $0x314] sm:$0xf]
    %v3088 = vld [vmem:[#allocation12 + $0x318] sm:$0xf]
    %v3089 = vld [vmem:[#allocation12 + $0x31c] sm:$0xf]
    %v3090 = vld [vmem:[#allocation12 + $0x320] sm:$0xf]
    %v3091 = vld [vmem:[#allocation12 + $0x324] sm:$0xf]
    %v3092 = vld [vmem:[#allocation12 + $0x328] sm:$0xf]
    %v3093 = vld [vmem:[#allocation12 + $0x32c] sm:$0xf]
    %v3094 = vld [vmem:[#allocation12 + $0x330] sm:$0xf]
    %v3095 = vld [vmem:[#allocation12 + $0x334] sm:$0xf]
    %v3096 = vld [vmem:[#allocation12 + $0x338] sm:$0xf]
    %v3097 = vld [vmem:[#allocation12 + $0x33c] sm:$0xf]
    %v3098 = vld [vmem:[#allocation12 + $0x340] sm:$0xf]
    %v3099 = vld [vmem:[#allocation12 + $0x344] sm:$0xf]
    %v3100 = vld [vmem:[#allocation12 + $0x348] sm:$0xf]
    %v3101 = vld [vmem:[#allocation12 + $0x34c] sm:$0xf]
    %v3102 = vld [vmem:[#allocation12 + $0x350] sm:$0xf]
    %v3103 = vld [vmem:[#allocation12 + $0x354] sm:$0xf]
    %v3104 = vld [vmem:[#allocation12 + $0x358] sm:$0xf]
    %v3105 = vld [vmem:[#allocation12 + $0x35c] sm:$0xf]
    %v3106 = vld [vmem:[#allocation12 + $0x360] sm:$0xf]
    %v3107 = vld [vmem:[#allocation12 + $0x364] sm:$0xf]
    %v3108 = vld [vmem:[#allocation12 + $0x368] sm:$0xf]
    %v3109 = vld [vmem:[#allocation12 + $0x36c] sm:$0xf]
    %v3110 = vld [vmem:[#allocation12 + $0x370] sm:$0xf]
    %v3111 = vld [vmem:[#allocation12 + $0x374] sm:$0xf]
    %v3112 = vld [vmem:[#allocation12 + $0x378] sm:$0xf]
    %v3113 = vld [vmem:[#allocation12 + $0x37c] sm:$0xf]
    %v3114 = vld [vmem:[#allocation12 + $0x380] sm:$0xf]
    %v3115 = vld [vmem:[#allocation12 + $0x384] sm:$0xf]
    %v3116 = vld [vmem:[#allocation12 + $0x388] sm:$0xf]
    %v3117 = vld [vmem:[#allocation12 + $0x38c] sm:$0xf]
    %v3118 = vld [vmem:[#allocation12 + $0x390] sm:$0xf]
    %v3119 = vld [vmem:[#allocation12 + $0x394] sm:$0xf]
    %v3120 = vld [vmem:[#allocation12 + $0x398] sm:$0xf]
    %v3121 = vld [vmem:[#allocation12 + $0x39c] sm:$0xf]
    %v3122 = vld [vmem:[#allocation12 + $0x3a0] sm:$0xf]
    %v3123 = vld [vmem:[#allocation12 + $0x3a4] sm:$0xf]
    %v3124 = vld [vmem:[#allocation12 + $0x3a8] sm:$0xf]
    %v3125 = vld [vmem:[#allocation12 + $0x3ac] sm:$0xf]
    %v3126 = vld [vmem:[#allocation12 + $0x3b0] sm:$0xf]
    %v3127 = vld [vmem:[#allocation12 + $0x3b4] sm:$0xf]
    %v3128 = vld [vmem:[#allocation12 + $0x3b8] sm:$0xf]
    %v3129 = vld [vmem:[#allocation12 + $0x3bc] sm:$0xf]
    %v3130 = vld [vmem:[#allocation12 + $0x3c0] sm:$0xf]
    %v3131 = vld [vmem:[#allocation12 + $0x3c4] sm:$0xf]
    %v3132 = vld [vmem:[#allocation12 + $0x3c8] sm:$0xf]
    %v3133 = vld [vmem:[#allocation12 + $0x3cc] sm:$0xf]
    %v3134 = vld [vmem:[#allocation12 + $0x3d0] sm:$0xf]
    %v3135 = vld [vmem:[#allocation12 + $0x3d4] sm:$0xf]
    %v3136 = vld [vmem:[#allocation12 + $0x3d8] sm:$0xf]
    %v3137 = vld [vmem:[#allocation12 + $0x3dc] sm:$0xf]
    %v3138 = vld [vmem:[#allocation12 + $0x3e0] sm:$0xf]
    %v3139 = vld [vmem:[#allocation12 + $0x3e4] sm:$0xf]
    %v3140 = vld [vmem:[#allocation12 + $0x3e8] sm:$0xf]
    %v3141 = vld [vmem:[#allocation12 + $0x3ec] sm:$0xf]
    %v3142 = vld [vmem:[#allocation12 + $0x3f0] sm:$0xf]
    %v3143 = vld [vmem:[#allocation12 + $0x3f4] sm:$0xf]
    %v3144 = vld [vmem:[#allocation12 + $0x3f8] sm:$0xf]
    %v3145 = vld [vmem:[#allocation12 + $0x3fc] sm:$0xf]
    %v3146 = vld [vmem:[#allocation12 + $0x400] sm:$0xf]
    %v3147 = vld [vmem:[#allocation12 + $0x404] sm:$0xf]
    %v3148 = vld [vmem:[#allocation12 + $0x408] sm:$0xf]
    %v3149 = vld [vmem:[#allocation12 + $0x40c] sm:$0xf]
    %v3150 = vld [vmem:[#allocation12 + $0x410] sm:$0xf]
    %v3151 = vld [vmem:[#allocation12 + $0x414] sm:$0xf]
    %v3152 = vld [vmem:[#allocation12 + $0x418] sm:$0xf]
    %v3153 = vld [vmem:[#allocation12 + $0x41c] sm:$0xf]
    %v3154 = vld [vmem:[#allocation12 + $0x420] sm:$0xf]
    %v3155 = vld [vmem:[#allocation12 + $0x424] sm:$0xf]
    %v3156 = vld [vmem:[#allocation12 + $0x428] sm:$0xf]
    %v3157 = vld [vmem:[#allocation12 + $0x42c] sm:$0xf]
    %v3158 = vld [vmem:[#allocation12 + $0x430] sm:$0xf]
    %v3159 = vld [vmem:[#allocation12 + $0x434] sm:$0xf]
    %v3160 = vld [vmem:[#allocation12 + $0x438] sm:$0xf]
    %v3161 = vld [vmem:[#allocation12 + $0x43c] sm:$0xf]
    %v3162 = vld [vmem:[#allocation12 + $0x440] sm:$0xf]
    %v3163 = vld [vmem:[#allocation12 + $0x444] sm:$0xf]
    %v3164 = vld [vmem:[#allocation12 + $0x448] sm:$0xf]
    %v3165 = vld [vmem:[#allocation12 + $0x44c] sm:$0xf]
    %v3166 = vld [vmem:[#allocation12 + $0x450] sm:$0xf]
    %v3167 = vld [vmem:[#allocation12 + $0x454] sm:$0xf]
    %v3168 = vld [vmem:[#allocation12 + $0x458] sm:$0xf]
    %v3169 = vld [vmem:[#allocation12 + $0x45c] sm:$0xf]
    %v3170 = vld [vmem:[#allocation12 + $0x460] sm:$0xf]
    %v3171 = vld [vmem:[#allocation12 + $0x464] sm:$0xf]
    %v3172 = vld [vmem:[#allocation12 + $0x468] sm:$0xf]
    %v3173 = vld [vmem:[#allocation12 + $0x46c] sm:$0xf]
    %v3174 = vld [vmem:[#allocation12 + $0x470] sm:$0xf]
    %v3175 = vld [vmem:[#allocation12 + $0x474] sm:$0xf]
    %v3176 = vld [vmem:[#allocation12 + $0x478] sm:$0xf]
    %v3177 = vld [vmem:[#allocation12 + $0x47c] sm:$0xf]
    %v3178 = vld [vmem:[#allocation12 + $0x480] sm:$0xf]
    %v3179 = vld [vmem:[#allocation12 + $0x484] sm:$0xf]
    %v3180 = vld [vmem:[#allocation12 + $0x488] sm:$0xf]
    %v3181 = vld [vmem:[#allocation12 + $0x48c] sm:$0xf]
    %v3182 = vld [vmem:[#allocation12 + $0x490] sm:$0xf]
    %v3183 = vld [vmem:[#allocation12 + $0x494] sm:$0xf]
    %v3184 = vld [vmem:[#allocation12 + $0x498] sm:$0xf]
    %v3185 = vld [vmem:[#allocation12 + $0x49c] sm:$0xf]
    %v3186 = vld [vmem:[#allocation12 + $0x4a0] sm:$0xf]
    %v3187 = vld [vmem:[#allocation12 + $0x4a4] sm:$0xf]
    %v3188 = vld [vmem:[#allocation12 + $0x4a8] sm:$0xf]
    %v3189 = vld [vmem:[#allocation12 + $0x4ac] sm:$0xf]
    %v3190 = vld [vmem:[#allocation12 + $0x4b0] sm:$0xf]
    %v3191 = vld [vmem:[#allocation12 + $0x4b4] sm:$0xf]
    %v3192 = vld [vmem:[#allocation12 + $0x4b8] sm:$0xf]
    %v3193 = vld [vmem:[#allocation12 + $0x4bc] sm:$0xf]
    %v3194 = vld [vmem:[#allocation12 + $0x4c0] sm:$0xf]
    %v3195 = vld [vmem:[#allocation12 + $0x4c4] sm:$0xf]
    %v3196 = vld [vmem:[#allocation12 + $0x4c8] sm:$0xf]
    %v3197 = vld [vmem:[#allocation12 + $0x4cc] sm:$0xf]
    %v3198 = vld [vmem:[#allocation12 + $0x4d0] sm:$0xf]
    %v3199 = vld [vmem:[#allocation12 + $0x4d4] sm:$0xf]
    %v3200 = vld [vmem:[#allocation12 + $0x4d8] sm:$0xf]
    %v3201 = vld [vmem:[#allocation12 + $0x4dc] sm:$0xf]
    %v3202 = vld [vmem:[#allocation12 + $0x4e0] sm:$0xf]
    %v3203 = vld [vmem:[#allocation12 + $0x4e4] sm:$0xf]
    %v3204 = vld [vmem:[#allocation12 + $0x4e8] sm:$0xf]
    %v3205 = vld [vmem:[#allocation12 + $0x4ec] sm:$0xf]
    %v3206 = vld [vmem:[#allocation12 + $0x4f0] sm:$0xf]
    %v3207 = vld [vmem:[#allocation12 + $0x4f4] sm:$0xf]
    %v3208 = vld [vmem:[#allocation12 + $0x4f8] sm:$0xf]
    %v3209 = vld [vmem:[#allocation12 + $0x4fc] sm:$0xf]
    %v3210 = vld [vmem:[#allocation12 + $0x500] sm:$0xf]
    %v3211 = vld [vmem:[#allocation12 + $0x504] sm:$0xf]
    %v3212 = vld [vmem:[#allocation12 + $0x508] sm:$0xf]
    %v3213 = vld [vmem:[#allocation12 + $0x50c] sm:$0xf]
    %v3214 = vld [vmem:[#allocation12 + $0x510] sm:$0xf]
    %v3215 = vld [vmem:[#allocation12 + $0x514] sm:$0xf]
    %v3216 = vld [vmem:[#allocation12 + $0x518] sm:$0xf]
    %v3217 = vld [vmem:[#allocation12 + $0x51c] sm:$0xf]
    %v3218 = vld [vmem:[#allocation12 + $0x520] sm:$0xf]
    %v3219 = vld [vmem:[#allocation12 + $0x524] sm:$0xf]
    %v3220 = vld [vmem:[#allocation12 + $0x528] sm:$0xf]
    %v3221 = vld [vmem:[#allocation12 + $0x52c] sm:$0xf]
    %v3222 = vld [vmem:[#allocation12 + $0x530] sm:$0xf]
    %v3223 = vld [vmem:[#allocation12 + $0x534] sm:$0xf]
    %v3224 = vld [vmem:[#allocation12 + $0x538] sm:$0xf]
    %v3225 = vld [vmem:[#allocation12 + $0x53c] sm:$0xf]
    %v3226 = vld [vmem:[#allocation12 + $0x540] sm:$0xf]
    %v3227 = vld [vmem:[#allocation12 + $0x544] sm:$0xf]
    %v3228 = vld [vmem:[#allocation12 + $0x548] sm:$0xf]
    %v3229 = vld [vmem:[#allocation12 + $0x54c] sm:$0xf]
    %v3230 = vld [vmem:[#allocation12 + $0x550] sm:$0xf]
    %v3231 = vld [vmem:[#allocation12 + $0x554] sm:$0xf]
    %v3232 = vld [vmem:[#allocation12 + $0x558] sm:$0xf]
    %v3233 = vld [vmem:[#allocation12 + $0x55c] sm:$0xf]
    %v3234 = vld [vmem:[#allocation12 + $0x560] sm:$0xf]
    %v3235 = vld [vmem:[#allocation12 + $0x564] sm:$0xf]
    %v3236 = vld [vmem:[#allocation12 + $0x568] sm:$0xf]
    %v3237 = vld [vmem:[#allocation12 + $0x56c] sm:$0xf]
    %v3238 = vld [vmem:[#allocation12 + $0x570] sm:$0xf]
    %v3239 = vld [vmem:[#allocation12 + $0x574] sm:$0xf]
    %v3240 = vld [vmem:[#allocation12 + $0x578] sm:$0xf]
    %v3241 = vld [vmem:[#allocation12 + $0x57c] sm:$0xf]
    %v3242 = vld [vmem:[#allocation12 + $0x580] sm:$0xf]
    %v3243 = vld [vmem:[#allocation12 + $0x584] sm:$0xf]
    %v3244 = vld [vmem:[#allocation12 + $0x588] sm:$0xf]
    %v3245 = vld [vmem:[#allocation12 + $0x58c] sm:$0xf]
    %v3246 = vld [vmem:[#allocation12 + $0x590] sm:$0xf]
    %v3247 = vld [vmem:[#allocation12 + $0x594] sm:$0xf]
    %v3248 = vld [vmem:[#allocation12 + $0x598] sm:$0xf]
    %v3249 = vld [vmem:[#allocation12 + $0x59c] sm:$0xf]
    %v3250 = vld [vmem:[#allocation12 + $0x5a0] sm:$0xf]
    %v3251 = vld [vmem:[#allocation12 + $0x5a4] sm:$0xf]
    %v3252 = vld [vmem:[#allocation12 + $0x5a8] sm:$0xf]
    %v3253 = vld [vmem:[#allocation12 + $0x5ac] sm:$0xf]
    %v3254 = vld [vmem:[#allocation12 + $0x5b0] sm:$0xf]
    %v3255 = vld [vmem:[#allocation12 + $0x5b4] sm:$0xf]
    %v3256 = vld [vmem:[#allocation12 + $0x5b8] sm:$0xf]
    %v3257 = vld [vmem:[#allocation12 + $0x5bc] sm:$0xf]
    %v3258 = vld [vmem:[#allocation12 + $0x5c0] sm:$0xf]
    %v3259 = vld [vmem:[#allocation12 + $0x5c4] sm:$0xf]
    %v3260 = vld [vmem:[#allocation12 + $0x5c8] sm:$0xf]
    %v3261 = vld [vmem:[#allocation12 + $0x5cc] sm:$0xf]
    %v3262 = vld [vmem:[#allocation12 + $0x5d0] sm:$0xf]
    %v3263 = vld [vmem:[#allocation12 + $0x5d4] sm:$0xf]
    %v3264 = vld [vmem:[#allocation12 + $0x5d8] sm:$0xf]
    %v3265 = vld [vmem:[#allocation12 + $0x5dc] sm:$0xf]
    %v3266 = vld [vmem:[#allocation12 + $0x5e0] sm:$0xf]
    %v3267 = vld [vmem:[#allocation12 + $0x5e4] sm:$0xf]
    %v3268 = vld [vmem:[#allocation12 + $0x5e8] sm:$0xf]
    %v3269 = vld [vmem:[#allocation12 + $0x5ec] sm:$0xf]
    %v3270 = vld [vmem:[#allocation12 + $0x5f0] sm:$0xf]
    %v3271 = vld [vmem:[#allocation12 + $0x5f4] sm:$0xf]
    %v3272 = vld [vmem:[#allocation12 + $0x5f8] sm:$0xf]
    %v3273 = vld [vmem:[#allocation12 + $0x5fc] sm:$0xf]
    %v3274 = vld [vmem:[#allocation12 + $0x600] sm:$0xf]
    %v3275 = vld [vmem:[#allocation12 + $0x604] sm:$0xf]
    %v3276 = vld [vmem:[#allocation12 + $0x608] sm:$0xf]
    %v3277 = vld [vmem:[#allocation12 + $0x60c] sm:$0xf]
    %v3278 = vld [vmem:[#allocation12 + $0x610] sm:$0xf]
    %v3279 = vld [vmem:[#allocation12 + $0x614] sm:$0xf]
    %v3280 = vld [vmem:[#allocation12 + $0x618] sm:$0xf]
    %v3281 = vld [vmem:[#allocation12 + $0x61c] sm:$0xf]
    %v3282 = vld [vmem:[#allocation12 + $0x620] sm:$0xf]
    %v3283 = vld [vmem:[#allocation12 + $0x624] sm:$0xf]
    %v3284 = vld [vmem:[#allocation12 + $0x628] sm:$0xf]
    %v3285 = vld [vmem:[#allocation12 + $0x62c] sm:$0xf]
    %v3286 = vld [vmem:[#allocation12 + $0x630] sm:$0xf]
    %v3287 = vld [vmem:[#allocation12 + $0x634] sm:$0xf]
    %v3288 = vld [vmem:[#allocation12 + $0x638] sm:$0xf]
    %v3289 = vld [vmem:[#allocation12 + $0x63c] sm:$0xf]
    %v3290 = vld [vmem:[#allocation12 + $0x640] sm:$0xf]
    %v3291 = vld [vmem:[#allocation12 + $0x644] sm:$0xf]
    %v3292 = vld [vmem:[#allocation12 + $0x648] sm:$0xf]
    %v3293 = vld [vmem:[#allocation12 + $0x64c] sm:$0xf]
    %v3294 = vld [vmem:[#allocation12 + $0x650] sm:$0xf]
    %v3295 = vld [vmem:[#allocation12 + $0x654] sm:$0xf]
    %v3296 = vld [vmem:[#allocation12 + $0x658] sm:$0xf]
    %v3297 = vld [vmem:[#allocation12 + $0x65c] sm:$0xf]
    %v3298 = vld [vmem:[#allocation12 + $0x660] sm:$0xf]
    %v3299 = vld [vmem:[#allocation12 + $0x664] sm:$0xf]
    %v3300 = vld [vmem:[#allocation12 + $0x668] sm:$0xf]
    %v3301 = vld [vmem:[#allocation12 + $0x66c] sm:$0xf]
    %v3302 = vld [vmem:[#allocation12 + $0x670] sm:$0xf]
    %v3303 = vld [vmem:[#allocation12 + $0x674] sm:$0xf]
    %v3304 = vld [vmem:[#allocation12 + $0x678] sm:$0xf]
    %v3305 = vld [vmem:[#allocation12 + $0x67c] sm:$0xf]
    %v3306 = vld [vmem:[#allocation12 + $0x680] sm:$0xf]
    %v3307 = vld [vmem:[#allocation12 + $0x684] sm:$0xf]
    %v3308 = vld [vmem:[#allocation12 + $0x688] sm:$0xf]
    %v3309 = vld [vmem:[#allocation12 + $0x68c] sm:$0xf]
    %v3310 = vld [vmem:[#allocation12 + $0x690] sm:$0xf]
    %v3311 = vld [vmem:[#allocation12 + $0x694] sm:$0xf]
    %v3312 = vld [vmem:[#allocation12 + $0x698] sm:$0xf]
    %v3313 = vld [vmem:[#allocation12 + $0x69c] sm:$0xf]
    %v3314 = vld [vmem:[#allocation12 + $0x6a0] sm:$0xf]
    %v3315 = vld [vmem:[#allocation12 + $0x6a4] sm:$0xf]
    %v3316 = vld [vmem:[#allocation12 + $0x6a8] sm:$0xf]
    %v3317 = vld [vmem:[#allocation12 + $0x6ac] sm:$0xf]
    %v3318 = vld [vmem:[#allocation12 + $0x6b0] sm:$0xf]
    %v3319 = vld [vmem:[#allocation12 + $0x6b4] sm:$0xf]
    %v3320 = vld [vmem:[#allocation12 + $0x6b8] sm:$0xf]
    %v3321 = vld [vmem:[#allocation12 + $0x6bc] sm:$0xf]
    %v3322 = vld [vmem:[#allocation12 + $0x6c0] sm:$0xf]
    %v3323 = vld [vmem:[#allocation12 + $0x6c4] sm:$0xf]
    %v3324 = vld [vmem:[#allocation12 + $0x6c8] sm:$0xf]
    %v3325 = vld [vmem:[#allocation12 + $0x6cc] sm:$0xf]
    %v3326 = vld [vmem:[#allocation12 + $0x6d0] sm:$0xf]
    %v3327 = vld [vmem:[#allocation12 + $0x6d4] sm:$0xf]
    %v3328 = vld [vmem:[#allocation12 + $0x6d8] sm:$0xf]
    %v3329 = vld [vmem:[#allocation12 + $0x6dc] sm:$0xf]
    %v3330 = vld [vmem:[#allocation12 + $0x6e0] sm:$0xf]
    %v3331 = vld [vmem:[#allocation12 + $0x6e4] sm:$0xf]
    %v3332 = vld [vmem:[#allocation12 + $0x6e8] sm:$0xf]
    %v3333 = vld [vmem:[#allocation12 + $0x6ec] sm:$0xf]
    %v3334 = vld [vmem:[#allocation12 + $0x6f0] sm:$0xf]
    %v3335 = vld [vmem:[#allocation12 + $0x6f4] sm:$0xf]
    %v3336 = vld [vmem:[#allocation12 + $0x6f8] sm:$0xf]
    %v3337 = vld [vmem:[#allocation12 + $0x6fc] sm:$0xf]
    %v3338 = vld [vmem:[#allocation12 + $0x700] sm:$0xf]
    %v3339 = vld [vmem:[#allocation12 + $0x704] sm:$0xf]
    %v3340 = vld [vmem:[#allocation12 + $0x708] sm:$0xf]
    %v3341 = vld [vmem:[#allocation12 + $0x70c] sm:$0xf]
    %v3342 = vld [vmem:[#allocation12 + $0x710] sm:$0xf]
    %v3343 = vld [vmem:[#allocation12 + $0x714] sm:$0xf]
    %v3344 = vld [vmem:[#allocation12 + $0x718] sm:$0xf]
    %v3345 = vld [vmem:[#allocation12 + $0x71c] sm:$0xf]
    %v3346 = vld [vmem:[#allocation12 + $0x720] sm:$0xf]
    %v3347 = vld [vmem:[#allocation12 + $0x724] sm:$0xf]
    %v3348 = vld [vmem:[#allocation12 + $0x728] sm:$0xf]
    %v3349 = vld [vmem:[#allocation12 + $0x72c] sm:$0xf]
    %v3350 = vld [vmem:[#allocation12 + $0x730] sm:$0xf]
    %v3351 = vld [vmem:[#allocation12 + $0x734] sm:$0xf]
    %v3352 = vld [vmem:[#allocation12 + $0x738] sm:$0xf]
    %v3353 = vld [vmem:[#allocation12 + $0x73c] sm:$0xf]
    %v3354 = vld [vmem:[#allocation12 + $0x740] sm:$0xf]
    %v3355 = vld [vmem:[#allocation12 + $0x744] sm:$0xf]
    %v3356 = vld [vmem:[#allocation12 + $0x748] sm:$0xf]
    %v3357 = vld [vmem:[#allocation12 + $0x74c] sm:$0xf]
    %v3358 = vld [vmem:[#allocation12 + $0x750] sm:$0xf]
    %v3359 = vld [vmem:[#allocation12 + $0x754] sm:$0xf]
    %v3360 = vld [vmem:[#allocation12 + $0x758] sm:$0xf]
    %v3361 = vld [vmem:[#allocation12 + $0x75c] sm:$0xf]
    %v3362 = vld [vmem:[#allocation12 + $0x760] sm:$0xf]
    %v3363 = vld [vmem:[#allocation12 + $0x764] sm:$0xf]
    %v3364 = vld [vmem:[#allocation12 + $0x768] sm:$0xf]
    %v3365 = vld [vmem:[#allocation12 + $0x76c] sm:$0xf]
    %v3366 = vld [vmem:[#allocation12 + $0x770] sm:$0xf]
    %v3367 = vld [vmem:[#allocation12 + $0x774] sm:$0xf]
    %v3368 = vld [vmem:[#allocation12 + $0x778] sm:$0xf]
    %v3369 = vld [vmem:[#allocation12 + $0x77c] sm:$0xf]
    %v3370 = vld [vmem:[#allocation12 + $0x780] sm:$0xf]
    %v3371 = vld [vmem:[#allocation12 + $0x784] sm:$0xf]
    %v3372 = vld [vmem:[#allocation12 + $0x788] sm:$0xf]
    %v3373 = vld [vmem:[#allocation12 + $0x78c] sm:$0xf]
    %v3374 = vld [vmem:[#allocation12 + $0x790] sm:$0xf]
    %v3375 = vld [vmem:[#allocation12 + $0x794] sm:$0xf]
    %v3376 = vld [vmem:[#allocation12 + $0x798] sm:$0xf]
    %v3377 = vld [vmem:[#allocation12 + $0x79c] sm:$0xf]
    %v3378 = vld [vmem:[#allocation12 + $0x7a0] sm:$0xf]
    %v3379 = vld [vmem:[#allocation12 + $0x7a4] sm:$0xf]
    %v3380 = vld [vmem:[#allocation12 + $0x7a8] sm:$0xf]
    %v3381 = vld [vmem:[#allocation12 + $0x7ac] sm:$0xf]
    %v3382 = vld [vmem:[#allocation12 + $0x7b0] sm:$0xf]
    %v3383 = vld [vmem:[#allocation12 + $0x7b4] sm:$0xf]
    %v3384 = vld [vmem:[#allocation12 + $0x7b8] sm:$0xf]
    %v3385 = vld [vmem:[#allocation12 + $0x7bc] sm:$0xf]
    %v3386 = vld [vmem:[#allocation12 + $0x7c0] sm:$0xf]
    %v3387 = vld [vmem:[#allocation12 + $0x7c4] sm:$0xf]
    %v3388 = vld [vmem:[#allocation12 + $0x7c8] sm:$0xf]
    %v3389 = vld [vmem:[#allocation12 + $0x7cc] sm:$0xf]
    %v3390 = vld [vmem:[#allocation12 + $0x7d0] sm:$0xf]
    %v3391 = vld [vmem:[#allocation12 + $0x7d4] sm:$0xf]
    %v3392 = vld [vmem:[#allocation12 + $0x7d8] sm:$0xf]
    %v3393 = vld [vmem:[#allocation12 + $0x7dc] sm:$0xf]
    %v3394 = vld [vmem:[#allocation12 + $0x7e0] sm:$0xf]
    %v3395 = vld [vmem:[#allocation12 + $0x7e4] sm:$0xf]
    %v3396 = vld [vmem:[#allocation12 + $0x7e8] sm:$0xf]
    %v3397 = vld [vmem:[#allocation12 + $0x7ec] sm:$0xf]
    %v3398 = vld [vmem:[#allocation12 + $0x7f0] sm:$0xf]
    %v3399 = vld [vmem:[#allocation12 + $0x7f4] sm:$0xf]
    %v3400 = vld [vmem:[#allocation12 + $0x7f8] sm:$0xf]
    %v3401 = vld [vmem:[#allocation12 + $0x7fc] sm:$0xf]
    %v3402 = vld [vmem:[#allocation12 + $0x800] sm:$0xf]
    %v3403 = vld [vmem:[#allocation12 + $0x804] sm:$0xf]
    %v3404 = vld [vmem:[#allocation12 + $0x808] sm:$0xf]
    %v3405 = vld [vmem:[#allocation12 + $0x80c] sm:$0xf]
    %v3406 = vld [vmem:[#allocation12 + $0x810] sm:$0xf]
    %v3407 = vld [vmem:[#allocation12 + $0x814] sm:$0xf]
    %v3408 = vld [vmem:[#allocation12 + $0x818] sm:$0xf]
    %v3409 = vld [vmem:[#allocation12 + $0x81c] sm:$0xf]
    %v3410 = vld [vmem:[#allocation12 + $0x820] sm:$0xf]
    %v3411 = vld [vmem:[#allocation12 + $0x824] sm:$0xf]
    %v3412 = vld [vmem:[#allocation12 + $0x828] sm:$0xf]
    %v3413 = vld [vmem:[#allocation12 + $0x82c] sm:$0xf]
    %v3414 = vld [vmem:[#allocation12 + $0x830] sm:$0xf]
    %v3415 = vld [vmem:[#allocation12 + $0x834] sm:$0xf]
    %v3416 = vld [vmem:[#allocation12 + $0x838] sm:$0xf]
    %v3417 = vld [vmem:[#allocation12 + $0x83c] sm:$0xf]
    %v3418 = vld [vmem:[#allocation12 + $0x840] sm:$0xf]
    %v3419 = vld [vmem:[#allocation12 + $0x844] sm:$0xf]
    %v3420 = vld [vmem:[#allocation12 + $0x848] sm:$0xf]
    %v3421 = vld [vmem:[#allocation12 + $0x84c] sm:$0xf]
    %v3422 = vld [vmem:[#allocation12 + $0x850] sm:$0xf]
    %v3423 = vld [vmem:[#allocation12 + $0x854] sm:$0xf]
    %v3424 = vld [vmem:[#allocation12 + $0x858] sm:$0xf]
    %v3425 = vld [vmem:[#allocation12 + $0x85c] sm:$0xf]
    %v3426 = vld [vmem:[#allocation12 + $0x860] sm:$0xf]
    %v3427 = vld [vmem:[#allocation12 + $0x864] sm:$0xf]
    %v3428 = vld [vmem:[#allocation12 + $0x868] sm:$0xf]
    %v3429 = vld [vmem:[#allocation12 + $0x86c] sm:$0xf]
    %v3430 = vld [vmem:[#allocation12 + $0x870] sm:$0xf]
    %v3431 = vld [vmem:[#allocation12 + $0x874] sm:$0xf]
    %v3432 = vld [vmem:[#allocation12 + $0x878] sm:$0xf]
    %v3433 = vld [vmem:[#allocation12 + $0x87c] sm:$0xf]
    %v3434 = vld [vmem:[#allocation12 + $0x880] sm:$0xf]
    %v3435 = vld [vmem:[#allocation12 + $0x884] sm:$0xf]
    %v3436 = vld [vmem:[#allocation12 + $0x888] sm:$0xf]
    %v3437 = vld [vmem:[#allocation12 + $0x88c] sm:$0xf]
    %v3438 = vld [vmem:[#allocation12 + $0x890] sm:$0xf]
    %v3439 = vld [vmem:[#allocation12 + $0x894] sm:$0xf]
    %v3440 = vld [vmem:[#allocation12 + $0x898] sm:$0xf]
    %v3441 = vld [vmem:[#allocation12 + $0x89c] sm:$0xf]
    %v3442 = vld [vmem:[#allocation12 + $0x8a0] sm:$0xf]
    %v3443 = vld [vmem:[#allocation12 + $0x8a4] sm:$0xf]
    %v3444 = vld [vmem:[#allocation12 + $0x8a8] sm:$0xf]
    %v3445 = vld [vmem:[#allocation12 + $0x8ac] sm:$0xf]
    %v3446 = vld [vmem:[#allocation12 + $0x8b0] sm:$0xf]
    %v3447 = vld [vmem:[#allocation12 + $0x8b4] sm:$0xf]
    %v3448 = vld [vmem:[#allocation12 + $0x8b8] sm:$0xf]
    %v3449 = vld [vmem:[#allocation12 + $0x8bc] sm:$0xf]
    %v3450 = vld [vmem:[#allocation12 + $0x8c0] sm:$0xf]
    %v3451 = vld [vmem:[#allocation12 + $0x8c4] sm:$0xf]
    %v3452 = vld [vmem:[#allocation12 + $0x8c8] sm:$0xf]
    %v3453 = vld [vmem:[#allocation12 + $0x8cc] sm:$0xf]
    %v3454 = vld [vmem:[#allocation12 + $0x8d0] sm:$0xf]
    %v3455 = vld [vmem:[#allocation12 + $0x8d4] sm:$0xf]
    %v3456 = vld [vmem:[#allocation12 + $0x8d8] sm:$0xf]
    %v3457 = vld [vmem:[#allocation12 + $0x8dc] sm:$0xf]
    %v3458 = vld [vmem:[#allocation12 + $0x8e0] sm:$0xf]
    %v3459 = vld [vmem:[#allocation12 + $0x8e4] sm:$0xf]
    %v3460 = vld [vmem:[#allocation12 + $0x8e8] sm:$0xf]
    %v3461 = vld [vmem:[#allocation12 + $0x8ec] sm:$0xf]
    %v3462 = vld [vmem:[#allocation12 + $0x8f0] sm:$0xf]
    %v3463 = vld [vmem:[#allocation12 + $0x8f4] sm:$0xf]
    %v3464 = vld [vmem:[#allocation12 + $0x8f8] sm:$0xf]
    %v3465 = vld [vmem:[#allocation12 + $0x8fc] sm:$0xf]
    %v3466 = vld [vmem:[#allocation12 + $0x900] sm:$0xf]
    %v3467 = vld [vmem:[#allocation12 + $0x904] sm:$0xf]
    %v3468 = vld [vmem:[#allocation12 + $0x908] sm:$0xf]
    %v3469 = vld [vmem:[#allocation12 + $0x90c] sm:$0xf]
    %v3470 = vld [vmem:[#allocation12 + $0x910] sm:$0xf]
    %v3471 = vld [vmem:[#allocation12 + $0x914] sm:$0xf]
    %v3472 = vld [vmem:[#allocation12 + $0x918] sm:$0xf]
    %v3473 = vld [vmem:[#allocation12 + $0x91c] sm:$0xf]
    %v3474 = vld [vmem:[#allocation12 + $0x920] sm:$0xf]
    %v3475 = vld [vmem:[#allocation12 + $0x924] sm:$0xf]
    %v3476 = vld [vmem:[#allocation12 + $0x928] sm:$0xf]
    %v3477 = vld [vmem:[#allocation12 + $0x92c] sm:$0xf]
    %v3478 = vld [vmem:[#allocation12 + $0x930] sm:$0xf]
    %v3479 = vld [vmem:[#allocation12 + $0x934] sm:$0xf]
    %v3480 = vld [vmem:[#allocation12 + $0x938] sm:$0xf]
    %v3481 = vld [vmem:[#allocation12 + $0x93c] sm:$0xf]
    %v3482 = vld [vmem:[#allocation12 + $0x940] sm:$0xf]
    %v3483 = vld [vmem:[#allocation12 + $0x944] sm:$0xf]
    %v3484 = vld [vmem:[#allocation12 + $0x948] sm:$0xf]
    %v3485 = vld [vmem:[#allocation12 + $0x94c] sm:$0xf]
    %v3486 = vld [vmem:[#allocation12 + $0x950] sm:$0xf]
    %v3487 = vld [vmem:[#allocation12 + $0x954] sm:$0xf]
    %v3488 = vld [vmem:[#allocation12 + $0x958] sm:$0xf]
    %v3489 = vld [vmem:[#allocation12 + $0x95c] sm:$0xf]
    %v3490 = vld [vmem:[#allocation12 + $0x960] sm:$0xf]
    %v3491 = vld [vmem:[#allocation12 + $0x964] sm:$0xf]
    %v3492 = vld [vmem:[#allocation12 + $0x968] sm:$0xf]
    %v3493 = vld [vmem:[#allocation12 + $0x96c] sm:$0xf]
    %v3494 = vld [vmem:[#allocation12 + $0x970] sm:$0xf]
    %v3495 = vld [vmem:[#allocation12 + $0x974] sm:$0xf]
    %v3496 = vld [vmem:[#allocation12 + $0x978] sm:$0xf]
    %v3497 = vld [vmem:[#allocation12 + $0x97c] sm:$0xf]
    %v3498 = vld [vmem:[#allocation12 + $0x980] sm:$0xf]
    %v3499 = vld [vmem:[#allocation12 + $0x984] sm:$0xf]
    %v3500 = vld [vmem:[#allocation12 + $0x988] sm:$0xf]
    %v3501 = vld [vmem:[#allocation12 + $0x98c] sm:$0xf]
    %v3502 = vld [vmem:[#allocation12 + $0x990] sm:$0xf]
    %v3503 = vld [vmem:[#allocation12 + $0x994] sm:$0xf]
    %v3504 = vld [vmem:[#allocation12 + $0x998] sm:$0xf]
    %v3505 = vld [vmem:[#allocation12 + $0x99c] sm:$0xf]
    %v3506 = vld [vmem:[#allocation12 + $0x9a0] sm:$0xf]
    %v3507 = vld [vmem:[#allocation12 + $0x9a4] sm:$0xf]
    %v3508 = vld [vmem:[#allocation12 + $0x9a8] sm:$0xf]
    %v3509 = vld [vmem:[#allocation12 + $0x9ac] sm:$0xf]
    %v3510 = vld [vmem:[#allocation12 + $0x9b0] sm:$0xf]
    %v3511 = vld [vmem:[#allocation12 + $0x9b4] sm:$0xf]
    %v3512 = vld [vmem:[#allocation12 + $0x9b8] sm:$0xf]
    %v3513 = vld [vmem:[#allocation12 + $0x9bc] sm:$0xf]
    %v3514 = vld [vmem:[#allocation12 + $0x9c0] sm:$0xf]
    %v3515 = vld [vmem:[#allocation12 + $0x9c4] sm:$0xf]
    %v3516 = vld [vmem:[#allocation12 + $0x9c8] sm:$0xf]
    %v3517 = vld [vmem:[#allocation12 + $0x9cc] sm:$0xf]
    %v3518 = vld [vmem:[#allocation12 + $0x9d0] sm:$0xf]
    %v3519 = vld [vmem:[#allocation12 + $0x9d4] sm:$0xf]
    %v3520 = vld [vmem:[#allocation12 + $0x9d8] sm:$0xf]
    %v3521 = vld [vmem:[#allocation12 + $0x9dc] sm:$0xf]
    %v3522 = vld [vmem:[#allocation12 + $0x9e0] sm:$0xf]
    %v3523 = vld [vmem:[#allocation12 + $0x9e4] sm:$0xf]
    %v3524 = vld [vmem:[#allocation12 + $0x9e8] sm:$0xf]
    %v3525 = vld [vmem:[#allocation12 + $0x9ec] sm:$0xf]
    %v3526 = vld [vmem:[#allocation12 + $0x9f0] sm:$0xf]
    %v3527 = vld [vmem:[#allocation12 + $0x9f4] sm:$0xf]
    %v3528 = vld [vmem:[#allocation12 + $0x9f8] sm:$0xf]
    %v3529 = vld [vmem:[#allocation12 + $0x9fc] sm:$0xf]
    %v3530 = vld [vmem:[#allocation12 + $0xa00] sm:$0xf]
    %v3531 = vld [vmem:[#allocation12 + $0xa04] sm:$0xf]
    %v3532 = vld [vmem:[#allocation12 + $0xa08] sm:$0xf]
    %v3533 = vld [vmem:[#allocation12 + $0xa0c] sm:$0xf]
    %v3534 = vld [vmem:[#allocation12 + $0xa10] sm:$0xf]
    %v3535 = vld [vmem:[#allocation12 + $0xa14] sm:$0xf]
    %v3536 = vld [vmem:[#allocation12 + $0xa18] sm:$0xf]
    %v3537 = vld [vmem:[#allocation12 + $0xa1c] sm:$0xf]
    %v3538 = vld [vmem:[#allocation12 + $0xa20] sm:$0xf]
    %v3539 = vld [vmem:[#allocation12 + $0xa24] sm:$0xf]
    %v3540 = vld [vmem:[#allocation12 + $0xa28] sm:$0xf]
    %v3541 = vld [vmem:[#allocation12 + $0xa2c] sm:$0xf]
    %v3542 = vld [vmem:[#allocation12 + $0xa30] sm:$0xf]
    %v3543 = vld [vmem:[#allocation12 + $0xa34] sm:$0xf]
    %v3544 = vld [vmem:[#allocation12 + $0xa38] sm:$0xf]
    %v3545 = vld [vmem:[#allocation12 + $0xa3c] sm:$0xf]
    %v3546 = vld [vmem:[#allocation12 + $0xa40] sm:$0xf]
    %v3547 = vld [vmem:[#allocation12 + $0xa44] sm:$0xf]
    %v3548 = vld [vmem:[#allocation12 + $0xa48] sm:$0xf]
    %v3549 = vld [vmem:[#allocation12 + $0xa4c] sm:$0xf]
    %v3550 = vld [vmem:[#allocation12 + $0xa50] sm:$0xf]
    %v3551 = vld [vmem:[#allocation12 + $0xa54] sm:$0xf]
    %v3552 = vld [vmem:[#allocation12 + $0xa58] sm:$0xf]
    %v3553 = vld [vmem:[#allocation12 + $0xa5c] sm:$0xf]
    %v3554 = vld [vmem:[#allocation12 + $0xa60] sm:$0xf]
    %v3555 = vld [vmem:[#allocation12 + $0xa64] sm:$0xf]
    %v3556 = vld [vmem:[#allocation12 + $0xa68] sm:$0xf]
    %v3557 = vld [vmem:[#allocation12 + $0xa6c] sm:$0xf]
    %v3558 = vld [vmem:[#allocation12 + $0xa70] sm:$0xf]
    %v3559 = vld [vmem:[#allocation12 + $0xa74] sm:$0xf]
    %v3560 = vld [vmem:[#allocation12 + $0xa78] sm:$0xf]
    %v3561 = vld [vmem:[#allocation12 + $0xa7c] sm:$0xf]
    %v3562 = vld [vmem:[#allocation12 + $0xa80] sm:$0xf]
    %v3563 = vld [vmem:[#allocation12 + $0xa84] sm:$0xf]
    %v3564 = vld [vmem:[#allocation12 + $0xa88] sm:$0xf]
    %v3565 = vld [vmem:[#allocation12 + $0xa8c] sm:$0xf]
    %v3566 = vld [vmem:[#allocation12 + $0xa90] sm:$0xf]
    %v3567 = vld [vmem:[#allocation12 + $0xa94] sm:$0xf]
    %v3568 = vld [vmem:[#allocation12 + $0xa98] sm:$0xf]
    %v3569 = vld [vmem:[#allocation12 + $0xa9c] sm:$0xf]
    %v3570 = vld [vmem:[#allocation12 + $0xaa0] sm:$0xf]
    %v3571 = vld [vmem:[#allocation12 + $0xaa4] sm:$0xf]
    %v3572 = vld [vmem:[#allocation12 + $0xaa8] sm:$0xf]
    %v3573 = vld [vmem:[#allocation12 + $0xaac] sm:$0xf]
    %v3574 = vld [vmem:[#allocation12 + $0xab0] sm:$0xf]
    %v3575 = vld [vmem:[#allocation12 + $0xab4] sm:$0xf]
    %v3576 = vld [vmem:[#allocation12 + $0xab8] sm:$0xf]
    %v3577 = vld [vmem:[#allocation12 + $0xabc] sm:$0xf]
    %v3578 = vld [vmem:[#allocation12 + $0xac0] sm:$0xf]
    %v3579 = vld [vmem:[#allocation12 + $0xac4] sm:$0xf]
    %v3580 = vld [vmem:[#allocation12 + $0xac8] sm:$0xf]
    %v3581 = vld [vmem:[#allocation12 + $0xacc] sm:$0xf]
    %v3582 = vld [vmem:[#allocation12 + $0xad0] sm:$0xf]
    %v3583 = vld [vmem:[#allocation12 + $0xad4] sm:$0xf]
    %v3584 = vld [vmem:[#allocation12 + $0xad8] sm:$0xf]
    %v3585 = vld [vmem:[#allocation12 + $0xadc] sm:$0xf]
    %v3586 = vld [vmem:[#allocation12 + $0xae0] sm:$0xf]
    %v3587 = vld [vmem:[#allocation12 + $0xae4] sm:$0xf]
    %v3588 = vld [vmem:[#allocation12 + $0xae8] sm:$0xf]
    %v3589 = vld [vmem:[#allocation12 + $0xaec] sm:$0xf]
    %v3590 = vld [vmem:[#allocation12 + $0xaf0] sm:$0xf]
    %v3591 = vld [vmem:[#allocation12 + $0xaf4] sm:$0xf]
    %v3592 = vld [vmem:[#allocation12 + $0xaf8] sm:$0xf]
    %v3593 = vld [vmem:[#allocation12 + $0xafc] sm:$0xf]
    %v3594 = vld [vmem:[#allocation12 + $0xb00] sm:$0xf]
    %v3595 = vld [vmem:[#allocation12 + $0xb04] sm:$0xf]
    %v3596 = vld [vmem:[#allocation12 + $0xb08] sm:$0xf]
    %v3597 = vld [vmem:[#allocation12 + $0xb0c] sm:$0xf]
    %v3598 = vld [vmem:[#allocation12 + $0xb10] sm:$0xf]
    %v3599 = vld [vmem:[#allocation12 + $0xb14] sm:$0xf]
    %v3600 = vld [vmem:[#allocation12 + $0xb18] sm:$0xf]
    %v3601 = vld [vmem:[#allocation12 + $0xb1c] sm:$0xf]
    %v3602 = vld [vmem:[#allocation12 + $0xb20] sm:$0xf]
    %v3603 = vld [vmem:[#allocation12 + $0xb24] sm:$0xf]
    %v3604 = vld [vmem:[#allocation12 + $0xb28] sm:$0xf]
    %v3605 = vld [vmem:[#allocation12 + $0xb2c] sm:$0xf]
    %v3606 = vld [vmem:[#allocation12 + $0xb30] sm:$0xf]
    %v3607 = vld [vmem:[#allocation12 + $0xb34] sm:$0xf]
    %v3608 = vld [vmem:[#allocation12 + $0xb38] sm:$0xf]
    %v3609 = vld [vmem:[#allocation12 + $0xb3c] sm:$0xf]
    %v3610 = vld [vmem:[#allocation12 + $0xb40] sm:$0xf]
    %v3611 = vld [vmem:[#allocation12 + $0xb44] sm:$0xf]
    %v3612 = vld [vmem:[#allocation12 + $0xb48] sm:$0xf]
    %v3613 = vld [vmem:[#allocation12 + $0xb4c] sm:$0xf]
    %v3614 = vld [vmem:[#allocation12 + $0xb50] sm:$0xf]
    %v3615 = vld [vmem:[#allocation12 + $0xb54] sm:$0xf]
    %v3616 = vld [vmem:[#allocation12 + $0xb58] sm:$0xf]
    %v3617 = vld [vmem:[#allocation12 + $0xb5c] sm:$0xf]
    %v3618 = vld [vmem:[#allocation12 + $0xb60] sm:$0xf]
    %v3619 = vld [vmem:[#allocation12 + $0xb64] sm:$0xf]
    %v3620 = vld [vmem:[#allocation12 + $0xb68] sm:$0xf]
    %v3621 = vld [vmem:[#allocation12 + $0xb6c] sm:$0xf]
    %v3622 = vld [vmem:[#allocation12 + $0xb70] sm:$0xf]
    %v3623 = vld [vmem:[#allocation12 + $0xb74] sm:$0xf]
    %v3624 = vld [vmem:[#allocation12 + $0xb78] sm:$0xf]
    %v3625 = vld [vmem:[#allocation12 + $0xb7c] sm:$0xf]
    %v3626 = vld [vmem:[#allocation12 + $0xb80] sm:$0xf]
    %v3627 = vld [vmem:[#allocation12 + $0xb84] sm:$0xf]
    %v3628 = vld [vmem:[#allocation12 + $0xb88] sm:$0xf]
    %v3629 = vld [vmem:[#allocation12 + $0xb8c] sm:$0xf]
    %v3630 = vld [vmem:[#allocation12 + $0xb90] sm:$0xf]
    %v3631 = vld [vmem:[#allocation12 + $0xb94] sm:$0xf]
    %v3632 = vld [vmem:[#allocation12 + $0xb98] sm:$0xf]
    %v3633 = vld [vmem:[#allocation12 + $0xb9c] sm:$0xf]
    %v3634 = vld [vmem:[#allocation12 + $0xba0] sm:$0xf]
    %v3635 = vld [vmem:[#allocation12 + $0xba4] sm:$0xf]
    %v3636 = vld [vmem:[#allocation12 + $0xba8] sm:$0xf]
    %v3637 = vld [vmem:[#allocation12 + $0xbac] sm:$0xf]
    %v3638 = vld [vmem:[#allocation12 + $0xbb0] sm:$0xf]
    %v3639 = vld [vmem:[#allocation12 + $0xbb4] sm:$0xf]
    %v3640 = vld [vmem:[#allocation12 + $0xbb8] sm:$0xf]
    %v3641 = vld [vmem:[#allocation12 + $0xbbc] sm:$0xf]
    %v3642 = vld [vmem:[#allocation12 + $0xbc0] sm:$0xf]
    %v3643 = vld [vmem:[#allocation12 + $0xbc4] sm:$0xf]
    %v3644 = vld [vmem:[#allocation12 + $0xbc8] sm:$0xf]
    %v3645 = vld [vmem:[#allocation12 + $0xbcc] sm:$0xf]
    %v3646 = vld [vmem:[#allocation12 + $0xbd0] sm:$0xf]
    %v3647 = vld [vmem:[#allocation12 + $0xbd4] sm:$0xf]
    %v3648 = vld [vmem:[#allocation12 + $0xbd8] sm:$0xf]
    %v3649 = vld [vmem:[#allocation12 + $0xbdc] sm:$0xf]
    %v3650 = vld [vmem:[#allocation12 + $0xbe0] sm:$0xf]
    %v3651 = vld [vmem:[#allocation12 + $0xbe4] sm:$0xf]
    %v3652 = vld [vmem:[#allocation12 + $0xbe8] sm:$0xf]
    %v3653 = vld [vmem:[#allocation12 + $0xbec] sm:$0xf]
    %v3654 = vld [vmem:[#allocation12 + $0xbf0] sm:$0xf]
    %v3655 = vld [vmem:[#allocation12 + $0xbf4] sm:$0xf]
    %v3656 = vld [vmem:[#allocation12 + $0xbf8] sm:$0xf]
    %v3657 = vld [vmem:[#allocation12 + $0xbfc] sm:$0xf]
    %v3658 = vld [vmem:[#allocation12 + $0xc00] sm:$0xf]
    %v3659 = vld [vmem:[#allocation12 + $0xc04] sm:$0xf]
    %v3660 = vld [vmem:[#allocation12 + $0xc08] sm:$0xf]
    %v3661 = vld [vmem:[#allocation12 + $0xc0c] sm:$0xf]
    %v3662 = vld [vmem:[#allocation12 + $0xc10] sm:$0xf]
    %v3663 = vld [vmem:[#allocation12 + $0xc14] sm:$0xf]
    %v3664 = vld [vmem:[#allocation12 + $0xc18] sm:$0xf]
    %v3665 = vld [vmem:[#allocation12 + $0xc1c] sm:$0xf]
    %v3666 = vld [vmem:[#allocation12 + $0xc20] sm:$0xf]
    %v3667 = vld [vmem:[#allocation12 + $0xc24] sm:$0xf]
    %v3668 = vld [vmem:[#allocation12 + $0xc28] sm:$0xf]
    %v3669 = vld [vmem:[#allocation12 + $0xc2c] sm:$0xf]
    %v3670 = vld [vmem:[#allocation12 + $0xc30] sm:$0xf]
    %v3671 = vld [vmem:[#allocation12 + $0xc34] sm:$0xf]
    %v3672 = vld [vmem:[#allocation12 + $0xc38] sm:$0xf]
    %v3673 = vld [vmem:[#allocation12 + $0xc3c] sm:$0xf]
    %v3674 = vld [vmem:[#allocation12 + $0xc40] sm:$0xf]
    %v3675 = vld [vmem:[#allocation12 + $0xc44] sm:$0xf]
    %v3676 = vld [vmem:[#allocation12 + $0xc48] sm:$0xf]
    %v3677 = vld [vmem:[#allocation12 + $0xc4c] sm:$0xf]
    %v3678 = vld [vmem:[#allocation12 + $0xc50] sm:$0xf]
    %v3679 = vld [vmem:[#allocation12 + $0xc54] sm:$0xf]
    %v3680 = vld [vmem:[#allocation12 + $0xc58] sm:$0xf]
    %v3681 = vld [vmem:[#allocation12 + $0xc5c] sm:$0xf]
    %v3682 = vld [vmem:[#allocation12 + $0xc60] sm:$0xf]
    %v3683 = vld [vmem:[#allocation12 + $0xc64] sm:$0xf]
    %v3684 = vld [vmem:[#allocation12 + $0xc68] sm:$0xf]
    %v3685 = vld [vmem:[#allocation12 + $0xc6c] sm:$0xf]
    %v3686 = vld [vmem:[#allocation12 + $0xc70] sm:$0xf]
    %v3687 = vld [vmem:[#allocation12 + $0xc74] sm:$0xf]
    %v3688 = vld [vmem:[#allocation12 + $0xc78] sm:$0xf]
    %v3689 = vld [vmem:[#allocation12 + $0xc7c] sm:$0xf]
    %v3690 = vld [vmem:[#allocation12 + $0xc80] sm:$0xf]
    %v3691 = vld [vmem:[#allocation12 + $0xc84] sm:$0xf]
    %v3692 = vld [vmem:[#allocation12 + $0xc88] sm:$0xf]
    %v3693 = vld [vmem:[#allocation12 + $0xc8c] sm:$0xf]
    %v3694 = vld [vmem:[#allocation12 + $0xc90] sm:$0xf]
    %v3695 = vld [vmem:[#allocation12 + $0xc94] sm:$0xf]
    %v3696 = vld [vmem:[#allocation12 + $0xc98] sm:$0xf]
    %v3697 = vld [vmem:[#allocation12 + $0xc9c] sm:$0xf]
    %v3698 = vld [vmem:[#allocation12 + $0xca0] sm:$0xf]
    %v3699 = vld [vmem:[#allocation12 + $0xca4] sm:$0xf]
    %v3700 = vld [vmem:[#allocation12 + $0xca8] sm:$0xf]
    %v3701 = vld [vmem:[#allocation12 + $0xcac] sm:$0xf]
    %v3702 = vld [vmem:[#allocation12 + $0xcb0] sm:$0xf]
    %v3703 = vld [vmem:[#allocation12 + $0xcb4] sm:$0xf]
    %v3704 = vld [vmem:[#allocation12 + $0xcb8] sm:$0xf]
    %v3705 = vld [vmem:[#allocation12 + $0xcbc] sm:$0xf]
    %v3706 = vld [vmem:[#allocation12 + $0xcc0] sm:$0xf]
    %v3707 = vld [vmem:[#allocation12 + $0xcc4] sm:$0xf]
    %v3708 = vld [vmem:[#allocation12 + $0xcc8] sm:$0xf]
    %v3709 = vld [vmem:[#allocation12 + $0xccc] sm:$0xf]
    %v3710 = vld [vmem:[#allocation12 + $0xcd0] sm:$0xf]
    %v3711 = vld [vmem:[#allocation12 + $0xcd4] sm:$0xf]
    %v3712 = vld [vmem:[#allocation12 + $0xcd8] sm:$0xf]
    %v3713 = vld [vmem:[#allocation12 + $0xcdc] sm:$0xf]
    %v3714 = vld [vmem:[#allocation12 + $0xce0] sm:$0xf]
    %v3715 = vld [vmem:[#allocation12 + $0xce4] sm:$0xf]
    %v3716 = vld [vmem:[#allocation12 + $0xce8] sm:$0xf]
    %v3717 = vld [vmem:[#allocation12 + $0xcec] sm:$0xf]
    %v3718 = vld [vmem:[#allocation12 + $0xcf0] sm:$0xf]
    %v3719 = vld [vmem:[#allocation12 + $0xcf4] sm:$0xf]
    %v3720 = vld [vmem:[#allocation12 + $0xcf8] sm:$0xf]
    %v3721 = vld [vmem:[#allocation12 + $0xcfc] sm:$0xf]
    %v3722 = vld [vmem:[#allocation12 + $0xd00] sm:$0xf]
    %v3723 = vld [vmem:[#allocation12 + $0xd04] sm:$0xf]
    %v3724 = vld [vmem:[#allocation12 + $0xd08] sm:$0xf]
    %v3725 = vld [vmem:[#allocation12 + $0xd0c] sm:$0xf]
    %v3726 = vld [vmem:[#allocation12 + $0xd10] sm:$0xf]
    %v3727 = vld [vmem:[#allocation12 + $0xd14] sm:$0xf]
    %v3728 = vld [vmem:[#allocation12 + $0xd18] sm:$0xf]
    %v3729 = vld [vmem:[#allocation12 + $0xd1c] sm:$0xf]
    %v3730 = vld [vmem:[#allocation12 + $0xd20] sm:$0xf]
    %v3731 = vld [vmem:[#allocation12 + $0xd24] sm:$0xf]
    %v3732 = vld [vmem:[#allocation12 + $0xd28] sm:$0xf]
    %v3733 = vld [vmem:[#allocation12 + $0xd2c] sm:$0xf]
    %v3734 = vld [vmem:[#allocation12 + $0xd30] sm:$0xf]
    %v3735 = vld [vmem:[#allocation12 + $0xd34] sm:$0xf]
    %v3736 = vld [vmem:[#allocation12 + $0xd38] sm:$0xf]
    %v3737 = vld [vmem:[#allocation12 + $0xd3c] sm:$0xf]
    %v3738 = vld [vmem:[#allocation12 + $0xd40] sm:$0xf]
    %v3739 = vld [vmem:[#allocation12 + $0xd44] sm:$0xf]
    %v3740 = vld [vmem:[#allocation12 + $0xd48] sm:$0xf]
    %v3741 = vld [vmem:[#allocation12 + $0xd4c] sm:$0xf]
    %v3742 = vld [vmem:[#allocation12 + $0xd50] sm:$0xf]
    %v3743 = vld [vmem:[#allocation12 + $0xd54] sm:$0xf]
    %v3744 = vld [vmem:[#allocation12 + $0xd58] sm:$0xf]
    %v3745 = vld [vmem:[#allocation12 + $0xd5c] sm:$0xf]
    %v3746 = vld [vmem:[#allocation12 + $0xd60] sm:$0xf]
    %v3747 = vld [vmem:[#allocation12 + $0xd64] sm:$0xf]
    %v3748 = vld [vmem:[#allocation12 + $0xd68] sm:$0xf]
    %v3749 = vld [vmem:[#allocation12 + $0xd6c] sm:$0xf]
    %v3750 = vld [vmem:[#allocation12 + $0xd70] sm:$0xf]
    %v3751 = vld [vmem:[#allocation12 + $0xd74] sm:$0xf]
    %v3752 = vld [vmem:[#allocation12 + $0xd78] sm:$0xf]
    %v3753 = vld [vmem:[#allocation12 + $0xd7c] sm:$0xf]
    %v3754 = vld [vmem:[#allocation12 + $0xd80] sm:$0xf]
    %v3755 = vld [vmem:[#allocation12 + $0xd84] sm:$0xf]
    %v3756 = vld [vmem:[#allocation12 + $0xd88] sm:$0xf]
    %v3757 = vld [vmem:[#allocation12 + $0xd8c] sm:$0xf]
    %v3758 = vld [vmem:[#allocation12 + $0xd90] sm:$0xf]
    %v3759 = vld [vmem:[#allocation12 + $0xd94] sm:$0xf]
    %v3760 = vld [vmem:[#allocation12 + $0xd98] sm:$0xf]
    %v3761 = vld [vmem:[#allocation12 + $0xd9c] sm:$0xf]
    %v3762 = vld [vmem:[#allocation12 + $0xda0] sm:$0xf]
    %v3763 = vld [vmem:[#allocation12 + $0xda4] sm:$0xf]
    %v3764 = vld [vmem:[#allocation12 + $0xda8] sm:$0xf]
    %v3765 = vld [vmem:[#allocation12 + $0xdac] sm:$0xf]
    %v3766 = vld [vmem:[#allocation12 + $0xdb0] sm:$0xf]
    %v3767 = vld [vmem:[#allocation12 + $0xdb4] sm:$0xf]
    %v3768 = vld [vmem:[#allocation12 + $0xdb8] sm:$0xf]
    %v3769 = vld [vmem:[#allocation12 + $0xdbc] sm:$0xf]
    %v3770 = vld [vmem:[#allocation12 + $0xdc0] sm:$0xf]
    %v3771 = vld [vmem:[#allocation12 + $0xdc4] sm:$0xf]
    %v3772 = vld [vmem:[#allocation12 + $0xdc8] sm:$0xf]
    %v3773 = vld [vmem:[#allocation12 + $0xdcc] sm:$0xf]
    %v3774 = vld [vmem:[#allocation12 + $0xdd0] sm:$0xf]
    %v3775 = vld [vmem:[#allocation12 + $0xdd4] sm:$0xf]
    %v3776 = vld [vmem:[#allocation12 + $0xdd8] sm:$0xf]
    %v3777 = vld [vmem:[#allocation12 + $0xddc] sm:$0xf]
    %v3778 = vld [vmem:[#allocation12 + $0xde0] sm:$0xf]
    %v3779 = vld [vmem:[#allocation12 + $0xde4] sm:$0xf]
    %v3780 = vld [vmem:[#allocation12 + $0xde8] sm:$0xf]
    %v3781 = vld [vmem:[#allocation12 + $0xdec] sm:$0xf]
    %v3782 = vld [vmem:[#allocation12 + $0xdf0] sm:$0xf]
    %v3783 = vld [vmem:[#allocation12 + $0xdf4] sm:$0xf]
    %v3784 = vld [vmem:[#allocation12 + $0xdf8] sm:$0xf]
    %v3785 = vld [vmem:[#allocation12 + $0xdfc] sm:$0xf]
    %v3786 = vld [vmem:[#allocation12 + $0xe00] sm:$0xf]
    %v3787 = vld [vmem:[#allocation12 + $0xe04] sm:$0xf]
    %v3788 = vld [vmem:[#allocation12 + $0xe08] sm:$0xf]
    %v3789 = vld [vmem:[#allocation12 + $0xe0c] sm:$0xf]
    %v3790 = vld [vmem:[#allocation12 + $0xe10] sm:$0xf]
    %v3791 = vld [vmem:[#allocation12 + $0xe14] sm:$0xf]
    %v3792 = vld [vmem:[#allocation12 + $0xe18] sm:$0xf]
    %v3793 = vld [vmem:[#allocation12 + $0xe1c] sm:$0xf]
    %v3794 = vld [vmem:[#allocation12 + $0xe20] sm:$0xf]
    %v3795 = vld [vmem:[#allocation12 + $0xe24] sm:$0xf]
    %v3796 = vld [vmem:[#allocation12 + $0xe28] sm:$0xf]
    %v3797 = vld [vmem:[#allocation12 + $0xe2c] sm:$0xf]
    %v3798 = vld [vmem:[#allocation12 + $0xe30] sm:$0xf]
    %v3799 = vld [vmem:[#allocation12 + $0xe34] sm:$0xf]
    %v3800 = vld [vmem:[#allocation12 + $0xe38] sm:$0xf]
    %v3801 = vld [vmem:[#allocation12 + $0xe3c] sm:$0xf]
    %v3802 = vld [vmem:[#allocation12 + $0xe40] sm:$0xf]
    %v3803 = vld [vmem:[#allocation12 + $0xe44] sm:$0xf]
    %v3804 = vld [vmem:[#allocation12 + $0xe48] sm:$0xf]
    %v3805 = vld [vmem:[#allocation12 + $0xe4c] sm:$0xf]
    %v3806 = vld [vmem:[#allocation12 + $0xe50] sm:$0xf]
    %v3807 = vld [vmem:[#allocation12 + $0xe54] sm:$0xf]
    %v3808 = vld [vmem:[#allocation12 + $0xe58] sm:$0xf]
    %v3809 = vld [vmem:[#allocation12 + $0xe5c] sm:$0xf]
    %v3810 = vld [vmem:[#allocation12 + $0xe60] sm:$0xf]
    %v3811 = vld [vmem:[#allocation12 + $0xe64] sm:$0xf]
    %v3812 = vld [vmem:[#allocation12 + $0xe68] sm:$0xf]
    %v3813 = vld [vmem:[#allocation12 + $0xe6c] sm:$0xf]
    %v3814 = vld [vmem:[#allocation12 + $0xe70] sm:$0xf]
    %v3815 = vld [vmem:[#allocation12 + $0xe74] sm:$0xf]
    %v3816 = vld [vmem:[#allocation12 + $0xe78] sm:$0xf]
    %v3817 = vld [vmem:[#allocation12 + $0xe7c] sm:$0xf]
    %v3818 = vld [vmem:[#allocation12 + $0xe80] sm:$0xf]
    %v3819 = vld [vmem:[#allocation12 + $0xe84] sm:$0xf]
    %v3820 = vld [vmem:[#allocation12 + $0xe88] sm:$0xf]
    %v3821 = vld [vmem:[#allocation12 + $0xe8c] sm:$0xf]
    %v3822 = vld [vmem:[#allocation12 + $0xe90] sm:$0xf]
    %v3823 = vld [vmem:[#allocation12 + $0xe94] sm:$0xf]
    %v3824 = vld [vmem:[#allocation12 + $0xe98] sm:$0xf]
    %v3825 = vld [vmem:[#allocation12 + $0xe9c] sm:$0xf]
    %v3826 = vld [vmem:[#allocation12 + $0xea0] sm:$0xf]
    %v3827 = vld [vmem:[#allocation12 + $0xea4] sm:$0xf]
    %v3828 = vld [vmem:[#allocation12 + $0xea8] sm:$0xf]
    %v3829 = vld [vmem:[#allocation12 + $0xeac] sm:$0xf]
    %v3830 = vld [vmem:[#allocation12 + $0xeb0] sm:$0xf]
    %v3831 = vld [vmem:[#allocation12 + $0xeb4] sm:$0xf]
    %v3832 = vld [vmem:[#allocation12 + $0xeb8] sm:$0xf]
    %v3833 = vld [vmem:[#allocation12 + $0xebc] sm:$0xf]
    %v3834 = vld [vmem:[#allocation12 + $0xec0] sm:$0xf]
    %v3835 = vld [vmem:[#allocation12 + $0xec4] sm:$0xf]
    %v3836 = vld [vmem:[#allocation12 + $0xec8] sm:$0xf]
    %v3837 = vld [vmem:[#allocation12 + $0xecc] sm:$0xf]
    %v3838 = vld [vmem:[#allocation12 + $0xed0] sm:$0xf]
    %v3839 = vld [vmem:[#allocation12 + $0xed4] sm:$0xf]
    %v3840 = vld [vmem:[#allocation12 + $0xed8] sm:$0xf]
    %v3841 = vld [vmem:[#allocation12 + $0xedc] sm:$0xf]
    %v3842 = vld [vmem:[#allocation12 + $0xee0] sm:$0xf]
    %v3843 = vld [vmem:[#allocation12 + $0xee4] sm:$0xf]
    %v3844 = vld [vmem:[#allocation12 + $0xee8] sm:$0xf]
    %v3845 = vld [vmem:[#allocation12 + $0xeec] sm:$0xf]
    %v3846 = vld [vmem:[#allocation12 + $0xef0] sm:$0xf]
    %v3847 = vld [vmem:[#allocation12 + $0xef4] sm:$0xf]
    %v3848 = vld [vmem:[#allocation12 + $0xef8] sm:$0xf]
    %v3849 = vld [vmem:[#allocation12 + $0xefc] sm:$0xf]
    %v3850 = vld [vmem:[#allocation12 + $0xf00] sm:$0xf]
    %v3851 = vld [vmem:[#allocation12 + $0xf04] sm:$0xf]
    %v3852 = vld [vmem:[#allocation12 + $0xf08] sm:$0xf]
    %v3853 = vld [vmem:[#allocation12 + $0xf0c] sm:$0xf]
    %v3854 = vld [vmem:[#allocation12 + $0xf10] sm:$0xf]
    %v3855 = vld [vmem:[#allocation12 + $0xf14] sm:$0xf]
    %v3856 = vld [vmem:[#allocation12 + $0xf18] sm:$0xf]
    %v3857 = vld [vmem:[#allocation12 + $0xf1c] sm:$0xf]
    %v3858 = vld [vmem:[#allocation12 + $0xf20] sm:$0xf]
    %v3859 = vld [vmem:[#allocation12 + $0xf24] sm:$0xf]
    %v3860 = vld [vmem:[#allocation12 + $0xf28] sm:$0xf]
    %v3861 = vld [vmem:[#allocation12 + $0xf2c] sm:$0xf]
    %v3862 = vld [vmem:[#allocation12 + $0xf30] sm:$0xf]
    %v3863 = vld [vmem:[#allocation12 + $0xf34] sm:$0xf]
    %v3864 = vld [vmem:[#allocation12 + $0xf38] sm:$0xf]
    %v3865 = vld [vmem:[#allocation12 + $0xf3c] sm:$0xf]
    %v3866 = vld [vmem:[#allocation12 + $0xf40] sm:$0xf]
    %v3867 = vld [vmem:[#allocation12 + $0xf44] sm:$0xf]
    %v3868 = vld [vmem:[#allocation12 + $0xf48] sm:$0xf]
    %v3869 = vld [vmem:[#allocation12 + $0xf4c] sm:$0xf]
    %v3870 = vld [vmem:[#allocation12 + $0xf50] sm:$0xf]
    %v3871 = vld [vmem:[#allocation12 + $0xf54] sm:$0xf]
    %v3872 = vld [vmem:[#allocation12 + $0xf58] sm:$0xf]
    %v3873 = vld [vmem:[#allocation12 + $0xf5c] sm:$0xf]
    %v3874 = vld [vmem:[#allocation12 + $0xf60] sm:$0xf]
    %v3875 = vld [vmem:[#allocation12 + $0xf64] sm:$0xf]
    %v3876 = vld [vmem:[#allocation12 + $0xf68] sm:$0xf]
    %v3877 = vld [vmem:[#allocation12 + $0xf6c] sm:$0xf]
    %v3878 = vld [vmem:[#allocation12 + $0xf70] sm:$0xf]
    %v3879 = vld [vmem:[#allocation12 + $0xf74] sm:$0xf]
    %v3880 = vld [vmem:[#allocation12 + $0xf78] sm:$0xf]
    %v3881 = vld [vmem:[#allocation12 + $0xf7c] sm:$0xf]
    %v3882 = vld [vmem:[#allocation12 + $0xf80] sm:$0xf]
    %v3883 = vld [vmem:[#allocation12 + $0xf84] sm:$0xf]
    %v3884 = vld [vmem:[#allocation12 + $0xf88] sm:$0xf]
    %v3885 = vld [vmem:[#allocation12 + $0xf8c] sm:$0xf]
    %v3886 = vld [vmem:[#allocation12 + $0xf90] sm:$0xf]
    %v3887 = vld [vmem:[#allocation12 + $0xf94] sm:$0xf]
    %v3888 = vld [vmem:[#allocation12 + $0xf98] sm:$0xf]
    %v3889 = vld [vmem:[#allocation12 + $0xf9c] sm:$0xf]
    %v3890 = vld [vmem:[#allocation12 + $0xfa0] sm:$0xf]
    %v3891 = vld [vmem:[#allocation12 + $0xfa4] sm:$0xf]
    %v3892 = vld [vmem:[#allocation12 + $0xfa8] sm:$0xf]
    %v3893 = vld [vmem:[#allocation12 + $0xfac] sm:$0xf]
    %v3894 = vld [vmem:[#allocation12 + $0xfb0] sm:$0xf]
    %v3895 = vld [vmem:[#allocation12 + $0xfb4] sm:$0xf]
    %v3896 = vld [vmem:[#allocation12 + $0xfb8] sm:$0xf]
    %v3897 = vld [vmem:[#allocation12 + $0xfbc] sm:$0xf]
    %v4906 = vunpack.c.l.b16 %v2890
    %v4907 = vunpack.c.l.b16 %v2891
    %v4908 = vunpack.c.l.b16 %v2892
    %v4909 = vunpack.c.l.b16 %v2893
    %v4910 = vunpack.c.l.b16 %v2894
    %v4911 = vunpack.c.l.b16 %v2895
    %v4912 = vunpack.c.l.b16 %v2896
    %v4913 = vunpack.c.l.b16 %v2897
    %v4914 = vunpack.c.l.b16 %v2898
    %v4915 = vunpack.c.l.b16 %v2899
    %v4916 = vunpack.c.l.b16 %v2900
    %v4917 = vunpack.c.l.b16 %v2901
    %v4918 = vunpack.c.l.b16 %v2902
    %v4919 = vunpack.c.l.b16 %v2903
    %v4920 = vunpack.c.l.b16 %v2904
    %v4921 = vunpack.c.l.b16 %v2905
    %v4922 = vunpack.c.l.b16 %v2906
    %v4923 = vunpack.c.l.b16 %v2907
    %v4924 = vunpack.c.l.b16 %v2908
    %v4925 = vunpack.c.l.b16 %v2909
    %v4926 = vunpack.c.l.b16 %v2910
    %v4927 = vunpack.c.l.b16 %v2911
    %v4928 = vunpack.c.l.b16 %v2912
    %v4929 = vunpack.c.l.b16 %v2913
    %v4930 = vunpack.c.l.b16 %v2914
    %v4931 = vunpack.c.l.b16 %v2915
    %v4932 = vunpack.c.l.b16 %v2916
    %v4933 = vunpack.c.l.b16 %v2917
    %v4934 = vunpack.c.l.b16 %v2918
    %v4935 = vunpack.c.l.b16 %v2919
    %v4936 = vunpack.c.l.b16 %v2920
    %v4937 = vunpack.c.l.b16 %v2921
    %v4938 = vunpack.c.l.b16 %v2922
    %v4939 = vunpack.c.l.b16 %v2923
    %v4940 = vunpack.c.l.b16 %v2924
    %v4941 = vunpack.c.l.b16 %v2925
    %v4942 = vunpack.c.l.b16 %v2926
    %v4943 = vunpack.c.l.b16 %v2927
    %v4944 = vunpack.c.l.b16 %v2928
    %v4945 = vunpack.c.l.b16 %v2929
    %v4946 = vunpack.c.l.b16 %v2930
    %v4947 = vunpack.c.l.b16 %v2931
    %v4948 = vunpack.c.l.b16 %v2932
    %v4949 = vunpack.c.l.b16 %v2933
    %v4950 = vunpack.c.l.b16 %v2934
    %v4951 = vunpack.c.l.b16 %v2935
    %v4952 = vunpack.c.l.b16 %v2936
    %v4953 = vunpack.c.l.b16 %v2937
    %v4954 = vunpack.c.l.b16 %v2938
    %v4955 = vunpack.c.l.b16 %v2939
    %v4956 = vunpack.c.l.b16 %v2940
    %v4957 = vunpack.c.l.b16 %v2941
    %v4958 = vunpack.c.l.b16 %v2942
    %v4959 = vunpack.c.l.b16 %v2943
    %v4960 = vunpack.c.l.b16 %v2944
    %v4961 = vunpack.c.l.b16 %v2945
    %v4962 = vunpack.c.l.b16 %v2946
    %v4963 = vunpack.c.l.b16 %v2947
    %v4964 = vunpack.c.l.b16 %v2948
    %v4965 = vunpack.c.l.b16 %v2949
    %v4966 = vunpack.c.l.b16 %v2950
    %v4967 = vunpack.c.l.b16 %v2951
    %v4968 = vunpack.c.l.b16 %v2952
    %v4969 = vunpack.c.l.b16 %v2953
    %v4970 = vunpack.c.l.b16 %v2954
    %v4971 = vunpack.c.l.b16 %v2955
    %v4972 = vunpack.c.l.b16 %v2956
    %v4973 = vunpack.c.l.b16 %v2957
    %v4974 = vunpack.c.l.b16 %v2958
    %v4975 = vunpack.c.l.b16 %v2959
    %v4976 = vunpack.c.l.b16 %v2960
    %v4977 = vunpack.c.l.b16 %v2961
    %v4978 = vunpack.c.l.b16 %v2962
    %v4979 = vunpack.c.l.b16 %v2963
    %v4980 = vunpack.c.l.b16 %v2964
    %v4981 = vunpack.c.l.b16 %v2965
    %v4982 = vunpack.c.l.b16 %v2966
    %v4983 = vunpack.c.l.b16 %v2967
    %v4984 = vunpack.c.l.b16 %v2968
    %v4985 = vunpack.c.l.b16 %v2969
    %v4986 = vunpack.c.l.b16 %v2970
    %v4987 = vunpack.c.l.b16 %v2971
    %v4988 = vunpack.c.l.b16 %v2972
    %v4989 = vunpack.c.l.b16 %v2973
    %v4990 = vunpack.c.l.b16 %v2974
    %v4991 = vunpack.c.l.b16 %v2975
    %v4992 = vunpack.c.l.b16 %v2976
    %v4993 = vunpack.c.l.b16 %v2977
    %v4994 = vunpack.c.l.b16 %v2978
    %v4995 = vunpack.c.l.b16 %v2979
    %v4996 = vunpack.c.l.b16 %v2980
    %v4997 = vunpack.c.l.b16 %v2981
    %v4998 = vunpack.c.l.b16 %v2982
    %v4999 = vunpack.c.l.b16 %v2983
    %v5000 = vunpack.c.l.b16 %v2984
    %v5001 = vunpack.c.l.b16 %v2985
    %v5002 = vunpack.c.l.b16 %v2986
    %v5003 = vunpack.c.l.b16 %v2987
    %v5004 = vunpack.c.l.b16 %v2988
    %v5005 = vunpack.c.l.b16 %v2989
    %v5006 = vunpack.c.l.b16 %v2990
    %v5007 = vunpack.c.l.b16 %v2991
    %v5008 = vunpack.c.l.b16 %v2992
    %v5009 = vunpack.c.l.b16 %v2993
    %v5010 = vunpack.c.l.b16 %v2994
    %v5011 = vunpack.c.l.b16 %v2995
    %v5012 = vunpack.c.l.b16 %v2996
    %v5013 = vunpack.c.l.b16 %v2997
    %v5014 = vunpack.c.l.b16 %v2998
    %v5015 = vunpack.c.l.b16 %v2999
    %v5016 = vunpack.c.l.b16 %v3000
    %v5017 = vunpack.c.l.b16 %v3001
    %v5018 = vunpack.c.l.b16 %v3002
    %v5019 = vunpack.c.l.b16 %v3003
    %v5020 = vunpack.c.l.b16 %v3004
    %v5021 = vunpack.c.l.b16 %v3005
    %v5022 = vunpack.c.l.b16 %v3006
    %v5023 = vunpack.c.l.b16 %v3007
    %v5024 = vunpack.c.l.b16 %v3008
    %v5025 = vunpack.c.l.b16 %v3009
    %v5026 = vunpack.c.l.b16 %v3010
    %v5027 = vunpack.c.l.b16 %v3011
    %v5028 = vunpack.c.l.b16 %v3012
    %v5029 = vunpack.c.l.b16 %v3013
    %v5030 = vunpack.c.l.b16 %v3014
    %v5031 = vunpack.c.l.b16 %v3015
    %v5032 = vunpack.c.l.b16 %v3016
    %v5033 = vunpack.c.l.b16 %v3017
    %v5034 = vunpack.c.l.b16 %v3018
    %v5035 = vunpack.c.l.b16 %v3019
    %v5036 = vunpack.c.l.b16 %v3020
    %v5037 = vunpack.c.l.b16 %v3021
    %v5038 = vunpack.c.l.b16 %v3022
    %v5039 = vunpack.c.l.b16 %v3023
    %v5040 = vunpack.c.l.b16 %v3024
    %v5041 = vunpack.c.l.b16 %v3025
    %v5042 = vunpack.c.l.b16 %v3026
    %v5043 = vunpack.c.l.b16 %v3027
    %v5044 = vunpack.c.l.b16 %v3028
    %v5045 = vunpack.c.l.b16 %v3029
    %v5046 = vunpack.c.l.b16 %v3030
    %v5047 = vunpack.c.l.b16 %v3031
    %v5048 = vunpack.c.l.b16 %v3032
    %v5049 = vunpack.c.l.b16 %v3033
    %v5050 = vunpack.c.l.b16 %v3034
    %v5051 = vunpack.c.l.b16 %v3035
    %v5052 = vunpack.c.l.b16 %v3036
    %v5053 = vunpack.c.l.b16 %v3037
    %v5054 = vunpack.c.l.b16 %v3038
    %v5055 = vunpack.c.l.b16 %v3039
    %v5056 = vunpack.c.l.b16 %v3040
    %v5057 = vunpack.c.l.b16 %v3041
    %v5058 = vunpack.c.l.b16 %v3042
    %v5059 = vunpack.c.l.b16 %v3043
    %v5060 = vunpack.c.l.b16 %v3044
    %v5061 = vunpack.c.l.b16 %v3045
    %v5062 = vunpack.c.l.b16 %v3046
    %v5063 = vunpack.c.l.b16 %v3047
    %v5064 = vunpack.c.l.b16 %v3048
    %v5065 = vunpack.c.l.b16 %v3049
    %v5066 = vunpack.c.l.b16 %v3050
    %v5067 = vunpack.c.l.b16 %v3051
    %v5068 = vunpack.c.l.b16 %v3052
    %v5069 = vunpack.c.l.b16 %v3053
    %v5070 = vunpack.c.l.b16 %v3054
    %v5071 = vunpack.c.l.b16 %v3055
    %v5072 = vunpack.c.l.b16 %v3056
    %v5073 = vunpack.c.l.b16 %v3057
    %v5074 = vunpack.c.l.b16 %v3058
    %v5075 = vunpack.c.l.b16 %v3059
    %v5076 = vunpack.c.l.b16 %v3060
    %v5077 = vunpack.c.l.b16 %v3061
    %v5078 = vunpack.c.l.b16 %v3062
    %v5079 = vunpack.c.l.b16 %v3063
    %v5080 = vunpack.c.l.b16 %v3064
    %v5081 = vunpack.c.l.b16 %v3065
    %v5082 = vunpack.c.l.b16 %v3066
    %v5083 = vunpack.c.l.b16 %v3067
    %v5084 = vunpack.c.l.b16 %v3068
    %v5085 = vunpack.c.l.b16 %v3069
    %v5086 = vunpack.c.l.b16 %v3070
    %v5087 = vunpack.c.l.b16 %v3071
    %v5088 = vunpack.c.l.b16 %v3072
    %v5089 = vunpack.c.l.b16 %v3073
    %v5090 = vunpack.c.l.b16 %v3074
    %v5091 = vunpack.c.l.b16 %v3075
    %v5092 = vunpack.c.l.b16 %v3076
    %v5093 = vunpack.c.l.b16 %v3077
    %v5094 = vunpack.c.l.b16 %v3078
    %v5095 = vunpack.c.l.b16 %v3079
    %v5096 = vunpack.c.l.b16 %v3080
    %v5097 = vunpack.c.l.b16 %v3081
    %v5098 = vunpack.c.l.b16 %v3082
    %v5099 = vunpack.c.l.b16 %v3083
    %v5100 = vunpack.c.l.b16 %v3084
    %v5101 = vunpack.c.l.b16 %v3085
    %v5102 = vunpack.c.l.b16 %v3086
    %v5103 = vunpack.c.l.b16 %v3087
    %v5104 = vunpack.c.l.b16 %v3088
    %v5105 = vunpack.c.l.b16 %v3089
    %v5106 = vunpack.c.l.b16 %v3090
    %v5107 = vunpack.c.l.b16 %v3091
    %v5108 = vunpack.c.l.b16 %v3092
    %v5109 = vunpack.c.l.b16 %v3093
    %v5110 = vunpack.c.l.b16 %v3094
    %v5111 = vunpack.c.l.b16 %v3095
    %v5112 = vunpack.c.l.b16 %v3096
    %v5113 = vunpack.c.l.b16 %v3097
    %v5114 = vunpack.c.l.b16 %v3098
    %v5115 = vunpack.c.l.b16 %v3099
    %v5116 = vunpack.c.l.b16 %v3100
    %v5117 = vunpack.c.l.b16 %v3101
    %v5118 = vunpack.c.l.b16 %v3102
    %v5119 = vunpack.c.l.b16 %v3103
    %v5120 = vunpack.c.l.b16 %v3104
    %v5121 = vunpack.c.l.b16 %v3105
    %v5122 = vunpack.c.l.b16 %v3106
    %v5123 = vunpack.c.l.b16 %v3107
    %v5124 = vunpack.c.l.b16 %v3108
    %v5125 = vunpack.c.l.b16 %v3109
    %v5126 = vunpack.c.l.b16 %v3110
    %v5127 = vunpack.c.l.b16 %v3111
    %v5128 = vunpack.c.l.b16 %v3112
    %v5129 = vunpack.c.l.b16 %v3113
    %v5130 = vunpack.c.l.b16 %v3114
    %v5131 = vunpack.c.l.b16 %v3115
    %v5132 = vunpack.c.l.b16 %v3116
    %v5133 = vunpack.c.l.b16 %v3117
    %v5134 = vunpack.c.l.b16 %v3118
    %v5135 = vunpack.c.l.b16 %v3119
    %v5136 = vunpack.c.l.b16 %v3120
    %v5137 = vunpack.c.l.b16 %v3121
    %v5138 = vunpack.c.l.b16 %v3122
    %v5139 = vunpack.c.l.b16 %v3123
    %v5140 = vunpack.c.l.b16 %v3124
    %v5141 = vunpack.c.l.b16 %v3125
    %v5142 = vunpack.c.l.b16 %v3126
    %v5143 = vunpack.c.l.b16 %v3127
    %v5144 = vunpack.c.l.b16 %v3128
    %v5145 = vunpack.c.l.b16 %v3129
    %v5146 = vunpack.c.l.b16 %v3130
    %v5147 = vunpack.c.l.b16 %v3131
    %v5148 = vunpack.c.l.b16 %v3132
    %v5149 = vunpack.c.l.b16 %v3133
    %v5150 = vunpack.c.l.b16 %v3134
    %v5151 = vunpack.c.l.b16 %v3135
    %v5152 = vunpack.c.l.b16 %v3136
    %v5153 = vunpack.c.l.b16 %v3137
    %v5154 = vunpack.c.l.b16 %v3138
    %v5155 = vunpack.c.l.b16 %v3139
    %v5156 = vunpack.c.l.b16 %v3140
    %v5157 = vunpack.c.l.b16 %v3141
    %v5158 = vunpack.c.l.b16 %v3142
    %v5159 = vunpack.c.l.b16 %v3143
    %v5160 = vunpack.c.l.b16 %v3144
    %v5161 = vunpack.c.l.b16 %v3145
    %v5162 = vunpack.c.l.b16 %v3146
    %v5163 = vunpack.c.l.b16 %v3147
    %v5164 = vunpack.c.l.b16 %v3148
    %v5165 = vunpack.c.l.b16 %v3149
    %v5166 = vunpack.c.l.b16 %v3150
    %v5167 = vunpack.c.l.b16 %v3151
    %v5168 = vunpack.c.l.b16 %v3152
    %v5169 = vunpack.c.l.b16 %v3153
    %v5170 = vunpack.c.l.b16 %v3154
    %v5171 = vunpack.c.l.b16 %v3155
    %v5172 = vunpack.c.l.b16 %v3156
    %v5173 = vunpack.c.l.b16 %v3157
    %v5174 = vunpack.c.l.b16 %v3158
    %v5175 = vunpack.c.l.b16 %v3159
    %v5176 = vunpack.c.l.b16 %v3160
    %v5177 = vunpack.c.l.b16 %v3161
    %v5178 = vunpack.c.l.b16 %v3162
    %v5179 = vunpack.c.l.b16 %v3163
    %v5180 = vunpack.c.l.b16 %v3164
    %v5181 = vunpack.c.l.b16 %v3165
    %v5182 = vunpack.c.l.b16 %v3166
    %v5183 = vunpack.c.l.b16 %v3167
    %v5184 = vunpack.c.l.b16 %v3168
    %v5185 = vunpack.c.l.b16 %v3169
    %v5186 = vunpack.c.l.b16 %v3170
    %v5187 = vunpack.c.l.b16 %v3171
    %v5188 = vunpack.c.l.b16 %v3172
    %v5189 = vunpack.c.l.b16 %v3173
    %v5190 = vunpack.c.l.b16 %v3174
    %v5191 = vunpack.c.l.b16 %v3175
    %v5192 = vunpack.c.l.b16 %v3176
    %v5193 = vunpack.c.l.b16 %v3177
    %v5194 = vunpack.c.l.b16 %v3178
    %v5195 = vunpack.c.l.b16 %v3179
    %v5196 = vunpack.c.l.b16 %v3180
    %v5197 = vunpack.c.l.b16 %v3181
    %v5198 = vunpack.c.l.b16 %v3182
    %v5199 = vunpack.c.l.b16 %v3183
    %v5200 = vunpack.c.l.b16 %v3184
    %v5201 = vunpack.c.l.b16 %v3185
    %v5202 = vunpack.c.l.b16 %v3186
    %v5203 = vunpack.c.l.b16 %v3187
    %v5204 = vunpack.c.l.b16 %v3188
    %v5205 = vunpack.c.l.b16 %v3189
    %v5206 = vunpack.c.l.b16 %v3190
    %v5207 = vunpack.c.l.b16 %v3191
    %v5208 = vunpack.c.l.b16 %v3192
    %v5209 = vunpack.c.l.b16 %v3193
    %v5210 = vunpack.c.l.b16 %v3194
    %v5211 = vunpack.c.l.b16 %v3195
    %v5212 = vunpack.c.l.b16 %v3196
    %v5213 = vunpack.c.l.b16 %v3197
    %v5214 = vunpack.c.l.b16 %v3198
    %v5215 = vunpack.c.l.b16 %v3199
    %v5216 = vunpack.c.l.b16 %v3200
    %v5217 = vunpack.c.l.b16 %v3201
    %v5218 = vunpack.c.l.b16 %v3202
    %v5219 = vunpack.c.l.b16 %v3203
    %v5220 = vunpack.c.l.b16 %v3204
    %v5221 = vunpack.c.l.b16 %v3205
    %v5222 = vunpack.c.l.b16 %v3206
    %v5223 = vunpack.c.l.b16 %v3207
    %v5224 = vunpack.c.l.b16 %v3208
    %v5225 = vunpack.c.l.b16 %v3209
    %v5226 = vunpack.c.l.b16 %v3210
    %v5227 = vunpack.c.l.b16 %v3211
    %v5228 = vunpack.c.l.b16 %v3212
    %v5229 = vunpack.c.l.b16 %v3213
    %v5230 = vunpack.c.l.b16 %v3214
    %v5231 = vunpack.c.l.b16 %v3215
    %v5232 = vunpack.c.l.b16 %v3216
    %v5233 = vunpack.c.l.b16 %v3217
    %v5234 = vunpack.c.l.b16 %v3218
    %v5235 = vunpack.c.l.b16 %v3219
    %v5236 = vunpack.c.l.b16 %v3220
    %v5237 = vunpack.c.l.b16 %v3221
    %v5238 = vunpack.c.l.b16 %v3222
    %v5239 = vunpack.c.l.b16 %v3223
    %v5240 = vunpack.c.l.b16 %v3224
    %v5241 = vunpack.c.l.b16 %v3225
    %v5242 = vunpack.c.l.b16 %v3226
    %v5243 = vunpack.c.l.b16 %v3227
    %v5244 = vunpack.c.l.b16 %v3228
    %v5245 = vunpack.c.l.b16 %v3229
    %v5246 = vunpack.c.l.b16 %v3230
    %v5247 = vunpack.c.l.b16 %v3231
    %v5248 = vunpack.c.l.b16 %v3232
    %v5249 = vunpack.c.l.b16 %v3233
    %v5250 = vunpack.c.l.b16 %v3234
    %v5251 = vunpack.c.l.b16 %v3235
    %v5252 = vunpack.c.l.b16 %v3236
    %v5253 = vunpack.c.l.b16 %v3237
    %v5254 = vunpack.c.l.b16 %v3238
    %v5255 = vunpack.c.l.b16 %v3239
    %v5256 = vunpack.c.l.b16 %v3240
    %v5257 = vunpack.c.l.b16 %v3241
    %v5258 = vunpack.c.l.b16 %v3242
    %v5259 = vunpack.c.l.b16 %v3243
    %v5260 = vunpack.c.l.b16 %v3244
    %v5261 = vunpack.c.l.b16 %v3245
    %v5262 = vunpack.c.l.b16 %v3246
    %v5263 = vunpack.c.l.b16 %v3247
    %v5264 = vunpack.c.l.b16 %v3248
    %v5265 = vunpack.c.l.b16 %v3249
    %v5266 = vunpack.c.l.b16 %v3250
    %v5267 = vunpack.c.l.b16 %v3251
    %v5268 = vunpack.c.l.b16 %v3252
    %v5269 = vunpack.c.l.b16 %v3253
    %v5270 = vunpack.c.l.b16 %v3254
    %v5271 = vunpack.c.l.b16 %v3255
    %v5272 = vunpack.c.l.b16 %v3256
    %v5273 = vunpack.c.l.b16 %v3257
    %v5274 = vunpack.c.l.b16 %v3258
    %v5275 = vunpack.c.l.b16 %v3259
    %v5276 = vunpack.c.l.b16 %v3260
    %v5277 = vunpack.c.l.b16 %v3261
    %v5278 = vunpack.c.l.b16 %v3262
    %v5279 = vunpack.c.l.b16 %v3263
    %v5280 = vunpack.c.l.b16 %v3264
    %v5281 = vunpack.c.l.b16 %v3265
    %v5282 = vunpack.c.l.b16 %v3266
    %v5283 = vunpack.c.l.b16 %v3267
    %v5284 = vunpack.c.l.b16 %v3268
    %v5285 = vunpack.c.l.b16 %v3269
    %v5286 = vunpack.c.l.b16 %v3270
    %v5287 = vunpack.c.l.b16 %v3271
    %v5288 = vunpack.c.l.b16 %v3272
    %v5289 = vunpack.c.l.b16 %v3273
    %v5290 = vunpack.c.l.b16 %v3274
    %v5291 = vunpack.c.l.b16 %v3275
    %v5292 = vunpack.c.l.b16 %v3276
    %v5293 = vunpack.c.l.b16 %v3277
    %v5294 = vunpack.c.l.b16 %v3278
    %v5295 = vunpack.c.l.b16 %v3279
    %v5296 = vunpack.c.l.b16 %v3280
    %v5297 = vunpack.c.l.b16 %v3281
    %v5298 = vunpack.c.l.b16 %v3282
    %v5299 = vunpack.c.l.b16 %v3283
    %v5300 = vunpack.c.l.b16 %v3284
    %v5301 = vunpack.c.l.b16 %v3285
    %v5302 = vunpack.c.l.b16 %v3286
    %v5303 = vunpack.c.l.b16 %v3287
    %v5304 = vunpack.c.l.b16 %v3288
    %v5305 = vunpack.c.l.b16 %v3289
    %v5306 = vunpack.c.l.b16 %v3290
    %v5307 = vunpack.c.l.b16 %v3291
    %v5308 = vunpack.c.l.b16 %v3292
    %v5309 = vunpack.c.l.b16 %v3293
    %v5310 = vunpack.c.l.b16 %v3294
    %v5311 = vunpack.c.l.b16 %v3295
    %v5312 = vunpack.c.l.b16 %v3296
    %v5313 = vunpack.c.l.b16 %v3297
    %v5314 = vunpack.c.l.b16 %v3298
    %v5315 = vunpack.c.l.b16 %v3299
    %v5316 = vunpack.c.l.b16 %v3300
    %v5317 = vunpack.c.l.b16 %v3301
    %v5318 = vunpack.c.l.b16 %v3302
    %v5319 = vunpack.c.l.b16 %v3303
    %v5320 = vunpack.c.l.b16 %v3304
    %v5321 = vunpack.c.l.b16 %v3305
    %v5322 = vunpack.c.l.b16 %v3306
    %v5323 = vunpack.c.l.b16 %v3307
    %v5324 = vunpack.c.l.b16 %v3308
    %v5325 = vunpack.c.l.b16 %v3309
    %v5326 = vunpack.c.l.b16 %v3310
    %v5327 = vunpack.c.l.b16 %v3311
    %v5328 = vunpack.c.l.b16 %v3312
    %v5329 = vunpack.c.l.b16 %v3313
    %v5330 = vunpack.c.l.b16 %v3314
    %v5331 = vunpack.c.l.b16 %v3315
    %v5332 = vunpack.c.l.b16 %v3316
    %v5333 = vunpack.c.l.b16 %v3317
    %v5334 = vunpack.c.l.b16 %v3318
    %v5335 = vunpack.c.l.b16 %v3319
    %v5336 = vunpack.c.l.b16 %v3320
    %v5337 = vunpack.c.l.b16 %v3321
    %v5338 = vunpack.c.l.b16 %v3322
    %v5339 = vunpack.c.l.b16 %v3323
    %v5340 = vunpack.c.l.b16 %v3324
    %v5341 = vunpack.c.l.b16 %v3325
    %v5342 = vunpack.c.l.b16 %v3326
    %v5343 = vunpack.c.l.b16 %v3327
    %v5344 = vunpack.c.l.b16 %v3328
    %v5345 = vunpack.c.l.b16 %v3329
    %v5346 = vunpack.c.l.b16 %v3330
    %v5347 = vunpack.c.l.b16 %v3331
    %v5348 = vunpack.c.l.b16 %v3332
    %v5349 = vunpack.c.l.b16 %v3333
    %v5350 = vunpack.c.l.b16 %v3334
    %v5351 = vunpack.c.l.b16 %v3335
    %v5352 = vunpack.c.l.b16 %v3336
    %v5353 = vunpack.c.l.b16 %v3337
    %v5354 = vunpack.c.l.b16 %v3338
    %v5355 = vunpack.c.l.b16 %v3339
    %v5356 = vunpack.c.l.b16 %v3340
    %v5357 = vunpack.c.l.b16 %v3341
    %v5358 = vunpack.c.l.b16 %v3342
    %v5359 = vunpack.c.l.b16 %v3343
    %v5360 = vunpack.c.l.b16 %v3344
    %v5361 = vunpack.c.l.b16 %v3345
    %v5362 = vunpack.c.l.b16 %v3346
    %v5363 = vunpack.c.l.b16 %v3347
    %v5364 = vunpack.c.l.b16 %v3348
    %v5365 = vunpack.c.l.b16 %v3349
    %v5366 = vunpack.c.l.b16 %v3350
    %v5367 = vunpack.c.l.b16 %v3351
    %v5368 = vunpack.c.l.b16 %v3352
    %v5369 = vunpack.c.l.b16 %v3353
    %v5370 = vunpack.c.l.b16 %v3354
    %v5371 = vunpack.c.l.b16 %v3355
    %v5372 = vunpack.c.l.b16 %v3356
    %v5373 = vunpack.c.l.b16 %v3357
    %v5374 = vunpack.c.l.b16 %v3358
    %v5375 = vunpack.c.l.b16 %v3359
    %v5376 = vunpack.c.l.b16 %v3360
    %v5377 = vunpack.c.l.b16 %v3361
    %v5378 = vunpack.c.l.b16 %v3362
    %v5379 = vunpack.c.l.b16 %v3363
    %v5380 = vunpack.c.l.b16 %v3364
    %v5381 = vunpack.c.l.b16 %v3365
    %v5382 = vunpack.c.l.b16 %v3366
    %v5383 = vunpack.c.l.b16 %v3367
    %v5384 = vunpack.c.l.b16 %v3368
    %v5385 = vunpack.c.l.b16 %v3369
    %v5386 = vunpack.c.l.b16 %v3370
    %v5387 = vunpack.c.l.b16 %v3371
    %v5388 = vunpack.c.l.b16 %v3372
    %v5389 = vunpack.c.l.b16 %v3373
    %v5390 = vunpack.c.l.b16 %v3374
    %v5391 = vunpack.c.l.b16 %v3375
    %v5392 = vunpack.c.l.b16 %v3376
    %v5393 = vunpack.c.l.b16 %v3377
    %v5394 = vunpack.c.l.b16 %v3378
    %v5395 = vunpack.c.l.b16 %v3379
    %v5396 = vunpack.c.l.b16 %v3380
    %v5397 = vunpack.c.l.b16 %v3381
    %v5398 = vunpack.c.l.b16 %v3382
    %v5399 = vunpack.c.l.b16 %v3383
    %v5400 = vunpack.c.l.b16 %v3384
    %v5401 = vunpack.c.l.b16 %v3385
    %v5402 = vunpack.c.l.b16 %v3386
    %v5403 = vunpack.c.l.b16 %v3387
    %v5404 = vunpack.c.l.b16 %v3388
    %v5405 = vunpack.c.l.b16 %v3389
    %v5406 = vunpack.c.l.b16 %v3390
    %v5407 = vunpack.c.l.b16 %v3391
    %v5408 = vunpack.c.l.b16 %v3392
    %v5409 = vunpack.c.l.b16 %v3393
    %v5410 = vunpack.c.l.b16 %v3394
    %v5411 = vunpack.c.l.b16 %v3395
    %v5412 = vunpack.c.l.b16 %v3396
    %v5413 = vunpack.c.l.b16 %v3397
    %v5414 = vunpack.c.l.b16 %v3398
    %v5415 = vunpack.c.l.b16 %v3399
    %v5416 = vunpack.c.l.b16 %v3400
    %v5417 = vunpack.c.l.b16 %v3401
    %v5418 = vunpack.c.l.b16 %v3402
    %v5419 = vunpack.c.l.b16 %v3403
    %v5420 = vunpack.c.l.b16 %v3404
    %v5421 = vunpack.c.l.b16 %v3405
    %v5422 = vunpack.c.l.b16 %v3406
    %v5423 = vunpack.c.l.b16 %v3407
    %v5424 = vunpack.c.l.b16 %v3408
    %v5425 = vunpack.c.l.b16 %v3409
    %v5426 = vunpack.c.l.b16 %v3410
    %v5427 = vunpack.c.l.b16 %v3411
    %v5428 = vunpack.c.l.b16 %v3412
    %v5429 = vunpack.c.l.b16 %v3413
    %v5430 = vunpack.c.l.b16 %v3414
    %v5431 = vunpack.c.l.b16 %v3415
    %v5432 = vunpack.c.l.b16 %v3416
    %v5433 = vunpack.c.l.b16 %v3417
    %v5434 = vunpack.c.l.b16 %v3418
    %v5435 = vunpack.c.l.b16 %v3419
    %v5436 = vunpack.c.l.b16 %v3420
    %v5437 = vunpack.c.l.b16 %v3421
    %v5438 = vunpack.c.l.b16 %v3422
    %v5439 = vunpack.c.l.b16 %v3423
    %v5440 = vunpack.c.l.b16 %v3424
    %v5441 = vunpack.c.l.b16 %v3425
    %v5442 = vunpack.c.l.b16 %v3426
    %v5443 = vunpack.c.l.b16 %v3427
    %v5444 = vunpack.c.l.b16 %v3428
    %v5445 = vunpack.c.l.b16 %v3429
    %v5446 = vunpack.c.l.b16 %v3430
    %v5447 = vunpack.c.l.b16 %v3431
    %v5448 = vunpack.c.l.b16 %v3432
    %v5449 = vunpack.c.l.b16 %v3433
    %v5450 = vunpack.c.l.b16 %v3434
    %v5451 = vunpack.c.l.b16 %v3435
    %v5452 = vunpack.c.l.b16 %v3436
    %v5453 = vunpack.c.l.b16 %v3437
    %v5454 = vunpack.c.l.b16 %v3438
    %v5455 = vunpack.c.l.b16 %v3439
    %v5456 = vunpack.c.l.b16 %v3440
    %v5457 = vunpack.c.l.b16 %v3441
    %v5458 = vunpack.c.l.b16 %v3442
    %v5459 = vunpack.c.l.b16 %v3443
    %v5460 = vunpack.c.l.b16 %v3444
    %v5461 = vunpack.c.l.b16 %v3445
    %v5462 = vunpack.c.l.b16 %v3446
    %v5463 = vunpack.c.l.b16 %v3447
    %v5464 = vunpack.c.l.b16 %v3448
    %v5465 = vunpack.c.l.b16 %v3449
    %v5466 = vunpack.c.l.b16 %v3450
    %v5467 = vunpack.c.l.b16 %v3451
    %v5468 = vunpack.c.l.b16 %v3452
    %v5469 = vunpack.c.l.b16 %v3453
    %v5470 = vunpack.c.l.b16 %v3454
    %v5471 = vunpack.c.l.b16 %v3455
    %v5472 = vunpack.c.l.b16 %v3456
    %v5473 = vunpack.c.l.b16 %v3457
    %v5474 = vunpack.c.l.b16 %v3458
    %v5475 = vunpack.c.l.b16 %v3459
    %v5476 = vunpack.c.l.b16 %v3460
    %v5477 = vunpack.c.l.b16 %v3461
    %v5478 = vunpack.c.l.b16 %v3462
    %v5479 = vunpack.c.l.b16 %v3463
    %v5480 = vunpack.c.l.b16 %v3464
    %v5481 = vunpack.c.l.b16 %v3465
    %v5482 = vunpack.c.l.b16 %v3466
    %v5483 = vunpack.c.l.b16 %v3467
    %v5484 = vunpack.c.l.b16 %v3468
    %v5485 = vunpack.c.l.b16 %v3469
    %v5486 = vunpack.c.l.b16 %v3470
    %v5487 = vunpack.c.l.b16 %v3471
    %v5488 = vunpack.c.l.b16 %v3472
    %v5489 = vunpack.c.l.b16 %v3473
    %v5490 = vunpack.c.l.b16 %v3474
    %v5491 = vunpack.c.l.b16 %v3475
    %v5492 = vunpack.c.l.b16 %v3476
    %v5493 = vunpack.c.l.b16 %v3477
    %v5494 = vunpack.c.l.b16 %v3478
    %v5495 = vunpack.c.l.b16 %v3479
    %v5496 = vunpack.c.l.b16 %v3480
    %v5497 = vunpack.c.l.b16 %v3481
    %v5498 = vunpack.c.l.b16 %v3482
    %v5499 = vunpack.c.l.b16 %v3483
    %v5500 = vunpack.c.l.b16 %v3484
    %v5501 = vunpack.c.l.b16 %v3485
    %v5502 = vunpack.c.l.b16 %v3486
    %v5503 = vunpack.c.l.b16 %v3487
    %v5504 = vunpack.c.l.b16 %v3488
    %v5505 = vunpack.c.l.b16 %v3489
    %v5506 = vunpack.c.l.b16 %v3490
    %v5507 = vunpack.c.l.b16 %v3491
    %v5508 = vunpack.c.l.b16 %v3492
    %v5509 = vunpack.c.l.b16 %v3493
    %v5510 = vunpack.c.l.b16 %v3494
    %v5511 = vunpack.c.l.b16 %v3495
    %v5512 = vunpack.c.l.b16 %v3496
    %v5513 = vunpack.c.l.b16 %v3497
    %v5514 = vunpack.c.l.b16 %v3498
    %v5515 = vunpack.c.l.b16 %v3499
    %v5516 = vunpack.c.l.b16 %v3500
    %v5517 = vunpack.c.l.b16 %v3501
    %v5518 = vunpack.c.l.b16 %v3502
    %v5519 = vunpack.c.l.b16 %v3503
    %v5520 = vunpack.c.l.b16 %v3504
    %v5521 = vunpack.c.l.b16 %v3505
    %v5522 = vunpack.c.l.b16 %v3506
    %v5523 = vunpack.c.l.b16 %v3507
    %v5524 = vunpack.c.l.b16 %v3508
    %v5525 = vunpack.c.l.b16 %v3509
    %v5526 = vunpack.c.l.b16 %v3510
    %v5527 = vunpack.c.l.b16 %v3511
    %v5528 = vunpack.c.l.b16 %v3512
    %v5529 = vunpack.c.l.b16 %v3513
    %v5530 = vunpack.c.l.b16 %v3514
    %v5531 = vunpack.c.l.b16 %v3515
    %v5532 = vunpack.c.l.b16 %v3516
    %v5533 = vunpack.c.l.b16 %v3517
    %v5534 = vunpack.c.l.b16 %v3518
    %v5535 = vunpack.c.l.b16 %v3519
    %v5536 = vunpack.c.l.b16 %v3520
    %v5537 = vunpack.c.l.b16 %v3521
    %v5538 = vunpack.c.l.b16 %v3522
    %v5539 = vunpack.c.l.b16 %v3523
    %v5540 = vunpack.c.l.b16 %v3524
    %v5541 = vunpack.c.l.b16 %v3525
    %v5542 = vunpack.c.l.b16 %v3526
    %v5543 = vunpack.c.l.b16 %v3527
    %v5544 = vunpack.c.l.b16 %v3528
    %v5545 = vunpack.c.l.b16 %v3529
    %v5546 = vunpack.c.l.b16 %v3530
    %v5547 = vunpack.c.l.b16 %v3531
    %v5548 = vunpack.c.l.b16 %v3532
    %v5549 = vunpack.c.l.b16 %v3533
    %v5550 = vunpack.c.l.b16 %v3534
    %v5551 = vunpack.c.l.b16 %v3535
    %v5552 = vunpack.c.l.b16 %v3536
    %v5553 = vunpack.c.l.b16 %v3537
    %v5554 = vunpack.c.l.b16 %v3538
    %v5555 = vunpack.c.l.b16 %v3539
    %v5556 = vunpack.c.l.b16 %v3540
    %v5557 = vunpack.c.l.b16 %v3541
    %v5558 = vunpack.c.l.b16 %v3542
    %v5559 = vunpack.c.l.b16 %v3543
    %v5560 = vunpack.c.l.b16 %v3544
    %v5561 = vunpack.c.l.b16 %v3545
    %v5562 = vunpack.c.l.b16 %v3546
    %v5563 = vunpack.c.l.b16 %v3547
    %v5564 = vunpack.c.l.b16 %v3548
    %v5565 = vunpack.c.l.b16 %v3549
    %v5566 = vunpack.c.l.b16 %v3550
    %v5567 = vunpack.c.l.b16 %v3551
    %v5568 = vunpack.c.l.b16 %v3552
    %v5569 = vunpack.c.l.b16 %v3553
    %v5570 = vunpack.c.l.b16 %v3554
    %v5571 = vunpack.c.l.b16 %v3555
    %v5572 = vunpack.c.l.b16 %v3556
    %v5573 = vunpack.c.l.b16 %v3557
    %v5574 = vunpack.c.l.b16 %v3558
    %v5575 = vunpack.c.l.b16 %v3559
    %v5576 = vunpack.c.l.b16 %v3560
    %v5577 = vunpack.c.l.b16 %v3561
    %v5578 = vunpack.c.l.b16 %v3562
    %v5579 = vunpack.c.l.b16 %v3563
    %v5580 = vunpack.c.l.b16 %v3564
    %v5581 = vunpack.c.l.b16 %v3565
    %v5582 = vunpack.c.l.b16 %v3566
    %v5583 = vunpack.c.l.b16 %v3567
    %v5584 = vunpack.c.l.b16 %v3568
    %v5585 = vunpack.c.l.b16 %v3569
    %v5586 = vunpack.c.l.b16 %v3570
    %v5587 = vunpack.c.l.b16 %v3571
    %v5588 = vunpack.c.l.b16 %v3572
    %v5589 = vunpack.c.l.b16 %v3573
    %v5590 = vunpack.c.l.b16 %v3574
    %v5591 = vunpack.c.l.b16 %v3575
    %v5592 = vunpack.c.l.b16 %v3576
    %v5593 = vunpack.c.l.b16 %v3577
    %v5594 = vunpack.c.l.b16 %v3578
    %v5595 = vunpack.c.l.b16 %v3579
    %v5596 = vunpack.c.l.b16 %v3580
    %v5597 = vunpack.c.l.b16 %v3581
    %v5598 = vunpack.c.l.b16 %v3582
    %v5599 = vunpack.c.l.b16 %v3583
    %v5600 = vunpack.c.l.b16 %v3584
    %v5601 = vunpack.c.l.b16 %v3585
    %v5602 = vunpack.c.l.b16 %v3586
    %v5603 = vunpack.c.l.b16 %v3587
    %v5604 = vunpack.c.l.b16 %v3588
    %v5605 = vunpack.c.l.b16 %v3589
    %v5606 = vunpack.c.l.b16 %v3590
    %v5607 = vunpack.c.l.b16 %v3591
    %v5608 = vunpack.c.l.b16 %v3592
    %v5609 = vunpack.c.l.b16 %v3593
    %v5610 = vunpack.c.l.b16 %v3594
    %v5611 = vunpack.c.l.b16 %v3595
    %v5612 = vunpack.c.l.b16 %v3596
    %v5613 = vunpack.c.l.b16 %v3597
    %v5614 = vunpack.c.l.b16 %v3598
    %v5615 = vunpack.c.l.b16 %v3599
    %v5616 = vunpack.c.l.b16 %v3600
    %v5617 = vunpack.c.l.b16 %v3601
    %v5618 = vunpack.c.l.b16 %v3602
    %v5619 = vunpack.c.l.b16 %v3603
    %v5620 = vunpack.c.l.b16 %v3604
    %v5621 = vunpack.c.l.b16 %v3605
    %v5622 = vunpack.c.l.b16 %v3606
    %v5623 = vunpack.c.l.b16 %v3607
    %v5624 = vunpack.c.l.b16 %v3608
    %v5625 = vunpack.c.l.b16 %v3609
    %v5626 = vunpack.c.l.b16 %v3610
    %v5627 = vunpack.c.l.b16 %v3611
    %v5628 = vunpack.c.l.b16 %v3612
    %v5629 = vunpack.c.l.b16 %v3613
    %v5630 = vunpack.c.l.b16 %v3614
    %v5631 = vunpack.c.l.b16 %v3615
    %v5632 = vunpack.c.l.b16 %v3616
    %v5633 = vunpack.c.l.b16 %v3617
    %v5634 = vunpack.c.l.b16 %v3618
    %v5635 = vunpack.c.l.b16 %v3619
    %v5636 = vunpack.c.l.b16 %v3620
    %v5637 = vunpack.c.l.b16 %v3621
    %v5638 = vunpack.c.l.b16 %v3622
    %v5639 = vunpack.c.l.b16 %v3623
    %v5640 = vunpack.c.l.b16 %v3624
    %v5641 = vunpack.c.l.b16 %v3625
    %v5642 = vunpack.c.l.b16 %v3626
    %v5643 = vunpack.c.l.b16 %v3627
    %v5644 = vunpack.c.l.b16 %v3628
    %v5645 = vunpack.c.l.b16 %v3629
    %v5646 = vunpack.c.l.b16 %v3630
    %v5647 = vunpack.c.l.b16 %v3631
    %v5648 = vunpack.c.l.b16 %v3632
    %v5649 = vunpack.c.l.b16 %v3633
    %v5650 = vunpack.c.l.b16 %v3634
    %v5651 = vunpack.c.l.b16 %v3635
    %v5652 = vunpack.c.l.b16 %v3636
    %v5653 = vunpack.c.l.b16 %v3637
    %v5654 = vunpack.c.l.b16 %v3638
    %v5655 = vunpack.c.l.b16 %v3639
    %v5656 = vunpack.c.l.b16 %v3640
    %v5657 = vunpack.c.l.b16 %v3641
    %v5658 = vunpack.c.l.b16 %v3642
    %v5659 = vunpack.c.l.b16 %v3643
    %v5660 = vunpack.c.l.b16 %v3644
    %v5661 = vunpack.c.l.b16 %v3645
    %v5662 = vunpack.c.l.b16 %v3646
    %v5663 = vunpack.c.l.b16 %v3647
    %v5664 = vunpack.c.l.b16 %v3648
    %v5665 = vunpack.c.l.b16 %v3649
    %v5666 = vunpack.c.l.b16 %v3650
    %v5667 = vunpack.c.l.b16 %v3651
    %v5668 = vunpack.c.l.b16 %v3652
    %v5669 = vunpack.c.l.b16 %v3653
    %v5670 = vunpack.c.l.b16 %v3654
    %v5671 = vunpack.c.l.b16 %v3655
    %v5672 = vunpack.c.l.b16 %v3656
    %v5673 = vunpack.c.l.b16 %v3657
    %v5674 = vunpack.c.l.b16 %v3658
    %v5675 = vunpack.c.l.b16 %v3659
    %v5676 = vunpack.c.l.b16 %v3660
    %v5677 = vunpack.c.l.b16 %v3661
    %v5678 = vunpack.c.l.b16 %v3662
    %v5679 = vunpack.c.l.b16 %v3663
    %v5680 = vunpack.c.l.b16 %v3664
    %v5681 = vunpack.c.l.b16 %v3665
    %v5682 = vunpack.c.l.b16 %v3666
    %v5683 = vunpack.c.l.b16 %v3667
    %v5684 = vunpack.c.l.b16 %v3668
    %v5685 = vunpack.c.l.b16 %v3669
    %v5686 = vunpack.c.l.b16 %v3670
    %v5687 = vunpack.c.l.b16 %v3671
    %v5688 = vunpack.c.l.b16 %v3672
    %v5689 = vunpack.c.l.b16 %v3673
    %v5690 = vunpack.c.l.b16 %v3674
    %v5691 = vunpack.c.l.b16 %v3675
    %v5692 = vunpack.c.l.b16 %v3676
    %v5693 = vunpack.c.l.b16 %v3677
    %v5694 = vunpack.c.l.b16 %v3678
    %v5695 = vunpack.c.l.b16 %v3679
    %v5696 = vunpack.c.l.b16 %v3680
    %v5697 = vunpack.c.l.b16 %v3681
    %v5698 = vunpack.c.l.b16 %v3682
    %v5699 = vunpack.c.l.b16 %v3683
    %v5700 = vunpack.c.l.b16 %v3684
    %v5701 = vunpack.c.l.b16 %v3685
    %v5702 = vunpack.c.l.b16 %v3686
    %v5703 = vunpack.c.l.b16 %v3687
    %v5704 = vunpack.c.l.b16 %v3688
    %v5705 = vunpack.c.l.b16 %v3689
    %v5706 = vunpack.c.l.b16 %v3690
    %v5707 = vunpack.c.l.b16 %v3691
    %v5708 = vunpack.c.l.b16 %v3692
    %v5709 = vunpack.c.l.b16 %v3693
    %v5710 = vunpack.c.l.b16 %v3694
    %v5711 = vunpack.c.l.b16 %v3695
    %v5712 = vunpack.c.l.b16 %v3696
    %v5713 = vunpack.c.l.b16 %v3697
    %v5714 = vunpack.c.l.b16 %v3698
    %v5715 = vunpack.c.l.b16 %v3699
    %v5716 = vunpack.c.l.b16 %v3700
    %v5717 = vunpack.c.l.b16 %v3701
    %v5718 = vunpack.c.l.b16 %v3702
    %v5719 = vunpack.c.l.b16 %v3703
    %v5720 = vunpack.c.l.b16 %v3704
    %v5721 = vunpack.c.l.b16 %v3705
    %v5722 = vunpack.c.l.b16 %v3706
    %v5723 = vunpack.c.l.b16 %v3707
    %v5724 = vunpack.c.l.b16 %v3708
    %v5725 = vunpack.c.l.b16 %v3709
    %v5726 = vunpack.c.l.b16 %v3710
    %v5727 = vunpack.c.l.b16 %v3711
    %v5728 = vunpack.c.l.b16 %v3712
    %v5729 = vunpack.c.l.b16 %v3713
    %v5730 = vunpack.c.l.b16 %v3714
    %v5731 = vunpack.c.l.b16 %v3715
    %v5732 = vunpack.c.l.b16 %v3716
    %v5733 = vunpack.c.l.b16 %v3717
    %v5734 = vunpack.c.l.b16 %v3718
    %v5735 = vunpack.c.l.b16 %v3719
    %v5736 = vunpack.c.l.b16 %v3720
    %v5737 = vunpack.c.l.b16 %v3721
    %v5738 = vunpack.c.l.b16 %v3722
    %v5739 = vunpack.c.l.b16 %v3723
    %v5740 = vunpack.c.l.b16 %v3724
    %v5741 = vunpack.c.l.b16 %v3725
    %v5742 = vunpack.c.l.b16 %v3726
    %v5743 = vunpack.c.l.b16 %v3727
    %v5744 = vunpack.c.l.b16 %v3728
    %v5745 = vunpack.c.l.b16 %v3729
    %v5746 = vunpack.c.l.b16 %v3730
    %v5747 = vunpack.c.l.b16 %v3731
    %v5748 = vunpack.c.l.b16 %v3732
    %v5749 = vunpack.c.l.b16 %v3733
    %v5750 = vunpack.c.l.b16 %v3734
    %v5751 = vunpack.c.l.b16 %v3735
    %v5752 = vunpack.c.l.b16 %v3736
    %v5753 = vunpack.c.l.b16 %v3737
    %v5754 = vunpack.c.l.b16 %v3738
    %v5755 = vunpack.c.l.b16 %v3739
    %v5756 = vunpack.c.l.b16 %v3740
    %v5757 = vunpack.c.l.b16 %v3741
    %v5758 = vunpack.c.l.b16 %v3742
    %v5759 = vunpack.c.l.b16 %v3743
    %v5760 = vunpack.c.l.b16 %v3744
    %v5761 = vunpack.c.l.b16 %v3745
    %v5762 = vunpack.c.l.b16 %v3746
    %v5763 = vunpack.c.l.b16 %v3747
    %v5764 = vunpack.c.l.b16 %v3748
    %v5765 = vunpack.c.l.b16 %v3749
    %v5766 = vunpack.c.l.b16 %v3750
    %v5767 = vunpack.c.l.b16 %v3751
    %v5768 = vunpack.c.l.b16 %v3752
    %v5769 = vunpack.c.l.b16 %v3753
    %v5770 = vunpack.c.l.b16 %v3754
    %v5771 = vunpack.c.l.b16 %v3755
    %v5772 = vunpack.c.l.b16 %v3756
    %v5773 = vunpack.c.l.b16 %v3757
    %v5774 = vunpack.c.l.b16 %v3758
    %v5775 = vunpack.c.l.b16 %v3759
    %v5776 = vunpack.c.l.b16 %v3760
    %v5777 = vunpack.c.l.b16 %v3761
    %v5778 = vunpack.c.l.b16 %v3762
    %v5779 = vunpack.c.l.b16 %v3763
    %v5780 = vunpack.c.l.b16 %v3764
    %v5781 = vunpack.c.l.b16 %v3765
    %v5782 = vunpack.c.l.b16 %v3766
    %v5783 = vunpack.c.l.b16 %v3767
    %v5784 = vunpack.c.l.b16 %v3768
    %v5785 = vunpack.c.l.b16 %v3769
    %v5786 = vunpack.c.l.b16 %v3770
    %v5787 = vunpack.c.l.b16 %v3771
    %v5788 = vunpack.c.l.b16 %v3772
    %v5789 = vunpack.c.l.b16 %v3773
    %v5790 = vunpack.c.l.b16 %v3774
    %v5791 = vunpack.c.l.b16 %v3775
    %v5792 = vunpack.c.l.b16 %v3776
    %v5793 = vunpack.c.l.b16 %v3777
    %v5794 = vunpack.c.l.b16 %v3778
    %v5795 = vunpack.c.l.b16 %v3779
    %v5796 = vunpack.c.l.b16 %v3780
    %v5797 = vunpack.c.l.b16 %v3781
    %v5798 = vunpack.c.l.b16 %v3782
    %v5799 = vunpack.c.l.b16 %v3783
    %v5800 = vunpack.c.l.b16 %v3784
    %v5801 = vunpack.c.l.b16 %v3785
    %v5802 = vunpack.c.l.b16 %v3786
    %v5803 = vunpack.c.l.b16 %v3787
    %v5804 = vunpack.c.l.b16 %v3788
    %v5805 = vunpack.c.l.b16 %v3789
    %v5806 = vunpack.c.l.b16 %v3790
    %v5807 = vunpack.c.l.b16 %v3791
    %v5808 = vunpack.c.l.b16 %v3792
    %v5809 = vunpack.c.l.b16 %v3793
    %v5810 = vunpack.c.l.b16 %v3794
    %v5811 = vunpack.c.l.b16 %v3795
    %v5812 = vunpack.c.l.b16 %v3796
    %v5813 = vunpack.c.l.b16 %v3797
    %v5814 = vunpack.c.l.b16 %v3798
    %v5815 = vunpack.c.l.b16 %v3799
    %v5816 = vunpack.c.l.b16 %v3800
    %v5817 = vunpack.c.l.b16 %v3801
    %v5818 = vunpack.c.l.b16 %v3802
    %v5819 = vunpack.c.l.b16 %v3803
    %v5820 = vunpack.c.l.b16 %v3804
    %v5821 = vunpack.c.l.b16 %v3805
    %v5822 = vunpack.c.l.b16 %v3806
    %v5823 = vunpack.c.l.b16 %v3807
    %v5824 = vunpack.c.l.b16 %v3808
    %v5825 = vunpack.c.l.b16 %v3809
    %v5826 = vunpack.c.l.b16 %v3810
    %v5827 = vunpack.c.l.b16 %v3811
    %v5828 = vunpack.c.l.b16 %v3812
    %v5829 = vunpack.c.l.b16 %v3813
    %v5830 = vunpack.c.l.b16 %v3814
    %v5831 = vunpack.c.l.b16 %v3815
    %v5832 = vunpack.c.l.b16 %v3816
    %v5833 = vunpack.c.l.b16 %v3817
    %v5834 = vunpack.c.l.b16 %v3818
    %v5835 = vunpack.c.l.b16 %v3819
    %v5836 = vunpack.c.l.b16 %v3820
    %v5837 = vunpack.c.l.b16 %v3821
    %v5838 = vunpack.c.l.b16 %v3822
    %v5839 = vunpack.c.l.b16 %v3823
    %v5840 = vunpack.c.l.b16 %v3824
    %v5841 = vunpack.c.l.b16 %v3825
    %v5842 = vunpack.c.l.b16 %v3826
    %v5843 = vunpack.c.l.b16 %v3827
    %v5844 = vunpack.c.l.b16 %v3828
    %v5845 = vunpack.c.l.b16 %v3829
    %v5846 = vunpack.c.l.b16 %v3830
    %v5847 = vunpack.c.l.b16 %v3831
    %v5848 = vunpack.c.l.b16 %v3832
    %v5849 = vunpack.c.l.b16 %v3833
    %v5850 = vunpack.c.l.b16 %v3834
    %v5851 = vunpack.c.l.b16 %v3835
    %v5852 = vunpack.c.l.b16 %v3836
    %v5853 = vunpack.c.l.b16 %v3837
    %v5854 = vunpack.c.l.b16 %v3838
    %v5855 = vunpack.c.l.b16 %v3839
    %v5856 = vunpack.c.l.b16 %v3840
    %v5857 = vunpack.c.l.b16 %v3841
    %v5858 = vunpack.c.l.b16 %v3842
    %v5859 = vunpack.c.l.b16 %v3843
    %v5860 = vunpack.c.l.b16 %v3844
    %v5861 = vunpack.c.l.b16 %v3845
    %v5862 = vunpack.c.l.b16 %v3846
    %v5863 = vunpack.c.l.b16 %v3847
    %v5864 = vunpack.c.l.b16 %v3848
    %v5865 = vunpack.c.l.b16 %v3849
    %v5866 = vunpack.c.l.b16 %v3850
    %v5867 = vunpack.c.l.b16 %v3851
    %v5868 = vunpack.c.l.b16 %v3852
    %v5869 = vunpack.c.l.b16 %v3853
    %v5870 = vunpack.c.l.b16 %v3854
    %v5871 = vunpack.c.l.b16 %v3855
    %v5872 = vunpack.c.l.b16 %v3856
    %v5873 = vunpack.c.l.b16 %v3857
    %v5874 = vunpack.c.l.b16 %v3858
    %v5875 = vunpack.c.l.b16 %v3859
    %v5876 = vunpack.c.l.b16 %v3860
    %v5877 = vunpack.c.l.b16 %v3861
    %v5878 = vunpack.c.l.b16 %v3862
    %v5879 = vunpack.c.l.b16 %v3863
    %v5880 = vunpack.c.l.b16 %v3864
    %v5881 = vunpack.c.l.b16 %v3865
    %v5882 = vunpack.c.l.b16 %v3866
    %v5883 = vunpack.c.l.b16 %v3867
    %v5884 = vunpack.c.l.b16 %v3868
    %v5885 = vunpack.c.l.b16 %v3869
    %v5886 = vunpack.c.l.b16 %v3870
    %v5887 = vunpack.c.l.b16 %v3871
    %v5888 = vunpack.c.l.b16 %v3872
    %v5889 = vunpack.c.l.b16 %v3873
    %v5890 = vunpack.c.l.b16 %v3874
    %v5891 = vunpack.c.l.b16 %v3875
    %v5892 = vunpack.c.l.b16 %v3876
    %v5893 = vunpack.c.l.b16 %v3877
    %v5894 = vunpack.c.l.b16 %v3878
    %v5895 = vunpack.c.l.b16 %v3879
    %v5896 = vunpack.c.l.b16 %v3880
    %v5897 = vunpack.c.l.b16 %v3881
    %v5898 = vunpack.c.l.b16 %v3882
    %v5899 = vunpack.c.l.b16 %v3883
    %v5900 = vunpack.c.l.b16 %v3884
    %v5901 = vunpack.c.l.b16 %v3885
    %v5902 = vunpack.c.l.b16 %v3886
    %v5903 = vunpack.c.l.b16 %v3887
    %v5904 = vunpack.c.l.b16 %v3888
    %v5905 = vunpack.c.l.b16 %v3889
    %v5906 = vunpack.c.l.b16 %v3890
    %v5907 = vunpack.c.l.b16 %v3891
    %v5908 = vunpack.c.l.b16 %v3892
    %v5909 = vunpack.c.l.b16 %v3893
    %v5910 = vunpack.c.l.b16 %v3894
    %v5911 = vunpack.c.l.b16 %v3895
    %v5912 = vunpack.c.l.b16 %v3896
    %v5913 = vunpack.c.l.b16 %v3897
    %v5914 = vpack.c.b16 %v4907, %v4906
    %v5915 = vpack.c.b16 %v4909, %v4908
    %v5916 = vpack.c.b16 %v4911, %v4910
    %v5917 = vpack.c.b16 %v4913, %v4912
    %v5918 = vpack.c.b16 %v4915, %v4914
    %v5919 = vpack.c.b16 %v4917, %v4916
    %v5920 = vpack.c.b16 %v4919, %v4918
    %v5921 = vpack.c.b16 %v4921, %v4920
    %v5922 = vpack.c.b16 %v4923, %v4922
    %v5923 = vpack.c.b16 %v4925, %v4924
    %v5924 = vpack.c.b16 %v4927, %v4926
    %v5925 = vpack.c.b16 %v4929, %v4928
    %v5926 = vpack.c.b16 %v4931, %v4930
    %v5927 = vpack.c.b16 %v4933, %v4932
    %v5928 = vpack.c.b16 %v4935, %v4934
    %v5929 = vpack.c.b16 %v4937, %v4936
    %v5930 = vpack.c.b16 %v4939, %v4938
    %v5931 = vpack.c.b16 %v4941, %v4940
    %v5932 = vpack.c.b16 %v4943, %v4942
    %v5933 = vpack.c.b16 %v4945, %v4944
    %v5934 = vpack.c.b16 %v4947, %v4946
    %v5935 = vpack.c.b16 %v4949, %v4948
    %v5936 = vpack.c.b16 %v4951, %v4950
    %v5937 = vpack.c.b16 %v4953, %v4952
    %v5938 = vpack.c.b16 %v4955, %v4954
    %v5939 = vpack.c.b16 %v4957, %v4956
    %v5940 = vpack.c.b16 %v4959, %v4958
    %v5941 = vpack.c.b16 %v4961, %v4960
    %v5942 = vpack.c.b16 %v4963, %v4962
    %v5943 = vpack.c.b16 %v4965, %v4964
    %v5944 = vpack.c.b16 %v4967, %v4966
    %v5945 = vpack.c.b16 %v4969, %v4968
    %v5946 = vpack.c.b16 %v4971, %v4970
    %v5947 = vpack.c.b16 %v4973, %v4972
    %v5948 = vpack.c.b16 %v4975, %v4974
    %v5949 = vpack.c.b16 %v4977, %v4976
    %v5950 = vpack.c.b16 %v4979, %v4978
    %v5951 = vpack.c.b16 %v4981, %v4980
    %v5952 = vpack.c.b16 %v4983, %v4982
    %v5953 = vpack.c.b16 %v4985, %v4984
    %v5954 = vpack.c.b16 %v4987, %v4986
    %v5955 = vpack.c.b16 %v4989, %v4988
    %v5956 = vpack.c.b16 %v4991, %v4990
    %v5957 = vpack.c.b16 %v4993, %v4992
    %v5958 = vpack.c.b16 %v4995, %v4994
    %v5959 = vpack.c.b16 %v4997, %v4996
    %v5960 = vpack.c.b16 %v4999, %v4998
    %v5961 = vpack.c.b16 %v5001, %v5000
    %v5962 = vpack.c.b16 %v5003, %v5002
    %v5963 = vpack.c.b16 %v5005, %v5004
    %v5964 = vpack.c.b16 %v5007, %v5006
    %v5965 = vpack.c.b16 %v5009, %v5008
    %v5966 = vpack.c.b16 %v5011, %v5010
    %v5967 = vpack.c.b16 %v5013, %v5012
    %v5968 = vpack.c.b16 %v5015, %v5014
    %v5969 = vpack.c.b16 %v5017, %v5016
    %v5970 = vpack.c.b16 %v5019, %v5018
    %v5971 = vpack.c.b16 %v5021, %v5020
    %v5972 = vpack.c.b16 %v5023, %v5022
    %v5973 = vpack.c.b16 %v5025, %v5024
    %v5974 = vpack.c.b16 %v5027, %v5026
    %v5975 = vpack.c.b16 %v5029, %v5028
    %v5976 = vpack.c.b16 %v5031, %v5030
    %v5977 = vpack.c.b16 %v5033, %v5032
    %v5978 = vpack.c.b16 %v5035, %v5034
    %v5979 = vpack.c.b16 %v5037, %v5036
    %v5980 = vpack.c.b16 %v5039, %v5038
    %v5981 = vpack.c.b16 %v5041, %v5040
    %v5982 = vpack.c.b16 %v5043, %v5042
    %v5983 = vpack.c.b16 %v5045, %v5044
    %v5984 = vpack.c.b16 %v5047, %v5046
    %v5985 = vpack.c.b16 %v5049, %v5048
    %v5986 = vpack.c.b16 %v5051, %v5050
    %v5987 = vpack.c.b16 %v5053, %v5052
    %v5988 = vpack.c.b16 %v5055, %v5054
    %v5989 = vpack.c.b16 %v5057, %v5056
    %v5990 = vpack.c.b16 %v5059, %v5058
    %v5991 = vpack.c.b16 %v5061, %v5060
    %v5992 = vpack.c.b16 %v5063, %v5062
    %v5993 = vpack.c.b16 %v5065, %v5064
    %v5994 = vpack.c.b16 %v5067, %v5066
    %v5995 = vpack.c.b16 %v5069, %v5068
    %v5996 = vpack.c.b16 %v5071, %v5070
    %v5997 = vpack.c.b16 %v5073, %v5072
    %v5998 = vpack.c.b16 %v5075, %v5074
    %v5999 = vpack.c.b16 %v5077, %v5076
    %v6000 = vpack.c.b16 %v5079, %v5078
    %v6001 = vpack.c.b16 %v5081, %v5080
    %v6002 = vpack.c.b16 %v5083, %v5082
    %v6003 = vpack.c.b16 %v5085, %v5084
    %v6004 = vpack.c.b16 %v5087, %v5086
    %v6005 = vpack.c.b16 %v5089, %v5088
    %v6006 = vpack.c.b16 %v5091, %v5090
    %v6007 = vpack.c.b16 %v5093, %v5092
    %v6008 = vpack.c.b16 %v5095, %v5094
    %v6009 = vpack.c.b16 %v5097, %v5096
    %v6010 = vpack.c.b16 %v5099, %v5098
    %v6011 = vpack.c.b16 %v5101, %v5100
    %v6012 = vpack.c.b16 %v5103, %v5102
    %v6013 = vpack.c.b16 %v5105, %v5104
    %v6014 = vpack.c.b16 %v5107, %v5106
    %v6015 = vpack.c.b16 %v5109, %v5108
    %v6016 = vpack.c.b16 %v5111, %v5110
    %v6017 = vpack.c.b16 %v5113, %v5112
    %v6018 = vpack.c.b16 %v5115, %v5114
    %v6019 = vpack.c.b16 %v5117, %v5116
    %v6020 = vpack.c.b16 %v5119, %v5118
    %v6021 = vpack.c.b16 %v5121, %v5120
    %v6022 = vpack.c.b16 %v5123, %v5122
    %v6023 = vpack.c.b16 %v5125, %v5124
    %v6024 = vpack.c.b16 %v5127, %v5126
    %v6025 = vpack.c.b16 %v5129, %v5128
    %v6026 = vpack.c.b16 %v5131, %v5130
    %v6027 = vpack.c.b16 %v5133, %v5132
    %v6028 = vpack.c.b16 %v5135, %v5134
    %v6029 = vpack.c.b16 %v5137, %v5136
    %v6030 = vpack.c.b16 %v5139, %v5138
    %v6031 = vpack.c.b16 %v5141, %v5140
    %v6032 = vpack.c.b16 %v5143, %v5142
    %v6033 = vpack.c.b16 %v5145, %v5144
    %v6034 = vpack.c.b16 %v5147, %v5146
    %v6035 = vpack.c.b16 %v5149, %v5148
    %v6036 = vpack.c.b16 %v5151, %v5150
    %v6037 = vpack.c.b16 %v5153, %v5152
    %v6038 = vpack.c.b16 %v5155, %v5154
    %v6039 = vpack.c.b16 %v5157, %v5156
    %v6040 = vpack.c.b16 %v5159, %v5158
    %v6041 = vpack.c.b16 %v5161, %v5160
    %v6042 = vpack.c.b16 %v5163, %v5162
    %v6043 = vpack.c.b16 %v5165, %v5164
    %v6044 = vpack.c.b16 %v5167, %v5166
    %v6045 = vpack.c.b16 %v5169, %v5168
    %v6046 = vpack.c.b16 %v5171, %v5170
    %v6047 = vpack.c.b16 %v5173, %v5172
    %v6048 = vpack.c.b16 %v5175, %v5174
    %v6049 = vpack.c.b16 %v5177, %v5176
    %v6050 = vpack.c.b16 %v5179, %v5178
    %v6051 = vpack.c.b16 %v5181, %v5180
    %v6052 = vpack.c.b16 %v5183, %v5182
    %v6053 = vpack.c.b16 %v5185, %v5184
    %v6054 = vpack.c.b16 %v5187, %v5186
    %v6055 = vpack.c.b16 %v5189, %v5188
    %v6056 = vpack.c.b16 %v5191, %v5190
    %v6057 = vpack.c.b16 %v5193, %v5192
    %v6058 = vpack.c.b16 %v5195, %v5194
    %v6059 = vpack.c.b16 %v5197, %v5196
    %v6060 = vpack.c.b16 %v5199, %v5198
    %v6061 = vpack.c.b16 %v5201, %v5200
    %v6062 = vpack.c.b16 %v5203, %v5202
    %v6063 = vpack.c.b16 %v5205, %v5204
    %v6064 = vpack.c.b16 %v5207, %v5206
    %v6065 = vpack.c.b16 %v5209, %v5208
    %v6066 = vpack.c.b16 %v5211, %v5210
    %v6067 = vpack.c.b16 %v5213, %v5212
    %v6068 = vpack.c.b16 %v5215, %v5214
    %v6069 = vpack.c.b16 %v5217, %v5216
    %v6070 = vpack.c.b16 %v5219, %v5218
    %v6071 = vpack.c.b16 %v5221, %v5220
    %v6072 = vpack.c.b16 %v5223, %v5222
    %v6073 = vpack.c.b16 %v5225, %v5224
    %v6074 = vpack.c.b16 %v5227, %v5226
    %v6075 = vpack.c.b16 %v5229, %v5228
    %v6076 = vpack.c.b16 %v5231, %v5230
    %v6077 = vpack.c.b16 %v5233, %v5232
    %v6078 = vpack.c.b16 %v5235, %v5234
    %v6079 = vpack.c.b16 %v5237, %v5236
    %v6080 = vpack.c.b16 %v5239, %v5238
    %v6081 = vpack.c.b16 %v5241, %v5240
    %v6082 = vpack.c.b16 %v5243, %v5242
    %v6083 = vpack.c.b16 %v5245, %v5244
    %v6084 = vpack.c.b16 %v5247, %v5246
    %v6085 = vpack.c.b16 %v5249, %v5248
    %v6086 = vpack.c.b16 %v5251, %v5250
    %v6087 = vpack.c.b16 %v5253, %v5252
    %v6088 = vpack.c.b16 %v5255, %v5254
    %v6089 = vpack.c.b16 %v5257, %v5256
    %v6090 = vpack.c.b16 %v5259, %v5258
    %v6091 = vpack.c.b16 %v5261, %v5260
    %v6092 = vpack.c.b16 %v5263, %v5262
    %v6093 = vpack.c.b16 %v5265, %v5264
    %v6094 = vpack.c.b16 %v5267, %v5266
    %v6095 = vpack.c.b16 %v5269, %v5268
    %v6096 = vpack.c.b16 %v5271, %v5270
    %v6097 = vpack.c.b16 %v5273, %v5272
    %v6098 = vpack.c.b16 %v5275, %v5274
    %v6099 = vpack.c.b16 %v5277, %v5276
    %v6100 = vpack.c.b16 %v5279, %v5278
    %v6101 = vpack.c.b16 %v5281, %v5280
    %v6102 = vpack.c.b16 %v5283, %v5282
    %v6103 = vpack.c.b16 %v5285, %v5284
    %v6104 = vpack.c.b16 %v5287, %v5286
    %v6105 = vpack.c.b16 %v5289, %v5288
    %v6106 = vpack.c.b16 %v5291, %v5290
    %v6107 = vpack.c.b16 %v5293, %v5292
    %v6108 = vpack.c.b16 %v5295, %v5294
    %v6109 = vpack.c.b16 %v5297, %v5296
    %v6110 = vpack.c.b16 %v5299, %v5298
    %v6111 = vpack.c.b16 %v5301, %v5300
    %v6112 = vpack.c.b16 %v5303, %v5302
    %v6113 = vpack.c.b16 %v5305, %v5304
    %v6114 = vpack.c.b16 %v5307, %v5306
    %v6115 = vpack.c.b16 %v5309, %v5308
    %v6116 = vpack.c.b16 %v5311, %v5310
    %v6117 = vpack.c.b16 %v5313, %v5312
    %v6118 = vpack.c.b16 %v5315, %v5314
    %v6119 = vpack.c.b16 %v5317, %v5316
    %v6120 = vpack.c.b16 %v5319, %v5318
    %v6121 = vpack.c.b16 %v5321, %v5320
    %v6122 = vpack.c.b16 %v5323, %v5322
    %v6123 = vpack.c.b16 %v5325, %v5324
    %v6124 = vpack.c.b16 %v5327, %v5326
    %v6125 = vpack.c.b16 %v5329, %v5328
    %v6126 = vpack.c.b16 %v5331, %v5330
    %v6127 = vpack.c.b16 %v5333, %v5332
    %v6128 = vpack.c.b16 %v5335, %v5334
    %v6129 = vpack.c.b16 %v5337, %v5336
    %v6130 = vpack.c.b16 %v5339, %v5338
    %v6131 = vpack.c.b16 %v5341, %v5340
    %v6132 = vpack.c.b16 %v5343, %v5342
    %v6133 = vpack.c.b16 %v5345, %v5344
    %v6134 = vpack.c.b16 %v5347, %v5346
    %v6135 = vpack.c.b16 %v5349, %v5348
    %v6136 = vpack.c.b16 %v5351, %v5350
    %v6137 = vpack.c.b16 %v5353, %v5352
    %v6138 = vpack.c.b16 %v5355, %v5354
    %v6139 = vpack.c.b16 %v5357, %v5356
    %v6140 = vpack.c.b16 %v5359, %v5358
    %v6141 = vpack.c.b16 %v5361, %v5360
    %v6142 = vpack.c.b16 %v5363, %v5362
    %v6143 = vpack.c.b16 %v5365, %v5364
    %v6144 = vpack.c.b16 %v5367, %v5366
    %v6145 = vpack.c.b16 %v5369, %v5368
    %v6146 = vpack.c.b16 %v5371, %v5370
    %v6147 = vpack.c.b16 %v5373, %v5372
    %v6148 = vpack.c.b16 %v5375, %v5374
    %v6149 = vpack.c.b16 %v5377, %v5376
    %v6150 = vpack.c.b16 %v5379, %v5378
    %v6151 = vpack.c.b16 %v5381, %v5380
    %v6152 = vpack.c.b16 %v5383, %v5382
    %v6153 = vpack.c.b16 %v5385, %v5384
    %v6154 = vpack.c.b16 %v5387, %v5386
    %v6155 = vpack.c.b16 %v5389, %v5388
    %v6156 = vpack.c.b16 %v5391, %v5390
    %v6157 = vpack.c.b16 %v5393, %v5392
    %v6158 = vpack.c.b16 %v5395, %v5394
    %v6159 = vpack.c.b16 %v5397, %v5396
    %v6160 = vpack.c.b16 %v5399, %v5398
    %v6161 = vpack.c.b16 %v5401, %v5400
    %v6162 = vpack.c.b16 %v5403, %v5402
    %v6163 = vpack.c.b16 %v5405, %v5404
    %v6164 = vpack.c.b16 %v5407, %v5406
    %v6165 = vpack.c.b16 %v5409, %v5408
    %v6166 = vpack.c.b16 %v5411, %v5410
    %v6167 = vpack.c.b16 %v5413, %v5412
    %v6168 = vpack.c.b16 %v5415, %v5414
    %v6169 = vpack.c.b16 %v5417, %v5416
    %v6170 = vpack.c.b16 %v5419, %v5418
    %v6171 = vpack.c.b16 %v5421, %v5420
    %v6172 = vpack.c.b16 %v5423, %v5422
    %v6173 = vpack.c.b16 %v5425, %v5424
    %v6174 = vpack.c.b16 %v5427, %v5426
    %v6175 = vpack.c.b16 %v5429, %v5428
    %v6176 = vpack.c.b16 %v5431, %v5430
    %v6177 = vpack.c.b16 %v5433, %v5432
    %v6178 = vpack.c.b16 %v5435, %v5434
    %v6179 = vpack.c.b16 %v5437, %v5436
    %v6180 = vpack.c.b16 %v5439, %v5438
    %v6181 = vpack.c.b16 %v5441, %v5440
    %v6182 = vpack.c.b16 %v5443, %v5442
    %v6183 = vpack.c.b16 %v5445, %v5444
    %v6184 = vpack.c.b16 %v5447, %v5446
    %v6185 = vpack.c.b16 %v5449, %v5448
    %v6186 = vpack.c.b16 %v5451, %v5450
    %v6187 = vpack.c.b16 %v5453, %v5452
    %v6188 = vpack.c.b16 %v5455, %v5454
    %v6189 = vpack.c.b16 %v5457, %v5456
    %v6190 = vpack.c.b16 %v5459, %v5458
    %v6191 = vpack.c.b16 %v5461, %v5460
    %v6192 = vpack.c.b16 %v5463, %v5462
    %v6193 = vpack.c.b16 %v5465, %v5464
    %v6194 = vpack.c.b16 %v5467, %v5466
    %v6195 = vpack.c.b16 %v5469, %v5468
    %v6196 = vpack.c.b16 %v5471, %v5470
    %v6197 = vpack.c.b16 %v5473, %v5472
    %v6198 = vpack.c.b16 %v5475, %v5474
    %v6199 = vpack.c.b16 %v5477, %v5476
    %v6200 = vpack.c.b16 %v5479, %v5478
    %v6201 = vpack.c.b16 %v5481, %v5480
    %v6202 = vpack.c.b16 %v5483, %v5482
    %v6203 = vpack.c.b16 %v5485, %v5484
    %v6204 = vpack.c.b16 %v5487, %v5486
    %v6205 = vpack.c.b16 %v5489, %v5488
    %v6206 = vpack.c.b16 %v5491, %v5490
    %v6207 = vpack.c.b16 %v5493, %v5492
    %v6208 = vpack.c.b16 %v5495, %v5494
    %v6209 = vpack.c.b16 %v5497, %v5496
    %v6210 = vpack.c.b16 %v5499, %v5498
    %v6211 = vpack.c.b16 %v5501, %v5500
    %v6212 = vpack.c.b16 %v5503, %v5502
    %v6213 = vpack.c.b16 %v5505, %v5504
    %v6214 = vpack.c.b16 %v5507, %v5506
    %v6215 = vpack.c.b16 %v5509, %v5508
    %v6216 = vpack.c.b16 %v5511, %v5510
    %v6217 = vpack.c.b16 %v5513, %v5512
    %v6218 = vpack.c.b16 %v5515, %v5514
    %v6219 = vpack.c.b16 %v5517, %v5516
    %v6220 = vpack.c.b16 %v5519, %v5518
    %v6221 = vpack.c.b16 %v5521, %v5520
    %v6222 = vpack.c.b16 %v5523, %v5522
    %v6223 = vpack.c.b16 %v5525, %v5524
    %v6224 = vpack.c.b16 %v5527, %v5526
    %v6225 = vpack.c.b16 %v5529, %v5528
    %v6226 = vpack.c.b16 %v5531, %v5530
    %v6227 = vpack.c.b16 %v5533, %v5532
    %v6228 = vpack.c.b16 %v5535, %v5534
    %v6229 = vpack.c.b16 %v5537, %v5536
    %v6230 = vpack.c.b16 %v5539, %v5538
    %v6231 = vpack.c.b16 %v5541, %v5540
    %v6232 = vpack.c.b16 %v5543, %v5542
    %v6233 = vpack.c.b16 %v5545, %v5544
    %v6234 = vpack.c.b16 %v5547, %v5546
    %v6235 = vpack.c.b16 %v5549, %v5548
    %v6236 = vpack.c.b16 %v5551, %v5550
    %v6237 = vpack.c.b16 %v5553, %v5552
    %v6238 = vpack.c.b16 %v5555, %v5554
    %v6239 = vpack.c.b16 %v5557, %v5556
    %v6240 = vpack.c.b16 %v5559, %v5558
    %v6241 = vpack.c.b16 %v5561, %v5560
    %v6242 = vpack.c.b16 %v5563, %v5562
    %v6243 = vpack.c.b16 %v5565, %v5564
    %v6244 = vpack.c.b16 %v5567, %v5566
    %v6245 = vpack.c.b16 %v5569, %v5568
    %v6246 = vpack.c.b16 %v5571, %v5570
    %v6247 = vpack.c.b16 %v5573, %v5572
    %v6248 = vpack.c.b16 %v5575, %v5574
    %v6249 = vpack.c.b16 %v5577, %v5576
    %v6250 = vpack.c.b16 %v5579, %v5578
    %v6251 = vpack.c.b16 %v5581, %v5580
    %v6252 = vpack.c.b16 %v5583, %v5582
    %v6253 = vpack.c.b16 %v5585, %v5584
    %v6254 = vpack.c.b16 %v5587, %v5586
    %v6255 = vpack.c.b16 %v5589, %v5588
    %v6256 = vpack.c.b16 %v5591, %v5590
    %v6257 = vpack.c.b16 %v5593, %v5592
    %v6258 = vpack.c.b16 %v5595, %v5594
    %v6259 = vpack.c.b16 %v5597, %v5596
    %v6260 = vpack.c.b16 %v5599, %v5598
    %v6261 = vpack.c.b16 %v5601, %v5600
    %v6262 = vpack.c.b16 %v5603, %v5602
    %v6263 = vpack.c.b16 %v5605, %v5604
    %v6264 = vpack.c.b16 %v5607, %v5606
    %v6265 = vpack.c.b16 %v5609, %v5608
    %v6266 = vpack.c.b16 %v5611, %v5610
    %v6267 = vpack.c.b16 %v5613, %v5612
    %v6268 = vpack.c.b16 %v5615, %v5614
    %v6269 = vpack.c.b16 %v5617, %v5616
    %v6270 = vpack.c.b16 %v5619, %v5618
    %v6271 = vpack.c.b16 %v5621, %v5620
    %v6272 = vpack.c.b16 %v5623, %v5622
    %v6273 = vpack.c.b16 %v5625, %v5624
    %v6274 = vpack.c.b16 %v5627, %v5626
    %v6275 = vpack.c.b16 %v5629, %v5628
    %v6276 = vpack.c.b16 %v5631, %v5630
    %v6277 = vpack.c.b16 %v5633, %v5632
    %v6278 = vpack.c.b16 %v5635, %v5634
    %v6279 = vpack.c.b16 %v5637, %v5636
    %v6280 = vpack.c.b16 %v5639, %v5638
    %v6281 = vpack.c.b16 %v5641, %v5640
    %v6282 = vpack.c.b16 %v5643, %v5642
    %v6283 = vpack.c.b16 %v5645, %v5644
    %v6284 = vpack.c.b16 %v5647, %v5646
    %v6285 = vpack.c.b16 %v5649, %v5648
    %v6286 = vpack.c.b16 %v5651, %v5650
    %v6287 = vpack.c.b16 %v5653, %v5652
    %v6288 = vpack.c.b16 %v5655, %v5654
    %v6289 = vpack.c.b16 %v5657, %v5656
    %v6290 = vpack.c.b16 %v5659, %v5658
    %v6291 = vpack.c.b16 %v5661, %v5660
    %v6292 = vpack.c.b16 %v5663, %v5662
    %v6293 = vpack.c.b16 %v5665, %v5664
    %v6294 = vpack.c.b16 %v5667, %v5666
    %v6295 = vpack.c.b16 %v5669, %v5668
    %v6296 = vpack.c.b16 %v5671, %v5670
    %v6297 = vpack.c.b16 %v5673, %v5672
    %v6298 = vpack.c.b16 %v5675, %v5674
    %v6299 = vpack.c.b16 %v5677, %v5676
    %v6300 = vpack.c.b16 %v5679, %v5678
    %v6301 = vpack.c.b16 %v5681, %v5680
    %v6302 = vpack.c.b16 %v5683, %v5682
    %v6303 = vpack.c.b16 %v5685, %v5684
    %v6304 = vpack.c.b16 %v5687, %v5686
    %v6305 = vpack.c.b16 %v5689, %v5688
    %v6306 = vpack.c.b16 %v5691, %v5690
    %v6307 = vpack.c.b16 %v5693, %v5692
    %v6308 = vpack.c.b16 %v5695, %v5694
    %v6309 = vpack.c.b16 %v5697, %v5696
    %v6310 = vpack.c.b16 %v5699, %v5698
    %v6311 = vpack.c.b16 %v5701, %v5700
    %v6312 = vpack.c.b16 %v5703, %v5702
    %v6313 = vpack.c.b16 %v5705, %v5704
    %v6314 = vpack.c.b16 %v5707, %v5706
    %v6315 = vpack.c.b16 %v5709, %v5708
    %v6316 = vpack.c.b16 %v5711, %v5710
    %v6317 = vpack.c.b16 %v5713, %v5712
    %v6318 = vpack.c.b16 %v5715, %v5714
    %v6319 = vpack.c.b16 %v5717, %v5716
    %v6320 = vpack.c.b16 %v5719, %v5718
    %v6321 = vpack.c.b16 %v5721, %v5720
    %v6322 = vpack.c.b16 %v5723, %v5722
    %v6323 = vpack.c.b16 %v5725, %v5724
    %v6324 = vpack.c.b16 %v5727, %v5726
    %v6325 = vpack.c.b16 %v5729, %v5728
    %v6326 = vpack.c.b16 %v5731, %v5730
    %v6327 = vpack.c.b16 %v5733, %v5732
    %v6328 = vpack.c.b16 %v5735, %v5734
    %v6329 = vpack.c.b16 %v5737, %v5736
    %v6330 = vpack.c.b16 %v5739, %v5738
    %v6331 = vpack.c.b16 %v5741, %v5740
    %v6332 = vpack.c.b16 %v5743, %v5742
    %v6333 = vpack.c.b16 %v5745, %v5744
    %v6334 = vpack.c.b16 %v5747, %v5746
    %v6335 = vpack.c.b16 %v5749, %v5748
    %v6336 = vpack.c.b16 %v5751, %v5750
    %v6337 = vpack.c.b16 %v5753, %v5752
    %v6338 = vpack.c.b16 %v5755, %v5754
    %v6339 = vpack.c.b16 %v5757, %v5756
    %v6340 = vpack.c.b16 %v5759, %v5758
    %v6341 = vpack.c.b16 %v5761, %v5760
    %v6342 = vpack.c.b16 %v5763, %v5762
    %v6343 = vpack.c.b16 %v5765, %v5764
    %v6344 = vpack.c.b16 %v5767, %v5766
    %v6345 = vpack.c.b16 %v5769, %v5768
    %v6346 = vpack.c.b16 %v5771, %v5770
    %v6347 = vpack.c.b16 %v5773, %v5772
    %v6348 = vpack.c.b16 %v5775, %v5774
    %v6349 = vpack.c.b16 %v5777, %v5776
    %v6350 = vpack.c.b16 %v5779, %v5778
    %v6351 = vpack.c.b16 %v5781, %v5780
    %v6352 = vpack.c.b16 %v5783, %v5782
    %v6353 = vpack.c.b16 %v5785, %v5784
    %v6354 = vpack.c.b16 %v5787, %v5786
    %v6355 = vpack.c.b16 %v5789, %v5788
    %v6356 = vpack.c.b16 %v5791, %v5790
    %v6357 = vpack.c.b16 %v5793, %v5792
    %v6358 = vpack.c.b16 %v5795, %v5794
    %v6359 = vpack.c.b16 %v5797, %v5796
    %v6360 = vpack.c.b16 %v5799, %v5798
    %v6361 = vpack.c.b16 %v5801, %v5800
    %v6362 = vpack.c.b16 %v5803, %v5802
    %v6363 = vpack.c.b16 %v5805, %v5804
    %v6364 = vpack.c.b16 %v5807, %v5806
    %v6365 = vpack.c.b16 %v5809, %v5808
    %v6366 = vpack.c.b16 %v5811, %v5810
    %v6367 = vpack.c.b16 %v5813, %v5812
    %v6368 = vpack.c.b16 %v5815, %v5814
    %v6369 = vpack.c.b16 %v5817, %v5816
    %v6370 = vpack.c.b16 %v5819, %v5818
    %v6371 = vpack.c.b16 %v5821, %v5820
    %v6372 = vpack.c.b16 %v5823, %v5822
    %v6373 = vpack.c.b16 %v5825, %v5824
    %v6374 = vpack.c.b16 %v5827, %v5826
    %v6375 = vpack.c.b16 %v5829, %v5828
    %v6376 = vpack.c.b16 %v5831, %v5830
    %v6377 = vpack.c.b16 %v5833, %v5832
    %v6378 = vpack.c.b16 %v5835, %v5834
    %v6379 = vpack.c.b16 %v5837, %v5836
    %v6380 = vpack.c.b16 %v5839, %v5838
    %v6381 = vpack.c.b16 %v5841, %v5840
    %v6382 = vpack.c.b16 %v5843, %v5842
    %v6383 = vpack.c.b16 %v5845, %v5844
    %v6384 = vpack.c.b16 %v5847, %v5846
    %v6385 = vpack.c.b16 %v5849, %v5848
    %v6386 = vpack.c.b16 %v5851, %v5850
    %v6387 = vpack.c.b16 %v5853, %v5852
    %v6388 = vpack.c.b16 %v5855, %v5854
    %v6389 = vpack.c.b16 %v5857, %v5856
    %v6390 = vpack.c.b16 %v5859, %v5858
    %v6391 = vpack.c.b16 %v5861, %v5860
    %v6392 = vpack.c.b16 %v5863, %v5862
    %v6393 = vpack.c.b16 %v5865, %v5864
    %v6394 = vpack.c.b16 %v5867, %v5866
    %v6395 = vpack.c.b16 %v5869, %v5868
    %v6396 = vpack.c.b16 %v5871, %v5870
    %v6397 = vpack.c.b16 %v5873, %v5872
    %v6398 = vpack.c.b16 %v5875, %v5874
    %v6399 = vpack.c.b16 %v5877, %v5876
    %v6400 = vpack.c.b16 %v5879, %v5878
    %v6401 = vpack.c.b16 %v5881, %v5880
    %v6402 = vpack.c.b16 %v5883, %v5882
    %v6403 = vpack.c.b16 %v5885, %v5884
    %v6404 = vpack.c.b16 %v5887, %v5886
    %v6405 = vpack.c.b16 %v5889, %v5888
    %v6406 = vpack.c.b16 %v5891, %v5890
    %v6407 = vpack.c.b16 %v5893, %v5892
    %v6408 = vpack.c.b16 %v5895, %v5894
    %v6409 = vpack.c.b16 %v5897, %v5896
    %v6410 = vpack.c.b16 %v5899, %v5898
    %v6411 = vpack.c.b16 %v5901, %v5900
    %v6412 = vpack.c.b16 %v5903, %v5902
    %v6413 = vpack.c.b16 %v5905, %v5904
    %v6414 = vpack.c.b16 %v5907, %v5906
    %v6415 = vpack.c.b16 %v5909, %v5908
    %v6416 = vpack.c.b16 %v5911, %v5910
    %v6417 = vpack.c.b16 %v5913, %v5912
    %6922 = vmatprep.subr.bf16.mxu0 0
    %6923 = vmatpush1.bf16.msra.mxu0 %v5914
    %6924 = vmatprep.subr.bf16.mxu0 0
    %6925 = vmatpush1.bf16.msra.mxu0 %v5915
    %6926 = vmatprep.subr.bf16.mxu0 0
    %6927 = vmatpush1.bf16.msra.mxu0 %v5916
    %6928 = vmatprep.subr.bf16.mxu0 0
    %6929 = vmatpush1.bf16.msra.mxu0 %v5917
    %6930 = vmatprep.subr.bf16.mxu0 0
    %6931 = vmatpush1.bf16.msra.mxu0 %v5918
    %6932 = vmatprep.subr.bf16.mxu0 0
    %6933 = vmatpush1.bf16.msra.mxu0 %v5919
    %6934 = vmatprep.subr.bf16.mxu0 0
    %6935 = vmatpush1.bf16.msra.mxu0 %v5920
    %6936 = vmatprep.subr.bf16.mxu0 0
    %6937 = vmatpush1.bf16.msra.mxu0 %v5921
    %6938 = vmatprep.subr.bf16.mxu0 0
    %6939 = vmatpush1.bf16.msra.mxu0 %v5922
    %6940 = vmatprep.subr.bf16.mxu0 0
    %6941 = vmatpush1.bf16.msra.mxu0 %v5923
    %6942 = vmatprep.subr.bf16.mxu0 0
    %6943 = vmatpush1.bf16.msra.mxu0 %v5924
    %6944 = vmatprep.subr.bf16.mxu0 0
    %6945 = vmatpush1.bf16.msra.mxu0 %v5925
    %6946 = vmatprep.subr.bf16.mxu0 0
    %6947 = vmatpush1.bf16.msra.mxu0 %v5926
    %6948 = vmatprep.subr.bf16.mxu0 0
    %6949 = vmatpush1.bf16.msra.mxu0 %v5927
    %6950 = vmatprep.subr.bf16.mxu0 0
    %6951 = vmatpush1.bf16.msra.mxu0 %v5928
    %6952 = vmatprep.subr.bf16.mxu0 0
    %6953 = vmatpush1.bf16.msra.mxu0 %v5929
    %6954 = vmatprep.mubr.bf16.mxu0 %v2765
    %6955 = vmatmul.mubr.bf16.gmra.mrb[0].mxu0 %v2764
    %v6956 = vpop.f32.mrb[0].mxu0
    %v6957 = vadd.f32 0.0, %v6956
    %v6958 = vpop.f32.mrb[0].mxu0
    %v6959 = vpop.f32.mrb[0].mxu0
    %v6960 = vadd.f32 0.0, %v6959
    %v6961 = vpop.f32.mrb[0].mxu0
    %6962 = vmatprep.mubr.bf16.mxu0 %v2828
    %6963 = vmatmul.mubr.bf16.gmra.mrb[0].mxu0 %v2827
    %v6964 = vpop.f32.mrb[0].mxu0
    %v6965 = vadd.f32 0.0, %v6964
    %v6966 = vpop.f32.mrb[0].mxu0
    %v6967 = vpop.f32.mrb[0].mxu0
    %v6968 = vadd.f32 0.0, %v6967
    %v6969 = vpop.f32.mrb[0].mxu0
    %6970 = vdwg.mxu0
    %6971 = vmatprep.subr.bf16.mxu0 0
    %6972 = vmatpush1.bf16.msra.mxu0 %v5930
    %6973 = vmatprep.subr.bf16.mxu0 0
    %6974 = vmatpush1.bf16.msra.mxu0 %v5931
    %6975 = vmatprep.subr.bf16.mxu0 0
    %6976 = vmatpush1.bf16.msra.mxu0 %v5932
    %6977 = vmatprep.subr.bf16.mxu0 0
    %6978 = vmatpush1.bf16.msra.mxu0 %v5933
    %6979 = vmatprep.subr.bf16.mxu0 0
    %6980 = vmatpush1.bf16.msra.mxu0 %v5934
    %6981 = vmatprep.subr.bf16.mxu0 0
    %6982 = vmatpush1.bf16.msra.mxu0 %v5935
    %6983 = vmatprep.subr.bf16.mxu0 0
    %6984 = vmatpush1.bf16.msra.mxu0 %v5936
    %6985 = vmatprep.subr.bf16.mxu0 0
    %6986 = vmatpush1.bf16.msra.mxu0 %v5937
    %6987 = vmatprep.subr.bf16.mxu0 0
    %6988 = vmatpush1.bf16.msra.mxu0 %v5938
    %6989 = vmatprep.subr.bf16.mxu0 0
    %6990 = vmatpush1.bf16.msra.mxu0 %v5939
    %6991 = vmatprep.subr.bf16.mxu0 0
    %6992 = vmatpush1.bf16.msra.mxu0 %v5940
    %6993 = vmatprep.subr.bf16.mxu0 0
    %6994 = vmatpush1.bf16.msra.mxu0 %v5941
    %6995 = vmatprep.subr.bf16.mxu0 0
    %6996 = vmatpush1.bf16.msra.mxu0 %v5942
    %6997 = vmatprep.subr.bf16.mxu0 0
    %6998 = vmatpush1.bf16.msra.mxu0 %v5943
    %6999 = vmatprep.subr.bf16.mxu0 0
    %7000 = vmatpush1.bf16.msra.mxu0 %v5944
    %7001 = vmatprep.subr.bf16.mxu0 0
    %7002 = vmatpush1.bf16.msra.mxu0 %v5945
    %7003 = vmatprep.mubr.bf16.mxu0 %v2767
    %7004 = vmatmul.mubr.bf16.gmra.mrb[0].mxu0 %v2766
    %v7005 = vpop.f32.mrb[0].mxu0
    %v7006 = vadd.f32 %v6957, %v7005
    %v7007 = vpop.f32.mrb[0].mxu0
    %v7008 = vpop.f32.mrb[0].mxu0
    %v7009 = vadd.f32 %v6960, %v7008
    %v7010 = vpop.f32.mrb[0].mxu0
    %7011 = vmatprep.mubr.bf16.mxu0 %v2830
    %7012 = vmatmul.mubr.bf16.gmra.mrb[0].mxu0 %v2829
    %v7013 = vpop.f32.mrb[0].mxu0
    %v7014 = vadd.f32 %v6965, %v7013
    %v7015 = vpop.f32.mrb[0].mxu0
    %v7016 = vpop.f32.mrb[0].mxu0
    %v7017 = vadd.f32 %v6968, %v7016
    %v7018 = vpop.f32.mrb[0].mxu0
    %7019 = vdwg.mxu0
    %7020 = vmatprep.subr.bf16.mxu0 0
    %7021 = vmatpush1.bf16.msra.mxu0 %v5946
    %7022 = vmatprep.subr.bf16.mxu0 0
    %7023 = vmatpush1.bf16.msra.mxu0 %v5947
    %7024 = vmatprep.subr.bf16.mxu0 0
    %7025 = vmatpush1.bf16.msra.mxu0 %v5948
    %7026 = vmatprep.subr.bf16.mxu0 0
    %7027 = vmatpush1.bf16.msra.mxu0 %v5949
    %7028 = vmatprep.subr.bf16.mxu0 0
    %7029 = vmatpush1.bf16.msra.mxu0 %v5950
    %7030 = vmatprep.subr.bf16.mxu0 0
    %7031 = vmatpush1.bf16.msra.mxu0 %v5951
    %7032 = vmatprep.subr.bf16.mxu0 0
    %7033 = vmatpush1.bf16.msra.mxu0 %v5952
    %7034 = vmatprep.subr.bf16.mxu0 0
    %7035 = vmatpush1.bf16.msra.mxu0 %v5953
    %7036 = vmatprep.subr.bf16.mxu0 0
    %7037 = vmatpush1.bf16.msra.mxu0 %v5954
    %7038 = vmatprep.subr.bf16.mxu0 0
    %7039 = vmatpush1.bf16.msra.mxu0 %v5955
    %7040 = vmatprep.subr.bf16.mxu0 0
    %7041 = vmatpush1.bf16.msra.mxu0 %v5956
    %7042 = vmatprep.subr.bf16.mxu0 0
    %7043 = vmatpush1.bf16.msra.mxu0 %v5957
    %7044 = vmatprep.subr.bf16.mxu0 0
    %7045 = vmatpush1.bf16.msra.mxu0 %v5958
    %7046 = vmatprep.subr.bf16.mxu0 0
    %7047 = vmatpush1.bf16.msra.mxu0 %v5959
    %7048 = vmatprep.subr.bf16.mxu0 0
    %7049 = vmatpush1.bf16.msra.mxu0 %v5960
    %7050 = vmatprep.subr.bf16.mxu0 0
    %7051 = vmatpush1.bf16.msra.mxu0 %v5961
    %7052 = vmatprep.mubr.bf16.mxu0 %v2769
    %7053 = vmatmul.mubr.bf16.gmra.mrb[0].mxu0 %v2768
    %v7054 = vpop.f32.mrb[0].mxu0
    %v7055 = vadd.f32 %v7006, %v7054
    %v7056 = vpop.f32.mrb[0].mxu0
    %v7057 = vpop.f32.mrb[0].mxu0
    %v7058 = vadd.f32 %v7009, %v7057
    %v7059 = vpop.f32.mrb[0].mxu0
    %7060 = vmatprep.mubr.bf16.mxu0 %v2832
    %7061 = vmatmul.mubr.bf16.gmra.mrb[0].mxu0 %v2831
    %v7062 = vpop.f32.mrb[0].mxu0
    %v7063 = vadd.f32 %v7014, %v7062
    %v7064 = vpop.f32.mrb[0].mxu0
    %v7065 = vpop.f32.mrb[0].mxu0
    %v7066 = vadd.f32 %v7017, %v7065
    %v7067 = vpop.f32.mrb[0].mxu0
    %7068 = vdwg.mxu0
    %7069 = vmatprep.subr.bf16.mxu0 0
    %7070 = vmatpush1.bf16.msra.mxu0 %v5962
    %7071 = vmatprep.subr.bf16.mxu0 0
    %7072 = vmatpush1.bf16.msra.mxu0 %v5963
    %7073 = vmatprep.subr.bf16.mxu0 0
    %7074 = vmatpush1.bf16.msra.mxu0 %v5964
    %7075 = vmatprep.subr.bf16.mxu0 0
    %7076 = vmatpush1.bf16.msra.mxu0 %v5965
    %7077 = vmatprep.subr.bf16.mxu0 0
    %7078 = vmatpush1.bf16.msra.mxu0 %v5966
    %7079 = vmatprep.subr.bf16.mxu0 0
    %7080 = vmatpush1.bf16.msra.mxu0 %v5967
    %7081 = vmatprep.subr.bf16.mxu0 0
    %7082 = vmatpush1.bf16.msra.mxu0 %v5968
    %7083 = vmatprep.subr.bf16.mxu0 0
    %7084 = vmatpush1.bf16.msra.mxu0 %v5969
    %7085 = vmatprep.subr.bf16.mxu0 0
    %7086 = vmatpush1.bf16.msra.mxu0 %v5970
    %7087 = vmatprep.subr.bf16.mxu0 0
    %7088 = vmatpush1.bf16.msra.mxu0 %v5971
    %7089 = vmatprep.subr.bf16.mxu0 0
    %7090 = vmatpush1.bf16.msra.mxu0 %v5972
    %7091 = vmatprep.subr.bf16.mxu0 0
    %7092 = vmatpush1.bf16.msra.mxu0 %v5973
    %7093 = vmatprep.subr.bf16.mxu0 0
    %7094 = vmatpush1.bf16.msra.mxu0 %v5974
    %7095 = vmatprep.subr.bf16.mxu0 0
    %7096 = vmatpush1.bf16.msra.mxu0 %v5975
    %7097 = vmatprep.subr.bf16.mxu0 0
    %7098 = vmatpush1.bf16.msra.mxu0 %v5976
    %7099 = vmatprep.subr.bf16.mxu0 0
    %7100 = vmatpush1.bf16.msra.mxu0 %v5977
    %7101 = vmatprep.mubr.bf16.mxu0 %v2771
    %7102 = vmatmul.mubr.bf16.gmra.mrb[0].mxu0 %v2770
    %v7103 = vpop.f32.mrb[0].mxu0
    %v7104 = vadd.f32 %v7055, %v7103
    %v7105 = vpop.f32.mrb[0].mxu0
    %v7106 = vpop.f32.mrb[0].mxu0
    %v7107 = vadd.f32 %v7058, %v7106
    %v7108 = vpop.f32.mrb[0].mxu0
    %7109 = vmatprep.mubr.bf16.mxu0 %v2834
    %7110 = vmatmul.mubr.bf16.gmra.mrb[0].mxu0 %v2833
    %v7111 = vpop.f32.mrb[0].mxu0
    %v7112 = vadd.f32 %v7063, %v7111
    %v7113 = vpop.f32.mrb[0].mxu0
    %v7114 = vpop.f32.mrb[0].mxu0
    %v7115 = vadd.f32 %v7066, %v7114
    %v7116 = vpop.f32.mrb[0].mxu0
    %7117 = vdwg.mxu0
    %7118 = vmatprep.subr.bf16.mxu0 0
    %7119 = vmatpush1.bf16.msra.mxu0 %v5978
    %7120 = vmatprep.subr.bf16.mxu0 0
    %7121 = vmatpush1.bf16.msra.mxu0 %v5979
    %7122 = vmatprep.subr.bf16.mxu0 0
    %7123 = vmatpush1.bf16.msra.mxu0 %v5980
    %7124 = vmatprep.subr.bf16.mxu0 0
    %7125 = vmatpush1.bf16.msra.mxu0 %v5981
    %7126 = vmatprep.subr.bf16.mxu0 0
    %7127 = vmatpush1.bf16.msra.mxu0 %v5982
    %7128 = vmatprep.subr.bf16.mxu0 0
    %7129 = vmatpush1.bf16.msra.mxu0 %v5983
    %7130 = vmatprep.subr.bf16.mxu0 0
    %7131 = vmatpush1.bf16.msra.mxu0 %v5984
    %7132 = vmatprep.subr.bf16.mxu0 0
    %7133 = vmatpush1.bf16.msra.mxu0 %v5985
    %7134 = vmatprep.subr.bf16.mxu0 0
    %7135 = vmatpush1.bf16.msra.mxu0 %v5986
    %7136 = vmatprep.subr.bf16.mxu0 0
    %7137 = vmatpush1.bf16.msra.mxu0 %v5987
    %7138 = vmatprep.subr.bf16.mxu0 0
    %7139 = vmatpush1.bf16.msra.mxu0 %v5988
    %7140 = vmatprep.subr.bf16.mxu0 0
    %7141 = vmatpush1.bf16.msra.mxu0 %v5989
    %7142 = vmatprep.subr.bf16.mxu0 0
    %7143 = vmatpush1.bf16.msra.mxu0 %v5990
    %7144 = vmatprep.subr.bf16.mxu0 0
    %7145 = vmatpush1.bf16.msra.mxu0 %v5991
    %7146 = vmatprep.subr.bf16.mxu0 0
    %7147 = vmatpush1.bf16.msra.mxu0 %v5992
    %7148 = vmatprep.subr.bf16.mxu0 0
    %7149 = vmatpush1.bf16.msra.mxu0 %v5993
    %7150 = vmatprep.mubr.bf16.mxu0 %v2773
    %7151 = vmatmul.mubr.bf16.gmra.mrb[0].mxu0 %v2772
    %v7152 = vpop.f32.mrb[0].mxu0
    %v7153 = vadd.f32 %v7104, %v7152
    %v7154 = vpop.f32.mrb[0].mxu0
    %v7155 = vpop.f32.mrb[0].mxu0
    %v7156 = vadd.f32 %v7107, %v7155
    %v7157 = vpop.f32.mrb[0].mxu0
    %7158 = vmatprep.mubr.bf16.mxu0 %v2836
    %7159 = vmatmul.mubr.bf16.gmra.mrb[0].mxu0 %v2835
    %v7160 = vpop.f32.mrb[0].mxu0
    %v7161 = vadd.f32 %v7112, %v7160
    %v7162 = vpop.f32.mrb[0].mxu0
    %v7163 = vpop.f32.mrb[0].mxu0
    %v7164 = vadd.f32 %v7115, %v7163
    %v7165 = vpop.f32.mrb[0].mxu0
    %7166 = vdwg.mxu0
    %7167 = vmatprep.subr.bf16.mxu0 0
    %7168 = vmatpush1.bf16.msra.mxu0 %v5994
    %7169 = vmatprep.subr.bf16.mxu0 0
    %7170 = vmatpush1.bf16.msra.mxu0 %v5995
    %7171 = vmatprep.subr.bf16.mxu0 0
    %7172 = vmatpush1.bf16.msra.mxu0 %v5996
    %7173 = vmatprep.subr.bf16.mxu0 0
    %7174 = vmatpush1.bf16.msra.mxu0 %v5997
    %7175 = vmatprep.subr.bf16.mxu0 0
    %7176 = vmatpush1.bf16.msra.mxu0 %v5998
    %7177 = vmatprep.subr.bf16.mxu0 0
    %7178 = vmatpush1.bf16.msra.mxu0 %v5999
    %7179 = vmatprep.subr.bf16.mxu0 0
    %7180 = vmatpush1.bf16.msra.mxu0 %v6000
    %7181 = vmatprep.subr.bf16.mxu0 0
    %7182 = vmatpush1.bf16.msra.mxu0 %v6001
    %7183 = vmatprep.subr.bf16.mxu0 0
    %7184 = vmatpush1.bf16.msra.mxu0 %v6002
    %7185 = vmatprep.subr.bf16.mxu0 0
    %7186 = vmatpush1.bf16.msra.mxu0 %v6003
    %7187 = vmatprep.subr.bf16.mxu0 0
    %7188 = vmatpush1.bf16.msra.mxu0 %v6004
    %7189 = vmatprep.subr.bf16.mxu0 0
    %7190 = vmatpush1.bf16.msra.mxu0 %v6005
    %7191 = vmatprep.subr.bf16.mxu0 0
    %7192 = vmatpush1.bf16.msra.mxu0 %v6006
    %7193 = vmatprep.subr.bf16.mxu0 0
    %7194 = vmatpush1.bf16.msra.mxu0 %v6007
    %7195 = vmatprep.subr.bf16.mxu0 0
    %7196 = vmatpush1.bf16.msra.mxu0 %v6008
    %7197 = vmatprep.subr.bf16.mxu0 0
    %7198 = vmatpush1.bf16.msra.mxu0 %v6009
    %7199 = vmatprep.mubr.bf16.mxu0 %v2775
    %7200 = vmatmul.mubr.bf16.gmra.mrb[0].mxu0 %v2774
    %v7201 = vpop.f32.mrb[0].mxu0
    %v7202 = vadd.f32 %v7153, %v7201
    %v7203 = vpop.f32.mrb[0].mxu0
    %v7204 = vpop.f32.mrb[0].mxu0
    %v7205 = vadd.f32 %v7156, %v7204
    %v7206 = vpop.f32.mrb[0].mxu0
    %7207 = vmatprep.mubr.bf16.mxu0 %v2838
    %7208 = vmatmul.mubr.bf16.gmra.mrb[0].mxu0 %v2837
    %v7209 = vpop.f32.mrb[0].mxu0
    %v7210 = vadd.f32 %v7161, %v7209
    %v7211 = vpop.f32.mrb[0].mxu0
    %v7212 = vpop.f32.mrb[0].mxu0
    %v7213 = vadd.f32 %v7164, %v7212
    %v7214 = vpop.f32.mrb[0].mxu0
    %7215 = vdwg.mxu0
    %7216 = vmatprep.subr.bf16.mxu0 0
    %7217 = vmatpush1.bf16.msra.mxu0 %v6010
    %7218 = vmatprep.subr.bf16.mxu0 0
    %7219 = vmatpush1.bf16.msra.mxu0 %v6011
    %7220 = vmatprep.subr.bf16.mxu0 0
    %7221 = vmatpush1.bf16.msra.mxu0 %v6012
    %7222 = vmatprep.subr.bf16.mxu0 0
    %7223 = vmatpush1.bf16.msra.mxu0 %v6013
    %7224 = vmatprep.subr.bf16.mxu0 0
    %7225 = vmatpush1.bf16.msra.mxu0 %v6014
    %7226 = vmatprep.subr.bf16.mxu0 0
    %7227 = vmatpush1.bf16.msra.mxu0 %v6015
    %7228 = vmatprep.subr.bf16.mxu0 0
    %7229 = vmatpush1.bf16.msra.mxu0 %v6016
    %7230 = vmatprep.subr.bf16.mxu0 0
    %7231 = vmatpush1.bf16.msra.mxu0 %v6017
    %7232 = vmatprep.subr.bf16.mxu0 0
    %7233 = vmatpush1.bf16.msra.mxu0 %v6018
    %7234 = vmatprep.subr.bf16.mxu0 0
    %7235 = vmatpush1.bf16.msra.mxu0 %v6019
    %7236 = vmatprep.subr.bf16.mxu0 0
    %7237 = vmatpush1.bf16.msra.mxu0 %v6020
    %7238 = vmatprep.subr.bf16.mxu0 0
    %7239 = vmatpush1.bf16.msra.mxu0 %v6021
    %7240 = vmatprep.subr.bf16.mxu0 0
    %7241 = vmatpush1.bf16.msra.mxu0 %v6022
    %7242 = vmatprep.subr.bf16.mxu0 0
    %7243 = vmatpush1.bf16.msra.mxu0 %v6023
    %7244 = vmatprep.subr.bf16.mxu0 0
    %7245 = vmatpush1.bf16.msra.mxu0 %v6024
    %7246 = vmatprep.subr.bf16.mxu0 0
    %7247 = vmatpush1.bf16.msra.mxu0 %v6025
    %7248 = vmatprep.mubr.bf16.mxu0 %v2777
    %7249 = vmatmul.mubr.bf16.gmra.mrb[0].mxu0 %v2776
    %v7250 = vpop.f32.mrb[0].mxu0
    %v7251 = vadd.f32 %v7202, %v7250
    %v7252 = vpop.f32.mrb[0].mxu0
    %v7253 = vpop.f32.mrb[0].mxu0
    %v7254 = vadd.f32 %v7205, %v7253
    %v7255 = vpop.f32.mrb[0].mxu0
    %7256 = vmatprep.mubr.bf16.mxu0 %v2840
    %7257 = vmatmul.mubr.bf16.gmra.mrb[0].mxu0 %v2839
    %v7258 = vpop.f32.mrb[0].mxu0
    %v7259 = vadd.f32 %v7210, %v7258
    %v7260 = vpop.f32.mrb[0].mxu0
    %v7261 = vpop.f32.mrb[0].mxu0
    %v7262 = vadd.f32 %v7213, %v7261
    %v7263 = vpop.f32.mrb[0].mxu0
    %7264 = vdwg.mxu0
    %7265 = vmatprep.subr.bf16.mxu0 0
    %7266 = vmatpush1.bf16.msra.mxu0 %v6026
    %7267 = vmatprep.subr.bf16.mxu0 0
    %7268 = vmatpush1.bf16.msra.mxu0 %v6027
    %7269 = vmatprep.subr.bf16.mxu0 0
    %7270 = vmatpush1.bf16.msra.mxu0 %v6028
    %7271 = vmatprep.subr.bf16.mxu0 0
    %7272 = vmatpush1.bf16.msra.mxu0 %v6029
    %7273 = vmatprep.subr.bf16.mxu0 0
    %7274 = vmatpush1.bf16.msra.mxu0 %v6030
    %7275 = vmatprep.subr.bf16.mxu0 0
    %7276 = vmatpush1.bf16.msra.mxu0 %v6031
    %7277 = vmatprep.subr.bf16.mxu0 0
    %7278 = vmatpush1.bf16.msra.mxu0 %v6032
    %7279 = vmatprep.subr.bf16.mxu0 0
    %7280 = vmatpush1.bf16.msra.mxu0 %v6033
    %7281 = vmatprep.subr.bf16.mxu0 0
    %7282 = vmatpush1.bf16.msra.mxu0 %v6034
    %7283 = vmatprep.subr.bf16.mxu0 0
    %7284 = vmatpush1.bf16.msra.mxu0 %v6035
    %7285 = vmatprep.subr.bf16.mxu0 0
    %7286 = vmatpush1.bf16.msra.mxu0 %v6036
    %7287 = vmatprep.subr.bf16.mxu0 0
    %7288 = vmatpush1.bf16.msra.mxu0 %v6037
    %7289 = vmatprep.subr.bf16.mxu0 0
    %7290 = vmatpush1.bf16.msra.mxu0 %v6038
    %7291 = vmatprep.subr.bf16.mxu0 0
    %7292 = vmatpush1.bf16.msra.mxu0 %v6039
    %7293 = vmatprep.subr.bf16.mxu0 0
    %7294 = vmatpush1.bf16.msra.mxu0 %v6040
    %7295 = vmatprep.subr.bf16.mxu0 0
    %7296 = vmatpush1.bf16.msra.mxu0 %v6041
    %7297 = vmatprep.mubr.bf16.mxu0 %v2779
    %7298 = vmatmul.mubr.bf16.gmra.mrb[0].mxu0 %v2778
    %v7299 = vpop.f32.mrb[0].mxu0
    %v7300 = vadd.f32 %v7251, %v7299
    %v7301 = vpop.f32.mrb[0].mxu0
    %v7302 = vpop.f32.mrb[0].mxu0
    %v7303 = vadd.f32 %v7254, %v7302
    %v7304 = vpop.f32.mrb[0].mxu0
    %7305 = vmatprep.mubr.bf16.mxu0 %v2842
    %7306 = vmatmul.mubr.bf16.gmra.mrb[0].mxu0 %v2841
    %v7307 = vpop.f32.mrb[0].mxu0
    %v7308 = vadd.f32 %v7259, %v7307
    %v7309 = vpop.f32.mrb[0].mxu0
    %v7310 = vpop.f32.mrb[0].mxu0
    %v7311 = vadd.f32 %v7262, %v7310
    %v7312 = vpop.f32.mrb[0].mxu0
    %7313 = vdwg.mxu0
    %7314 = vmatprep.subr.bf16.mxu0 0
    %7315 = vmatpush1.bf16.msra.mxu0 %v6042
    %7316 = vmatprep.subr.bf16.mxu0 0
    %7317 = vmatpush1.bf16.msra.mxu0 %v6043
    %7318 = vmatprep.subr.bf16.mxu0 0
    %7319 = vmatpush1.bf16.msra.mxu0 %v6044
    %7320 = vmatprep.subr.bf16.mxu0 0
    %7321 = vmatpush1.bf16.msra.mxu0 %v6045
    %7322 = vmatprep.subr.bf16.mxu0 0
    %7323 = vmatpush1.bf16.msra.mxu0 %v6046
    %7324 = vmatprep.subr.bf16.mxu0 0
    %7325 = vmatpush1.bf16.msra.mxu0 %v6047
    %7326 = vmatprep.subr.bf16.mxu0 0
    %7327 = vmatpush1.bf16.msra.mxu0 %v6048
    %7328 = vmatprep.subr.bf16.mxu0 0
    %7329 = vmatpush1.bf16.msra.mxu0 %v6049
    %7330 = vmatprep.subr.bf16.mxu0 0
    %7331 = vmatpush1.bf16.msra.mxu0 %v6050
    %7332 = vmatprep.subr.bf16.mxu0 0
    %7333 = vmatpush1.bf16.msra.mxu0 %v6051
    %7334 = vmatprep.subr.bf16.mxu0 0
    %7335 = vmatpush1.bf16.msra.mxu0 %v6052
    %7336 = vmatprep.subr.bf16.mxu0 0
    %7337 = vmatpush1.bf16.msra.mxu0 %v6053
    %7338 = vmatprep.subr.bf16.mxu0 0
    %7339 = vmatpush1.bf16.msra.mxu0 %v6054
    %7340 = vmatprep.subr.bf16.mxu0 0
    %7341 = vmatpush1.bf16.msra.mxu0 %v6055
    %7342 = vmatprep.subr.bf16.mxu0 0
    %7343 = vmatpush1.bf16.msra.mxu0 %v6056
    %7344 = vmatprep.subr.bf16.mxu0 0
    %7345 = vmatpush1.bf16.msra.mxu0 %v6057
    %7346 = vmatprep.mubr.bf16.mxu0 %v2781
    %7347 = vmatmul.mubr.bf16.gmra.mrb[0].mxu0 %v2780
    %v7348 = vpop.f32.mrb[0].mxu0
    %v7349 = vadd.f32 %v7300, %v7348
    %v7350 = vpop.f32.mrb[0].mxu0
    %v7351 = vpop.f32.mrb[0].mxu0
    %v7352 = vadd.f32 %v7303, %v7351
    %v7353 = vpop.f32.mrb[0].mxu0
    %7354 = vmatprep.mubr.bf16.mxu0 %v2844
    %7355 = vmatmul.mubr.bf16.gmra.mrb[0].mxu0 %v2843
    %v7356 = vpop.f32.mrb[0].mxu0
    %v7357 = vadd.f32 %v7308, %v7356
    %v7358 = vpop.f32.mrb[0].mxu0
    %v7359 = vpop.f32.mrb[0].mxu0
    %v7360 = vadd.f32 %v7311, %v7359
    %v7361 = vpop.f32.mrb[0].mxu0
    %7362 = vdwg.mxu0
    %7363 = vmatprep.subr.bf16.mxu0 0
    %7364 = vmatpush1.bf16.msra.mxu0 %v6058
    %7365 = vmatprep.subr.bf16.mxu0 0
    %7366 = vmatpush1.bf16.msra.mxu0 %v6059
    %7367 = vmatprep.subr.bf16.mxu0 0
    %7368 = vmatpush1.bf16.msra.mxu0 %v6060
    %7369 = vmatprep.subr.bf16.mxu0 0
    %7370 = vmatpush1.bf16.msra.mxu0 %v6061
    %7371 = vmatprep.subr.bf16.mxu0 0
    %7372 = vmatpush1.bf16.msra.mxu0 %v6062
    %7373 = vmatprep.subr.bf16.mxu0 0
    %7374 = vmatpush1.bf16.msra.mxu0 %v6063
    %7375 = vmatprep.subr.bf16.mxu0 0
    %7376 = vmatpush1.bf16.msra.mxu0 %v6064
    %7377 = vmatprep.subr.bf16.mxu0 0
    %7378 = vmatpush1.bf16.msra.mxu0 %v6065
    %7379 = vmatprep.subr.bf16.mxu0 0
    %7380 = vmatpush1.bf16.msra.mxu0 %v6066
    %7381 = vmatprep.subr.bf16.mxu0 0
    %7382 = vmatpush1.bf16.msra.mxu0 %v6067
    %7383 = vmatprep.subr.bf16.mxu0 0
    %7384 = vmatpush1.bf16.msra.mxu0 %v6068
    %7385 = vmatprep.subr.bf16.mxu0 0
    %7386 = vmatpush1.bf16.msra.mxu0 %v6069
    %7387 = vmatprep.subr.bf16.mxu0 0
    %7388 = vmatpush1.bf16.msra.mxu0 %v6070
    %7389 = vmatprep.subr.bf16.mxu0 0
    %7390 = vmatpush1.bf16.msra.mxu0 %v6071
    %7391 = vmatprep.subr.bf16.mxu0 0
    %7392 = vmatpush1.bf16.msra.mxu0 %v6072
    %7393 = vmatprep.subr.bf16.mxu0 0
    %7394 = vmatpush1.bf16.msra.mxu0 %v6073
    %7395 = vmatprep.mubr.bf16.mxu0 %v2783
    %7396 = vmatmul.mubr.bf16.gmra.mrb[0].mxu0 %v2782
    %v7397 = vpop.f32.mrb[0].mxu0
    %v7398 = vadd.f32 %v7349, %v7397
    %v7399 = vpop.f32.mrb[0].mxu0
    %v7400 = vpop.f32.mrb[0].mxu0
    %v7401 = vadd.f32 %v7352, %v7400
    %v7402 = vpop.f32.mrb[0].mxu0
    %7403 = vmatprep.mubr.bf16.mxu0 %v2846
    %7404 = vmatmul.mubr.bf16.gmra.mrb[0].mxu0 %v2845
    %v7405 = vpop.f32.mrb[0].mxu0
    %v7406 = vadd.f32 %v7357, %v7405
    %v7407 = vpop.f32.mrb[0].mxu0
    %v7408 = vpop.f32.mrb[0].mxu0
    %v7409 = vadd.f32 %v7360, %v7408
    %v7410 = vpop.f32.mrb[0].mxu0
    %7411 = vdwg.mxu0
    %7412 = vmatprep.subr.bf16.mxu0 0
    %7413 = vmatpush1.bf16.msra.mxu0 %v6074
    %7414 = vmatprep.subr.bf16.mxu0 0
    %7415 = vmatpush1.bf16.msra.mxu0 %v6075
    %7416 = vmatprep.subr.bf16.mxu0 0
    %7417 = vmatpush1.bf16.msra.mxu0 %v6076
    %7418 = vmatprep.subr.bf16.mxu0 0
    %7419 = vmatpush1.bf16.msra.mxu0 %v6077
    %7420 = vmatprep.subr.bf16.mxu0 0
    %7421 = vmatpush1.bf16.msra.mxu0 %v6078
    %7422 = vmatprep.subr.bf16.mxu0 0
    %7423 = vmatpush1.bf16.msra.mxu0 %v6079
    %7424 = vmatprep.subr.bf16.mxu0 0
    %7425 = vmatpush1.bf16.msra.mxu0 %v6080
    %7426 = vmatprep.subr.bf16.mxu0 0
    %7427 = vmatpush1.bf16.msra.mxu0 %v6081
    %7428 = vmatprep.subr.bf16.mxu0 0
    %7429 = vmatpush1.bf16.msra.mxu0 %v6082
    %7430 = vmatprep.subr.bf16.mxu0 0
    %7431 = vmatpush1.bf16.msra.mxu0 %v6083
    %7432 = vmatprep.subr.bf16.mxu0 0
    %7433 = vmatpush1.bf16.msra.mxu0 %v6084
    %7434 = vmatprep.subr.bf16.mxu0 0
    %7435 = vmatpush1.bf16.msra.mxu0 %v6085
    %7436 = vmatprep.subr.bf16.mxu0 0
    %7437 = vmatpush1.bf16.msra.mxu0 %v6086
    %7438 = vmatprep.subr.bf16.mxu0 0
    %7439 = vmatpush1.bf16.msra.mxu0 %v6087
    %7440 = vmatprep.subr.bf16.mxu0 0
    %7441 = vmatpush1.bf16.msra.mxu0 %v6088
    %7442 = vmatprep.subr.bf16.mxu0 0
    %7443 = vmatpush1.bf16.msra.mxu0 %v6089
    %7444 = vmatprep.mubr.bf16.mxu0 %v2785
    %7445 = vmatmul.mubr.bf16.gmra.mrb[0].mxu0 %v2784
    %v7446 = vpop.f32.mrb[0].mxu0
    %v7447 = vadd.f32 %v7398, %v7446
    %v7448 = vpop.f32.mrb[0].mxu0
    %v7449 = vpop.f32.mrb[0].mxu0
    %v7450 = vadd.f32 %v7401, %v7449
    %v7451 = vpop.f32.mrb[0].mxu0
    %7452 = vmatprep.mubr.bf16.mxu0 %v2848
    %7453 = vmatmul.mubr.bf16.gmra.mrb[0].mxu0 %v2847
    %v7454 = vpop.f32.mrb[0].mxu0
    %v7455 = vadd.f32 %v7406, %v7454
    %v7456 = vpop.f32.mrb[0].mxu0
    %v7457 = vpop.f32.mrb[0].mxu0
    %v7458 = vadd.f32 %v7409, %v7457
    %v7459 = vpop.f32.mrb[0].mxu0
    %7460 = vdwg.mxu0
    %7461 = vmatprep.subr.bf16.mxu0 0
    %7462 = vmatpush1.bf16.msra.mxu0 %v6090
    %7463 = vmatprep.subr.bf16.mxu0 0
    %7464 = vmatpush1.bf16.msra.mxu0 %v6091
    %7465 = vmatprep.subr.bf16.mxu0 0
    %7466 = vmatpush1.bf16.msra.mxu0 %v6092
    %7467 = vmatprep.subr.bf16.mxu0 0
    %7468 = vmatpush1.bf16.msra.mxu0 %v6093
    %7469 = vmatprep.subr.bf16.mxu0 0
    %7470 = vmatpush1.bf16.msra.mxu0 %v6094
    %7471 = vmatprep.subr.bf16.mxu0 0
    %7472 = vmatpush1.bf16.msra.mxu0 %v6095
    %7473 = vmatprep.subr.bf16.mxu0 0
    %7474 = vmatpush1.bf16.msra.mxu0 %v6096
    %7475 = vmatprep.subr.bf16.mxu0 0
    %7476 = vmatpush1.bf16.msra.mxu0 %v6097
    %7477 = vmatprep.subr.bf16.mxu0 0
    %7478 = vmatpush1.bf16.msra.mxu0 %v6098
    %7479 = vmatprep.subr.bf16.mxu0 0
    %7480 = vmatpush1.bf16.msra.mxu0 %v6099
    %7481 = vmatprep.subr.bf16.mxu0 0
    %7482 = vmatpush1.bf16.msra.mxu0 %v6100
    %7483 = vmatprep.subr.bf16.mxu0 0
    %7484 = vmatpush1.bf16.msra.mxu0 %v6101
    %7485 = vmatprep.subr.bf16.mxu0 0
    %7486 = vmatpush1.bf16.msra.mxu0 %v6102
    %7487 = vmatprep.subr.bf16.mxu0 0
    %7488 = vmatpush1.bf16.msra.mxu0 %v6103
    %7489 = vmatprep.subr.bf16.mxu0 0
    %7490 = vmatpush1.bf16.msra.mxu0 %v6104
    %7491 = vmatprep.subr.bf16.mxu0 0
    %7492 = vmatpush1.bf16.msra.mxu0 %v6105
    %7493 = vmatprep.mubr.bf16.mxu0 %v2787
    %7494 = vmatmul.mubr.bf16.gmra.mrb[0].mxu0 %v2786
    %v7495 = vpop.f32.mrb[0].mxu0
    %v7496 = vadd.f32 %v7447, %v7495
    %v7497 = vpop.f32.mrb[0].mxu0
    %v7498 = vpop.f32.mrb[0].mxu0
    %v7499 = vadd.f32 %v7450, %v7498
    %v7500 = vpop.f32.mrb[0].mxu0
    %7501 = vmatprep.mubr.bf16.mxu0 %v2850
    %7502 = vmatmul.mubr.bf16.gmra.mrb[0].mxu0 %v2849
    %v7503 = vpop.f32.mrb[0].mxu0
    %v7504 = vadd.f32 %v7455, %v7503
    %v7505 = vpop.f32.mrb[0].mxu0
    %v7506 = vpop.f32.mrb[0].mxu0
    %v7507 = vadd.f32 %v7458, %v7506
    %v7508 = vpop.f32.mrb[0].mxu0
    %7509 = vdwg.mxu0
    %7510 = vmatprep.subr.bf16.mxu0 0
    %7511 = vmatpush1.bf16.msra.mxu0 %v6106
    %7512 = vmatprep.subr.bf16.mxu0 0
    %7513 = vmatpush1.bf16.msra.mxu0 %v6107
    %7514 = vmatprep.subr.bf16.mxu0 0
    %7515 = vmatpush1.bf16.msra.mxu0 %v6108
    %7516 = vmatprep.subr.bf16.mxu0 0
    %7517 = vmatpush1.bf16.msra.mxu0 %v6109
    %7518 = vmatprep.subr.bf16.mxu0 0
    %7519 = vmatpush1.bf16.msra.mxu0 %v6110
    %7520 = vmatprep.subr.bf16.mxu0 0
    %7521 = vmatpush1.bf16.msra.mxu0 %v6111
    %7522 = vmatprep.subr.bf16.mxu0 0
    %7523 = vmatpush1.bf16.msra.mxu0 %v6112
    %7524 = vmatprep.subr.bf16.mxu0 0
    %7525 = vmatpush1.bf16.msra.mxu0 %v6113
    %7526 = vmatprep.subr.bf16.mxu0 0
    %7527 = vmatpush1.bf16.msra.mxu0 %v6114
    %7528 = vmatprep.subr.bf16.mxu0 0
    %7529 = vmatpush1.bf16.msra.mxu0 %v6115
    %7530 = vmatprep.subr.bf16.mxu0 0
    %7531 = vmatpush1.bf16.msra.mxu0 %v6116
    %7532 = vmatprep.subr.bf16.mxu0 0
    %7533 = vmatpush1.bf16.msra.mxu0 %v6117
    %7534 = vmatprep.subr.bf16.mxu0 0
    %7535 = vmatpush1.bf16.msra.mxu0 %v6118
    %7536 = vmatprep.subr.bf16.mxu0 0
    %7537 = vmatpush1.bf16.msra.mxu0 %v6119
    %7538 = vmatprep.subr.bf16.mxu0 0
    %7539 = vmatpush1.bf16.msra.mxu0 %v6120
    %7540 = vmatprep.subr.bf16.mxu0 0
    %7541 = vmatpush1.bf16.msra.mxu0 %v6121
    %7542 = vmatprep.mubr.bf16.mxu0 %v2789
    %7543 = vmatmul.mubr.bf16.gmra.mrb[0].mxu0 %v2788
    %v7544 = vpop.f32.mrb[0].mxu0
    %v7545 = vadd.f32 %v7496, %v7544
    %v7546 = vpop.f32.mrb[0].mxu0
    %v7547 = vpop.f32.mrb[0].mxu0
    %v7548 = vadd.f32 %v7499, %v7547
    %v7549 = vpop.f32.mrb[0].mxu0
    %7550 = vmatprep.mubr.bf16.mxu0 %v2852
    %7551 = vmatmul.mubr.bf16.gmra.mrb[0].mxu0 %v2851
    %v7552 = vpop.f32.mrb[0].mxu0
    %v7553 = vadd.f32 %v7504, %v7552
    %v7554 = vpop.f32.mrb[0].mxu0
    %v7555 = vpop.f32.mrb[0].mxu0
    %v7556 = vadd.f32 %v7507, %v7555
    %v7557 = vpop.f32.mrb[0].mxu0
    %7558 = vdwg.mxu0
    %7559 = vmatprep.subr.bf16.mxu0 0
    %7560 = vmatpush1.bf16.msra.mxu0 %v6122
    %7561 = vmatprep.subr.bf16.mxu0 0
    %7562 = vmatpush1.bf16.msra.mxu0 %v6123
    %7563 = vmatprep.subr.bf16.mxu0 0
    %7564 = vmatpush1.bf16.msra.mxu0 %v6124
    %7565 = vmatprep.subr.bf16.mxu0 0
    %7566 = vmatpush1.bf16.msra.mxu0 %v6125
    %7567 = vmatprep.subr.bf16.mxu0 0
    %7568 = vmatpush1.bf16.msra.mxu0 %v6126
    %7569 = vmatprep.subr.bf16.mxu0 0
    %7570 = vmatpush1.bf16.msra.mxu0 %v6127
    %7571 = vmatprep.subr.bf16.mxu0 0
    %7572 = vmatpush1.bf16.msra.mxu0 %v6128
    %7573 = vmatprep.subr.bf16.mxu0 0
    %7574 = vmatpush1.bf16.msra.mxu0 %v6129
    %7575 = vmatprep.subr.bf16.mxu0 0
    %7576 = vmatpush1.bf16.msra.mxu0 %v6130
    %7577 = vmatprep.subr.bf16.mxu0 0
    %7578 = vmatpush1.bf16.msra.mxu0 %v6131
    %7579 = vmatprep.subr.bf16.mxu0 0
    %7580 = vmatpush1.bf16.msra.mxu0 %v6132
    %7581 = vmatprep.subr.bf16.mxu0 0
    %7582 = vmatpush1.bf16.msra.mxu0 %v6133
    %7583 = vmatprep.subr.bf16.mxu0 0
    %7584 = vmatpush1.bf16.msra.mxu0 %v6134
    %7585 = vmatprep.subr.bf16.mxu0 0
    %7586 = vmatpush1.bf16.msra.mxu0 %v6135
    %7587 = vmatprep.subr.bf16.mxu0 0
    %7588 = vmatpush1.bf16.msra.mxu0 %v6136
    %7589 = vmatprep.subr.bf16.mxu0 0
    %7590 = vmatpush1.bf16.msra.mxu0 %v6137
    %7591 = vmatprep.mubr.bf16.mxu0 %v2791
    %7592 = vmatmul.mubr.bf16.gmra.mrb[0].mxu0 %v2790
    %v7593 = vpop.f32.mrb[0].mxu0
    %v7594 = vadd.f32 %v7545, %v7593
    %v7595 = vpop.f32.mrb[0].mxu0
    %v7596 = vpop.f32.mrb[0].mxu0
    %v7597 = vadd.f32 %v7548, %v7596
    %v7598 = vpop.f32.mrb[0].mxu0
    %7599 = vmatprep.mubr.bf16.mxu0 %v2854
    %7600 = vmatmul.mubr.bf16.gmra.mrb[0].mxu0 %v2853
    %v7601 = vpop.f32.mrb[0].mxu0
    %v7602 = vadd.f32 %v7553, %v7601
    %v7603 = vpop.f32.mrb[0].mxu0
    %v7604 = vpop.f32.mrb[0].mxu0
    %v7605 = vadd.f32 %v7556, %v7604
    %v7606 = vpop.f32.mrb[0].mxu0
    %7607 = vdwg.mxu0
    %7608 = vmatprep.subr.bf16.mxu0 0
    %7609 = vmatpush1.bf16.msra.mxu0 %v6138
    %7610 = vmatprep.subr.bf16.mxu0 0
    %7611 = vmatpush1.bf16.msra.mxu0 %v6139
    %7612 = vmatprep.subr.bf16.mxu0 0
    %7613 = vmatpush1.bf16.msra.mxu0 %v6140
    %7614 = vmatprep.subr.bf16.mxu0 0
    %7615 = vmatpush1.bf16.msra.mxu0 %v6141
    %7616 = vmatprep.subr.bf16.mxu0 0
    %7617 = vmatpush1.bf16.msra.mxu0 %v6142
    %7618 = vmatprep.subr.bf16.mxu0 0
    %7619 = vmatpush1.bf16.msra.mxu0 %v6143
    %7620 = vmatprep.subr.bf16.mxu0 0
    %7621 = vmatpush1.bf16.msra.mxu0 %v6144
    %7622 = vmatprep.subr.bf16.mxu0 0
    %7623 = vmatpush1.bf16.msra.mxu0 %v6145
    %7624 = vmatprep.subr.bf16.mxu0 0
    %7625 = vmatpush1.bf16.msra.mxu0 %v6146
    %7626 = vmatprep.subr.bf16.mxu0 0
    %7627 = vmatpush1.bf16.msra.mxu0 %v6147
    %7628 = vmatprep.subr.bf16.mxu0 0
    %7629 = vmatpush1.bf16.msra.mxu0 %v6148
    %7630 = vmatprep.subr.bf16.mxu0 0
    %7631 = vmatpush1.bf16.msra.mxu0 %v6149
    %7632 = vmatprep.subr.bf16.mxu0 0
    %7633 = vmatpush1.bf16.msra.mxu0 %v6150
    %7634 = vmatprep.subr.bf16.mxu0 0
    %7635 = vmatpush1.bf16.msra.mxu0 %v6151
    %7636 = vmatprep.subr.bf16.mxu0 0
    %7637 = vmatpush1.bf16.msra.mxu0 %v6152
    %7638 = vmatprep.subr.bf16.mxu0 0
    %7639 = vmatpush1.bf16.msra.mxu0 %v6153
    %7640 = vmatprep.mubr.bf16.mxu0 %v2793
    %7641 = vmatmul.mubr.bf16.gmra.mrb[0].mxu0 %v2792
    %v7642 = vpop.f32.mrb[0].mxu0
    %v7643 = vadd.f32 %v7594, %v7642
    %v7644 = vpop.f32.mrb[0].mxu0
    %v7645 = vpop.f32.mrb[0].mxu0
    %v7646 = vadd.f32 %v7597, %v7645
    %v7647 = vpop.f32.mrb[0].mxu0
    %7648 = vmatprep.mubr.bf16.mxu0 %v2856
    %7649 = vmatmul.mubr.bf16.gmra.mrb[0].mxu0 %v2855
    %v7650 = vpop.f32.mrb[0].mxu0
    %v7651 = vadd.f32 %v7602, %v7650
    %v7652 = vpop.f32.mrb[0].mxu0
    %v7653 = vpop.f32.mrb[0].mxu0
    %v7654 = vadd.f32 %v7605, %v7653
    %v7655 = vpop.f32.mrb[0].mxu0
    %7656 = vdwg.mxu0
    %7657 = vmatprep.subr.bf16.mxu0 0
    %7658 = vmatpush1.bf16.msra.mxu0 %v6154
    %7659 = vmatprep.subr.bf16.mxu0 0
    %7660 = vmatpush1.bf16.msra.mxu0 %v6155
    %7661 = vmatprep.subr.bf16.mxu0 0
    %7662 = vmatpush1.bf16.msra.mxu0 %v6156
    %7663 = vmatprep.subr.bf16.mxu0 0
    %7664 = vmatpush1.bf16.msra.mxu0 %v6157
    %7665 = vmatprep.subr.bf16.mxu0 0
    %7666 = vmatpush1.bf16.msra.mxu0 %v6158
    %7667 = vmatprep.subr.bf16.mxu0 0
    %7668 = vmatpush1.bf16.msra.mxu0 %v6159
    %7669 = vmatprep.subr.bf16.mxu0 0
    %7670 = vmatpush1.bf16.msra.mxu0 %v6160
    %7671 = vmatprep.subr.bf16.mxu0 0
    %7672 = vmatpush1.bf16.msra.mxu0 %v6161
    %7673 = vmatprep.subr.bf16.mxu0 0
    %7674 = vmatpush1.bf16.msra.mxu0 %v6162
    %7675 = vmatprep.subr.bf16.mxu0 0
    %7676 = vmatpush1.bf16.msra.mxu0 %v6163
    %7677 = vmatprep.subr.bf16.mxu0 0
    %7678 = vmatpush1.bf16.msra.mxu0 %v6164
    %7679 = vmatprep.subr.bf16.mxu0 0
    %7680 = vmatpush1.bf16.msra.mxu0 %v6165
    %7681 = vmatprep.subr.bf16.mxu0 0
    %7682 = vmatpush1.bf16.msra.mxu0 %v6166
    %7683 = vmatprep.subr.bf16.mxu0 0
    %7684 = vmatpush1.bf16.msra.mxu0 %v6167
    %7685 = vmatprep.subr.bf16.mxu0 0
    %7686 = vmatpush1.bf16.msra.mxu0 %v6168
    %7687 = vmatprep.subr.bf16.mxu0 0
    %7688 = vmatpush1.bf16.msra.mxu0 %v6169
    %7689 = vmatprep.mubr.bf16.mxu0 %v2795
    %7690 = vmatmul.mubr.bf16.gmra.mrb[0].mxu0 %v2794
    %v7691 = vpop.f32.mrb[0].mxu0
    %v7692 = vadd.f32 %v7643, %v7691
    %v7693 = vpop.f32.mrb[0].mxu0
    %v7694 = vpop.f32.mrb[0].mxu0
    %v7695 = vadd.f32 %v7646, %v7694
    %v7696 = vpop.f32.mrb[0].mxu0
    %7697 = vmatprep.mubr.bf16.mxu0 %v2858
    %7698 = vmatmul.mubr.bf16.gmra.mrb[0].mxu0 %v2857
    %v7699 = vpop.f32.mrb[0].mxu0
    %v7700 = vadd.f32 %v7651, %v7699
    %v7701 = vpop.f32.mrb[0].mxu0
    %v7702 = vpop.f32.mrb[0].mxu0
    %v7703 = vadd.f32 %v7654, %v7702
    %v7704 = vpop.f32.mrb[0].mxu0
    %7705 = vdwg.mxu0
    %7706 = vmatprep.subr.bf16.mxu0 0
    %7707 = vmatpush1.bf16.msra.mxu0 %v6170
    %7708 = vmatprep.subr.bf16.mxu0 0
    %7709 = vmatpush1.bf16.msra.mxu0 %v6171
    %7710 = vmatprep.subr.bf16.mxu0 0
    %7711 = vmatpush1.bf16.msra.mxu0 %v6172
    %7712 = vmatprep.subr.bf16.mxu0 0
    %7713 = vmatpush1.bf16.msra.mxu0 %v6173
    %7714 = vmatprep.subr.bf16.mxu0 0
    %7715 = vmatpush1.bf16.msra.mxu0 %v6174
    %7716 = vmatprep.subr.bf16.mxu0 0
    %7717 = vmatpush1.bf16.msra.mxu0 %v6175
    %7718 = vmatprep.subr.bf16.mxu0 0
    %7719 = vmatpush1.bf16.msra.mxu0 %v6176
    %7720 = vmatprep.subr.bf16.mxu0 0
    %7721 = vmatpush1.bf16.msra.mxu0 %v6177
    %7722 = vmatprep.subr.bf16.mxu0 0
    %7723 = vmatpush1.bf16.msra.mxu0 %v6178
    %7724 = vmatprep.subr.bf16.mxu0 0
    %7725 = vmatpush1.bf16.msra.mxu0 %v6179
    %7726 = vmatprep.subr.bf16.mxu0 0
    %7727 = vmatpush1.bf16.msra.mxu0 %v6180
    %7728 = vmatprep.subr.bf16.mxu0 0
    %7729 = vmatpush1.bf16.msra.mxu0 %v6181
    %7730 = vmatprep.subr.bf16.mxu0 0
    %7731 = vmatpush1.bf16.msra.mxu0 %v6182
    %7732 = vmatprep.subr.bf16.mxu0 0
    %7733 = vmatpush1.bf16.msra.mxu0 %v6183
    %7734 = vmatprep.subr.bf16.mxu0 0
    %7735 = vmatpush1.bf16.msra.mxu0 %v6184
    %7736 = vmatprep.subr.bf16.mxu0 0
    %7737 = vmatpush1.bf16.msra.mxu0 %v6185
    %7738 = vmatprep.mubr.bf16.mxu0 %v2797
    %7739 = vmatmul.mubr.bf16.gmra.mrb[0].mxu0 %v2796
    %v7740 = vpop.f32.mrb[0].mxu0
    %v7741 = vadd.f32 %v7692, %v7740
    %v7742 = vpop.f32.mrb[0].mxu0
    %v7743 = vpop.f32.mrb[0].mxu0
    %v7744 = vadd.f32 %v7695, %v7743
    %v7745 = vpop.f32.mrb[0].mxu0
    %7746 = vmatprep.mubr.bf16.mxu0 %v2860
    %7747 = vmatmul.mubr.bf16.gmra.mrb[0].mxu0 %v2859
    %v7748 = vpop.f32.mrb[0].mxu0
    %v7749 = vadd.f32 %v7700, %v7748
    %v7750 = vpop.f32.mrb[0].mxu0
    %v7751 = vpop.f32.mrb[0].mxu0
    %v7752 = vadd.f32 %v7703, %v7751
    %v7753 = vpop.f32.mrb[0].mxu0
    %7754 = vdwg.mxu0
    %7755 = vmatprep.subr.bf16.mxu0 0
    %7756 = vmatpush1.bf16.msra.mxu0 %v6186
    %7757 = vmatprep.subr.bf16.mxu0 0
    %7758 = vmatpush1.bf16.msra.mxu0 %v6187
    %7759 = vmatprep.subr.bf16.mxu0 0
    %7760 = vmatpush1.bf16.msra.mxu0 %v6188
    %7761 = vmatprep.subr.bf16.mxu0 0
    %7762 = vmatpush1.bf16.msra.mxu0 %v6189
    %7763 = vmatprep.subr.bf16.mxu0 0
    %7764 = vmatpush1.bf16.msra.mxu0 %v6190
    %7765 = vmatprep.subr.bf16.mxu0 0
    %7766 = vmatpush1.bf16.msra.mxu0 %v6191
    %7767 = vmatprep.subr.bf16.mxu0 0
    %7768 = vmatpush1.bf16.msra.mxu0 %v6192
    %7769 = vmatprep.subr.bf16.mxu0 0
    %7770 = vmatpush1.bf16.msra.mxu0 %v6193
    %7771 = vmatprep.subr.bf16.mxu0 0
    %7772 = vmatpush1.bf16.msra.mxu0 %v6194
    %7773 = vmatprep.subr.bf16.mxu0 0
    %7774 = vmatpush1.bf16.msra.mxu0 %v6195
    %7775 = vmatprep.subr.bf16.mxu0 0
    %7776 = vmatpush1.bf16.msra.mxu0 %v6196
    %7777 = vmatprep.subr.bf16.mxu0 0
    %7778 = vmatpush1.bf16.msra.mxu0 %v6197
    %7779 = vmatprep.subr.bf16.mxu0 0
    %7780 = vmatpush1.bf16.msra.mxu0 %v6198
    %7781 = vmatprep.subr.bf16.mxu0 0
    %7782 = vmatpush1.bf16.msra.mxu0 %v6199
    %7783 = vmatprep.subr.bf16.mxu0 0
    %7784 = vmatpush1.bf16.msra.mxu0 %v6200
    %7785 = vmatprep.subr.bf16.mxu0 0
    %7786 = vmatpush1.bf16.msra.mxu0 %v6201
    %7787 = vmatprep.mubr.bf16.mxu0 %v2799
    %7788 = vmatmul.mubr.bf16.gmra.mrb[0].mxu0 %v2798
    %v7789 = vpop.f32.mrb[0].mxu0
    %v7790 = vadd.f32 %v7741, %v7789
    %v7791 = vpop.f32.mrb[0].mxu0
    %v7792 = vpop.f32.mrb[0].mxu0
    %v7793 = vadd.f32 %v7744, %v7792
    %v7794 = vpop.f32.mrb[0].mxu0
    %7795 = vmatprep.mubr.bf16.mxu0 %v2862
    %7796 = vmatmul.mubr.bf16.gmra.mrb[0].mxu0 %v2861
    %v7797 = vpop.f32.mrb[0].mxu0
    %v7798 = vadd.f32 %v7749, %v7797
    %v7799 = vpop.f32.mrb[0].mxu0
    %v7800 = vpop.f32.mrb[0].mxu0
    %v7801 = vadd.f32 %v7752, %v7800
    %v7802 = vpop.f32.mrb[0].mxu0
    %7803 = vdwg.mxu0
    %7804 = vmatprep.subr.bf16.mxu0 0
    %7805 = vmatpush1.bf16.msra.mxu0 %v6202
    %7806 = vmatprep.subr.bf16.mxu0 0
    %7807 = vmatpush1.bf16.msra.mxu0 %v6203
    %7808 = vmatprep.subr.bf16.mxu0 0
    %7809 = vmatpush1.bf16.msra.mxu0 %v6204
    %7810 = vmatprep.subr.bf16.mxu0 0
    %7811 = vmatpush1.bf16.msra.mxu0 %v6205
    %7812 = vmatprep.subr.bf16.mxu0 0
    %7813 = vmatpush1.bf16.msra.mxu0 %v6206
    %7814 = vmatprep.subr.bf16.mxu0 0
    %7815 = vmatpush1.bf16.msra.mxu0 %v6207
    %7816 = vmatprep.subr.bf16.mxu0 0
    %7817 = vmatpush1.bf16.msra.mxu0 %v6208
    %7818 = vmatprep.subr.bf16.mxu0 0
    %7819 = vmatpush1.bf16.msra.mxu0 %v6209
    %7820 = vmatprep.subr.bf16.mxu0 0
    %7821 = vmatpush1.bf16.msra.mxu0 %v6210
    %7822 = vmatprep.subr.bf16.mxu0 0
    %7823 = vmatpush1.bf16.msra.mxu0 %v6211
    %7824 = vmatprep.subr.bf16.mxu0 0
    %7825 = vmatpush1.bf16.msra.mxu0 %v6212
    %7826 = vmatprep.subr.bf16.mxu0 0
    %7827 = vmatpush1.bf16.msra.mxu0 %v6213
    %7828 = vmatprep.subr.bf16.mxu0 0
    %7829 = vmatpush1.bf16.msra.mxu0 %v6214
    %7830 = vmatprep.subr.bf16.mxu0 0
    %7831 = vmatpush1.bf16.msra.mxu0 %v6215
    %7832 = vmatprep.subr.bf16.mxu0 0
    %7833 = vmatpush1.bf16.msra.mxu0 %v6216
    %7834 = vmatprep.subr.bf16.mxu0 0
    %7835 = vmatpush1.bf16.msra.mxu0 %v6217
    %7836 = vmatprep.mubr.bf16.mxu0 %v2801
    %7837 = vmatmul.mubr.bf16.gmra.mrb[0].mxu0 %v2800
    %v7838 = vpop.f32.mrb[0].mxu0
    %v7839 = vadd.f32 %v7790, %v7838
    %v7840 = vpop.f32.mrb[0].mxu0
    %v7841 = vpop.f32.mrb[0].mxu0
    %v7842 = vadd.f32 %v7793, %v7841
    %v7843 = vpop.f32.mrb[0].mxu0
    %7844 = vmatprep.mubr.bf16.mxu0 %v2864
    %7845 = vmatmul.mubr.bf16.gmra.mrb[0].mxu0 %v2863
    %v7846 = vpop.f32.mrb[0].mxu0
    %v7847 = vadd.f32 %v7798, %v7846
    %v7848 = vpop.f32.mrb[0].mxu0
    %v7849 = vpop.f32.mrb[0].mxu0
    %v7850 = vadd.f32 %v7801, %v7849
    %v7851 = vpop.f32.mrb[0].mxu0
    %7852 = vdwg.mxu0
    %7853 = vmatprep.subr.bf16.mxu0 0
    %7854 = vmatpush1.bf16.msra.mxu0 %v6218
    %7855 = vmatprep.subr.bf16.mxu0 0
    %7856 = vmatpush1.bf16.msra.mxu0 %v6219
    %7857 = vmatprep.subr.bf16.mxu0 0
    %7858 = vmatpush1.bf16.msra.mxu0 %v6220
    %7859 = vmatprep.subr.bf16.mxu0 0
    %7860 = vmatpush1.bf16.msra.mxu0 %v6221
    %7861 = vmatprep.subr.bf16.mxu0 0
    %7862 = vmatpush1.bf16.msra.mxu0 %v6222
    %7863 = vmatprep.subr.bf16.mxu0 0
    %7864 = vmatpush1.bf16.msra.mxu0 %v6223
    %7865 = vmatprep.subr.bf16.mxu0 0
    %7866 = vmatpush1.bf16.msra.mxu0 %v6224
    %7867 = vmatprep.subr.bf16.mxu0 0
    %7868 = vmatpush1.bf16.msra.mxu0 %v6225
    %7869 = vmatprep.subr.bf16.mxu0 0
    %7870 = vmatpush1.bf16.msra.mxu0 %v6226
    %7871 = vmatprep.subr.bf16.mxu0 0
    %7872 = vmatpush1.bf16.msra.mxu0 %v6227
    %7873 = vmatprep.subr.bf16.mxu0 0
    %7874 = vmatpush1.bf16.msra.mxu0 %v6228
    %7875 = vmatprep.subr.bf16.mxu0 0
    %7876 = vmatpush1.bf16.msra.mxu0 %v6229
    %7877 = vmatprep.subr.bf16.mxu0 0
    %7878 = vmatpush1.bf16.msra.mxu0 %v6230
    %7879 = vmatprep.subr.bf16.mxu0 0
    %7880 = vmatpush1.bf16.msra.mxu0 %v6231
    %7881 = vmatprep.subr.bf16.mxu0 0
    %7882 = vmatpush1.bf16.msra.mxu0 %v6232
    %7883 = vmatprep.subr.bf16.mxu0 0
    %7884 = vmatpush1.bf16.msra.mxu0 %v6233
    %7885 = vmatprep.mubr.bf16.mxu0 %v2803
    %7886 = vmatmul.mubr.bf16.gmra.mrb[0].mxu0 %v2802
    %v7887 = vpop.f32.mrb[0].mxu0
    %v7888 = vadd.f32 %v7839, %v7887
    %v7889 = vpop.f32.mrb[0].mxu0
    %v7890 = vpop.f32.mrb[0].mxu0
    %v7891 = vadd.f32 %v7842, %v7890
    %v7892 = vpop.f32.mrb[0].mxu0
    %7893 = vmatprep.mubr.bf16.mxu0 %v2866
    %7894 = vmatmul.mubr.bf16.gmra.mrb[0].mxu0 %v2865
    %v7895 = vpop.f32.mrb[0].mxu0
    %v7896 = vadd.f32 %v7847, %v7895
    %v7897 = vpop.f32.mrb[0].mxu0
    %v7898 = vpop.f32.mrb[0].mxu0
    %v7899 = vadd.f32 %v7850, %v7898
    %v7900 = vpop.f32.mrb[0].mxu0
    %7901 = vdwg.mxu0
    %7902 = vmatprep.subr.bf16.mxu0 0
    %7903 = vmatpush1.bf16.msra.mxu0 %v6234
    %7904 = vmatprep.subr.bf16.mxu0 0
    %7905 = vmatpush1.bf16.msra.mxu0 %v6235
    %7906 = vmatprep.subr.bf16.mxu0 0
    %7907 = vmatpush1.bf16.msra.mxu0 %v6236
    %7908 = vmatprep.subr.bf16.mxu0 0
    %7909 = vmatpush1.bf16.msra.mxu0 %v6237
    %7910 = vmatprep.subr.bf16.mxu0 0
    %7911 = vmatpush1.bf16.msra.mxu0 %v6238
    %7912 = vmatprep.subr.bf16.mxu0 0
    %7913 = vmatpush1.bf16.msra.mxu0 %v6239
    %7914 = vmatprep.subr.bf16.mxu0 0
    %7915 = vmatpush1.bf16.msra.mxu0 %v6240
    %7916 = vmatprep.subr.bf16.mxu0 0
    %7917 = vmatpush1.bf16.msra.mxu0 %v6241
    %7918 = vmatprep.subr.bf16.mxu0 0
    %7919 = vmatpush1.bf16.msra.mxu0 %v6242
    %7920 = vmatprep.subr.bf16.mxu0 0
    %7921 = vmatpush1.bf16.msra.mxu0 %v6243
    %7922 = vmatprep.subr.bf16.mxu0 0
    %7923 = vmatpush1.bf16.msra.mxu0 %v6244
    %7924 = vmatprep.subr.bf16.mxu0 0
    %7925 = vmatpush1.bf16.msra.mxu0 %v6245
    %7926 = vmatprep.subr.bf16.mxu0 0
    %7927 = vmatpush1.bf16.msra.mxu0 %v6246
    %7928 = vmatprep.subr.bf16.mxu0 0
    %7929 = vmatpush1.bf16.msra.mxu0 %v6247
    %7930 = vmatprep.subr.bf16.mxu0 0
    %7931 = vmatpush1.bf16.msra.mxu0 %v6248
    %7932 = vmatprep.subr.bf16.mxu0 0
    %7933 = vmatpush1.bf16.msra.mxu0 %v6249
    %7934 = vmatprep.mubr.bf16.mxu0 %v2805
    %7935 = vmatmul.mubr.bf16.gmra.mrb[0].mxu0 %v2804
    %v7936 = vpop.f32.mrb[0].mxu0
    %v7937 = vadd.f32 %v7888, %v7936
    %v7938 = vpop.f32.mrb[0].mxu0
    %v7939 = vpop.f32.mrb[0].mxu0
    %v7940 = vadd.f32 %v7891, %v7939
    %v7941 = vpop.f32.mrb[0].mxu0
    %7942 = vmatprep.mubr.bf16.mxu0 %v2868
    %7943 = vmatmul.mubr.bf16.gmra.mrb[0].mxu0 %v2867
    %v7944 = vpop.f32.mrb[0].mxu0
    %v7945 = vadd.f32 %v7896, %v7944
    %v7946 = vpop.f32.mrb[0].mxu0
    %v7947 = vpop.f32.mrb[0].mxu0
    %v7948 = vadd.f32 %v7899, %v7947
    %v7949 = vpop.f32.mrb[0].mxu0
    %7950 = vdwg.mxu0
    %7951 = vmatprep.subr.bf16.mxu0 0
    %7952 = vmatpush1.bf16.msra.mxu0 %v6250
    %7953 = vmatprep.subr.bf16.mxu0 0
    %7954 = vmatpush1.bf16.msra.mxu0 %v6251
    %7955 = vmatprep.subr.bf16.mxu0 0
    %7956 = vmatpush1.bf16.msra.mxu0 %v6252
    %7957 = vmatprep.subr.bf16.mxu0 0
    %7958 = vmatpush1.bf16.msra.mxu0 %v6253
    %7959 = vmatprep.subr.bf16.mxu0 0
    %7960 = vmatpush1.bf16.msra.mxu0 %v6254
    %7961 = vmatprep.subr.bf16.mxu0 0
    %7962 = vmatpush1.bf16.msra.mxu0 %v6255
    %7963 = vmatprep.subr.bf16.mxu0 0
    %7964 = vmatpush1.bf16.msra.mxu0 %v6256
    %7965 = vmatprep.subr.bf16.mxu0 0
    %7966 = vmatpush1.bf16.msra.mxu0 %v6257
    %7967 = vmatprep.subr.bf16.mxu0 0
    %7968 = vmatpush1.bf16.msra.mxu0 %v6258
    %7969 = vmatprep.subr.bf16.mxu0 0
    %7970 = vmatpush1.bf16.msra.mxu0 %v6259
    %7971 = vmatprep.subr.bf16.mxu0 0
    %7972 = vmatpush1.bf16.msra.mxu0 %v6260
    %7973 = vmatprep.subr.bf16.mxu0 0
    %7974 = vmatpush1.bf16.msra.mxu0 %v6261
    %7975 = vmatprep.subr.bf16.mxu0 0
    %7976 = vmatpush1.bf16.msra.mxu0 %v6262
    %7977 = vmatprep.subr.bf16.mxu0 0
    %7978 = vmatpush1.bf16.msra.mxu0 %v6263
    %7979 = vmatprep.subr.bf16.mxu0 0
    %7980 = vmatpush1.bf16.msra.mxu0 %v6264
    %7981 = vmatprep.subr.bf16.mxu0 0
    %7982 = vmatpush1.bf16.msra.mxu0 %v6265
    %7983 = vmatprep.mubr.bf16.mxu0 %v2807
    %7984 = vmatmul.mubr.bf16.gmra.mrb[0].mxu0 %v2806
    %v7985 = vpop.f32.mrb[0].mxu0
    %v7986 = vadd.f32 %v7937, %v7985
    %v7987 = vpop.f32.mrb[0].mxu0
    %v7988 = vpop.f32.mrb[0].mxu0
    %v7989 = vadd.f32 %v7940, %v7988
    %v7990 = vpop.f32.mrb[0].mxu0
    %7991 = vmatprep.mubr.bf16.mxu0 %v2870
    %7992 = vmatmul.mubr.bf16.gmra.mrb[0].mxu0 %v2869
    %v7993 = vpop.f32.mrb[0].mxu0
    %v7994 = vadd.f32 %v7945, %v7993
    %v7995 = vpop.f32.mrb[0].mxu0
    %v7996 = vpop.f32.mrb[0].mxu0
    %v7997 = vadd.f32 %v7948, %v7996
    %v7998 = vpop.f32.mrb[0].mxu0
    %7999 = vdwg.mxu0
    %8000 = vmatprep.subr.bf16.mxu0 0
    %8001 = vmatpush1.bf16.msra.mxu0 %v6266
    %8002 = vmatprep.subr.bf16.mxu0 0
    %8003 = vmatpush1.bf16.msra.mxu0 %v6267
    %8004 = vmatprep.subr.bf16.mxu0 0
    %8005 = vmatpush1.bf16.msra.mxu0 %v6268
    %8006 = vmatprep.subr.bf16.mxu0 0
    %8007 = vmatpush1.bf16.msra.mxu0 %v6269
    %8008 = vmatprep.subr.bf16.mxu0 0
    %8009 = vmatpush1.bf16.msra.mxu0 %v6270
    %8010 = vmatprep.subr.bf16.mxu0 0
    %8011 = vmatpush1.bf16.msra.mxu0 %v6271
    %8012 = vmatprep.subr.bf16.mxu0 0
    %8013 = vmatpush1.bf16.msra.mxu0 %v6272
    %8014 = vmatprep.subr.bf16.mxu0 0
    %8015 = vmatpush1.bf16.msra.mxu0 %v6273
    %8016 = vmatprep.subr.bf16.mxu0 0
    %8017 = vmatpush1.bf16.msra.mxu0 %v6274
    %8018 = vmatprep.subr.bf16.mxu0 0
    %8019 = vmatpush1.bf16.msra.mxu0 %v6275
    %8020 = vmatprep.subr.bf16.mxu0 0
    %8021 = vmatpush1.bf16.msra.mxu0 %v6276
    %8022 = vmatprep.subr.bf16.mxu0 0
    %8023 = vmatpush1.bf16.msra.mxu0 %v6277
    %8024 = vmatprep.subr.bf16.mxu0 0
    %8025 = vmatpush1.bf16.msra.mxu0 %v6278
    %8026 = vmatprep.subr.bf16.mxu0 0
    %8027 = vmatpush1.bf16.msra.mxu0 %v6279
    %8028 = vmatprep.subr.bf16.mxu0 0
    %8029 = vmatpush1.bf16.msra.mxu0 %v6280
    %8030 = vmatprep.subr.bf16.mxu0 0
    %8031 = vmatpush1.bf16.msra.mxu0 %v6281
    %8032 = vmatprep.mubr.bf16.mxu0 %v2809
    %8033 = vmatmul.mubr.bf16.gmra.mrb[0].mxu0 %v2808
    %v8034 = vpop.f32.mrb[0].mxu0
    %v8035 = vadd.f32 %v7986, %v8034
    %v8036 = vpop.f32.mrb[0].mxu0
    %v8037 = vpop.f32.mrb[0].mxu0
    %v8038 = vadd.f32 %v7989, %v8037
    %v8039 = vpop.f32.mrb[0].mxu0
    %8040 = vmatprep.mubr.bf16.mxu0 %v2872
    %8041 = vmatmul.mubr.bf16.gmra.mrb[0].mxu0 %v2871
    %v8042 = vpop.f32.mrb[0].mxu0
    %v8043 = vadd.f32 %v7994, %v8042
    %v8044 = vpop.f32.mrb[0].mxu0
    %v8045 = vpop.f32.mrb[0].mxu0
    %v8046 = vadd.f32 %v7997, %v8045
    %v8047 = vpop.f32.mrb[0].mxu0
    %8048 = vdwg.mxu0
    %8049 = vmatprep.subr.bf16.mxu0 0
    %8050 = vmatpush1.bf16.msra.mxu0 %v6282
    %8051 = vmatprep.subr.bf16.mxu0 0
    %8052 = vmatpush1.bf16.msra.mxu0 %v6283
    %8053 = vmatprep.subr.bf16.mxu0 0
    %8054 = vmatpush1.bf16.msra.mxu0 %v6284
    %8055 = vmatprep.subr.bf16.mxu0 0
    %8056 = vmatpush1.bf16.msra.mxu0 %v6285
    %8057 = vmatprep.subr.bf16.mxu0 0
    %8058 = vmatpush1.bf16.msra.mxu0 %v6286
    %8059 = vmatprep.subr.bf16.mxu0 0
    %8060 = vmatpush1.bf16.msra.mxu0 %v6287
    %8061 = vmatprep.subr.bf16.mxu0 0
    %8062 = vmatpush1.bf16.msra.mxu0 %v6288
    %8063 = vmatprep.subr.bf16.mxu0 0
    %8064 = vmatpush1.bf16.msra.mxu0 %v6289
    %8065 = vmatprep.subr.bf16.mxu0 0
    %8066 = vmatpush1.bf16.msra.mxu0 %v6290
    %8067 = vmatprep.subr.bf16.mxu0 0
    %8068 = vmatpush1.bf16.msra.mxu0 %v6291
    %8069 = vmatprep.subr.bf16.mxu0 0
    %8070 = vmatpush1.bf16.msra.mxu0 %v6292
    %8071 = vmatprep.subr.bf16.mxu0 0
    %8072 = vmatpush1.bf16.msra.mxu0 %v6293
    %8073 = vmatprep.subr.bf16.mxu0 0
    %8074 = vmatpush1.bf16.msra.mxu0 %v6294
    %8075 = vmatprep.subr.bf16.mxu0 0
    %8076 = vmatpush1.bf16.msra.mxu0 %v6295
    %8077 = vmatprep.subr.bf16.mxu0 0
    %8078 = vmatpush1.bf16.msra.mxu0 %v6296
    %8079 = vmatprep.subr.bf16.mxu0 0
    %8080 = vmatpush1.bf16.msra.mxu0 %v6297
    %8081 = vmatprep.mubr.bf16.mxu0 %v2811
    %8082 = vmatmul.mubr.bf16.gmra.mrb[0].mxu0 %v2810
    %v8083 = vpop.f32.mrb[0].mxu0
    %v8084 = vadd.f32 %v8035, %v8083
    %v8085 = vpop.f32.mrb[0].mxu0
    %v8086 = vpop.f32.mrb[0].mxu0
    %v8087 = vadd.f32 %v8038, %v8086
    %v8088 = vpop.f32.mrb[0].mxu0
    %8089 = vmatprep.mubr.bf16.mxu0 %v2874
    %8090 = vmatmul.mubr.bf16.gmra.mrb[0].mxu0 %v2873
    %v8091 = vpop.f32.mrb[0].mxu0
    %v8092 = vadd.f32 %v8043, %v8091
    %v8093 = vpop.f32.mrb[0].mxu0
    %v8094 = vpop.f32.mrb[0].mxu0
    %v8095 = vadd.f32 %v8046, %v8094
    %v8096 = vpop.f32.mrb[0].mxu0
    %8097 = vdwg.mxu0
    %8098 = vmatprep.subr.bf16.mxu0 0
    %8099 = vmatpush1.bf16.msra.mxu0 %v6298
    %8100 = vmatprep.subr.bf16.mxu0 0
    %8101 = vmatpush1.bf16.msra.mxu0 %v6299
    %8102 = vmatprep.subr.bf16.mxu0 0
    %8103 = vmatpush1.bf16.msra.mxu0 %v6300
    %8104 = vmatprep.subr.bf16.mxu0 0
    %8105 = vmatpush1.bf16.msra.mxu0 %v6301
    %8106 = vmatprep.subr.bf16.mxu0 0
    %8107 = vmatpush1.bf16.msra.mxu0 %v6302
    %8108 = vmatprep.subr.bf16.mxu0 0
    %8109 = vmatpush1.bf16.msra.mxu0 %v6303
    %8110 = vmatprep.subr.bf16.mxu0 0
    %8111 = vmatpush1.bf16.msra.mxu0 %v6304
    %8112 = vmatprep.subr.bf16.mxu0 0
    %8113 = vmatpush1.bf16.msra.mxu0 %v6305
    %8114 = vmatprep.subr.bf16.mxu0 0
    %8115 = vmatpush1.bf16.msra.mxu0 %v6306
    %8116 = vmatprep.subr.bf16.mxu0 0
    %8117 = vmatpush1.bf16.msra.mxu0 %v6307
    %8118 = vmatprep.subr.bf16.mxu0 0
    %8119 = vmatpush1.bf16.msra.mxu0 %v6308
    %8120 = vmatprep.subr.bf16.mxu0 0
    %8121 = vmatpush1.bf16.msra.mxu0 %v6309
    %8122 = vmatprep.subr.bf16.mxu0 0
    %8123 = vmatpush1.bf16.msra.mxu0 %v6310
    %8124 = vmatprep.subr.bf16.mxu0 0
    %8125 = vmatpush1.bf16.msra.mxu0 %v6311
    %8126 = vmatprep.subr.bf16.mxu0 0
    %8127 = vmatpush1.bf16.msra.mxu0 %v6312
    %8128 = vmatprep.subr.bf16.mxu0 0
    %8129 = vmatpush1.bf16.msra.mxu0 %v6313
    %8130 = vmatprep.mubr.bf16.mxu0 %v2813
    %8131 = vmatmul.mubr.bf16.gmra.mrb[0].mxu0 %v2812
    %v8132 = vpop.f32.mrb[0].mxu0
    %v8133 = vadd.f32 %v8084, %v8132
    %v8134 = vpop.f32.mrb[0].mxu0
    %v8135 = vpop.f32.mrb[0].mxu0
    %v8136 = vadd.f32 %v8087, %v8135
    %v8137 = vpop.f32.mrb[0].mxu0
    %8138 = vmatprep.mubr.bf16.mxu0 %v2876
    %8139 = vmatmul.mubr.bf16.gmra.mrb[0].mxu0 %v2875
    %v8140 = vpop.f32.mrb[0].mxu0
    %v8141 = vadd.f32 %v8092, %v8140
    %v8142 = vpop.f32.mrb[0].mxu0
    %v8143 = vpop.f32.mrb[0].mxu0
    %v8144 = vadd.f32 %v8095, %v8143
    %v8145 = vpop.f32.mrb[0].mxu0
    %8146 = vdwg.mxu0
    %8147 = vmatprep.subr.bf16.mxu0 0
    %8148 = vmatpush1.bf16.msra.mxu0 %v6314
    %8149 = vmatprep.subr.bf16.mxu0 0
    %8150 = vmatpush1.bf16.msra.mxu0 %v6315
    %8151 = vmatprep.subr.bf16.mxu0 0
    %8152 = vmatpush1.bf16.msra.mxu0 %v6316
    %8153 = vmatprep.subr.bf16.mxu0 0
    %8154 = vmatpush1.bf16.msra.mxu0 %v6317
    %8155 = vmatprep.subr.bf16.mxu0 0
    %8156 = vmatpush1.bf16.msra.mxu0 %v6318
    %8157 = vmatprep.subr.bf16.mxu0 0
    %8158 = vmatpush1.bf16.msra.mxu0 %v6319
    %8159 = vmatprep.subr.bf16.mxu0 0
    %8160 = vmatpush1.bf16.msra.mxu0 %v6320
    %8161 = vmatprep.subr.bf16.mxu0 0
    %8162 = vmatpush1.bf16.msra.mxu0 %v6321
    %8163 = vmatprep.subr.bf16.mxu0 0
    %8164 = vmatpush1.bf16.msra.mxu0 %v6322
    %8165 = vmatprep.subr.bf16.mxu0 0
    %8166 = vmatpush1.bf16.msra.mxu0 %v6323
    %8167 = vmatprep.subr.bf16.mxu0 0
    %8168 = vmatpush1.bf16.msra.mxu0 %v6324
    %8169 = vmatprep.subr.bf16.mxu0 0
    %8170 = vmatpush1.bf16.msra.mxu0 %v6325
    %8171 = vmatprep.subr.bf16.mxu0 0
    %8172 = vmatpush1.bf16.msra.mxu0 %v6326
    %8173 = vmatprep.subr.bf16.mxu0 0
    %8174 = vmatpush1.bf16.msra.mxu0 %v6327
    %8175 = vmatprep.subr.bf16.mxu0 0
    %8176 = vmatpush1.bf16.msra.mxu0 %v6328
    %8177 = vmatprep.subr.bf16.mxu0 0
    %8178 = vmatpush1.bf16.msra.mxu0 %v6329
    %8179 = vmatprep.mubr.bf16.mxu0 %v2815
    %8180 = vmatmul.mubr.bf16.gmra.mrb[0].mxu0 %v2814
    %v8181 = vpop.f32.mrb[0].mxu0
    %v8182 = vadd.f32 %v8133, %v8181
    %v8183 = vpop.f32.mrb[0].mxu0
    %v8184 = vpop.f32.mrb[0].mxu0
    %v8185 = vadd.f32 %v8136, %v8184
    %v8186 = vpop.f32.mrb[0].mxu0
    %8187 = vmatprep.mubr.bf16.mxu0 %v2878
    %8188 = vmatmul.mubr.bf16.gmra.mrb[0].mxu0 %v2877
    %v8189 = vpop.f32.mrb[0].mxu0
    %v8190 = vadd.f32 %v8141, %v8189
    %v8191 = vpop.f32.mrb[0].mxu0
    %v8192 = vpop.f32.mrb[0].mxu0
    %v8193 = vadd.f32 %v8144, %v8192
    %v8194 = vpop.f32.mrb[0].mxu0
    %8195 = vdwg.mxu0
    %8196 = vmatprep.subr.bf16.mxu0 0
    %8197 = vmatpush1.bf16.msra.mxu0 %v6330
    %8198 = vmatprep.subr.bf16.mxu0 0
    %8199 = vmatpush1.bf16.msra.mxu0 %v6331
    %8200 = vmatprep.subr.bf16.mxu0 0
    %8201 = vmatpush1.bf16.msra.mxu0 %v6332
    %8202 = vmatprep.subr.bf16.mxu0 0
    %8203 = vmatpush1.bf16.msra.mxu0 %v6333
    %8204 = vmatprep.subr.bf16.mxu0 0
    %8205 = vmatpush1.bf16.msra.mxu0 %v6334
    %8206 = vmatprep.subr.bf16.mxu0 0
    %8207 = vmatpush1.bf16.msra.mxu0 %v6335
    %8208 = vmatprep.subr.bf16.mxu0 0
    %8209 = vmatpush1.bf16.msra.mxu0 %v6336
    %8210 = vmatprep.subr.bf16.mxu0 0
    %8211 = vmatpush1.bf16.msra.mxu0 %v6337
    %8212 = vmatprep.subr.bf16.mxu0 0
    %8213 = vmatpush1.bf16.msra.mxu0 %v6338
    %8214 = vmatprep.subr.bf16.mxu0 0
    %8215 = vmatpush1.bf16.msra.mxu0 %v6339
    %8216 = vmatprep.subr.bf16.mxu0 0
    %8217 = vmatpush1.bf16.msra.mxu0 %v6340
    %8218 = vmatprep.subr.bf16.mxu0 0
    %8219 = vmatpush1.bf16.msra.mxu0 %v6341
    %8220 = vmatprep.subr.bf16.mxu0 0
    %8221 = vmatpush1.bf16.msra.mxu0 %v6342
    %8222 = vmatprep.subr.bf16.mxu0 0
    %8223 = vmatpush1.bf16.msra.mxu0 %v6343
    %8224 = vmatprep.subr.bf16.mxu0 0
    %8225 = vmatpush1.bf16.msra.mxu0 %v6344
    %8226 = vmatprep.subr.bf16.mxu0 0
    %8227 = vmatpush1.bf16.msra.mxu0 %v6345
    %8228 = vmatprep.mubr.bf16.mxu0 %v2817
    %8229 = vmatmul.mubr.bf16.gmra.mrb[0].mxu0 %v2816
    %v8230 = vpop.f32.mrb[0].mxu0
    %v8231 = vadd.f32 %v8182, %v8230
    %v8232 = vpop.f32.mrb[0].mxu0
    %v8233 = vpop.f32.mrb[0].mxu0
    %v8234 = vadd.f32 %v8185, %v8233
    %v8235 = vpop.f32.mrb[0].mxu0
    %8236 = vmatprep.mubr.bf16.mxu0 %v2880
    %8237 = vmatmul.mubr.bf16.gmra.mrb[0].mxu0 %v2879
    %v8238 = vpop.f32.mrb[0].mxu0
    %v8239 = vadd.f32 %v8190, %v8238
    %v8240 = vpop.f32.mrb[0].mxu0
    %v8241 = vpop.f32.mrb[0].mxu0
    %v8242 = vadd.f32 %v8193, %v8241
    %v8243 = vpop.f32.mrb[0].mxu0
    %8244 = vdwg.mxu0
    %8245 = vmatprep.subr.bf16.mxu0 0
    %8246 = vmatpush1.bf16.msra.mxu0 %v6346
    %8247 = vmatprep.subr.bf16.mxu0 0
    %8248 = vmatpush1.bf16.msra.mxu0 %v6347
    %8249 = vmatprep.subr.bf16.mxu0 0
    %8250 = vmatpush1.bf16.msra.mxu0 %v6348
    %8251 = vmatprep.subr.bf16.mxu0 0
    %8252 = vmatpush1.bf16.msra.mxu0 %v6349
    %8253 = vmatprep.subr.bf16.mxu0 0
    %8254 = vmatpush1.bf16.msra.mxu0 %v6350
    %8255 = vmatprep.subr.bf16.mxu0 0
    %8256 = vmatpush1.bf16.msra.mxu0 %v6351
    %8257 = vmatprep.subr.bf16.mxu0 0
    %8258 = vmatpush1.bf16.msra.mxu0 %v6352
    %8259 = vmatprep.subr.bf16.mxu0 0
    %8260 = vmatpush1.bf16.msra.mxu0 %v6353
    %8261 = vmatprep.subr.bf16.mxu0 0
    %8262 = vmatpush1.bf16.msra.mxu0 %v6354
    %8263 = vmatprep.subr.bf16.mxu0 0
    %8264 = vmatpush1.bf16.msra.mxu0 %v6355
    %8265 = vmatprep.subr.bf16.mxu0 0
    %8266 = vmatpush1.bf16.msra.mxu0 %v6356
    %8267 = vmatprep.subr.bf16.mxu0 0
    %8268 = vmatpush1.bf16.msra.mxu0 %v6357
    %8269 = vmatprep.subr.bf16.mxu0 0
    %8270 = vmatpush1.bf16.msra.mxu0 %v6358
    %8271 = vmatprep.subr.bf16.mxu0 0
    %8272 = vmatpush1.bf16.msra.mxu0 %v6359
    %8273 = vmatprep.subr.bf16.mxu0 0
    %8274 = vmatpush1.bf16.msra.mxu0 %v6360
    %8275 = vmatprep.subr.bf16.mxu0 0
    %8276 = vmatpush1.bf16.msra.mxu0 %v6361
    %8277 = vmatprep.mubr.bf16.mxu0 %v2819
    %8278 = vmatmul.mubr.bf16.gmra.mrb[0].mxu0 %v2818
    %v8279 = vpop.f32.mrb[0].mxu0
    %v8280 = vadd.f32 %v8231, %v8279
    %v8281 = vpop.f32.mrb[0].mxu0
    %v8282 = vpop.f32.mrb[0].mxu0
    %v8283 = vadd.f32 %v8234, %v8282
    %v8284 = vpop.f32.mrb[0].mxu0
    %8285 = vmatprep.mubr.bf16.mxu0 %v2882
    %8286 = vmatmul.mubr.bf16.gmra.mrb[0].mxu0 %v2881
    %v8287 = vpop.f32.mrb[0].mxu0
    %v8288 = vadd.f32 %v8239, %v8287
    %v8289 = vpop.f32.mrb[0].mxu0
    %v8290 = vpop.f32.mrb[0].mxu0
    %v8291 = vadd.f32 %v8242, %v8290
    %v8292 = vpop.f32.mrb[0].mxu0
    %8293 = vdwg.mxu0
    %8294 = vmatprep.subr.bf16.mxu0 0
    %8295 = vmatpush1.bf16.msra.mxu0 %v6362
    %8296 = vmatprep.subr.bf16.mxu0 0
    %8297 = vmatpush1.bf16.msra.mxu0 %v6363
    %8298 = vmatprep.subr.bf16.mxu0 0
    %8299 = vmatpush1.bf16.msra.mxu0 %v6364
    %8300 = vmatprep.subr.bf16.mxu0 0
    %8301 = vmatpush1.bf16.msra.mxu0 %v6365
    %8302 = vmatprep.subr.bf16.mxu0 0
    %8303 = vmatpush1.bf16.msra.mxu0 %v6366
    %8304 = vmatprep.subr.bf16.mxu0 0
    %8305 = vmatpush1.bf16.msra.mxu0 %v6367
    %8306 = vmatprep.subr.bf16.mxu0 0
    %8307 = vmatpush1.bf16.msra.mxu0 %v6368
    %8308 = vmatprep.subr.bf16.mxu0 0
    %8309 = vmatpush1.bf16.msra.mxu0 %v6369
    %8310 = vmatprep.subr.bf16.mxu0 0
    %8311 = vmatpush1.bf16.msra.mxu0 %v6370
    %8312 = vmatprep.subr.bf16.mxu0 0
    %8313 = vmatpush1.bf16.msra.mxu0 %v6371
    %8314 = vmatprep.subr.bf16.mxu0 0
    %8315 = vmatpush1.bf16.msra.mxu0 %v6372
    %8316 = vmatprep.subr.bf16.mxu0 0
    %8317 = vmatpush1.bf16.msra.mxu0 %v6373
    %8318 = vmatprep.subr.bf16.mxu0 0
    %8319 = vmatpush1.bf16.msra.mxu0 %v6374
    %8320 = vmatprep.subr.bf16.mxu0 0
    %8321 = vmatpush1.bf16.msra.mxu0 %v6375
    %8322 = vmatprep.subr.bf16.mxu0 0
    %8323 = vmatpush1.bf16.msra.mxu0 %v6376
    %8324 = vmatprep.subr.bf16.mxu0 0
    %8325 = vmatpush1.bf16.msra.mxu0 %v6377
    %8326 = vmatprep.mubr.bf16.mxu0 %v2821
    %8327 = vmatmul.mubr.bf16.gmra.mrb[0].mxu0 %v2820
    %v8328 = vpop.f32.mrb[0].mxu0
    %v8329 = vadd.f32 %v8280, %v8328
    %v8330 = vpop.f32.mrb[0].mxu0
    %v8331 = vpop.f32.mrb[0].mxu0
    %v8332 = vadd.f32 %v8283, %v8331
    %v8333 = vpop.f32.mrb[0].mxu0
    %8334 = vmatprep.mubr.bf16.mxu0 %v2884
    %8335 = vmatmul.mubr.bf16.gmra.mrb[0].mxu0 %v2883
    %v8336 = vpop.f32.mrb[0].mxu0
    %v8337 = vadd.f32 %v8288, %v8336
    %v8338 = vpop.f32.mrb[0].mxu0
    %v8339 = vpop.f32.mrb[0].mxu0
    %v8340 = vadd.f32 %v8291, %v8339
    %v8341 = vpop.f32.mrb[0].mxu0
    %8342 = vdwg.mxu0
    %8343 = vmatprep.subr.bf16.mxu0 0
    %8344 = vmatpush1.bf16.msra.mxu0 %v6378
    %8345 = vmatprep.subr.bf16.mxu0 0
    %8346 = vmatpush1.bf16.msra.mxu0 %v6379
    %8347 = vmatprep.subr.bf16.mxu0 0
    %8348 = vmatpush1.bf16.msra.mxu0 %v6380
    %8349 = vmatprep.subr.bf16.mxu0 0
    %8350 = vmatpush1.bf16.msra.mxu0 %v6381
    %8351 = vmatprep.subr.bf16.mxu0 0
    %8352 = vmatpush1.bf16.msra.mxu0 %v6382
    %8353 = vmatprep.subr.bf16.mxu0 0
    %8354 = vmatpush1.bf16.msra.mxu0 %v6383
    %8355 = vmatprep.subr.bf16.mxu0 0
    %8356 = vmatpush1.bf16.msra.mxu0 %v6384
    %8357 = vmatprep.subr.bf16.mxu0 0
    %8358 = vmatpush1.bf16.msra.mxu0 %v6385
    %8359 = vmatprep.subr.bf16.mxu0 0
    %8360 = vmatpush1.bf16.msra.mxu0 %v6386
    %8361 = vmatprep.subr.bf16.mxu0 0
    %8362 = vmatpush1.bf16.msra.mxu0 %v6387
    %8363 = vmatprep.subr.bf16.mxu0 0
    %8364 = vmatpush1.bf16.msra.mxu0 %v6388
    %8365 = vmatprep.subr.bf16.mxu0 0
    %8366 = vmatpush1.bf16.msra.mxu0 %v6389
    %8367 = vmatprep.subr.bf16.mxu0 0
    %8368 = vmatpush1.bf16.msra.mxu0 %v6390
    %8369 = vmatprep.subr.bf16.mxu0 0
    %8370 = vmatpush1.bf16.msra.mxu0 %v6391
    %8371 = vmatprep.subr.bf16.mxu0 0
    %8372 = vmatpush1.bf16.msra.mxu0 %v6392
    %8373 = vmatprep.subr.bf16.mxu0 0
    %8374 = vmatpush1.bf16.msra.mxu0 %v6393
    %8375 = vmatprep.mubr.bf16.mxu0 %v2823
    %8376 = vmatmul.mubr.bf16.gmra.mrb[0].mxu0 %v2822
    %v8377 = vpop.f32.mrb[0].mxu0
    %v8378 = vadd.f32 %v8329, %v8377
    %v8379 = vpop.f32.mrb[0].mxu0
    %v8380 = vpop.f32.mrb[0].mxu0
    %v8381 = vadd.f32 %v8332, %v8380
    %v8382 = vpop.f32.mrb[0].mxu0
    %8383 = vmatprep.mubr.bf16.mxu0 %v2886
    %8384 = vmatmul.mubr.bf16.gmra.mrb[0].mxu0 %v2885
    %v8385 = vpop.f32.mrb[0].mxu0
    %v8386 = vadd.f32 %v8337, %v8385
    %v8387 = vpop.f32.mrb[0].mxu0
    %v8388 = vpop.f32.mrb[0].mxu0
    %v8389 = vadd.f32 %v8340, %v8388
    %v8390 = vpop.f32.mrb[0].mxu0
    %8391 = vdwg.mxu0
    %8392 = vmatprep.subr.bf16.mxu0 0
    %8393 = vmatpush1.bf16.msra.mxu0 %v6394
    %8394 = vmatprep.subr.bf16.mxu0 0
    %8395 = vmatpush1.bf16.msra.mxu0 %v6395
    %8396 = vmatprep.subr.bf16.mxu0 0
    %8397 = vmatpush1.bf16.msra.mxu0 %v6396
    %8398 = vmatprep.subr.bf16.mxu0 0
    %8399 = vmatpush1.bf16.msra.mxu0 %v6397
    %8400 = vmatprep.subr.bf16.mxu0 0
    %8401 = vmatpush1.bf16.msra.mxu0 %v6398
    %8402 = vmatprep.subr.bf16.mxu0 0
    %8403 = vmatpush1.bf16.msra.mxu0 %v6399
    %8404 = vmatprep.subr.bf16.mxu0 0
    %8405 = vmatpush1.bf16.msra.mxu0 %v6400
    %8406 = vmatprep.subr.bf16.mxu0 0
    %8407 = vmatpush1.bf16.msra.mxu0 %v6401
    %8408 = vmatprep.subr.bf16.mxu0 0
    %8409 = vmatpush1.bf16.msra.mxu0 %v6402
    %8410 = vmatprep.subr.bf16.mxu0 0
    %8411 = vmatpush1.bf16.msra.mxu0 %v6403
    %8412 = vmatprep.subr.bf16.mxu0 0
    %8413 = vmatpush1.bf16.msra.mxu0 %v6404
    %8414 = vmatprep.subr.bf16.mxu0 0
    %8415 = vmatpush1.bf16.msra.mxu0 %v6405
    %8416 = vmatprep.subr.bf16.mxu0 0
    %8417 = vmatpush1.bf16.msra.mxu0 %v6406
    %8418 = vmatprep.subr.bf16.mxu0 0
    %8419 = vmatpush1.bf16.msra.mxu0 %v6407
    %8420 = vmatprep.subr.bf16.mxu0 0
    %8421 = vmatpush1.bf16.msra.mxu0 %v6408
    %8422 = vmatprep.subr.bf16.mxu0 0
    %8423 = vmatpush1.bf16.msra.mxu0 %v6409
    %8424 = vmatprep.mubr.bf16.mxu0 %v2825
    %8425 = vmatmul.mubr.bf16.gmra.mrb[0].mxu0 %v2824
    %v8426 = vpop.f32.mrb[0].mxu0
    %v8427 = vadd.f32 %v8378, %v8426
    %v8428 = vpop.f32.mrb[0].mxu0
    %v8429 = vpop.f32.mrb[0].mxu0
    %v8430 = vadd.f32 %v8381, %v8429
    %v8431 = vpop.f32.mrb[0].mxu0
    %8432 = vmatprep.mubr.bf16.mxu0 %v2888
    %8433 = vmatmul.mubr.bf16.gmra.mrb[0].mxu0 %v2887
    %v8434 = vpop.f32.mrb[0].mxu0
    %v8435 = vadd.f32 %v8386, %v8434
    %v8436 = vpop.f32.mrb[0].mxu0
    %v8437 = vpop.f32.mrb[0].mxu0
    %v8438 = vadd.f32 %v8389, %v8437
    %v8439 = vpop.f32.mrb[0].mxu0
    %8440 = vdwg.mxu0
    %8441 = vmatprep.subr.bf16.mxu0 0
    %8442 = vmatpush1.bf16.msra.mxu0 %v6410
    %8443 = vmatprep.subr.bf16.mxu0 0
    %8444 = vmatpush1.bf16.msra.mxu0 %v6411
    %8445 = vmatprep.subr.bf16.mxu0 0
    %8446 = vmatpush1.bf16.msra.mxu0 %v6412
    %8447 = vmatprep.subr.bf16.mxu0 0
    %8448 = vmatpush1.bf16.msra.mxu0 %v6413
    %8449 = vmatprep.subr.bf16.mxu0 0
    %8450 = vmatpush1.bf16.msra.mxu0 %v6414
    %8451 = vmatprep.subr.bf16.mxu0 0
    %8452 = vmatpush1.bf16.msra.mxu0 %v6415
    %8453 = vmatprep.subr.bf16.mxu0 0
    %8454 = vmatpush1.bf16.msra.mxu0 %v6416
    %8455 = vmatprep.subr.bf16.mxu0 0
    %8456 = vmatpush1.bf16.msra.mxu0 %v6417
    %8457 = vmatprep.subr.bf16.mxu0 0
    %8458 = vmatpush1.bf16.msra.mxu0 0
    %8459 = vmatprep.subr.bf16.mxu0 0
    %8460 = vmatpush1.bf16.msra.mxu0 0
    %8461 = vmatprep.subr.bf16.mxu0 0
    %8462 = vmatpush1.bf16.msra.mxu0 0
    %8463 = vmatprep.subr.bf16.mxu0 0
    %8464 = vmatpush1.bf16.msra.mxu0 0
    %8465 = vmatprep.subr.bf16.mxu0 0
    %8466 = vmatpush1.bf16.msra.mxu0 0
    %8467 = vmatprep.subr.bf16.mxu0 0
    %8468 = vmatpush1.bf16.msra.mxu0 0
    %8469 = vmatprep.subr.bf16.mxu0 0
    %8470 = vmatpush1.bf16.msra.mxu0 0
    %8471 = vmatprep.subr.bf16.mxu0 0
    %8472 = vmatpush1.bf16.msra.mxu0 0
    %8473 = vmatprep.mubr.bf16.mxu0 0
    %8474 = vmatmul.mubr.bf16.gmra.mrb[0].mxu0 %v2826
    %v8475 = vpop.f32.mrb[0].mxu0
    %v8476 = vadd.f32 %v8427, %v8475
    %v8477 = vpop.f32.mrb[0].mxu0
    %v8478 = vpop.f32.mrb[0].mxu0
    %v8479 = vadd.f32 %v8430, %v8478
    %v8480 = vpop.f32.mrb[0].mxu0
    %8481 = vmatprep.mubr.bf16.mxu0 0
    %8482 = vmatmul.mubr.bf16.gmra.mrb[0].mxu0 %v2889
    %v8483 = vpop.f32.mrb[0].mxu0
    %v8484 = vadd.f32 %v8435, %v8483
    %v8485 = vpop.f32.mrb[0].mxu0
    %v8486 = vpop.f32.mrb[0].mxu0
    %v8487 = vadd.f32 %v8438, %v8486
    %v8488 = vpop.f32.mrb[0].mxu0
    %8489 = vdwg.mxu0
    %v8490 = vmax.f32 %v8476, 1e-20
    %v8491 = vmax.f32 %v8479, 1e-20
    %v8492 = vmax.f32 %v8484, 1e-20
    %v8493 = vmax.f32 %v8487, 1e-20
    %v8494 = vrcp.pop %v8490
    %v8495 = vrcp.pop %v8491
    %v8496 = vrcp.pop %v8492
    %v8497 = vrcp.pop %v8493
    %8499 = vset.pattern.permute.xlu0 127
    %8500 = vperm.xlu0 %8499, %v8494
    %v8501 = vpop.permute.xlu0 %8500
    %8504 = vset.pattern.permute.xlu0 127
    %8505 = vperm.xlu0 %8504, %v8495
    %v8506 = vpop.permute.xlu0 %8505
    %8509 = vset.pattern.permute.xlu0 127
    %8510 = vperm.xlu0 %8509, %v8496
    %v8511 = vpop.permute.xlu0 %8510
    %8514 = vset.pattern.permute.xlu0 127
    %8515 = vperm.xlu0 %8514, %v8497
    %v8516 = vpop.permute.xlu0 %8515
    %v8518 = vmul.f32 %v8476, %v8501
    %v8519 = vmul.f32 %v8479, %v8506
    %v8520 = vmul.f32 %v8484, %v8511
    %v8521 = vmul.f32 %v8487, %v8516
    %v8522 = vadd.f32 %v2697, %v8518
    %v8523 = vadd.f32 %v2698, %v8519
    %v8524 = vadd.f32 %v2699, %v8520
    %v8525 = vadd.f32 %v2700, %v8521
    %v8526 = vld [vmem:[#allocation15] sm:$0x1]
    %v8527 = vlaneseq
    %v8528 = vshrl.u32 %v8527, 7
    %v8529 = vsub.s32 0, %v8528
    %v8530 = vrot.slane %v8526, %v8529
    %v8531 = vadd.f32 %v8522, %v8530
    %v8532 = vadd.f32 %v8523, %v8530
    %v8533 = vadd.f32 %v8524, %v8530
    %v8534 = vadd.f32 %v8525, %v8530
    %v8535 = vmax.f32 %v8531, 0.0
    %v8536 = vmax.f32 %v8532, 0.0
    %v8537 = vmax.f32 %v8533, 0.0
    %v8538 = vmax.f32 %v8534, 0.0
    %v8539 = vld [vmem:[#allocation13] sm:$0xff]
    %v8540 = vld [vmem:[#allocation13 + $0x8] sm:$0xff]
    %v8541 = vld [vmem:[#allocation13 + $0x10] sm:$0xff]
    %v8542 = vld [vmem:[#allocation13 + $0x18] sm:$0xff]
    %v8543 = vld [vmem:[#allocation13 + $0x20] sm:$0xff]
    %v8544 = vld [vmem:[#allocation13 + $0x28] sm:$0xff]
    %v8545 = vld [vmem:[#allocation13 + $0x30] sm:$0xff]
    %v8546 = vld [vmem:[#allocation13 + $0x38] sm:$0xff]
    %v8547 = vld [vmem:[#allocation13 + $0x40] sm:$0xff]
    %v8548 = vld [vmem:[#allocation13 + $0x48] sm:$0xff]
    %v8549 = vld [vmem:[#allocation13 + $0x50] sm:$0xff]
    %v8550 = vld [vmem:[#allocation13 + $0x58] sm:$0xff]
    %v8551 = vld [vmem:[#allocation13 + $0x60] sm:$0xff]
    %v8552 = vld [vmem:[#allocation13 + $0x68] sm:$0xff]
    %v8553 = vld [vmem:[#allocation13 + $0x70] sm:$0xff]
    %v8554 = vld [vmem:[#allocation13 + $0x78] sm:$0xff]
    %v8555 = vld [vmem:[#allocation15 + $0x1] sm:$0x1]
    %v8556 = vlaneseq
    %v8557 = vshrl.u32 %v8556, 7
    %v8558 = vsub.s32 0, %v8557
    %v8559 = vrot.slane %v8555, %v8558
    %8560 = vmatprep.subr.mxu0 0.0
    %8561 = vmatpush1.msra.mxu0 %v8539
    %8562 = vmatprep.subr.mxu0 0.0
    %8563 = vmatpush1.msra.mxu0 %v8540
    %8564 = vmatprep.subr.mxu0 0.0
    %8565 = vmatpush1.msra.mxu0 %v8541
    %8566 = vmatprep.subr.mxu0 0.0
    %8567 = vmatpush1.msra.mxu0 %v8542
    %8568 = vmatprep.subr.mxu0 0.0
    %8569 = vmatpush1.msra.mxu0 %v8543
    %8570 = vmatprep.subr.mxu0 0.0
    %8571 = vmatpush1.msra.mxu0 %v8544
    %8572 = vmatprep.subr.mxu0 0.0
    %8573 = vmatpush1.msra.mxu0 %v8545
    %8574 = vmatprep.subr.mxu0 0.0
    %8575 = vmatpush1.msra.mxu0 %v8546
    %8576 = vmatprep.subr.mxu0 0.0
    %8577 = vmatpush1.msra.mxu0 %v8547
    %8578 = vmatprep.subr.mxu0 0.0
    %8579 = vmatpush1.msra.mxu0 %v8548
    %8580 = vmatprep.subr.mxu0 0.0
    %8581 = vmatpush1.msra.mxu0 %v8549
    %8582 = vmatprep.subr.mxu0 0.0
    %8583 = vmatpush1.msra.mxu0 %v8550
    %8584 = vmatprep.subr.mxu0 0.0
    %8585 = vmatpush1.msra.mxu0 %v8551
    %8586 = vmatprep.subr.mxu0 0.0
    %8587 = vmatpush1.msra.mxu0 %v8552
    %8588 = vmatprep.subr.mxu0 0.0
    %8589 = vmatpush1.msra.mxu0 %v8553
    %8590 = vmatprep.subr.mxu0 0.0
    %8591 = vmatpush1.msra.mxu0 %v8554
    %8592 = vmatprep.subr.mxu0 0.0
    %8593 = vmatpush1.msra.mxu0 0.0
    %8594 = vmatprep.subr.mxu0 0.0
    %8595 = vmatpush1.msra.mxu0 0.0
    %8596 = vmatprep.subr.mxu0 0.0
    %8597 = vmatpush1.msra.mxu0 0.0
    %8598 = vmatprep.subr.mxu0 0.0
    %8599 = vmatpush1.msra.mxu0 0.0
    %8600 = vmatprep.subr.mxu0 0.0
    %8601 = vmatpush1.msra.mxu0 0.0
    %8602 = vmatprep.subr.mxu0 0.0
    %8603 = vmatpush1.msra.mxu0 0.0
    %8604 = vmatprep.subr.mxu0 0.0
    %8605 = vmatpush1.msra.mxu0 0.0
    %8606 = vmatprep.subr.mxu0 0.0
    %8607 = vmatpush1.msra.mxu0 0.0
    %8608 = vmatprep.subr.mxu0 0.0
    %8609 = vmatpush1.msra.mxu0 0.0
    %8610 = vmatprep.subr.mxu0 0.0
    %8611 = vmatpush1.msra.mxu0 0.0
    %8612 = vmatprep.subr.mxu0 0.0
    %8613 = vmatpush1.msra.mxu0 0.0
    %8614 = vmatprep.subr.mxu0 0.0
    %8615 = vmatpush1.msra.mxu0 0.0
    %8616 = vmatprep.subr.mxu0 0.0
    %8617 = vmatpush1.msra.mxu0 0.0
    %8618 = vmatprep.subr.mxu0 0.0
    %8619 = vmatpush1.msra.mxu0 0.0
    %8620 = vmatprep.subr.mxu0 0.0
    %8621 = vmatpush1.msra.mxu0 0.0
    %8622 = vmatprep.subr.mxu0 0.0
    %8623 = vmatpush1.msra.mxu0 0.0
    %8624 = vmatprep.mubr.f32.mxu0 0.0
    %8625 = vmatmul.mubr.f32.gmra.mrb[0].mxu0 %v8535
    %v8626 = vpop.f32.mrb[0].mxu0
    %v8627 = vadd.f32 %v8559, %v8626
    %v8628 = vpop.f32.mrb[0].mxu0
    %8629 = vmatprep.mubr.f32.mxu0 0.0
    %8630 = vmatmul.mubr.f32.gmra.mrb[0].mxu0 %v8536
    %v8631 = vpop.f32.mrb[0].mxu0
    %v8632 = vadd.f32 %v8559, %v8631
    %v8633 = vpop.f32.mrb[0].mxu0
    %8634 = vmatprep.mubr.f32.mxu0 0.0
    %8635 = vmatmul.mubr.f32.gmra.mrb[0].mxu0 %v8537
    %v8636 = vpop.f32.mrb[0].mxu0
    %v8637 = vadd.f32 %v8559, %v8636
    %v8638 = vpop.f32.mrb[0].mxu0
    %8639 = vmatprep.mubr.f32.mxu0 0.0
    %8640 = vmatmul.mubr.f32.gmra.mrb[0].mxu0 %v8538
    %v8641 = vpop.f32.mrb[0].mxu0
    %v8642 = vadd.f32 %v8559, %v8641
    %v8643 = vpop.f32.mrb[0].mxu0
    %8644 = vdwg.mxu0
    %v8645 = vmax.f32 %v8627, 0.0
    %v8646 = vmax.f32 %v8632, 0.0
    %v8647 = vmax.f32 %v8637, 0.0
    %v8648 = vmax.f32 %v8642, 0.0
    %v8649 = vld [vmem:[%s9] sm:$0xff]
    %v8650 = vld [vmem:[%s9 + $0x8] sm:$0xff]
    %v8651 = vld [vmem:[%s9 + $0x10] sm:$0xff]
    %v8652 = vld [vmem:[%s9 + $0x18] sm:$0xff]
    %v8653 = vld [vmem:[%s9 + $0x20] sm:$0xff]
    %v8654 = vld [vmem:[%s9 + $0x28] sm:$0xff]
    %v8655 = vld [vmem:[%s9 + $0x30] sm:$0xff]
    %v8656 = vld [vmem:[%s9 + $0x38] sm:$0xff]
    %v8657 = vld [vmem:[%s9 + $0x40] sm:$0xff]
    %v8658 = vld [vmem:[%s9 + $0x48] sm:$0xff]
    %v8659 = vld [vmem:[%s9 + $0x50] sm:$0xff]
    %v8660 = vld [vmem:[%s9 + $0x58] sm:$0xff]
    %v8661 = vld [vmem:[%s9 + $0x60] sm:$0xff]
    %v8662 = vld [vmem:[%s9 + $0x68] sm:$0xff]
    %v8663 = vld [vmem:[%s9 + $0x70] sm:$0xff]
    %v8664 = vld [vmem:[%s9 + $0x78] sm:$0xff]
    %v8665 = vld [vmem:[#allocation15 + $0x2] sm:$0x1]
    %v8666 = vlaneseq
    %v8667 = vshrl.u32 %v8666, 7
    %v8668 = vsub.s32 0, %v8667
    %v8669 = vrot.slane %v8665, %v8668
    %8670 = vmatprep.subr.mxu0 0.0
    %8671 = vmatpush1.msra.mxu0 %v8649
    %8672 = vmatprep.subr.mxu0 0.0
    %8673 = vmatpush1.msra.mxu0 %v8650
    %8674 = vmatprep.subr.mxu0 0.0
    %8675 = vmatpush1.msra.mxu0 %v8651
    %8676 = vmatprep.subr.mxu0 0.0
    %8677 = vmatpush1.msra.mxu0 %v8652
    %8678 = vmatprep.subr.mxu0 0.0
    %8679 = vmatpush1.msra.mxu0 %v8653
    %8680 = vmatprep.subr.mxu0 0.0
    %8681 = vmatpush1.msra.mxu0 %v8654
    %8682 = vmatprep.subr.mxu0 0.0
    %8683 = vmatpush1.msra.mxu0 %v8655
    %8684 = vmatprep.subr.mxu0 0.0
    %8685 = vmatpush1.msra.mxu0 %v8656
    %8686 = vmatprep.subr.mxu0 0.0
    %8687 = vmatpush1.msra.mxu0 %v8657
    %8688 = vmatprep.subr.mxu0 0.0
    %8689 = vmatpush1.msra.mxu0 %v8658
    %8690 = vmatprep.subr.mxu0 0.0
    %8691 = vmatpush1.msra.mxu0 %v8659
    %8692 = vmatprep.subr.mxu0 0.0
    %8693 = vmatpush1.msra.mxu0 %v8660
    %8694 = vmatprep.subr.mxu0 0.0
    %8695 = vmatpush1.msra.mxu0 %v8661
    %8696 = vmatprep.subr.mxu0 0.0
    %8697 = vmatpush1.msra.mxu0 %v8662
    %8698 = vmatprep.subr.mxu0 0.0
    %8699 = vmatpush1.msra.mxu0 %v8663
    %8700 = vmatprep.subr.mxu0 0.0
    %8701 = vmatpush1.msra.mxu0 %v8664
    %8702 = vmatprep.subr.mxu0 0.0
    %8703 = vmatpush1.msra.mxu0 0.0
    %8704 = vmatprep.subr.mxu0 0.0
    %8705 = vmatpush1.msra.mxu0 0.0
    %8706 = vmatprep.subr.mxu0 0.0
    %8707 = vmatpush1.msra.mxu0 0.0
    %8708 = vmatprep.subr.mxu0 0.0
    %8709 = vmatpush1.msra.mxu0 0.0
    %8710 = vmatprep.subr.mxu0 0.0
    %8711 = vmatpush1.msra.mxu0 0.0
    %8712 = vmatprep.subr.mxu0 0.0
    %8713 = vmatpush1.msra.mxu0 0.0
    %8714 = vmatprep.subr.mxu0 0.0
    %8715 = vmatpush1.msra.mxu0 0.0
    %8716 = vmatprep.subr.mxu0 0.0
    %8717 = vmatpush1.msra.mxu0 0.0
    %8718 = vmatprep.subr.mxu0 0.0
    %8719 = vmatpush1.msra.mxu0 0.0
    %8720 = vmatprep.subr.mxu0 0.0
    %8721 = vmatpush1.msra.mxu0 0.0
    %8722 = vmatprep.subr.mxu0 0.0
    %8723 = vmatpush1.msra.mxu0 0.0
    %8724 = vmatprep.subr.mxu0 0.0
    %8725 = vmatpush1.msra.mxu0 0.0
    %8726 = vmatprep.subr.mxu0 0.0
    %8727 = vmatpush1.msra.mxu0 0.0
    %8728 = vmatprep.subr.mxu0 0.0
    %8729 = vmatpush1.msra.mxu0 0.0
    %8730 = vmatprep.subr.mxu0 0.0
    %8731 = vmatpush1.msra.mxu0 0.0
    %8732 = vmatprep.subr.mxu0 0.0
    %8733 = vmatpush1.msra.mxu0 0.0
    %8734 = vmatprep.mubr.f32.mxu0 0.0
    %8735 = vmatmul.mubr.f32.gmra.mrb[0].mxu0 %v8645
    %v8736 = vpop.f32.mrb[0].mxu0
    %v8737 = vadd.f32 %v8669, %v8736
    %v8738 = vpop.f32.mrb[0].mxu0
    %8739 = vmatprep.mubr.f32.mxu0 0.0
    %8740 = vmatmul.mubr.f32.gmra.mrb[0].mxu0 %v8646
    %v8741 = vpop.f32.mrb[0].mxu0
    %v8742 = vadd.f32 %v8669, %v8741
    %v8743 = vpop.f32.mrb[0].mxu0
    %8744 = vmatprep.mubr.f32.mxu0 0.0
    %8745 = vmatmul.mubr.f32.gmra.mrb[0].mxu0 %v8647
    %v8746 = vpop.f32.mrb[0].mxu0
    %v8747 = vadd.f32 %v8669, %v8746
    %v8748 = vpop.f32.mrb[0].mxu0
    %8749 = vmatprep.mubr.f32.mxu0 0.0
    %8750 = vmatmul.mubr.f32.gmra.mrb[0].mxu0 %v8648
    %v8751 = vpop.f32.mrb[0].mxu0
    %v8752 = vadd.f32 %v8669, %v8751
    %v8753 = vpop.f32.mrb[0].mxu0
    %8754 = vdwg.mxu0
    %vm8755 = vcmask 64512
    %8756 = vst.msk [vmem:[%s11] sm:$0xff] %vm8755, %v8737
    %8757 = vst.msk [vmem:[%s11 + $0x8] sm:$0xff] %vm8755, %v8742
    %8758 = vst.msk [vmem:[%s11 + $0x10] sm:$0xff] %vm8755, %v8747
    %8759 = vst.msk [vmem:[%s11 + $0x18] sm:$0xff] %vm8755, %v8752
    // Predicated region
    $region82: #{tpu_custom_call.1} parent=1 // pred_check
      _
    $region83: #{tpu_custom_call.1} parent=1 // pred_check_branch
      %8761 = sbr.rel (0) target = $region85
    $region84: #{tpu_custom_call.1} parent=1 // pred_region
      _
    $region85: #{tpu_custom_call.1} parent=1 // pred_fallthru
      _
    // Predicated region
    $region86: #{tpu_custom_call.1} parent=1 // pred_check
      _
    $region87: #{tpu_custom_call.1} parent=1 // pred_check_branch
      %8763 = sbr.rel (0) target = $region89
    $region88: #{tpu_custom_call.1} parent=1 // pred_region
      _
    $region89: #{tpu_custom_call.1} parent=1 // pred_fallthru
      _
    %8764 = vsyncpa [#allocation3], 1
    %8765 = vsyncpa [#allocation5], 1
    %8766 = vsyncpa [#allocation8], 1
    %8767 = vsyncpa [#allocation11], 1
    %8768 = vsyncpa [#allocation14], 1

</llo_original>
